<compile_context>
chip_gen: v7x
topology: tpu7x:2x2x1
jax: 0.10.0
libtpu: 0.0.40
codegen_flags: <defaults>
</compile_context>

<pallas_src>
import functools

import jax
import jax.numpy as jnp
import numpy as np
from jax.experimental import pallas as pl
from jax.experimental.pallas import tpu as pltpu


# ----------------------------------------------------------------------------
# Trace-time numpy constants (boundary masks, pooling selection matrices)
# ----------------------------------------------------------------------------
def _conv_masks(H, W):
    """(H*W, 9) validity mask for the 9 (dy, dx) taps of a 3x3, pad=1 window."""
    M = H * W
    m = np.zeros((M, 9), np.float32)
    for r in range(M):
        y, x = divmod(r, W)
        for dy in range(3):
            for dx in range(3):
                yy, xx = y + dy - 1, x + dx - 1
                if 0 <= yy < H and 0 <= xx < W:
                    m[r, 3 * dy + dx] = 1.0
    return m


def _pool_select(H, W):
    """0/1 matrix selecting the even (y, x) rows: stride-2 subsample as matmul."""
    Ho, Wo = H // 2, W // 2
    S = np.zeros((Ho * Wo, H * W), np.float32)
    for i in range(Ho):
        for j in range(Wo):
            S[i * Wo + j, (2 * i) * W + (2 * j)] = 1.0
    return S


def _const_spec(a):
    """Whole-array block, same block for every grid step (weights/constants)."""
    zeros = (0,) * a.ndim
    return pl.BlockSpec(a.shape, lambda n, _z=zeros: _z)


# ----------------------------------------------------------------------------
# The fused forward kernel (one image per grid step)
# ----------------------------------------------------------------------------
def _forward_kernel(
    x_ref, m0_ref, m1_ref, m2_ref, s1_ref, s2_ref, s3_ref, avg_ref,
    c1w_ref, c1b_ref, c2w_ref, c2b_ref,
    aw_red_ref, ab_red_ref, aw22_ref, ab22_ref, aw32_ref, ab32_ref,
    aw33_ref, ab33_ref, aw42_ref, ab42_ref, abns_ref, abnb_ref,
    bw_red_ref, bb_red_ref, bw22_ref, bb22_ref, bw32_ref, bb32_ref,
    bw33_ref, bb33_ref, bw42_ref, bb42_ref, bbns_ref, bbnb_ref,
    f1w_ref, f1b_ref, f2w_ref, f2b_ref,
    o_ref, *, H0, W0, sa, sb):
    f32 = jnp.float32
    NEG = jnp.float32(-1e30)

    def mm(a, w_ref, b_ref, relu):
        # bf16 MXU operands, f32 accumulation, f32 bias + ReLU epilogue.
        y = jnp.dot(a.astype(jnp.bfloat16), w_ref[...],
                    preferred_element_type=f32) + b_ref[...]
        return jnp.maximum(y, 0.0) if relu else y

    def shifted(a, s, M):
        # output row r <- input row r + s; circular roll (XLU), boundary rows
        # are handled by the static masks of the caller.
        return a if s == 0 else pltpu.roll(a, (-s) % M, axis=0)

    def conv3x3(a, w_ref, b_ref, masks, H, W, relu=True):
        # In-kernel im2col: lane-concatenate the 9 masked taps -> one
        # (H*W, 9*C) lane-dense MXU matmul.
        M = H * W
        taps = []
        for dy in range(3):
            for dx in range(3):
                s = (dy - 1) * W + (dx - 1)
                xs = shifted(a, s, M)
                if dy == 1 and dx == 1:               # centre tap always valid
                    taps.append(xs)
                else:
                    k = 3 * dy + dx
                    taps.append(xs * masks[:, k:k + 1])
        return mm(jnp.concatenate(taps, axis=-1), w_ref, b_ref, relu)

    def maxpool3x3(a, masks, H, W):
        # Separable 3x3 / stride-1 / pad-1 max pool (PyTorch pads with -inf):
        # vertical max over row shifts, then horizontal max over col shifts.
        # Out-of-range taps are forced to -inf; the always-valid centre tap
        # guarantees the padding never wins.
        M = H * W
        v = jnp.maximum(
            jnp.where(masks[:, 1:2] > 0.5, shifted(a, -W, M), NEG),
            jnp.where(masks[:, 7:8] > 0.5, shifted(a, W, M), NEG))
        v = jnp.maximum(v, a)
        h = jnp.maximum(
            jnp.where(masks[:, 3:4] > 0.5, shifted(v, -1, M), NEG),
            jnp.where(masks[:, 5:6] > 0.5, shifted(v, 1, M), NEG))
        return jnp.maximum(h, v)

    def pool_s2(a, masks, sel_ref, H, W, exact):
        # k=3 / stride=2 / pad=1 pool == dense stride-1 pool sampled at even
        # (y, x); the subsample is a tiny one-hot selection matmul.
        p = maxpool3x3(a, masks, H, W)
        if exact:                                     # f32 select (feeds avg-pool)
            return jnp.dot(sel_ref[...], p, preferred_element_type=f32)
        # bf16 select: 0/1 selector exact in bf16; selected activations feed a
        # conv that would bf16-cast them anyway -> same values, 3x cheaper.
        return jnp.dot(sel_ref[...], p.astype(jnp.bfloat16),
                       preferred_element_type=f32)

    def inception(a, masks, H, W, c1, c2, wred, bred, w22, b22, w32, b32,
                  w33, b33, w42, b42, bns, bnb):
        red = mm(a, wred, bred, relu=True)            # merged 1x1 reductions
        br1 = red[:, :c1]
        br2 = conv3x3(red[:, c1:c1 + c2], w22, b22, masks, H, W)
        br3 = conv3x3(red[:, c1 + c2:], w32, b32, masks, H, W)
        br3 = conv3x3(br3, w33, b33, masks, H, W)
        br4 = mm(maxpool3x3(a, masks, H, W), w42, b42, relu=True)
        cat = jnp.concatenate([br1, br2, br3, br4], axis=-1)
        return jnp.maximum(cat * bns[...] + bnb[...], 0.0)   # post-concat BN+ReLU

    H1, W1 = H0 // 2, W0 // 2
    H2, W2 = H1 // 2, W1 // 2
    m0, m1, m2 = m0_ref[...], m1_ref[...], m2_ref[...]

    x = x_ref[...]                                            # (H0*W0, 1)
    x = conv3x3(x, c1w_ref, c1b_ref, m0, H0, W0)              # conv1 (+bn1 folded) + relu
    x = pool_s2(x, m0, s1_ref, H0, W0, exact=False)           # pool1
    x = conv3x3(x, c2w_ref, c2b_ref, m1, H1, W1)              # conv2 (+bn2 folded) + relu
    x = pool_s2(x, m1, s2_ref, H1, W1, exact=False)           # pool2

    x = inception(x, m2, H2, W2, sa[0], sa[1],
                  aw_red_ref, ab_red_ref, aw22_ref, ab22_ref, aw32_ref,
                  ab32_ref, aw33_ref, ab33_ref, aw42_ref, ab42_ref,
                  abns_ref, abnb_ref)                         # inception3a
    x = inception(x, m2, H2, W2, sb[0], sb[1],
                  bw_red_ref, bb_red_ref, bw22_ref, bb22_ref, bw32_ref,
                  bb32_ref, bw33_ref, bb33_ref, bw42_ref, bb42_ref,
                  bbns_ref, bbnb_ref)                         # inception3b

    x = pool_s2(x, m2, s3_ref, H2, W2, exact=True)            # pool3 -> (H3*W3, 352)

    # Global average pool as a tiny matmul; result replicated to 8 rows so the
    # FC matmuls and the output store stay sublane-aligned.
    feat = jnp.dot(avg_ref[...], x, preferred_element_type=f32)   # (8, 352)
    # dropout: identity in eval mode
    h = mm(feat, f1w_ref, f1b_ref, relu=True)                 # fc1 + relu
    # dropout: identity in eval mode
    logits = mm(h, f2w_ref, f2b_ref, relu=False)              # fc2
    o_ref[...] = logits[None, :, :]                           # (1, 8, num_classes)


# ----------------------------------------------------------------------------
# Host-side weight preparation (BN folding, bf16 MXU layouts)
# ----------------------------------------------------------------------------
def bn_fold(bn, eps=1e-5):
    scale = bn["gamma"] / jnp.sqrt(bn["var"] + eps)
    shift = bn["beta"] - bn["mean"] * scale
    return scale, shift


def _prep_conv3x3(w, b, scale_shift=None):
    # w: (Co, Ci, 3, 3) PyTorch layout -> (9*Ci, Co) bf16, rows ordered (ky, kx, ci).
    Co, Ci = w.shape[0], w.shape[1]
    w2 = jnp.transpose(w, (2, 3, 1, 0)).reshape(9 * Ci, Co)
    sh = b
    if scale_shift is not None:                 # fold BN scale into the weights
        scale, shift = scale_shift
        w2 = w2 * scale[None, :]
        sh = b * scale + shift
    return w2.astype(jnp.bfloat16), sh.reshape(1, Co).astype(jnp.float32)


def _prep_conv1x1(w, b):
    Co, Ci = w.shape[0], w.shape[1]
    return (w.reshape(Co, Ci).T.astype(jnp.bfloat16),
            b.reshape(1, Co).astype(jnp.float32))


def _prep_linear(w, b):
    return w.T.astype(jnp.bfloat16), b.reshape(1, -1).astype(jnp.float32)


def _prep_inception(p):
    w1, b1 = _prep_conv1x1(*p["branch1"])
    w21, b21 = _prep_conv1x1(*p["branch2_1"])
    w31, b31 = _prep_conv1x1(*p["branch3_1"])
    # The three 1x1 reductions share the same input -> one lane-dense matmul.
    wred = jnp.concatenate([w1, w21, w31], axis=1)
    bred = jnp.concatenate([b1, b21, b31], axis=1)
    w22, b22 = _prep_conv3x3(*p["branch2_2"])
    w32, b32 = _prep_conv3x3(*p["branch3_2"])
    w33, b33 = _prep_conv3x3(*p["branch3_3"])
    w42, b42 = _prep_conv1x1(*p["branch4_2"])
    scale, shift = bn_fold(p["bn"])
    arrs = [wred, bred, w22, b22, w32, b32, w33, b33, w42, b42,
            scale.reshape(1, -1).astype(jnp.float32),
            shift.reshape(1, -1).astype(jnp.float32)]
    splits = (p["branch1"][0].shape[0], p["branch2_1"][0].shape[0])
    return arrs, splits


# ----------------------------------------------------------------------------
# Forward pass wrapper
# ----------------------------------------------------------------------------
def forward(params, x_nchw):
    N, Cin, H, W = x_nchw.shape
    assert Cin == 1, "conv1 expects a single input channel"
    assert H % 16 == 0 and W % 16 == 0, "need aligned tiles through 3 stride-2 pools"
    num_classes = params["fc2"][0].shape[0]

    H1, W1 = H // 2, W // 2
    H2, W2 = H1 // 2, W1 // 2
    H3, W3 = H2 // 2, W2 // 2

    # NCHW -> channels-last, flattened to (N*H*W, 1) (free row-major reshape).
    x2d = jnp.transpose(x_nchw, (0, 2, 3, 1)).astype(jnp.float32).reshape(N * H * W, Cin)

    # Static trace-time constants: 3x3 boundary masks + stride-2 selection + avg matrix.
    m0 = jnp.asarray(_conv_masks(H, W))
    m1 = jnp.asarray(_conv_masks(H1, W1))
    m2 = jnp.asarray(_conv_masks(H2, W2))
    # pool1/pool2 one-hot selectors in bf16 (exact; selected data goes to bf16 convs).
    s1 = jnp.asarray(_pool_select(H, W)).astype(jnp.bfloat16)
    s2 = jnp.asarray(_pool_select(H1, W1)).astype(jnp.bfloat16)
    s3 = jnp.asarray(_pool_select(H2, W2))                      # f32, exact (feeds avg)
    avg = jnp.full((8, H3 * W3), 1.0 / (H3 * W3), jnp.float32)

    # Weight preparation: BN folded, bf16 MXU matrices, f32 shifts.
    c1w, c1b = _prep_conv3x3(*params["conv1"], scale_shift=bn_fold(params["bn1"]))
    c2w, c2b = _prep_conv3x3(*params["conv2"], scale_shift=bn_fold(params["bn2"]))
    ia, sa = _prep_inception(params["inception3a"])
    ib, sb = _prep_inception(params["inception3b"])
    f1w, f1b = _prep_linear(*params["fc1"])
    f2w, f2b = _prep_linear(*params["fc2"])

    inputs = [x2d, m0, m1, m2, s1, s2, s3, avg,
              c1w, c1b, c2w, c2b, *ia, *ib, f1w, f1b, f2w, f2b]

    in_specs = [pl.BlockSpec((H * W, Cin), lambda n: (n, 0))]   # one image per grid step
    in_specs += [_const_spec(a) for a in inputs[1:]]            # constants: whole arrays

    kernel = functools.partial(_forward_kernel, H0=H, W0=W, sa=sa, sb=sb)

    out = pl.pallas_call(
        kernel,
        grid=(N,),
        out_shape=jax.ShapeDtypeStruct((N, 8, num_classes), jnp.float32),
        in_specs=in_specs,
        out_specs=pl.BlockSpec((1, 8, num_classes), lambda n: (n, 0, 0)),
        compiler_params=pltpu.CompilerParams(
            # batch-parallel grid: v7x's two TensorCores each take images;
            # a short sequential loop on v5e/v6e.
            dimension_semantics=("parallel",)),
    )(*inputs)
    # Each program wrote its logits replicated across the 8-row aligned block.
    return out[:, 0, :]


# ----------------------------------------------------------------------------
# Parameter init (deterministic, PyTorch-like shapes)
# ----------------------------------------------------------------------------
def _init_conv(key, cin, cout, k):
    kw, kb = jax.random.split(key)
    bound = 1.0 / (cin * k * k) ** 0.5
    w = jax.random.uniform(kw, (cout, cin, k, k), jnp.float32, -bound, bound)
    b = jax.random.uniform(kb, (cout,), jnp.float32, -bound, bound)
    return w, b


def _init_linear(key, fin, fout):
    kw, kb = jax.random.split(key)
    bound = 1.0 / fin ** 0.5
    w = jax.random.uniform(kw, (fout, fin), jnp.float32, -bound, bound)
    b = jax.random.uniform(kb, (fout,), jnp.float32, -bound, bound)
    return w, b


def _init_bn(key, c):
    k1, k2, k3, k4 = jax.random.split(key, 4)
    return {
        "gamma": 1.0 + 0.1 * jax.random.normal(k1, (c,), jnp.float32),
        "beta": 0.1 * jax.random.normal(k2, (c,), jnp.float32),
        "mean": 0.1 * jax.random.normal(k3, (c,), jnp.float32),
        "var": 1.0 + 0.1 * jnp.abs(jax.random.normal(k4, (c,), jnp.float32)),
    }


def _init_inception(key, cin, ch1x1, ch3x3red, ch3x3, ch5x5red, ch5x5, pool_proj):
    ks = jax.random.split(key, 9)
    return {
        "branch1": _init_conv(ks[0], cin, ch1x1, 1),
        "branch2_1": _init_conv(ks[1], cin, ch3x3red, 1),
        "branch2_2": _init_conv(ks[2], ch3x3red, ch3x3, 3),
        "branch3_1": _init_conv(ks[3], cin, ch5x5red, 1),
        "branch3_2": _init_conv(ks[4], ch5x5red, ch5x5, 3),
        "branch3_3": _init_conv(ks[5], ch5x5, ch5x5, 3),
        "branch4_2": _init_conv(ks[6], cin, pool_proj, 1),
        "bn": _init_bn(ks[7], ch1x1 + ch3x3 + ch5x5 + pool_proj),
    }


def init_params(key, num_classes):
    ks = jax.random.split(key, 10)
    return {
        "conv1": _init_conv(ks[0], 1, 32, 3),
        "bn1": _init_bn(ks[1], 32),
        "conv2": _init_conv(ks[2], 32, 64, 3),
        "bn2": _init_bn(ks[3], 64),
        "inception3a": _init_inception(ks[4], 64, 64, 48, 64, 16, 32, 32),
        "inception3b": _init_inception(ks[5], 192, 128, 64, 96, 32, 64, 64),
        "fc1": _init_linear(ks[6], 352, 256),
        "fc2": _init_linear(ks[7], 256, num_classes),
    }


if __name__ == "__main__":
    num_classes = 10
    key = jax.random.PRNGKey(0)
    k_params, k_x = jax.random.split(key)

    params = init_params(k_params, num_classes)
    x = jax.random.normal(k_x, (2, 1, 16, 16), jnp.float32)   # NCHW, like PyTorch

    out = jax.jit(forward)(params, x)
    out = jax.block_until_ready(out)

    assert out.shape == (2, num_classes), out.shape
    assert out.dtype == jnp.float32
    assert bool(jnp.isfinite(out).all())
    print("KERNEL_OK")
</pallas_src>

<mosaic_0001>
module attributes {stable_mosaic.version = 11 : i64} {
  func.func @_forward_kernel(%arg0: i32, %arg1: memref<256x1xf32, #tpu.memory_space<vmem>>, %arg2: memref<256x9xf32, #tpu.memory_space<vmem>>, %arg3: memref<64x9xf32, #tpu.memory_space<vmem>>, %arg4: memref<16x9xf32, #tpu.memory_space<vmem>>, %arg5: memref<64x256xbf16, #tpu.memory_space<vmem>>, %arg6: memref<16x64xbf16, #tpu.memory_space<vmem>>, %arg7: memref<4x16xf32, #tpu.memory_space<vmem>>, %arg8: memref<8x4xf32, #tpu.memory_space<vmem>>, %arg9: memref<9x32xbf16, #tpu.memory_space<vmem>>, %arg10: memref<1x32xf32, #tpu.memory_space<vmem>>, %arg11: memref<288x64xbf16, #tpu.memory_space<vmem>>, %arg12: memref<1x64xf32, #tpu.memory_space<vmem>>, %arg13: memref<64x128xbf16, #tpu.memory_space<vmem>>, %arg14: memref<1x128xf32, #tpu.memory_space<vmem>>, %arg15: memref<432x64xbf16, #tpu.memory_space<vmem>>, %arg16: memref<1x64xf32, #tpu.memory_space<vmem>>, %arg17: memref<144x32xbf16, #tpu.memory_space<vmem>>, %arg18: memref<1x32xf32, #tpu.memory_space<vmem>>, %arg19: memref<288x32xbf16, #tpu.memory_space<vmem>>, %arg20: memref<1x32xf32, #tpu.memory_space<vmem>>, %arg21: memref<64x32xbf16, #tpu.memory_space<vmem>>, %arg22: memref<1x32xf32, #tpu.memory_space<vmem>>, %arg23: memref<1x192xf32, #tpu.memory_space<vmem>>, %arg24: memref<1x192xf32, #tpu.memory_space<vmem>>, %arg25: memref<192x224xbf16, #tpu.memory_space<vmem>>, %arg26: memref<1x224xf32, #tpu.memory_space<vmem>>, %arg27: memref<576x96xbf16, #tpu.memory_space<vmem>>, %arg28: memref<1x96xf32, #tpu.memory_space<vmem>>, %arg29: memref<288x64xbf16, #tpu.memory_space<vmem>>, %arg30: memref<1x64xf32, #tpu.memory_space<vmem>>, %arg31: memref<576x64xbf16, #tpu.memory_space<vmem>>, %arg32: memref<1x64xf32, #tpu.memory_space<vmem>>, %arg33: memref<192x64xbf16, #tpu.memory_space<vmem>>, %arg34: memref<1x64xf32, #tpu.memory_space<vmem>>, %arg35: memref<1x352xf32, #tpu.memory_space<vmem>>, %arg36: memref<1x352xf32, #tpu.memory_space<vmem>>, %arg37: memref<352x256xbf16, #tpu.memory_space<vmem>>, %arg38: memref<1x256xf32, #tpu.memory_space<vmem>>, %arg39: memref<256x10xbf16, #tpu.memory_space<vmem>>, %arg40: memref<1x10xf32, #tpu.memory_space<vmem>>, %arg41: memref<1x8x10xf32, #tpu.memory_space<vmem>>) attributes {dimension_semantics = [#tpu.dimension_semantics<parallel>], iteration_bounds = array<i64: 2>, scalar_prefetch = 0 : i64, scratch_operands = 0 : i64, tpu.core_type = #tpu.core_type<tc>, window_params = [{transform_indices = @transform_0, window_bounds = array<i64: 256, 1>}, {pipeline_mode = #tpu.pipeline_mode<synchronous>, transform_indices = @transform_1, window_bounds = array<i64: 256, 9>}, {pipeline_mode = #tpu.pipeline_mode<synchronous>, transform_indices = @transform_2, window_bounds = array<i64: 64, 9>}, {pipeline_mode = #tpu.pipeline_mode<synchronous>, transform_indices = @transform_3, window_bounds = array<i64: 16, 9>}, {pipeline_mode = #tpu.pipeline_mode<synchronous>, transform_indices = @transform_4, window_bounds = array<i64: 64, 256>}, {pipeline_mode = #tpu.pipeline_mode<synchronous>, transform_indices = @transform_5, window_bounds = array<i64: 16, 64>}, {pipeline_mode = #tpu.pipeline_mode<synchronous>, transform_indices = @transform_6, window_bounds = array<i64: 4, 16>}, {pipeline_mode = #tpu.pipeline_mode<synchronous>, transform_indices = @transform_7, window_bounds = array<i64: 8, 4>}, {pipeline_mode = #tpu.pipeline_mode<synchronous>, transform_indices = @transform_8, window_bounds = array<i64: 9, 32>}, {pipeline_mode = #tpu.pipeline_mode<synchronous>, transform_indices = @transform_9, window_bounds = array<i64: 1, 32>}, {pipeline_mode = #tpu.pipeline_mode<synchronous>, transform_indices = @transform_10, window_bounds = array<i64: 288, 64>}, {pipeline_mode = #tpu.pipeline_mode<synchronous>, transform_indices = @transform_11, window_bounds = array<i64: 1, 64>}, {pipeline_mode = #tpu.pipeline_mode<synchronous>, transform_indices = @transform_12, window_bounds = array<i64: 64, 128>}, {pipeline_mode = #tpu.pipeline_mode<synchronous>, transform_indices = @transform_13, window_bounds = array<i64: 1, 128>}, {pipeline_mode = #tpu.pipeline_mode<synchronous>, transform_indices = @transform_14, window_bounds = array<i64: 432, 64>}, {pipeline_mode = #tpu.pipeline_mode<synchronous>, transform_indices = @transform_15, window_bounds = array<i64: 1, 64>}, {pipeline_mode = #tpu.pipeline_mode<synchronous>, transform_indices = @transform_16, window_bounds = array<i64: 144, 32>}, {pipeline_mode = #tpu.pipeline_mode<synchronous>, transform_indices = @transform_17, window_bounds = array<i64: 1, 32>}, {pipeline_mode = #tpu.pipeline_mode<synchronous>, transform_indices = @transform_18, window_bounds = array<i64: 288, 32>}, {pipeline_mode = #tpu.pipeline_mode<synchronous>, transform_indices = @transform_19, window_bounds = array<i64: 1, 32>}, {pipeline_mode = #tpu.pipeline_mode<synchronous>, transform_indices = @transform_20, window_bounds = array<i64: 64, 32>}, {pipeline_mode = #tpu.pipeline_mode<synchronous>, transform_indices = @transform_21, window_bounds = array<i64: 1, 32>}, {pipeline_mode = #tpu.pipeline_mode<synchronous>, transform_indices = @transform_22, window_bounds = array<i64: 1, 192>}, {pipeline_mode = #tpu.pipeline_mode<synchronous>, transform_indices = @transform_23, window_bounds = array<i64: 1, 192>}, {pipeline_mode = #tpu.pipeline_mode<synchronous>, transform_indices = @transform_24, window_bounds = array<i64: 192, 224>}, {pipeline_mode = #tpu.pipeline_mode<synchronous>, transform_indices = @transform_25, window_bounds = array<i64: 1, 224>}, {pipeline_mode = #tpu.pipeline_mode<synchronous>, transform_indices = @transform_26, window_bounds = array<i64: 576, 96>}, {pipeline_mode = #tpu.pipeline_mode<synchronous>, transform_indices = @transform_27, window_bounds = array<i64: 1, 96>}, {pipeline_mode = #tpu.pipeline_mode<synchronous>, transform_indices = @transform_28, window_bounds = array<i64: 288, 64>}, {pipeline_mode = #tpu.pipeline_mode<synchronous>, transform_indices = @transform_29, window_bounds = array<i64: 1, 64>}, {pipeline_mode = #tpu.pipeline_mode<synchronous>, transform_indices = @transform_30, window_bounds = array<i64: 576, 64>}, {pipeline_mode = #tpu.pipeline_mode<synchronous>, transform_indices = @transform_31, window_bounds = array<i64: 1, 64>}, {pipeline_mode = #tpu.pipeline_mode<synchronous>, transform_indices = @transform_32, window_bounds = array<i64: 192, 64>}, {pipeline_mode = #tpu.pipeline_mode<synchronous>, transform_indices = @transform_33, window_bounds = array<i64: 1, 64>}, {pipeline_mode = #tpu.pipeline_mode<synchronous>, transform_indices = @transform_34, window_bounds = array<i64: 1, 352>}, {pipeline_mode = #tpu.pipeline_mode<synchronous>, transform_indices = @transform_35, window_bounds = array<i64: 1, 352>}, {pipeline_mode = #tpu.pipeline_mode<synchronous>, transform_indices = @transform_36, window_bounds = array<i64: 352, 256>}, {pipeline_mode = #tpu.pipeline_mode<synchronous>, transform_indices = @transform_37, window_bounds = array<i64: 1, 256>}, {pipeline_mode = #tpu.pipeline_mode<synchronous>, transform_indices = @transform_38, window_bounds = array<i64: 256, 10>}, {pipeline_mode = #tpu.pipeline_mode<synchronous>, transform_indices = @transform_39, window_bounds = array<i64: 1, 10>}, {transform_indices = @transform_40, window_bounds = array<i64: 1, 8, 10>}]} {
    %c0 = arith.constant 0 : index
    %c0_0 = arith.constant 0 : index
    %0 = vector.load %arg2[%c0, %c0_0] : memref<256x9xf32, #tpu.memory_space<vmem>>, vector<256x9xf32>
    %c0_1 = arith.constant 0 : index
    %c0_2 = arith.constant 0 : index
    %1 = vector.load %arg3[%c0_1, %c0_2] : memref<64x9xf32, #tpu.memory_space<vmem>>, vector<64x9xf32>
    %c0_3 = arith.constant 0 : index
    %c0_4 = arith.constant 0 : index
    %2 = vector.load %arg4[%c0_3, %c0_4] : memref<16x9xf32, #tpu.memory_space<vmem>>, vector<16x9xf32>
    %c0_5 = arith.constant 0 : index
    %c0_6 = arith.constant 0 : index
    %3 = vector.load %arg1[%c0_5, %c0_6] : memref<256x1xf32, #tpu.memory_space<vmem>>, vector<256x1xf32>
    %c17_i32 = arith.constant 17 : i32
    %4 = tpu.dynamic_rotate %3 by %c17_i32 dim 0 : vector<256x1xf32>, i32 -> vector<256x1xf32>
    %5 = vector.extract_strided_slice %0 {offsets = [0, 0], sizes = [256, 1], strides = [1, 1]} : vector<256x9xf32> to vector<256x1xf32>
    %6 = arith.mulf %4, %5 : vector<256x1xf32>
    %c16_i32 = arith.constant 16 : i32
    %7 = tpu.dynamic_rotate %3 by %c16_i32 dim 0 : vector<256x1xf32>, i32 -> vector<256x1xf32>
    %8 = vector.extract_strided_slice %0 {offsets = [0, 1], sizes = [256, 1], strides = [1, 1]} : vector<256x9xf32> to vector<256x1xf32>
    %9 = arith.mulf %7, %8 : vector<256x1xf32>
    %c15_i32 = arith.constant 15 : i32
    %10 = tpu.dynamic_rotate %3 by %c15_i32 dim 0 : vector<256x1xf32>, i32 -> vector<256x1xf32>
    %11 = vector.extract_strided_slice %0 {offsets = [0, 2], sizes = [256, 1], strides = [1, 1]} : vector<256x9xf32> to vector<256x1xf32>
    %12 = arith.mulf %10, %11 : vector<256x1xf32>
    %c1_i32 = arith.constant 1 : i32
    %13 = tpu.dynamic_rotate %3 by %c1_i32 dim 0 : vector<256x1xf32>, i32 -> vector<256x1xf32>
    %14 = vector.extract_strided_slice %0 {offsets = [0, 3], sizes = [256, 1], strides = [1, 1]} : vector<256x9xf32> to vector<256x1xf32>
    %15 = arith.mulf %13, %14 : vector<256x1xf32>
    %c255_i32 = arith.constant 255 : i32
    %16 = tpu.dynamic_rotate %3 by %c255_i32 dim 0 : vector<256x1xf32>, i32 -> vector<256x1xf32>
    %17 = vector.extract_strided_slice %0 {offsets = [0, 5], sizes = [256, 1], strides = [1, 1]} : vector<256x9xf32> to vector<256x1xf32>
    %18 = arith.mulf %16, %17 : vector<256x1xf32>
    %c241_i32 = arith.constant 241 : i32
    %19 = tpu.dynamic_rotate %3 by %c241_i32 dim 0 : vector<256x1xf32>, i32 -> vector<256x1xf32>
    %20 = vector.extract_strided_slice %0 {offsets = [0, 6], sizes = [256, 1], strides = [1, 1]} : vector<256x9xf32> to vector<256x1xf32>
    %21 = arith.mulf %19, %20 : vector<256x1xf32>
    %c240_i32 = arith.constant 240 : i32
    %22 = tpu.dynamic_rotate %3 by %c240_i32 dim 0 : vector<256x1xf32>, i32 -> vector<256x1xf32>
    %23 = vector.extract_strided_slice %0 {offsets = [0, 7], sizes = [256, 1], strides = [1, 1]} : vector<256x9xf32> to vector<256x1xf32>
    %24 = arith.mulf %22, %23 : vector<256x1xf32>
    %c239_i32 = arith.constant 239 : i32
    %25 = tpu.dynamic_rotate %3 by %c239_i32 dim 0 : vector<256x1xf32>, i32 -> vector<256x1xf32>
    %26 = vector.extract_strided_slice %0 {offsets = [0, 8], sizes = [256, 1], strides = [1, 1]} : vector<256x9xf32> to vector<256x1xf32>
    %27 = arith.mulf %25, %26 : vector<256x1xf32>
    %28 = tpu.concatenate %6, %9, %12, %15, %3, %18, %21, %24, %27 in 1 : vector<256x1xf32>, vector<256x1xf32>, vector<256x1xf32>, vector<256x1xf32>, vector<256x1xf32>, vector<256x1xf32>, vector<256x1xf32>, vector<256x1xf32>, vector<256x1xf32> -> vector<256x9xf32>
    %29 = arith.truncf %28 : vector<256x9xf32> to vector<256x9xbf16>
    %c0_7 = arith.constant 0 : index
    %c0_8 = arith.constant 0 : index
    %30 = vector.load %arg9[%c0_7, %c0_8] : memref<9x32xbf16, #tpu.memory_space<vmem>>, vector<9x32xbf16>
    %cst = arith.constant dense<0.000000e+00> : vector<256x32xf32>
    %31 = tpu.matmul %29, %30, %cst {dimension_numbers = #tpu.dot_dimension_numbers<[1], [0], [0], [1], [0, 0, 1, 1], [], []>} : vector<256x9xbf16>, vector<9x32xbf16>, vector<256x32xf32> -> vector<256x32xf32>
    %c0_9 = arith.constant 0 : index
    %c0_10 = arith.constant 0 : index
    %32 = vector.load %arg10[%c0_9, %c0_10] : memref<1x32xf32, #tpu.memory_space<vmem>>, vector<1x32xf32>
    %33 = vector.broadcast %32 : vector<1x32xf32> to vector<256x32xf32>
    %34 = arith.addf %31, %33 : vector<256x32xf32>
    %cst_11 = arith.constant 0.000000e+00 : f32
    %35 = vector.broadcast %cst_11 : f32 to vector<256x32xf32>
    %36 = arith.maximumf %34, %35 : vector<256x32xf32>
    %37 = vector.extract_strided_slice %0 {offsets = [0, 1], sizes = [256, 1], strides = [1, 1]} : vector<256x9xf32> to vector<256x1xf32>
    %cst_12 = arith.constant 5.000000e-01 : f32
    %38 = vector.broadcast %cst_12 : f32 to vector<256x1xf32>
    %39 = arith.cmpf ogt, %37, %38 : vector<256x1xf32>
    %c16_i32_13 = arith.constant 16 : i32
    %40 = tpu.dynamic_rotate %36 by %c16_i32_13 dim 0 : vector<256x32xf32>, i32 -> vector<256x32xf32>
    %cst_14 = arith.constant -1.000000e+30 : f32
    %41 = vector.shape_cast %39 : vector<256x1xi1> to vector<256x1xi1>
    %42 = vector.broadcast %41 : vector<256x1xi1> to vector<256x32xi1>
    %43 = vector.broadcast %cst_14 : f32 to vector<256x32xf32>
    %44 = arith.select %42, %40, %43 : vector<256x32xi1>, vector<256x32xf32>
    %45 = vector.extract_strided_slice %0 {offsets = [0, 7], sizes = [256, 1], strides = [1, 1]} : vector<256x9xf32> to vector<256x1xf32>
    %cst_15 = arith.constant 5.000000e-01 : f32
    %46 = vector.broadcast %cst_15 : f32 to vector<256x1xf32>
    %47 = arith.cmpf ogt, %45, %46 : vector<256x1xf32>
    %c240_i32_16 = arith.constant 240 : i32
    %48 = tpu.dynamic_rotate %36 by %c240_i32_16 dim 0 : vector<256x32xf32>, i32 -> vector<256x32xf32>
    %cst_17 = arith.constant -1.000000e+30 : f32
    %49 = vector.shape_cast %47 : vector<256x1xi1> to vector<256x1xi1>
    %50 = vector.broadcast %49 : vector<256x1xi1> to vector<256x32xi1>
    %51 = vector.broadcast %cst_17 : f32 to vector<256x32xf32>
    %52 = arith.select %50, %48, %51 : vector<256x32xi1>, vector<256x32xf32>
    %53 = arith.maximumf %44, %52 : vector<256x32xf32>
    %54 = arith.maximumf %53, %36 : vector<256x32xf32>
    %55 = vector.extract_strided_slice %0 {offsets = [0, 3], sizes = [256, 1], strides = [1, 1]} : vector<256x9xf32> to vector<256x1xf32>
    %cst_18 = arith.constant 5.000000e-01 : f32
    %56 = vector.broadcast %cst_18 : f32 to vector<256x1xf32>
    %57 = arith.cmpf ogt, %55, %56 : vector<256x1xf32>
    %c1_i32_19 = arith.constant 1 : i32
    %58 = tpu.dynamic_rotate %54 by %c1_i32_19 dim 0 : vector<256x32xf32>, i32 -> vector<256x32xf32>
    %cst_20 = arith.constant -1.000000e+30 : f32
    %59 = vector.shape_cast %57 : vector<256x1xi1> to vector<256x1xi1>
    %60 = vector.broadcast %59 : vector<256x1xi1> to vector<256x32xi1>
    %61 = vector.broadcast %cst_20 : f32 to vector<256x32xf32>
    %62 = arith.select %60, %58, %61 : vector<256x32xi1>, vector<256x32xf32>
    %63 = vector.extract_strided_slice %0 {offsets = [0, 5], sizes = [256, 1], strides = [1, 1]} : vector<256x9xf32> to vector<256x1xf32>
    %cst_21 = arith.constant 5.000000e-01 : f32
    %64 = vector.broadcast %cst_21 : f32 to vector<256x1xf32>
    %65 = arith.cmpf ogt, %63, %64 : vector<256x1xf32>
    %c255_i32_22 = arith.constant 255 : i32
    %66 = tpu.dynamic_rotate %54 by %c255_i32_22 dim 0 : vector<256x32xf32>, i32 -> vector<256x32xf32>
    %cst_23 = arith.constant -1.000000e+30 : f32
    %67 = vector.shape_cast %65 : vector<256x1xi1> to vector<256x1xi1>
    %68 = vector.broadcast %67 : vector<256x1xi1> to vector<256x32xi1>
    %69 = vector.broadcast %cst_23 : f32 to vector<256x32xf32>
    %70 = arith.select %68, %66, %69 : vector<256x32xi1>, vector<256x32xf32>
    %71 = arith.maximumf %62, %70 : vector<256x32xf32>
    %72 = arith.maximumf %71, %54 : vector<256x32xf32>
    %c0_24 = arith.constant 0 : index
    %c0_25 = arith.constant 0 : index
    %73 = vector.load %arg5[%c0_24, %c0_25] : memref<64x256xbf16, #tpu.memory_space<vmem>>, vector<64x256xbf16>
    %74 = arith.truncf %72 : vector<256x32xf32> to vector<256x32xbf16>
    %cst_26 = arith.constant dense<0.000000e+00> : vector<64x32xf32>
    %75 = tpu.matmul %73, %74, %cst_26 {dimension_numbers = #tpu.dot_dimension_numbers<[1], [0], [0], [1], [0, 0, 1, 1], [], []>} : vector<64x256xbf16>, vector<256x32xbf16>, vector<64x32xf32> -> vector<64x32xf32>
    %c9_i32 = arith.constant 9 : i32
    %76 = tpu.dynamic_rotate %75 by %c9_i32 dim 0 : vector<64x32xf32>, i32 -> vector<64x32xf32>
    %77 = vector.extract_strided_slice %1 {offsets = [0, 0], sizes = [64, 1], strides = [1, 1]} : vector<64x9xf32> to vector<64x1xf32>
    %78 = vector.broadcast %77 : vector<64x1xf32> to vector<64x32xf32>
    %79 = arith.mulf %76, %78 : vector<64x32xf32>
    %c8_i32 = arith.constant 8 : i32
    %80 = tpu.dynamic_rotate %75 by %c8_i32 dim 0 : vector<64x32xf32>, i32 -> vector<64x32xf32>
    %81 = vector.extract_strided_slice %1 {offsets = [0, 1], sizes = [64, 1], strides = [1, 1]} : vector<64x9xf32> to vector<64x1xf32>
    %82 = vector.broadcast %81 : vector<64x1xf32> to vector<64x32xf32>
    %83 = arith.mulf %80, %82 : vector<64x32xf32>
    %c7_i32 = arith.constant 7 : i32
    %84 = tpu.dynamic_rotate %75 by %c7_i32 dim 0 : vector<64x32xf32>, i32 -> vector<64x32xf32>
    %85 = vector.extract_strided_slice %1 {offsets = [0, 2], sizes = [64, 1], strides = [1, 1]} : vector<64x9xf32> to vector<64x1xf32>
    %86 = vector.broadcast %85 : vector<64x1xf32> to vector<64x32xf32>
    %87 = arith.mulf %84, %86 : vector<64x32xf32>
    %c1_i32_27 = arith.constant 1 : i32
    %88 = tpu.dynamic_rotate %75 by %c1_i32_27 dim 0 : vector<64x32xf32>, i32 -> vector<64x32xf32>
    %89 = vector.extract_strided_slice %1 {offsets = [0, 3], sizes = [64, 1], strides = [1, 1]} : vector<64x9xf32> to vector<64x1xf32>
    %90 = vector.broadcast %89 : vector<64x1xf32> to vector<64x32xf32>
    %91 = arith.mulf %88, %90 : vector<64x32xf32>
    %c63_i32 = arith.constant 63 : i32
    %92 = tpu.dynamic_rotate %75 by %c63_i32 dim 0 : vector<64x32xf32>, i32 -> vector<64x32xf32>
    %93 = vector.extract_strided_slice %1 {offsets = [0, 5], sizes = [64, 1], strides = [1, 1]} : vector<64x9xf32> to vector<64x1xf32>
    %94 = vector.broadcast %93 : vector<64x1xf32> to vector<64x32xf32>
    %95 = arith.mulf %92, %94 : vector<64x32xf32>
    %c57_i32 = arith.constant 57 : i32
    %96 = tpu.dynamic_rotate %75 by %c57_i32 dim 0 : vector<64x32xf32>, i32 -> vector<64x32xf32>
    %97 = vector.extract_strided_slice %1 {offsets = [0, 6], sizes = [64, 1], strides = [1, 1]} : vector<64x9xf32> to vector<64x1xf32>
    %98 = vector.broadcast %97 : vector<64x1xf32> to vector<64x32xf32>
    %99 = arith.mulf %96, %98 : vector<64x32xf32>
    %c56_i32 = arith.constant 56 : i32
    %100 = tpu.dynamic_rotate %75 by %c56_i32 dim 0 : vector<64x32xf32>, i32 -> vector<64x32xf32>
    %101 = vector.extract_strided_slice %1 {offsets = [0, 7], sizes = [64, 1], strides = [1, 1]} : vector<64x9xf32> to vector<64x1xf32>
    %102 = vector.broadcast %101 : vector<64x1xf32> to vector<64x32xf32>
    %103 = arith.mulf %100, %102 : vector<64x32xf32>
    %c55_i32 = arith.constant 55 : i32
    %104 = tpu.dynamic_rotate %75 by %c55_i32 dim 0 : vector<64x32xf32>, i32 -> vector<64x32xf32>
    %105 = vector.extract_strided_slice %1 {offsets = [0, 8], sizes = [64, 1], strides = [1, 1]} : vector<64x9xf32> to vector<64x1xf32>
    %106 = vector.broadcast %105 : vector<64x1xf32> to vector<64x32xf32>
    %107 = arith.mulf %104, %106 : vector<64x32xf32>
    %108 = tpu.concatenate %79, %83, %87, %91, %75, %95, %99, %103, %107 in 1 : vector<64x32xf32>, vector<64x32xf32>, vector<64x32xf32>, vector<64x32xf32>, vector<64x32xf32>, vector<64x32xf32>, vector<64x32xf32>, vector<64x32xf32>, vector<64x32xf32> -> vector<64x288xf32>
    %109 = arith.truncf %108 : vector<64x288xf32> to vector<64x288xbf16>
    %c0_28 = arith.constant 0 : index
    %c0_29 = arith.constant 0 : index
    %110 = vector.load %arg11[%c0_28, %c0_29] : memref<288x64xbf16, #tpu.memory_space<vmem>>, vector<288x64xbf16>
    %cst_30 = arith.constant dense<0.000000e+00> : vector<64x64xf32>
    %111 = tpu.matmul %109, %110, %cst_30 {dimension_numbers = #tpu.dot_dimension_numbers<[1], [0], [0], [1], [0, 0, 1, 1], [], []>} : vector<64x288xbf16>, vector<288x64xbf16>, vector<64x64xf32> -> vector<64x64xf32>
    %c0_31 = arith.constant 0 : index
    %c0_32 = arith.constant 0 : index
    %112 = vector.load %arg12[%c0_31, %c0_32] : memref<1x64xf32, #tpu.memory_space<vmem>>, vector<1x64xf32>
    %113 = vector.broadcast %112 : vector<1x64xf32> to vector<64x64xf32>
    %114 = arith.addf %111, %113 : vector<64x64xf32>
    %cst_33 = arith.constant 0.000000e+00 : f32
    %115 = vector.broadcast %cst_33 : f32 to vector<64x64xf32>
    %116 = arith.maximumf %114, %115 : vector<64x64xf32>
    %117 = vector.extract_strided_slice %1 {offsets = [0, 1], sizes = [64, 1], strides = [1, 1]} : vector<64x9xf32> to vector<64x1xf32>
    %cst_34 = arith.constant 5.000000e-01 : f32
    %118 = vector.broadcast %cst_34 : f32 to vector<64x1xf32>
    %119 = arith.cmpf ogt, %117, %118 : vector<64x1xf32>
    %c8_i32_35 = arith.constant 8 : i32
    %120 = tpu.dynamic_rotate %116 by %c8_i32_35 dim 0 : vector<64x64xf32>, i32 -> vector<64x64xf32>
    %cst_36 = arith.constant -1.000000e+30 : f32
    %121 = vector.shape_cast %119 : vector<64x1xi1> to vector<64x1xi1>
    %122 = vector.broadcast %121 : vector<64x1xi1> to vector<64x64xi1>
    %123 = vector.broadcast %cst_36 : f32 to vector<64x64xf32>
    %124 = arith.select %122, %120, %123 : vector<64x64xi1>, vector<64x64xf32>
    %125 = vector.extract_strided_slice %1 {offsets = [0, 7], sizes = [64, 1], strides = [1, 1]} : vector<64x9xf32> to vector<64x1xf32>
    %cst_37 = arith.constant 5.000000e-01 : f32
    %126 = vector.broadcast %cst_37 : f32 to vector<64x1xf32>
    %127 = arith.cmpf ogt, %125, %126 : vector<64x1xf32>
    %c56_i32_38 = arith.constant 56 : i32
    %128 = tpu.dynamic_rotate %116 by %c56_i32_38 dim 0 : vector<64x64xf32>, i32 -> vector<64x64xf32>
    %cst_39 = arith.constant -1.000000e+30 : f32
    %129 = vector.shape_cast %127 : vector<64x1xi1> to vector<64x1xi1>
    %130 = vector.broadcast %129 : vector<64x1xi1> to vector<64x64xi1>
    %131 = vector.broadcast %cst_39 : f32 to vector<64x64xf32>
    %132 = arith.select %130, %128, %131 : vector<64x64xi1>, vector<64x64xf32>
    %133 = arith.maximumf %124, %132 : vector<64x64xf32>
    %134 = arith.maximumf %133, %116 : vector<64x64xf32>
    %135 = vector.extract_strided_slice %1 {offsets = [0, 3], sizes = [64, 1], strides = [1, 1]} : vector<64x9xf32> to vector<64x1xf32>
    %cst_40 = arith.constant 5.000000e-01 : f32
    %136 = vector.broadcast %cst_40 : f32 to vector<64x1xf32>
    %137 = arith.cmpf ogt, %135, %136 : vector<64x1xf32>
    %c1_i32_41 = arith.constant 1 : i32
    %138 = tpu.dynamic_rotate %134 by %c1_i32_41 dim 0 : vector<64x64xf32>, i32 -> vector<64x64xf32>
    %cst_42 = arith.constant -1.000000e+30 : f32
    %139 = vector.shape_cast %137 : vector<64x1xi1> to vector<64x1xi1>
    %140 = vector.broadcast %139 : vector<64x1xi1> to vector<64x64xi1>
    %141 = vector.broadcast %cst_42 : f32 to vector<64x64xf32>
    %142 = arith.select %140, %138, %141 : vector<64x64xi1>, vector<64x64xf32>
    %143 = vector.extract_strided_slice %1 {offsets = [0, 5], sizes = [64, 1], strides = [1, 1]} : vector<64x9xf32> to vector<64x1xf32>
    %cst_43 = arith.constant 5.000000e-01 : f32
    %144 = vector.broadcast %cst_43 : f32 to vector<64x1xf32>
    %145 = arith.cmpf ogt, %143, %144 : vector<64x1xf32>
    %c63_i32_44 = arith.constant 63 : i32
    %146 = tpu.dynamic_rotate %134 by %c63_i32_44 dim 0 : vector<64x64xf32>, i32 -> vector<64x64xf32>
    %cst_45 = arith.constant -1.000000e+30 : f32
    %147 = vector.shape_cast %145 : vector<64x1xi1> to vector<64x1xi1>
    %148 = vector.broadcast %147 : vector<64x1xi1> to vector<64x64xi1>
    %149 = vector.broadcast %cst_45 : f32 to vector<64x64xf32>
    %150 = arith.select %148, %146, %149 : vector<64x64xi1>, vector<64x64xf32>
    %151 = arith.maximumf %142, %150 : vector<64x64xf32>
    %152 = arith.maximumf %151, %134 : vector<64x64xf32>
    %c0_46 = arith.constant 0 : index
    %c0_47 = arith.constant 0 : index
    %153 = vector.load %arg6[%c0_46, %c0_47] : memref<16x64xbf16, #tpu.memory_space<vmem>>, vector<16x64xbf16>
    %154 = arith.truncf %152 : vector<64x64xf32> to vector<64x64xbf16>
    %cst_48 = arith.constant dense<0.000000e+00> : vector<16x64xf32>
    %155 = tpu.matmul %153, %154, %cst_48 {dimension_numbers = #tpu.dot_dimension_numbers<[1], [0], [0], [1], [0, 0, 1, 1], [], []>} : vector<16x64xbf16>, vector<64x64xbf16>, vector<16x64xf32> -> vector<16x64xf32>
    %156 = arith.truncf %155 : vector<16x64xf32> to vector<16x64xbf16>
    %c0_49 = arith.constant 0 : index
    %c0_50 = arith.constant 0 : index
    %157 = vector.load %arg13[%c0_49, %c0_50] : memref<64x128xbf16, #tpu.memory_space<vmem>>, vector<64x128xbf16>
    %cst_51 = arith.constant dense<0.000000e+00> : vector<16x128xf32>
    %158 = tpu.matmul %156, %157, %cst_51 {dimension_numbers = #tpu.dot_dimension_numbers<[1], [0], [0], [1], [0, 0, 1, 1], [], []>} : vector<16x64xbf16>, vector<64x128xbf16>, vector<16x128xf32> -> vector<16x128xf32>
    %c0_52 = arith.constant 0 : index
    %c0_53 = arith.constant 0 : index
    %159 = vector.load %arg14[%c0_52, %c0_53] : memref<1x128xf32, #tpu.memory_space<vmem>>, vector<1x128xf32>
    %160 = vector.broadcast %159 : vector<1x128xf32> to vector<16x128xf32>
    %161 = arith.addf %158, %160 : vector<16x128xf32>
    %cst_54 = arith.constant 0.000000e+00 : f32
    %162 = vector.broadcast %cst_54 : f32 to vector<16x128xf32>
    %163 = arith.maximumf %161, %162 : vector<16x128xf32>
    %164 = vector.extract_strided_slice %163 {offsets = [0, 0], sizes = [16, 64], strides = [1, 1]} : vector<16x128xf32> to vector<16x64xf32>
    %165 = vector.extract_strided_slice %163 {offsets = [0, 64], sizes = [16, 48], strides = [1, 1]} : vector<16x128xf32> to vector<16x48xf32>
    %c5_i32 = arith.constant 5 : i32
    %166 = tpu.dynamic_rotate %165 by %c5_i32 dim 0 : vector<16x48xf32>, i32 -> vector<16x48xf32>
    %167 = vector.extract_strided_slice %2 {offsets = [0, 0], sizes = [16, 1], strides = [1, 1]} : vector<16x9xf32> to vector<16x1xf32>
    %168 = vector.broadcast %167 : vector<16x1xf32> to vector<16x48xf32>
    %169 = arith.mulf %166, %168 : vector<16x48xf32>
    %c4_i32 = arith.constant 4 : i32
    %170 = tpu.dynamic_rotate %165 by %c4_i32 dim 0 : vector<16x48xf32>, i32 -> vector<16x48xf32>
    %171 = vector.extract_strided_slice %2 {offsets = [0, 1], sizes = [16, 1], strides = [1, 1]} : vector<16x9xf32> to vector<16x1xf32>
    %172 = vector.broadcast %171 : vector<16x1xf32> to vector<16x48xf32>
    %173 = arith.mulf %170, %172 : vector<16x48xf32>
    %c3_i32 = arith.constant 3 : i32
    %174 = tpu.dynamic_rotate %165 by %c3_i32 dim 0 : vector<16x48xf32>, i32 -> vector<16x48xf32>
    %175 = vector.extract_strided_slice %2 {offsets = [0, 2], sizes = [16, 1], strides = [1, 1]} : vector<16x9xf32> to vector<16x1xf32>
    %176 = vector.broadcast %175 : vector<16x1xf32> to vector<16x48xf32>
    %177 = arith.mulf %174, %176 : vector<16x48xf32>
    %c1_i32_55 = arith.constant 1 : i32
    %178 = tpu.dynamic_rotate %165 by %c1_i32_55 dim 0 : vector<16x48xf32>, i32 -> vector<16x48xf32>
    %179 = vector.extract_strided_slice %2 {offsets = [0, 3], sizes = [16, 1], strides = [1, 1]} : vector<16x9xf32> to vector<16x1xf32>
    %180 = vector.broadcast %179 : vector<16x1xf32> to vector<16x48xf32>
    %181 = arith.mulf %178, %180 : vector<16x48xf32>
    %c15_i32_56 = arith.constant 15 : i32
    %182 = tpu.dynamic_rotate %165 by %c15_i32_56 dim 0 : vector<16x48xf32>, i32 -> vector<16x48xf32>
    %183 = vector.extract_strided_slice %2 {offsets = [0, 5], sizes = [16, 1], strides = [1, 1]} : vector<16x9xf32> to vector<16x1xf32>
    %184 = vector.broadcast %183 : vector<16x1xf32> to vector<16x48xf32>
    %185 = arith.mulf %182, %184 : vector<16x48xf32>
    %c13_i32 = arith.constant 13 : i32
    %186 = tpu.dynamic_rotate %165 by %c13_i32 dim 0 : vector<16x48xf32>, i32 -> vector<16x48xf32>
    %187 = vector.extract_strided_slice %2 {offsets = [0, 6], sizes = [16, 1], strides = [1, 1]} : vector<16x9xf32> to vector<16x1xf32>
    %188 = vector.broadcast %187 : vector<16x1xf32> to vector<16x48xf32>
    %189 = arith.mulf %186, %188 : vector<16x48xf32>
    %c12_i32 = arith.constant 12 : i32
    %190 = tpu.dynamic_rotate %165 by %c12_i32 dim 0 : vector<16x48xf32>, i32 -> vector<16x48xf32>
    %191 = vector.extract_strided_slice %2 {offsets = [0, 7], sizes = [16, 1], strides = [1, 1]} : vector<16x9xf32> to vector<16x1xf32>
    %192 = vector.broadcast %191 : vector<16x1xf32> to vector<16x48xf32>
    %193 = arith.mulf %190, %192 : vector<16x48xf32>
    %c11_i32 = arith.constant 11 : i32
    %194 = tpu.dynamic_rotate %165 by %c11_i32 dim 0 : vector<16x48xf32>, i32 -> vector<16x48xf32>
    %195 = vector.extract_strided_slice %2 {offsets = [0, 8], sizes = [16, 1], strides = [1, 1]} : vector<16x9xf32> to vector<16x1xf32>
    %196 = vector.broadcast %195 : vector<16x1xf32> to vector<16x48xf32>
    %197 = arith.mulf %194, %196 : vector<16x48xf32>
    %198 = tpu.concatenate %169, %173, %177, %181, %165, %185, %189, %193, %197 in 1 : vector<16x48xf32>, vector<16x48xf32>, vector<16x48xf32>, vector<16x48xf32>, vector<16x48xf32>, vector<16x48xf32>, vector<16x48xf32>, vector<16x48xf32>, vector<16x48xf32> -> vector<16x432xf32>
    %199 = arith.truncf %198 : vector<16x432xf32> to vector<16x432xbf16>
    %c0_57 = arith.constant 0 : index
    %c0_58 = arith.constant 0 : index
    %200 = vector.load %arg15[%c0_57, %c0_58] : memref<432x64xbf16, #tpu.memory_space<vmem>>, vector<432x64xbf16>
    %cst_59 = arith.constant dense<0.000000e+00> : vector<16x64xf32>
    %201 = tpu.matmul %199, %200, %cst_59 {dimension_numbers = #tpu.dot_dimension_numbers<[1], [0], [0], [1], [0, 0, 1, 1], [], []>} : vector<16x432xbf16>, vector<432x64xbf16>, vector<16x64xf32> -> vector<16x64xf32>
    %c0_60 = arith.constant 0 : index
    %c0_61 = arith.constant 0 : index
    %202 = vector.load %arg16[%c0_60, %c0_61] : memref<1x64xf32, #tpu.memory_space<vmem>>, vector<1x64xf32>
    %203 = vector.broadcast %202 : vector<1x64xf32> to vector<16x64xf32>
    %204 = arith.addf %201, %203 : vector<16x64xf32>
    %cst_62 = arith.constant 0.000000e+00 : f32
    %205 = vector.broadcast %cst_62 : f32 to vector<16x64xf32>
    %206 = arith.maximumf %204, %205 : vector<16x64xf32>
    %207 = vector.extract_strided_slice %163 {offsets = [0, 112], sizes = [16, 16], strides = [1, 1]} : vector<16x128xf32> to vector<16x16xf32>
    %c5_i32_63 = arith.constant 5 : i32
    %208 = tpu.dynamic_rotate %207 by %c5_i32_63 dim 0 : vector<16x16xf32>, i32 -> vector<16x16xf32>
    %209 = vector.extract_strided_slice %2 {offsets = [0, 0], sizes = [16, 1], strides = [1, 1]} : vector<16x9xf32> to vector<16x1xf32>
    %210 = vector.broadcast %209 : vector<16x1xf32> to vector<16x16xf32>
    %211 = arith.mulf %208, %210 : vector<16x16xf32>
    %c4_i32_64 = arith.constant 4 : i32
    %212 = tpu.dynamic_rotate %207 by %c4_i32_64 dim 0 : vector<16x16xf32>, i32 -> vector<16x16xf32>
    %213 = vector.extract_strided_slice %2 {offsets = [0, 1], sizes = [16, 1], strides = [1, 1]} : vector<16x9xf32> to vector<16x1xf32>
    %214 = vector.broadcast %213 : vector<16x1xf32> to vector<16x16xf32>
    %215 = arith.mulf %212, %214 : vector<16x16xf32>
    %c3_i32_65 = arith.constant 3 : i32
    %216 = tpu.dynamic_rotate %207 by %c3_i32_65 dim 0 : vector<16x16xf32>, i32 -> vector<16x16xf32>
    %217 = vector.extract_strided_slice %2 {offsets = [0, 2], sizes = [16, 1], strides = [1, 1]} : vector<16x9xf32> to vector<16x1xf32>
    %218 = vector.broadcast %217 : vector<16x1xf32> to vector<16x16xf32>
    %219 = arith.mulf %216, %218 : vector<16x16xf32>
    %c1_i32_66 = arith.constant 1 : i32
    %220 = tpu.dynamic_rotate %207 by %c1_i32_66 dim 0 : vector<16x16xf32>, i32 -> vector<16x16xf32>
    %221 = vector.extract_strided_slice %2 {offsets = [0, 3], sizes = [16, 1], strides = [1, 1]} : vector<16x9xf32> to vector<16x1xf32>
    %222 = vector.broadcast %221 : vector<16x1xf32> to vector<16x16xf32>
    %223 = arith.mulf %220, %222 : vector<16x16xf32>
    %c15_i32_67 = arith.constant 15 : i32
    %224 = tpu.dynamic_rotate %207 by %c15_i32_67 dim 0 : vector<16x16xf32>, i32 -> vector<16x16xf32>
    %225 = vector.extract_strided_slice %2 {offsets = [0, 5], sizes = [16, 1], strides = [1, 1]} : vector<16x9xf32> to vector<16x1xf32>
    %226 = vector.broadcast %225 : vector<16x1xf32> to vector<16x16xf32>
    %227 = arith.mulf %224, %226 : vector<16x16xf32>
    %c13_i32_68 = arith.constant 13 : i32
    %228 = tpu.dynamic_rotate %207 by %c13_i32_68 dim 0 : vector<16x16xf32>, i32 -> vector<16x16xf32>
    %229 = vector.extract_strided_slice %2 {offsets = [0, 6], sizes = [16, 1], strides = [1, 1]} : vector<16x9xf32> to vector<16x1xf32>
    %230 = vector.broadcast %229 : vector<16x1xf32> to vector<16x16xf32>
    %231 = arith.mulf %228, %230 : vector<16x16xf32>
    %c12_i32_69 = arith.constant 12 : i32
    %232 = tpu.dynamic_rotate %207 by %c12_i32_69 dim 0 : vector<16x16xf32>, i32 -> vector<16x16xf32>
    %233 = vector.extract_strided_slice %2 {offsets = [0, 7], sizes = [16, 1], strides = [1, 1]} : vector<16x9xf32> to vector<16x1xf32>
    %234 = vector.broadcast %233 : vector<16x1xf32> to vector<16x16xf32>
    %235 = arith.mulf %232, %234 : vector<16x16xf32>
    %c11_i32_70 = arith.constant 11 : i32
    %236 = tpu.dynamic_rotate %207 by %c11_i32_70 dim 0 : vector<16x16xf32>, i32 -> vector<16x16xf32>
    %237 = vector.extract_strided_slice %2 {offsets = [0, 8], sizes = [16, 1], strides = [1, 1]} : vector<16x9xf32> to vector<16x1xf32>
    %238 = vector.broadcast %237 : vector<16x1xf32> to vector<16x16xf32>
    %239 = arith.mulf %236, %238 : vector<16x16xf32>
    %240 = tpu.concatenate %211, %215, %219, %223, %207, %227, %231, %235, %239 in 1 : vector<16x16xf32>, vector<16x16xf32>, vector<16x16xf32>, vector<16x16xf32>, vector<16x16xf32>, vector<16x16xf32>, vector<16x16xf32>, vector<16x16xf32>, vector<16x16xf32> -> vector<16x144xf32>
    %241 = arith.truncf %240 : vector<16x144xf32> to vector<16x144xbf16>
    %c0_71 = arith.constant 0 : index
    %c0_72 = arith.constant 0 : index
    %242 = vector.load %arg17[%c0_71, %c0_72] : memref<144x32xbf16, #tpu.memory_space<vmem>>, vector<144x32xbf16>
    %cst_73 = arith.constant dense<0.000000e+00> : vector<16x32xf32>
    %243 = tpu.matmul %241, %242, %cst_73 {dimension_numbers = #tpu.dot_dimension_numbers<[1], [0], [0], [1], [0, 0, 1, 1], [], []>} : vector<16x144xbf16>, vector<144x32xbf16>, vector<16x32xf32> -> vector<16x32xf32>
    %c0_74 = arith.constant 0 : index
    %c0_75 = arith.constant 0 : index
    %244 = vector.load %arg18[%c0_74, %c0_75] : memref<1x32xf32, #tpu.memory_space<vmem>>, vector<1x32xf32>
    %245 = vector.broadcast %244 : vector<1x32xf32> to vector<16x32xf32>
    %246 = arith.addf %243, %245 : vector<16x32xf32>
    %cst_76 = arith.constant 0.000000e+00 : f32
    %247 = vector.broadcast %cst_76 : f32 to vector<16x32xf32>
    %248 = arith.maximumf %246, %247 : vector<16x32xf32>
    %c5_i32_77 = arith.constant 5 : i32
    %249 = tpu.dynamic_rotate %248 by %c5_i32_77 dim 0 : vector<16x32xf32>, i32 -> vector<16x32xf32>
    %250 = vector.extract_strided_slice %2 {offsets = [0, 0], sizes = [16, 1], strides = [1, 1]} : vector<16x9xf32> to vector<16x1xf32>
    %251 = vector.broadcast %250 : vector<16x1xf32> to vector<16x32xf32>
    %252 = arith.mulf %249, %251 : vector<16x32xf32>
    %c4_i32_78 = arith.constant 4 : i32
    %253 = tpu.dynamic_rotate %248 by %c4_i32_78 dim 0 : vector<16x32xf32>, i32 -> vector<16x32xf32>
    %254 = vector.extract_strided_slice %2 {offsets = [0, 1], sizes = [16, 1], strides = [1, 1]} : vector<16x9xf32> to vector<16x1xf32>
    %255 = vector.broadcast %254 : vector<16x1xf32> to vector<16x32xf32>
    %256 = arith.mulf %253, %255 : vector<16x32xf32>
    %c3_i32_79 = arith.constant 3 : i32
    %257 = tpu.dynamic_rotate %248 by %c3_i32_79 dim 0 : vector<16x32xf32>, i32 -> vector<16x32xf32>
    %258 = vector.extract_strided_slice %2 {offsets = [0, 2], sizes = [16, 1], strides = [1, 1]} : vector<16x9xf32> to vector<16x1xf32>
    %259 = vector.broadcast %258 : vector<16x1xf32> to vector<16x32xf32>
    %260 = arith.mulf %257, %259 : vector<16x32xf32>
    %c1_i32_80 = arith.constant 1 : i32
    %261 = tpu.dynamic_rotate %248 by %c1_i32_80 dim 0 : vector<16x32xf32>, i32 -> vector<16x32xf32>
    %262 = vector.extract_strided_slice %2 {offsets = [0, 3], sizes = [16, 1], strides = [1, 1]} : vector<16x9xf32> to vector<16x1xf32>
    %263 = vector.broadcast %262 : vector<16x1xf32> to vector<16x32xf32>
    %264 = arith.mulf %261, %263 : vector<16x32xf32>
    %c15_i32_81 = arith.constant 15 : i32
    %265 = tpu.dynamic_rotate %248 by %c15_i32_81 dim 0 : vector<16x32xf32>, i32 -> vector<16x32xf32>
    %266 = vector.extract_strided_slice %2 {offsets = [0, 5], sizes = [16, 1], strides = [1, 1]} : vector<16x9xf32> to vector<16x1xf32>
    %267 = vector.broadcast %266 : vector<16x1xf32> to vector<16x32xf32>
    %268 = arith.mulf %265, %267 : vector<16x32xf32>
    %c13_i32_82 = arith.constant 13 : i32
    %269 = tpu.dynamic_rotate %248 by %c13_i32_82 dim 0 : vector<16x32xf32>, i32 -> vector<16x32xf32>
    %270 = vector.extract_strided_slice %2 {offsets = [0, 6], sizes = [16, 1], strides = [1, 1]} : vector<16x9xf32> to vector<16x1xf32>
    %271 = vector.broadcast %270 : vector<16x1xf32> to vector<16x32xf32>
    %272 = arith.mulf %269, %271 : vector<16x32xf32>
    %c12_i32_83 = arith.constant 12 : i32
    %273 = tpu.dynamic_rotate %248 by %c12_i32_83 dim 0 : vector<16x32xf32>, i32 -> vector<16x32xf32>
    %274 = vector.extract_strided_slice %2 {offsets = [0, 7], sizes = [16, 1], strides = [1, 1]} : vector<16x9xf32> to vector<16x1xf32>
    %275 = vector.broadcast %274 : vector<16x1xf32> to vector<16x32xf32>
    %276 = arith.mulf %273, %275 : vector<16x32xf32>
    %c11_i32_84 = arith.constant 11 : i32
    %277 = tpu.dynamic_rotate %248 by %c11_i32_84 dim 0 : vector<16x32xf32>, i32 -> vector<16x32xf32>
    %278 = vector.extract_strided_slice %2 {offsets = [0, 8], sizes = [16, 1], strides = [1, 1]} : vector<16x9xf32> to vector<16x1xf32>
    %279 = vector.broadcast %278 : vector<16x1xf32> to vector<16x32xf32>
    %280 = arith.mulf %277, %279 : vector<16x32xf32>
    %281 = tpu.concatenate %252, %256, %260, %264, %248, %268, %272, %276, %280 in 1 : vector<16x32xf32>, vector<16x32xf32>, vector<16x32xf32>, vector<16x32xf32>, vector<16x32xf32>, vector<16x32xf32>, vector<16x32xf32>, vector<16x32xf32>, vector<16x32xf32> -> vector<16x288xf32>
    %282 = arith.truncf %281 : vector<16x288xf32> to vector<16x288xbf16>
    %c0_85 = arith.constant 0 : index
    %c0_86 = arith.constant 0 : index
    %283 = vector.load %arg19[%c0_85, %c0_86] : memref<288x32xbf16, #tpu.memory_space<vmem>>, vector<288x32xbf16>
    %cst_87 = arith.constant dense<0.000000e+00> : vector<16x32xf32>
    %284 = tpu.matmul %282, %283, %cst_87 {dimension_numbers = #tpu.dot_dimension_numbers<[1], [0], [0], [1], [0, 0, 1, 1], [], []>} : vector<16x288xbf16>, vector<288x32xbf16>, vector<16x32xf32> -> vector<16x32xf32>
    %c0_88 = arith.constant 0 : index
    %c0_89 = arith.constant 0 : index
    %285 = vector.load %arg20[%c0_88, %c0_89] : memref<1x32xf32, #tpu.memory_space<vmem>>, vector<1x32xf32>
    %286 = vector.broadcast %285 : vector<1x32xf32> to vector<16x32xf32>
    %287 = arith.addf %284, %286 : vector<16x32xf32>
    %cst_90 = arith.constant 0.000000e+00 : f32
    %288 = vector.broadcast %cst_90 : f32 to vector<16x32xf32>
    %289 = arith.maximumf %287, %288 : vector<16x32xf32>
    %290 = vector.extract_strided_slice %2 {offsets = [0, 1], sizes = [16, 1], strides = [1, 1]} : vector<16x9xf32> to vector<16x1xf32>
    %cst_91 = arith.constant 5.000000e-01 : f32
    %291 = vector.broadcast %cst_91 : f32 to vector<16x1xf32>
    %292 = arith.cmpf ogt, %290, %291 : vector<16x1xf32>
    %c4_i32_92 = arith.constant 4 : i32
    %293 = tpu.dynamic_rotate %155 by %c4_i32_92 dim 0 : vector<16x64xf32>, i32 -> vector<16x64xf32>
    %cst_93 = arith.constant -1.000000e+30 : f32
    %294 = vector.shape_cast %292 : vector<16x1xi1> to vector<16x1xi1>
    %295 = vector.broadcast %294 : vector<16x1xi1> to vector<16x64xi1>
    %296 = vector.broadcast %cst_93 : f32 to vector<16x64xf32>
    %297 = arith.select %295, %293, %296 : vector<16x64xi1>, vector<16x64xf32>
    %298 = vector.extract_strided_slice %2 {offsets = [0, 7], sizes = [16, 1], strides = [1, 1]} : vector<16x9xf32> to vector<16x1xf32>
    %cst_94 = arith.constant 5.000000e-01 : f32
    %299 = vector.broadcast %cst_94 : f32 to vector<16x1xf32>
    %300 = arith.cmpf ogt, %298, %299 : vector<16x1xf32>
    %c12_i32_95 = arith.constant 12 : i32
    %301 = tpu.dynamic_rotate %155 by %c12_i32_95 dim 0 : vector<16x64xf32>, i32 -> vector<16x64xf32>
    %cst_96 = arith.constant -1.000000e+30 : f32
    %302 = vector.shape_cast %300 : vector<16x1xi1> to vector<16x1xi1>
    %303 = vector.broadcast %302 : vector<16x1xi1> to vector<16x64xi1>
    %304 = vector.broadcast %cst_96 : f32 to vector<16x64xf32>
    %305 = arith.select %303, %301, %304 : vector<16x64xi1>, vector<16x64xf32>
    %306 = arith.maximumf %297, %305 : vector<16x64xf32>
    %307 = arith.maximumf %306, %155 : vector<16x64xf32>
    %308 = vector.extract_strided_slice %2 {offsets = [0, 3], sizes = [16, 1], strides = [1, 1]} : vector<16x9xf32> to vector<16x1xf32>
    %cst_97 = arith.constant 5.000000e-01 : f32
    %309 = vector.broadcast %cst_97 : f32 to vector<16x1xf32>
    %310 = arith.cmpf ogt, %308, %309 : vector<16x1xf32>
    %c1_i32_98 = arith.constant 1 : i32
    %311 = tpu.dynamic_rotate %307 by %c1_i32_98 dim 0 : vector<16x64xf32>, i32 -> vector<16x64xf32>
    %cst_99 = arith.constant -1.000000e+30 : f32
    %312 = vector.shape_cast %310 : vector<16x1xi1> to vector<16x1xi1>
    %313 = vector.broadcast %312 : vector<16x1xi1> to vector<16x64xi1>
    %314 = vector.broadcast %cst_99 : f32 to vector<16x64xf32>
    %315 = arith.select %313, %311, %314 : vector<16x64xi1>, vector<16x64xf32>
    %316 = vector.extract_strided_slice %2 {offsets = [0, 5], sizes = [16, 1], strides = [1, 1]} : vector<16x9xf32> to vector<16x1xf32>
    %cst_100 = arith.constant 5.000000e-01 : f32
    %317 = vector.broadcast %cst_100 : f32 to vector<16x1xf32>
    %318 = arith.cmpf ogt, %316, %317 : vector<16x1xf32>
    %c15_i32_101 = arith.constant 15 : i32
    %319 = tpu.dynamic_rotate %307 by %c15_i32_101 dim 0 : vector<16x64xf32>, i32 -> vector<16x64xf32>
    %cst_102 = arith.constant -1.000000e+30 : f32
    %320 = vector.shape_cast %318 : vector<16x1xi1> to vector<16x1xi1>
    %321 = vector.broadcast %320 : vector<16x1xi1> to vector<16x64xi1>
    %322 = vector.broadcast %cst_102 : f32 to vector<16x64xf32>
    %323 = arith.select %321, %319, %322 : vector<16x64xi1>, vector<16x64xf32>
    %324 = arith.maximumf %315, %323 : vector<16x64xf32>
    %325 = arith.maximumf %324, %307 : vector<16x64xf32>
    %326 = arith.truncf %325 : vector<16x64xf32> to vector<16x64xbf16>
    %c0_103 = arith.constant 0 : index
    %c0_104 = arith.constant 0 : index
    %327 = vector.load %arg21[%c0_103, %c0_104] : memref<64x32xbf16, #tpu.memory_space<vmem>>, vector<64x32xbf16>
    %cst_105 = arith.constant dense<0.000000e+00> : vector<16x32xf32>
    %328 = tpu.matmul %326, %327, %cst_105 {dimension_numbers = #tpu.dot_dimension_numbers<[1], [0], [0], [1], [0, 0, 1, 1], [], []>} : vector<16x64xbf16>, vector<64x32xbf16>, vector<16x32xf32> -> vector<16x32xf32>
    %c0_106 = arith.constant 0 : index
    %c0_107 = arith.constant 0 : index
    %329 = vector.load %arg22[%c0_106, %c0_107] : memref<1x32xf32, #tpu.memory_space<vmem>>, vector<1x32xf32>
    %330 = vector.broadcast %329 : vector<1x32xf32> to vector<16x32xf32>
    %331 = arith.addf %328, %330 : vector<16x32xf32>
    %cst_108 = arith.constant 0.000000e+00 : f32
    %332 = vector.broadcast %cst_108 : f32 to vector<16x32xf32>
    %333 = arith.maximumf %331, %332 : vector<16x32xf32>
    %334 = tpu.concatenate %164, %206, %289, %333 in 1 : vector<16x64xf32>, vector<16x64xf32>, vector<16x32xf32>, vector<16x32xf32> -> vector<16x192xf32>
    %c0_109 = arith.constant 0 : index
    %c0_110 = arith.constant 0 : index
    %335 = vector.load %arg23[%c0_109, %c0_110] : memref<1x192xf32, #tpu.memory_space<vmem>>, vector<1x192xf32>
    %336 = vector.broadcast %335 : vector<1x192xf32> to vector<16x192xf32>
    %337 = arith.mulf %334, %336 : vector<16x192xf32>
    %c0_111 = arith.constant 0 : index
    %c0_112 = arith.constant 0 : index
    %338 = vector.load %arg24[%c0_111, %c0_112] : memref<1x192xf32, #tpu.memory_space<vmem>>, vector<1x192xf32>
    %339 = vector.broadcast %338 : vector<1x192xf32> to vector<16x192xf32>
    %340 = arith.addf %337, %339 : vector<16x192xf32>
    %cst_113 = arith.constant 0.000000e+00 : f32
    %341 = vector.broadcast %cst_113 : f32 to vector<16x192xf32>
    %342 = arith.maximumf %340, %341 : vector<16x192xf32>
    %343 = arith.truncf %342 : vector<16x192xf32> to vector<16x192xbf16>
    %c0_114 = arith.constant 0 : index
    %c0_115 = arith.constant 0 : index
    %344 = vector.load %arg25[%c0_114, %c0_115] : memref<192x224xbf16, #tpu.memory_space<vmem>>, vector<192x224xbf16>
    %cst_116 = arith.constant dense<0.000000e+00> : vector<16x224xf32>
    %345 = tpu.matmul %343, %344, %cst_116 {dimension_numbers = #tpu.dot_dimension_numbers<[1], [0], [0], [1], [0, 0, 1, 1], [], []>} : vector<16x192xbf16>, vector<192x224xbf16>, vector<16x224xf32> -> vector<16x224xf32>
    %c0_117 = arith.constant 0 : index
    %c0_118 = arith.constant 0 : index
    %346 = vector.load %arg26[%c0_117, %c0_118] : memref<1x224xf32, #tpu.memory_space<vmem>>, vector<1x224xf32>
    %347 = vector.broadcast %346 : vector<1x224xf32> to vector<16x224xf32>
    %348 = arith.addf %345, %347 : vector<16x224xf32>
    %cst_119 = arith.constant 0.000000e+00 : f32
    %349 = vector.broadcast %cst_119 : f32 to vector<16x224xf32>
    %350 = arith.maximumf %348, %349 : vector<16x224xf32>
    %351 = vector.extract_strided_slice %350 {offsets = [0, 0], sizes = [16, 128], strides = [1, 1]} : vector<16x224xf32> to vector<16x128xf32>
    %352 = vector.extract_strided_slice %350 {offsets = [0, 128], sizes = [16, 64], strides = [1, 1]} : vector<16x224xf32> to vector<16x64xf32>
    %c5_i32_120 = arith.constant 5 : i32
    %353 = tpu.dynamic_rotate %352 by %c5_i32_120 dim 0 : vector<16x64xf32>, i32 -> vector<16x64xf32>
    %354 = vector.extract_strided_slice %2 {offsets = [0, 0], sizes = [16, 1], strides = [1, 1]} : vector<16x9xf32> to vector<16x1xf32>
    %355 = vector.broadcast %354 : vector<16x1xf32> to vector<16x64xf32>
    %356 = arith.mulf %353, %355 : vector<16x64xf32>
    %c4_i32_121 = arith.constant 4 : i32
    %357 = tpu.dynamic_rotate %352 by %c4_i32_121 dim 0 : vector<16x64xf32>, i32 -> vector<16x64xf32>
    %358 = vector.extract_strided_slice %2 {offsets = [0, 1], sizes = [16, 1], strides = [1, 1]} : vector<16x9xf32> to vector<16x1xf32>
    %359 = vector.broadcast %358 : vector<16x1xf32> to vector<16x64xf32>
    %360 = arith.mulf %357, %359 : vector<16x64xf32>
    %c3_i32_122 = arith.constant 3 : i32
    %361 = tpu.dynamic_rotate %352 by %c3_i32_122 dim 0 : vector<16x64xf32>, i32 -> vector<16x64xf32>
    %362 = vector.extract_strided_slice %2 {offsets = [0, 2], sizes = [16, 1], strides = [1, 1]} : vector<16x9xf32> to vector<16x1xf32>
    %363 = vector.broadcast %362 : vector<16x1xf32> to vector<16x64xf32>
    %364 = arith.mulf %361, %363 : vector<16x64xf32>
    %c1_i32_123 = arith.constant 1 : i32
    %365 = tpu.dynamic_rotate %352 by %c1_i32_123 dim 0 : vector<16x64xf32>, i32 -> vector<16x64xf32>
    %366 = vector.extract_strided_slice %2 {offsets = [0, 3], sizes = [16, 1], strides = [1, 1]} : vector<16x9xf32> to vector<16x1xf32>
    %367 = vector.broadcast %366 : vector<16x1xf32> to vector<16x64xf32>
    %368 = arith.mulf %365, %367 : vector<16x64xf32>
    %c15_i32_124 = arith.constant 15 : i32
    %369 = tpu.dynamic_rotate %352 by %c15_i32_124 dim 0 : vector<16x64xf32>, i32 -> vector<16x64xf32>
    %370 = vector.extract_strided_slice %2 {offsets = [0, 5], sizes = [16, 1], strides = [1, 1]} : vector<16x9xf32> to vector<16x1xf32>
    %371 = vector.broadcast %370 : vector<16x1xf32> to vector<16x64xf32>
    %372 = arith.mulf %369, %371 : vector<16x64xf32>
    %c13_i32_125 = arith.constant 13 : i32
    %373 = tpu.dynamic_rotate %352 by %c13_i32_125 dim 0 : vector<16x64xf32>, i32 -> vector<16x64xf32>
    %374 = vector.extract_strided_slice %2 {offsets = [0, 6], sizes = [16, 1], strides = [1, 1]} : vector<16x9xf32> to vector<16x1xf32>
    %375 = vector.broadcast %374 : vector<16x1xf32> to vector<16x64xf32>
    %376 = arith.mulf %373, %375 : vector<16x64xf32>
    %c12_i32_126 = arith.constant 12 : i32
    %377 = tpu.dynamic_rotate %352 by %c12_i32_126 dim 0 : vector<16x64xf32>, i32 -> vector<16x64xf32>
    %378 = vector.extract_strided_slice %2 {offsets = [0, 7], sizes = [16, 1], strides = [1, 1]} : vector<16x9xf32> to vector<16x1xf32>
    %379 = vector.broadcast %378 : vector<16x1xf32> to vector<16x64xf32>
    %380 = arith.mulf %377, %379 : vector<16x64xf32>
    %c11_i32_127 = arith.constant 11 : i32
    %381 = tpu.dynamic_rotate %352 by %c11_i32_127 dim 0 : vector<16x64xf32>, i32 -> vector<16x64xf32>
    %382 = vector.extract_strided_slice %2 {offsets = [0, 8], sizes = [16, 1], strides = [1, 1]} : vector<16x9xf32> to vector<16x1xf32>
    %383 = vector.broadcast %382 : vector<16x1xf32> to vector<16x64xf32>
    %384 = arith.mulf %381, %383 : vector<16x64xf32>
    %385 = tpu.concatenate %356, %360, %364, %368, %352, %372, %376, %380, %384 in 1 : vector<16x64xf32>, vector<16x64xf32>, vector<16x64xf32>, vector<16x64xf32>, vector<16x64xf32>, vector<16x64xf32>, vector<16x64xf32>, vector<16x64xf32>, vector<16x64xf32> -> vector<16x576xf32>
    %386 = arith.truncf %385 : vector<16x576xf32> to vector<16x576xbf16>
    %c0_128 = arith.constant 0 : index
    %c0_129 = arith.constant 0 : index
    %387 = vector.load %arg27[%c0_128, %c0_129] : memref<576x96xbf16, #tpu.memory_space<vmem>>, vector<576x96xbf16>
    %cst_130 = arith.constant dense<0.000000e+00> : vector<16x96xf32>
    %388 = tpu.matmul %386, %387, %cst_130 {dimension_numbers = #tpu.dot_dimension_numbers<[1], [0], [0], [1], [0, 0, 1, 1], [], []>} : vector<16x576xbf16>, vector<576x96xbf16>, vector<16x96xf32> -> vector<16x96xf32>
    %c0_131 = arith.constant 0 : index
    %c0_132 = arith.constant 0 : index
    %389 = vector.load %arg28[%c0_131, %c0_132] : memref<1x96xf32, #tpu.memory_space<vmem>>, vector<1x96xf32>
    %390 = vector.broadcast %389 : vector<1x96xf32> to vector<16x96xf32>
    %391 = arith.addf %388, %390 : vector<16x96xf32>
    %cst_133 = arith.constant 0.000000e+00 : f32
    %392 = vector.broadcast %cst_133 : f32 to vector<16x96xf32>
    %393 = arith.maximumf %391, %392 : vector<16x96xf32>
    %394 = vector.extract_strided_slice %350 {offsets = [0, 192], sizes = [16, 32], strides = [1, 1]} : vector<16x224xf32> to vector<16x32xf32>
    %c5_i32_134 = arith.constant 5 : i32
    %395 = tpu.dynamic_rotate %394 by %c5_i32_134 dim 0 : vector<16x32xf32>, i32 -> vector<16x32xf32>
    %396 = vector.extract_strided_slice %2 {offsets = [0, 0], sizes = [16, 1], strides = [1, 1]} : vector<16x9xf32> to vector<16x1xf32>
    %397 = vector.broadcast %396 : vector<16x1xf32> to vector<16x32xf32>
    %398 = arith.mulf %395, %397 : vector<16x32xf32>
    %c4_i32_135 = arith.constant 4 : i32
    %399 = tpu.dynamic_rotate %394 by %c4_i32_135 dim 0 : vector<16x32xf32>, i32 -> vector<16x32xf32>
    %400 = vector.extract_strided_slice %2 {offsets = [0, 1], sizes = [16, 1], strides = [1, 1]} : vector<16x9xf32> to vector<16x1xf32>
    %401 = vector.broadcast %400 : vector<16x1xf32> to vector<16x32xf32>
    %402 = arith.mulf %399, %401 : vector<16x32xf32>
    %c3_i32_136 = arith.constant 3 : i32
    %403 = tpu.dynamic_rotate %394 by %c3_i32_136 dim 0 : vector<16x32xf32>, i32 -> vector<16x32xf32>
    %404 = vector.extract_strided_slice %2 {offsets = [0, 2], sizes = [16, 1], strides = [1, 1]} : vector<16x9xf32> to vector<16x1xf32>
    %405 = vector.broadcast %404 : vector<16x1xf32> to vector<16x32xf32>
    %406 = arith.mulf %403, %405 : vector<16x32xf32>
    %c1_i32_137 = arith.constant 1 : i32
    %407 = tpu.dynamic_rotate %394 by %c1_i32_137 dim 0 : vector<16x32xf32>, i32 -> vector<16x32xf32>
    %408 = vector.extract_strided_slice %2 {offsets = [0, 3], sizes = [16, 1], strides = [1, 1]} : vector<16x9xf32> to vector<16x1xf32>
    %409 = vector.broadcast %408 : vector<16x1xf32> to vector<16x32xf32>
    %410 = arith.mulf %407, %409 : vector<16x32xf32>
    %c15_i32_138 = arith.constant 15 : i32
    %411 = tpu.dynamic_rotate %394 by %c15_i32_138 dim 0 : vector<16x32xf32>, i32 -> vector<16x32xf32>
    %412 = vector.extract_strided_slice %2 {offsets = [0, 5], sizes = [16, 1], strides = [1, 1]} : vector<16x9xf32> to vector<16x1xf32>
    %413 = vector.broadcast %412 : vector<16x1xf32> to vector<16x32xf32>
    %414 = arith.mulf %411, %413 : vector<16x32xf32>
    %c13_i32_139 = arith.constant 13 : i32
    %415 = tpu.dynamic_rotate %394 by %c13_i32_139 dim 0 : vector<16x32xf32>, i32 -> vector<16x32xf32>
    %416 = vector.extract_strided_slice %2 {offsets = [0, 6], sizes = [16, 1], strides = [1, 1]} : vector<16x9xf32> to vector<16x1xf32>
    %417 = vector.broadcast %416 : vector<16x1xf32> to vector<16x32xf32>
    %418 = arith.mulf %415, %417 : vector<16x32xf32>
    %c12_i32_140 = arith.constant 12 : i32
    %419 = tpu.dynamic_rotate %394 by %c12_i32_140 dim 0 : vector<16x32xf32>, i32 -> vector<16x32xf32>
    %420 = vector.extract_strided_slice %2 {offsets = [0, 7], sizes = [16, 1], strides = [1, 1]} : vector<16x9xf32> to vector<16x1xf32>
    %421 = vector.broadcast %420 : vector<16x1xf32> to vector<16x32xf32>
    %422 = arith.mulf %419, %421 : vector<16x32xf32>
    %c11_i32_141 = arith.constant 11 : i32
    %423 = tpu.dynamic_rotate %394 by %c11_i32_141 dim 0 : vector<16x32xf32>, i32 -> vector<16x32xf32>
    %424 = vector.extract_strided_slice %2 {offsets = [0, 8], sizes = [16, 1], strides = [1, 1]} : vector<16x9xf32> to vector<16x1xf32>
    %425 = vector.broadcast %424 : vector<16x1xf32> to vector<16x32xf32>
    %426 = arith.mulf %423, %425 : vector<16x32xf32>
    %427 = tpu.concatenate %398, %402, %406, %410, %394, %414, %418, %422, %426 in 1 : vector<16x32xf32>, vector<16x32xf32>, vector<16x32xf32>, vector<16x32xf32>, vector<16x32xf32>, vector<16x32xf32>, vector<16x32xf32>, vector<16x32xf32>, vector<16x32xf32> -> vector<16x288xf32>
    %428 = arith.truncf %427 : vector<16x288xf32> to vector<16x288xbf16>
    %c0_142 = arith.constant 0 : index
    %c0_143 = arith.constant 0 : index
    %429 = vector.load %arg29[%c0_142, %c0_143] : memref<288x64xbf16, #tpu.memory_space<vmem>>, vector<288x64xbf16>
    %cst_144 = arith.constant dense<0.000000e+00> : vector<16x64xf32>
    %430 = tpu.matmul %428, %429, %cst_144 {dimension_numbers = #tpu.dot_dimension_numbers<[1], [0], [0], [1], [0, 0, 1, 1], [], []>} : vector<16x288xbf16>, vector<288x64xbf16>, vector<16x64xf32> -> vector<16x64xf32>
    %c0_145 = arith.constant 0 : index
    %c0_146 = arith.constant 0 : index
    %431 = vector.load %arg30[%c0_145, %c0_146] : memref<1x64xf32, #tpu.memory_space<vmem>>, vector<1x64xf32>
    %432 = vector.broadcast %431 : vector<1x64xf32> to vector<16x64xf32>
    %433 = arith.addf %430, %432 : vector<16x64xf32>
    %cst_147 = arith.constant 0.000000e+00 : f32
    %434 = vector.broadcast %cst_147 : f32 to vector<16x64xf32>
    %435 = arith.maximumf %433, %434 : vector<16x64xf32>
    %c5_i32_148 = arith.constant 5 : i32
    %436 = tpu.dynamic_rotate %435 by %c5_i32_148 dim 0 : vector<16x64xf32>, i32 -> vector<16x64xf32>
    %437 = vector.extract_strided_slice %2 {offsets = [0, 0], sizes = [16, 1], strides = [1, 1]} : vector<16x9xf32> to vector<16x1xf32>
    %438 = vector.broadcast %437 : vector<16x1xf32> to vector<16x64xf32>
    %439 = arith.mulf %436, %438 : vector<16x64xf32>
    %c4_i32_149 = arith.constant 4 : i32
    %440 = tpu.dynamic_rotate %435 by %c4_i32_149 dim 0 : vector<16x64xf32>, i32 -> vector<16x64xf32>
    %441 = vector.extract_strided_slice %2 {offsets = [0, 1], sizes = [16, 1], strides = [1, 1]} : vector<16x9xf32> to vector<16x1xf32>
    %442 = vector.broadcast %441 : vector<16x1xf32> to vector<16x64xf32>
    %443 = arith.mulf %440, %442 : vector<16x64xf32>
    %c3_i32_150 = arith.constant 3 : i32
    %444 = tpu.dynamic_rotate %435 by %c3_i32_150 dim 0 : vector<16x64xf32>, i32 -> vector<16x64xf32>
    %445 = vector.extract_strided_slice %2 {offsets = [0, 2], sizes = [16, 1], strides = [1, 1]} : vector<16x9xf32> to vector<16x1xf32>
    %446 = vector.broadcast %445 : vector<16x1xf32> to vector<16x64xf32>
    %447 = arith.mulf %444, %446 : vector<16x64xf32>
    %c1_i32_151 = arith.constant 1 : i32
    %448 = tpu.dynamic_rotate %435 by %c1_i32_151 dim 0 : vector<16x64xf32>, i32 -> vector<16x64xf32>
    %449 = vector.extract_strided_slice %2 {offsets = [0, 3], sizes = [16, 1], strides = [1, 1]} : vector<16x9xf32> to vector<16x1xf32>
    %450 = vector.broadcast %449 : vector<16x1xf32> to vector<16x64xf32>
    %451 = arith.mulf %448, %450 : vector<16x64xf32>
    %c15_i32_152 = arith.constant 15 : i32
    %452 = tpu.dynamic_rotate %435 by %c15_i32_152 dim 0 : vector<16x64xf32>, i32 -> vector<16x64xf32>
    %453 = vector.extract_strided_slice %2 {offsets = [0, 5], sizes = [16, 1], strides = [1, 1]} : vector<16x9xf32> to vector<16x1xf32>
    %454 = vector.broadcast %453 : vector<16x1xf32> to vector<16x64xf32>
    %455 = arith.mulf %452, %454 : vector<16x64xf32>
    %c13_i32_153 = arith.constant 13 : i32
    %456 = tpu.dynamic_rotate %435 by %c13_i32_153 dim 0 : vector<16x64xf32>, i32 -> vector<16x64xf32>
    %457 = vector.extract_strided_slice %2 {offsets = [0, 6], sizes = [16, 1], strides = [1, 1]} : vector<16x9xf32> to vector<16x1xf32>
    %458 = vector.broadcast %457 : vector<16x1xf32> to vector<16x64xf32>
    %459 = arith.mulf %456, %458 : vector<16x64xf32>
    %c12_i32_154 = arith.constant 12 : i32
    %460 = tpu.dynamic_rotate %435 by %c12_i32_154 dim 0 : vector<16x64xf32>, i32 -> vector<16x64xf32>
    %461 = vector.extract_strided_slice %2 {offsets = [0, 7], sizes = [16, 1], strides = [1, 1]} : vector<16x9xf32> to vector<16x1xf32>
    %462 = vector.broadcast %461 : vector<16x1xf32> to vector<16x64xf32>
    %463 = arith.mulf %460, %462 : vector<16x64xf32>
    %c11_i32_155 = arith.constant 11 : i32
    %464 = tpu.dynamic_rotate %435 by %c11_i32_155 dim 0 : vector<16x64xf32>, i32 -> vector<16x64xf32>
    %465 = vector.extract_strided_slice %2 {offsets = [0, 8], sizes = [16, 1], strides = [1, 1]} : vector<16x9xf32> to vector<16x1xf32>
    %466 = vector.broadcast %465 : vector<16x1xf32> to vector<16x64xf32>
    %467 = arith.mulf %464, %466 : vector<16x64xf32>
    %468 = tpu.concatenate %439, %443, %447, %451, %435, %455, %459, %463, %467 in 1 : vector<16x64xf32>, vector<16x64xf32>, vector<16x64xf32>, vector<16x64xf32>, vector<16x64xf32>, vector<16x64xf32>, vector<16x64xf32>, vector<16x64xf32>, vector<16x64xf32> -> vector<16x576xf32>
    %469 = arith.truncf %468 : vector<16x576xf32> to vector<16x576xbf16>
    %c0_156 = arith.constant 0 : index
    %c0_157 = arith.constant 0 : index
    %470 = vector.load %arg31[%c0_156, %c0_157] : memref<576x64xbf16, #tpu.memory_space<vmem>>, vector<576x64xbf16>
    %cst_158 = arith.constant dense<0.000000e+00> : vector<16x64xf32>
    %471 = tpu.matmul %469, %470, %cst_158 {dimension_numbers = #tpu.dot_dimension_numbers<[1], [0], [0], [1], [0, 0, 1, 1], [], []>} : vector<16x576xbf16>, vector<576x64xbf16>, vector<16x64xf32> -> vector<16x64xf32>
    %c0_159 = arith.constant 0 : index
    %c0_160 = arith.constant 0 : index
    %472 = vector.load %arg32[%c0_159, %c0_160] : memref<1x64xf32, #tpu.memory_space<vmem>>, vector<1x64xf32>
    %473 = vector.broadcast %472 : vector<1x64xf32> to vector<16x64xf32>
    %474 = arith.addf %471, %473 : vector<16x64xf32>
    %cst_161 = arith.constant 0.000000e+00 : f32
    %475 = vector.broadcast %cst_161 : f32 to vector<16x64xf32>
    %476 = arith.maximumf %474, %475 : vector<16x64xf32>
    %477 = vector.extract_strided_slice %2 {offsets = [0, 1], sizes = [16, 1], strides = [1, 1]} : vector<16x9xf32> to vector<16x1xf32>
    %cst_162 = arith.constant 5.000000e-01 : f32
    %478 = vector.broadcast %cst_162 : f32 to vector<16x1xf32>
    %479 = arith.cmpf ogt, %477, %478 : vector<16x1xf32>
    %c4_i32_163 = arith.constant 4 : i32
    %480 = tpu.dynamic_rotate %342 by %c4_i32_163 dim 0 : vector<16x192xf32>, i32 -> vector<16x192xf32>
    %cst_164 = arith.constant -1.000000e+30 : f32
    %481 = vector.shape_cast %479 : vector<16x1xi1> to vector<16x1xi1>
    %482 = vector.broadcast %481 : vector<16x1xi1> to vector<16x192xi1>
    %483 = vector.broadcast %cst_164 : f32 to vector<16x192xf32>
    %484 = arith.select %482, %480, %483 : vector<16x192xi1>, vector<16x192xf32>
    %485 = vector.extract_strided_slice %2 {offsets = [0, 7], sizes = [16, 1], strides = [1, 1]} : vector<16x9xf32> to vector<16x1xf32>
    %cst_165 = arith.constant 5.000000e-01 : f32
    %486 = vector.broadcast %cst_165 : f32 to vector<16x1xf32>
    %487 = arith.cmpf ogt, %485, %486 : vector<16x1xf32>
    %c12_i32_166 = arith.constant 12 : i32
    %488 = tpu.dynamic_rotate %342 by %c12_i32_166 dim 0 : vector<16x192xf32>, i32 -> vector<16x192xf32>
    %cst_167 = arith.constant -1.000000e+30 : f32
    %489 = vector.shape_cast %487 : vector<16x1xi1> to vector<16x1xi1>
    %490 = vector.broadcast %489 : vector<16x1xi1> to vector<16x192xi1>
    %491 = vector.broadcast %cst_167 : f32 to vector<16x192xf32>
    %492 = arith.select %490, %488, %491 : vector<16x192xi1>, vector<16x192xf32>
    %493 = arith.maximumf %484, %492 : vector<16x192xf32>
    %494 = arith.maximumf %493, %342 : vector<16x192xf32>
    %495 = vector.extract_strided_slice %2 {offsets = [0, 3], sizes = [16, 1], strides = [1, 1]} : vector<16x9xf32> to vector<16x1xf32>
    %cst_168 = arith.constant 5.000000e-01 : f32
    %496 = vector.broadcast %cst_168 : f32 to vector<16x1xf32>
    %497 = arith.cmpf ogt, %495, %496 : vector<16x1xf32>
    %c1_i32_169 = arith.constant 1 : i32
    %498 = tpu.dynamic_rotate %494 by %c1_i32_169 dim 0 : vector<16x192xf32>, i32 -> vector<16x192xf32>
    %cst_170 = arith.constant -1.000000e+30 : f32
    %499 = vector.shape_cast %497 : vector<16x1xi1> to vector<16x1xi1>
    %500 = vector.broadcast %499 : vector<16x1xi1> to vector<16x192xi1>
    %501 = vector.broadcast %cst_170 : f32 to vector<16x192xf32>
    %502 = arith.select %500, %498, %501 : vector<16x192xi1>, vector<16x192xf32>
    %503 = vector.extract_strided_slice %2 {offsets = [0, 5], sizes = [16, 1], strides = [1, 1]} : vector<16x9xf32> to vector<16x1xf32>
    %cst_171 = arith.constant 5.000000e-01 : f32
    %504 = vector.broadcast %cst_171 : f32 to vector<16x1xf32>
    %505 = arith.cmpf ogt, %503, %504 : vector<16x1xf32>
    %c15_i32_172 = arith.constant 15 : i32
    %506 = tpu.dynamic_rotate %494 by %c15_i32_172 dim 0 : vector<16x192xf32>, i32 -> vector<16x192xf32>
    %cst_173 = arith.constant -1.000000e+30 : f32
    %507 = vector.shape_cast %505 : vector<16x1xi1> to vector<16x1xi1>
    %508 = vector.broadcast %507 : vector<16x1xi1> to vector<16x192xi1>
    %509 = vector.broadcast %cst_173 : f32 to vector<16x192xf32>
    %510 = arith.select %508, %506, %509 : vector<16x192xi1>, vector<16x192xf32>
    %511 = arith.maximumf %502, %510 : vector<16x192xf32>
    %512 = arith.maximumf %511, %494 : vector<16x192xf32>
    %513 = arith.truncf %512 : vector<16x192xf32> to vector<16x192xbf16>
    %c0_174 = arith.constant 0 : index
    %c0_175 = arith.constant 0 : index
    %514 = vector.load %arg33[%c0_174, %c0_175] : memref<192x64xbf16, #tpu.memory_space<vmem>>, vector<192x64xbf16>
    %cst_176 = arith.constant dense<0.000000e+00> : vector<16x64xf32>
    %515 = tpu.matmul %513, %514, %cst_176 {dimension_numbers = #tpu.dot_dimension_numbers<[1], [0], [0], [1], [0, 0, 1, 1], [], []>} : vector<16x192xbf16>, vector<192x64xbf16>, vector<16x64xf32> -> vector<16x64xf32>
    %c0_177 = arith.constant 0 : index
    %c0_178 = arith.constant 0 : index
    %516 = vector.load %arg34[%c0_177, %c0_178] : memref<1x64xf32, #tpu.memory_space<vmem>>, vector<1x64xf32>
    %517 = vector.broadcast %516 : vector<1x64xf32> to vector<16x64xf32>
    %518 = arith.addf %515, %517 : vector<16x64xf32>
    %cst_179 = arith.constant 0.000000e+00 : f32
    %519 = vector.broadcast %cst_179 : f32 to vector<16x64xf32>
    %520 = arith.maximumf %518, %519 : vector<16x64xf32>
    %521 = tpu.concatenate %351, %393, %476, %520 in 1 : vector<16x128xf32>, vector<16x96xf32>, vector<16x64xf32>, vector<16x64xf32> -> vector<16x352xf32>
    %c0_180 = arith.constant 0 : index
    %c0_181 = arith.constant 0 : index
    %522 = vector.load %arg35[%c0_180, %c0_181] : memref<1x352xf32, #tpu.memory_space<vmem>>, vector<1x352xf32>
    %523 = vector.broadcast %522 : vector<1x352xf32> to vector<16x352xf32>
    %524 = arith.mulf %521, %523 : vector<16x352xf32>
    %c0_182 = arith.constant 0 : index
    %c0_183 = arith.constant 0 : index
    %525 = vector.load %arg36[%c0_182, %c0_183] : memref<1x352xf32, #tpu.memory_space<vmem>>, vector<1x352xf32>
    %526 = vector.broadcast %525 : vector<1x352xf32> to vector<16x352xf32>
    %527 = arith.addf %524, %526 : vector<16x352xf32>
    %cst_184 = arith.constant 0.000000e+00 : f32
    %528 = vector.broadcast %cst_184 : f32 to vector<16x352xf32>
    %529 = arith.maximumf %527, %528 : vector<16x352xf32>
    %530 = vector.extract_strided_slice %2 {offsets = [0, 1], sizes = [16, 1], strides = [1, 1]} : vector<16x9xf32> to vector<16x1xf32>
    %cst_185 = arith.constant 5.000000e-01 : f32
    %531 = vector.broadcast %cst_185 : f32 to vector<16x1xf32>
    %532 = arith.cmpf ogt, %530, %531 : vector<16x1xf32>
    %c4_i32_186 = arith.constant 4 : i32
    %533 = tpu.dynamic_rotate %529 by %c4_i32_186 dim 0 : vector<16x352xf32>, i32 -> vector<16x352xf32>
    %cst_187 = arith.constant -1.000000e+30 : f32
    %534 = vector.shape_cast %532 : vector<16x1xi1> to vector<16x1xi1>
    %535 = vector.broadcast %534 : vector<16x1xi1> to vector<16x352xi1>
    %536 = vector.broadcast %cst_187 : f32 to vector<16x352xf32>
    %537 = arith.select %535, %533, %536 : vector<16x352xi1>, vector<16x352xf32>
    %538 = vector.extract_strided_slice %2 {offsets = [0, 7], sizes = [16, 1], strides = [1, 1]} : vector<16x9xf32> to vector<16x1xf32>
    %cst_188 = arith.constant 5.000000e-01 : f32
    %539 = vector.broadcast %cst_188 : f32 to vector<16x1xf32>
    %540 = arith.cmpf ogt, %538, %539 : vector<16x1xf32>
    %c12_i32_189 = arith.constant 12 : i32
    %541 = tpu.dynamic_rotate %529 by %c12_i32_189 dim 0 : vector<16x352xf32>, i32 -> vector<16x352xf32>
    %cst_190 = arith.constant -1.000000e+30 : f32
    %542 = vector.shape_cast %540 : vector<16x1xi1> to vector<16x1xi1>
    %543 = vector.broadcast %542 : vector<16x1xi1> to vector<16x352xi1>
    %544 = vector.broadcast %cst_190 : f32 to vector<16x352xf32>
    %545 = arith.select %543, %541, %544 : vector<16x352xi1>, vector<16x352xf32>
    %546 = arith.maximumf %537, %545 : vector<16x352xf32>
    %547 = arith.maximumf %546, %529 : vector<16x352xf32>
    %548 = vector.extract_strided_slice %2 {offsets = [0, 3], sizes = [16, 1], strides = [1, 1]} : vector<16x9xf32> to vector<16x1xf32>
    %cst_191 = arith.constant 5.000000e-01 : f32
    %549 = vector.broadcast %cst_191 : f32 to vector<16x1xf32>
    %550 = arith.cmpf ogt, %548, %549 : vector<16x1xf32>
    %c1_i32_192 = arith.constant 1 : i32
    %551 = tpu.dynamic_rotate %547 by %c1_i32_192 dim 0 : vector<16x352xf32>, i32 -> vector<16x352xf32>
    %cst_193 = arith.constant -1.000000e+30 : f32
    %552 = vector.shape_cast %550 : vector<16x1xi1> to vector<16x1xi1>
    %553 = vector.broadcast %552 : vector<16x1xi1> to vector<16x352xi1>
    %554 = vector.broadcast %cst_193 : f32 to vector<16x352xf32>
    %555 = arith.select %553, %551, %554 : vector<16x352xi1>, vector<16x352xf32>
    %556 = vector.extract_strided_slice %2 {offsets = [0, 5], sizes = [16, 1], strides = [1, 1]} : vector<16x9xf32> to vector<16x1xf32>
    %cst_194 = arith.constant 5.000000e-01 : f32
    %557 = vector.broadcast %cst_194 : f32 to vector<16x1xf32>
    %558 = arith.cmpf ogt, %556, %557 : vector<16x1xf32>
    %c15_i32_195 = arith.constant 15 : i32
    %559 = tpu.dynamic_rotate %547 by %c15_i32_195 dim 0 : vector<16x352xf32>, i32 -> vector<16x352xf32>
    %cst_196 = arith.constant -1.000000e+30 : f32
    %560 = vector.shape_cast %558 : vector<16x1xi1> to vector<16x1xi1>
    %561 = vector.broadcast %560 : vector<16x1xi1> to vector<16x352xi1>
    %562 = vector.broadcast %cst_196 : f32 to vector<16x352xf32>
    %563 = arith.select %561, %559, %562 : vector<16x352xi1>, vector<16x352xf32>
    %564 = arith.maximumf %555, %563 : vector<16x352xf32>
    %565 = arith.maximumf %564, %547 : vector<16x352xf32>
    %c0_197 = arith.constant 0 : index
    %c0_198 = arith.constant 0 : index
    %566 = vector.load %arg7[%c0_197, %c0_198] : memref<4x16xf32, #tpu.memory_space<vmem>>, vector<4x16xf32>
    %cst_199 = arith.constant dense<0.000000e+00> : vector<4x352xf32>
    %567 = tpu.matmul %566, %565, %cst_199 {dimension_numbers = #tpu.dot_dimension_numbers<[1], [0], [0], [1], [0, 0, 1, 1], [], []>} : vector<4x16xf32>, vector<16x352xf32>, vector<4x352xf32> -> vector<4x352xf32>
    %c0_200 = arith.constant 0 : index
    %c0_201 = arith.constant 0 : index
    %568 = vector.load %arg8[%c0_200, %c0_201] : memref<8x4xf32, #tpu.memory_space<vmem>>, vector<8x4xf32>
    %cst_202 = arith.constant dense<0.000000e+00> : vector<8x352xf32>
    %569 = tpu.matmul %568, %567, %cst_202 {dimension_numbers = #tpu.dot_dimension_numbers<[1], [0], [0], [1], [0, 0, 1, 1], [], []>} : vector<8x4xf32>, vector<4x352xf32>, vector<8x352xf32> -> vector<8x352xf32>
    %570 = arith.truncf %569 : vector<8x352xf32> to vector<8x352xbf16>
    %c0_203 = arith.constant 0 : index
    %c0_204 = arith.constant 0 : index
    %571 = vector.load %arg37[%c0_203, %c0_204] : memref<352x256xbf16, #tpu.memory_space<vmem>>, vector<352x256xbf16>
    %cst_205 = arith.constant dense<0.000000e+00> : vector<8x256xf32>
    %572 = tpu.matmul %570, %571, %cst_205 {dimension_numbers = #tpu.dot_dimension_numbers<[1], [0], [0], [1], [0, 0, 1, 1], [], []>} : vector<8x352xbf16>, vector<352x256xbf16>, vector<8x256xf32> -> vector<8x256xf32>
    %c0_206 = arith.constant 0 : index
    %c0_207 = arith.constant 0 : index
    %573 = vector.load %arg38[%c0_206, %c0_207] : memref<1x256xf32, #tpu.memory_space<vmem>>, vector<1x256xf32>
    %574 = vector.broadcast %573 : vector<1x256xf32> to vector<8x256xf32>
    %575 = arith.addf %572, %574 : vector<8x256xf32>
    %cst_208 = arith.constant 0.000000e+00 : f32
    %576 = vector.broadcast %cst_208 : f32 to vector<8x256xf32>
    %577 = arith.maximumf %575, %576 : vector<8x256xf32>
    %578 = arith.truncf %577 : vector<8x256xf32> to vector<8x256xbf16>
    %c0_209 = arith.constant 0 : index
    %c0_210 = arith.constant 0 : index
    %579 = vector.load %arg39[%c0_209, %c0_210] : memref<256x10xbf16, #tpu.memory_space<vmem>>, vector<256x10xbf16>
    %cst_211 = arith.constant dense<0.000000e+00> : vector<8x10xf32>
    %580 = tpu.matmul %578, %579, %cst_211 {dimension_numbers = #tpu.dot_dimension_numbers<[1], [0], [0], [1], [0, 0, 1, 1], [], []>} : vector<8x256xbf16>, vector<256x10xbf16>, vector<8x10xf32> -> vector<8x10xf32>
    %c0_212 = arith.constant 0 : index
    %c0_213 = arith.constant 0 : index
    %581 = vector.load %arg40[%c0_212, %c0_213] : memref<1x10xf32, #tpu.memory_space<vmem>>, vector<1x10xf32>
    %582 = vector.broadcast %581 : vector<1x10xf32> to vector<8x10xf32>
    %583 = arith.addf %580, %582 : vector<8x10xf32>
    %584 = vector.shape_cast %583 : vector<8x10xf32> to vector<1x8x10xf32>
    %c0_214 = arith.constant 0 : index
    %c0_215 = arith.constant 0 : index
    %c0_216 = arith.constant 0 : index
    %585 = vector.load %arg41[%c0_214, %c0_215, %c0_216] : memref<1x8x10xf32, #tpu.memory_space<vmem>>, vector<1x8x10xf32>
    tpu.vector_store %arg41[%c0_214, %c0_215, %c0_216], %584 {strides = array<i32>} : memref<1x8x10xf32, #tpu.memory_space<vmem>>, vector<1x8x10xf32>,
    return
  }
  func.func @transform_0(%arg0: i32) -> (i32, i32) {
    %c0_i32 = arith.constant 0 : i32
    %c0_i32_0 = arith.constant 0 : i32
    return %arg0, %c0_i32 : i32, i32
  }
  func.func @transform_1(%arg0: i32) -> (i32, i32) {
    %c0_i32 = arith.constant 0 : i32
    %c0_i32_0 = arith.constant 0 : i32
    %c0_i32_1 = arith.constant 0 : i32
    return %c0_i32, %c0_i32_0 : i32, i32
  }
  func.func @transform_2(%arg0: i32) -> (i32, i32) {
    %c0_i32 = arith.constant 0 : i32
    %c0_i32_0 = arith.constant 0 : i32
    %c0_i32_1 = arith.constant 0 : i32
    return %c0_i32, %c0_i32_0 : i32, i32
  }
  func.func @transform_3(%arg0: i32) -> (i32, i32) {
    %c0_i32 = arith.constant 0 : i32
    %c0_i32_0 = arith.constant 0 : i32
    %c0_i32_1 = arith.constant 0 : i32
    return %c0_i32, %c0_i32_0 : i32, i32
  }
  func.func @transform_4(%arg0: i32) -> (i32, i32) {
    %c0_i32 = arith.constant 0 : i32
    %c0_i32_0 = arith.constant 0 : i32
    %c0_i32_1 = arith.constant 0 : i32
    return %c0_i32, %c0_i32_0 : i32, i32
  }
  func.func @transform_5(%arg0: i32) -> (i32, i32) {
    %c0_i32 = arith.constant 0 : i32
    %c0_i32_0 = arith.constant 0 : i32
    %c0_i32_1 = arith.constant 0 : i32
    return %c0_i32, %c0_i32_0 : i32, i32
  }
  func.func @transform_6(%arg0: i32) -> (i32, i32) {
    %c0_i32 = arith.constant 0 : i32
    %c0_i32_0 = arith.constant 0 : i32
    %c0_i32_1 = arith.constant 0 : i32
    return %c0_i32, %c0_i32_0 : i32, i32
  }
  func.func @transform_7(%arg0: i32) -> (i32, i32) {
    %c0_i32 = arith.constant 0 : i32
    %c0_i32_0 = arith.constant 0 : i32
    %c0_i32_1 = arith.constant 0 : i32
    return %c0_i32, %c0_i32_0 : i32, i32
  }
  func.func @transform_8(%arg0: i32) -> (i32, i32) {
    %c0_i32 = arith.constant 0 : i32
    %c0_i32_0 = arith.constant 0 : i32
    %c0_i32_1 = arith.constant 0 : i32
    return %c0_i32, %c0_i32_0 : i32, i32
  }
  func.func @transform_9(%arg0: i32) -> (i32, i32) {
    %c0_i32 = arith.constant 0 : i32
    %c0_i32_0 = arith.constant 0 : i32
    %c0_i32_1 = arith.constant 0 : i32
    return %c0_i32, %c0_i32_0 : i32, i32
  }
  func.func @transform_10(%arg0: i32) -> (i32, i32) {
    %c0_i32 = arith.constant 0 : i32
    %c0_i32_0 = arith.constant 0 : i32
    %c0_i32_1 = arith.constant 0 : i32
    return %c0_i32, %c0_i32_0 : i32, i32
  }
  func.func @transform_11(%arg0: i32) -> (i32, i32) {
    %c0_i32 = arith.constant 0 : i32
    %c0_i32_0 = arith.constant 0 : i32
    %c0_i32_1 = arith.constant 0 : i32
    return %c0_i32, %c0_i32_0 : i32, i32
  }
  func.func @transform_12(%arg0: i32) -> (i32, i32) {
    %c0_i32 = arith.constant 0 : i32
    %c0_i32_0 = arith.constant 0 : i32
    %c0_i32_1 = arith.constant 0 : i32
    return %c0_i32, %c0_i32_0 : i32, i32
  }
  func.func @transform_13(%arg0: i32) -> (i32, i32) {
    %c0_i32 = arith.constant 0 : i32
    %c0_i32_0 = arith.constant 0 : i32
    %c0_i32_1 = arith.constant 0 : i32
    return %c0_i32, %c0_i32_0 : i32, i32
  }
  func.func @transform_14(%arg0: i32) -> (i32, i32) {
    %c0_i32 = arith.constant 0 : i32
    %c0_i32_0 = arith.constant 0 : i32
    %c0_i32_1 = arith.constant 0 : i32
    return %c0_i32, %c0_i32_0 : i32, i32
  }
  func.func @transform_15(%arg0: i32) -> (i32, i32) {
    %c0_i32 = arith.constant 0 : i32
    %c0_i32_0 = arith.constant 0 : i32
    %c0_i32_1 = arith.constant 0 : i32
    return %c0_i32, %c0_i32_0 : i32, i32
  }
  func.func @transform_16(%arg0: i32) -> (i32, i32) {
    %c0_i32 = arith.constant 0 : i32
    %c0_i32_0 = arith.constant 0 : i32
    %c0_i32_1 = arith.constant 0 : i32
    return %c0_i32, %c0_i32_0 : i32, i32
  }
  func.func @transform_17(%arg0: i32) -> (i32, i32) {
    %c0_i32 = arith.constant 0 : i32
    %c0_i32_0 = arith.constant 0 : i32
    %c0_i32_1 = arith.constant 0 : i32
    return %c0_i32, %c0_i32_0 : i32, i32
  }
  func.func @transform_18(%arg0: i32) -> (i32, i32) {
    %c0_i32 = arith.constant 0 : i32
    %c0_i32_0 = arith.constant 0 : i32
    %c0_i32_1 = arith.constant 0 : i32
    return %c0_i32, %c0_i32_0 : i32, i32
  }
  func.func @transform_19(%arg0: i32) -> (i32, i32) {
    %c0_i32 = arith.constant 0 : i32
    %c0_i32_0 = arith.constant 0 : i32
    %c0_i32_1 = arith.constant 0 : i32
    return %c0_i32, %c0_i32_0 : i32, i32
  }
  func.func @transform_20(%arg0: i32) -> (i32, i32) {
    %c0_i32 = arith.constant 0 : i32
    %c0_i32_0 = arith.constant 0 : i32
    %c0_i32_1 = arith.constant 0 : i32
    return %c0_i32, %c0_i32_0 : i32, i32
  }
  func.func @transform_21(%arg0: i32) -> (i32, i32) {
    %c0_i32 = arith.constant 0 : i32
    %c0_i32_0 = arith.constant 0 : i32
    %c0_i32_1 = arith.constant 0 : i32
    return %c0_i32, %c0_i32_0 : i32, i32
  }
  func.func @transform_22(%arg0: i32) -> (i32, i32) {
    %c0_i32 = arith.constant 0 : i32
    %c0_i32_0 = arith.constant 0 : i32
    %c0_i32_1 = arith.constant 0 : i32
    return %c0_i32, %c0_i32_0 : i32, i32
  }
  func.func @transform_23(%arg0: i32) -> (i32, i32) {
    %c0_i32 = arith.constant 0 : i32
    %c0_i32_0 = arith.constant 0 : i32
    %c0_i32_1 = arith.constant 0 : i32
    return %c0_i32, %c0_i32_0 : i32, i32
  }
  func.func @transform_24(%arg0: i32) -> (i32, i32) {
    %c0_i32 = arith.constant 0 : i32
    %c0_i32_0 = arith.constant 0 : i32
    %c0_i32_1 = arith.constant 0 : i32
    return %c0_i32, %c0_i32_0 : i32, i32
  }
  func.func @transform_25(%arg0: i32) -> (i32, i32) {
    %c0_i32 = arith.constant 0 : i32
    %c0_i32_0 = arith.constant 0 : i32
    %c0_i32_1 = arith.constant 0 : i32
    return %c0_i32, %c0_i32_0 : i32, i32
  }
  func.func @transform_26(%arg0: i32) -> (i32, i32) {
    %c0_i32 = arith.constant 0 : i32
    %c0_i32_0 = arith.constant 0 : i32
    %c0_i32_1 = arith.constant 0 : i32
    return %c0_i32, %c0_i32_0 : i32, i32
  }
  func.func @transform_27(%arg0: i32) -> (i32, i32) {
    %c0_i32 = arith.constant 0 : i32
    %c0_i32_0 = arith.constant 0 : i32
    %c0_i32_1 = arith.constant 0 : i32
    return %c0_i32, %c0_i32_0 : i32, i32
  }
  func.func @transform_28(%arg0: i32) -> (i32, i32) {
    %c0_i32 = arith.constant 0 : i32
    %c0_i32_0 = arith.constant 0 : i32
    %c0_i32_1 = arith.constant 0 : i32
    return %c0_i32, %c0_i32_0 : i32, i32
  }
  func.func @transform_29(%arg0: i32) -> (i32, i32) {
    %c0_i32 = arith.constant 0 : i32
    %c0_i32_0 = arith.constant 0 : i32
    %c0_i32_1 = arith.constant 0 : i32
    return %c0_i32, %c0_i32_0 : i32, i32
  }
  func.func @transform_30(%arg0: i32) -> (i32, i32) {
    %c0_i32 = arith.constant 0 : i32
    %c0_i32_0 = arith.constant 0 : i32
    %c0_i32_1 = arith.constant 0 : i32
    return %c0_i32, %c0_i32_0 : i32, i32
  }
  func.func @transform_31(%arg0: i32) -> (i32, i32) {
    %c0_i32 = arith.constant 0 : i32
    %c0_i32_0 = arith.constant 0 : i32
    %c0_i32_1 = arith.constant 0 : i32
    return %c0_i32, %c0_i32_0 : i32, i32
  }
  func.func @transform_32(%arg0: i32) -> (i32, i32) {
    %c0_i32 = arith.constant 0 : i32
    %c0_i32_0 = arith.constant 0 : i32
    %c0_i32_1 = arith.constant 0 : i32
    return %c0_i32, %c0_i32_0 : i32, i32
  }
  func.func @transform_33(%arg0: i32) -> (i32, i32) {
    %c0_i32 = arith.constant 0 : i32
    %c0_i32_0 = arith.constant 0 : i32
    %c0_i32_1 = arith.constant 0 : i32
    return %c0_i32, %c0_i32_0 : i32, i32
  }
  func.func @transform_34(%arg0: i32) -> (i32, i32) {
    %c0_i32 = arith.constant 0 : i32
    %c0_i32_0 = arith.constant 0 : i32
    %c0_i32_1 = arith.constant 0 : i32
    return %c0_i32, %c0_i32_0 : i32, i32
  }
  func.func @transform_35(%arg0: i32) -> (i32, i32) {
    %c0_i32 = arith.constant 0 : i32
    %c0_i32_0 = arith.constant 0 : i32
    %c0_i32_1 = arith.constant 0 : i32
    return %c0_i32, %c0_i32_0 : i32, i32
  }
  func.func @transform_36(%arg0: i32) -> (i32, i32) {
    %c0_i32 = arith.constant 0 : i32
    %c0_i32_0 = arith.constant 0 : i32
    %c0_i32_1 = arith.constant 0 : i32
    return %c0_i32, %c0_i32_0 : i32, i32
  }
  func.func @transform_37(%arg0: i32) -> (i32, i32) {
    %c0_i32 = arith.constant 0 : i32
    %c0_i32_0 = arith.constant 0 : i32
    %c0_i32_1 = arith.constant 0 : i32
    return %c0_i32, %c0_i32_0 : i32, i32
  }
  func.func @transform_38(%arg0: i32) -> (i32, i32) {
    %c0_i32 = arith.constant 0 : i32
    %c0_i32_0 = arith.constant 0 : i32
    %c0_i32_1 = arith.constant 0 : i32
    return %c0_i32, %c0_i32_0 : i32, i32
  }
  func.func @transform_39(%arg0: i32) -> (i32, i32) {
    %c0_i32 = arith.constant 0 : i32
    %c0_i32_0 = arith.constant 0 : i32
    %c0_i32_1 = arith.constant 0 : i32
    return %c0_i32, %c0_i32_0 : i32, i32
  }
  func.func @transform_40(%arg0: i32) -> (i32, i32, i32) {
    %c0_i32 = arith.constant 0 : i32
    %c0_i32_0 = arith.constant 0 : i32
    %c0_i32_1 = arith.constant 0 : i32
    return %arg0, %c0_i32, %c0_i32_0 : i32, i32, i32
  }
}

</mosaic_0001>

<llo_original>
// kernel: forward.1
$region0: #{forward.1}
  #allocation0 [shape = 'u32[]', space=smem, size = 0x4, offset = 0x4, fixed_abs, tag = 'smem constant byte address 0x4 - core index']
  #allocation1 [shape = 'u32[144,128]{1,0:T(1,128)}', space=vmem, size = 0x12000, scoped, tag = 'internal scratch']
  %s0 = inlined_call_operand.smem [shape: u32[41], index: -1, kind: input, shape index: {}]
  %s1 = sld [smem:[%s0]]
  %s2 = scalar_lea.smem %s0, 1
  %s3 = sld [smem:[%s2]]
  %s4 = scalar_lea.smem %s0, 2
  %s5 = sld [smem:[%s4]]
  %s6 = scalar_lea.smem %s0, 3
  %s7 = sld [smem:[%s6]]
  %s8 = scalar_lea.smem %s0, 4
  %s9 = sld [smem:[%s8]]
  %s10 = scalar_lea.smem %s0, 5
  %s11 = sld [smem:[%s10]]
  %s12 = scalar_lea.smem %s0, 6
  %s13 = sld [smem:[%s12]]
  %s14 = scalar_lea.smem %s0, 7
  %s15 = sld [smem:[%s14]]
  %s16 = scalar_lea.smem %s0, 8
  %s17 = sld [smem:[%s16]]
  %s18 = scalar_lea.smem %s0, 9
  %s19 = sld [smem:[%s18]]
  %s20 = scalar_lea.smem %s0, 10
  %s21 = sld [smem:[%s20]]
  %s22 = scalar_lea.smem %s0, 11
  %s23 = sld [smem:[%s22]]
  %s24 = scalar_lea.smem %s0, 12
  %s25 = sld [smem:[%s24]]
  %s26 = scalar_lea.smem %s0, 13
  %s27 = sld [smem:[%s26]]
  %s28 = scalar_lea.smem %s0, 14
  %s29 = sld [smem:[%s28]]
  %s30 = scalar_lea.smem %s0, 15
  %s31 = sld [smem:[%s30]]
  %s32 = scalar_lea.smem %s0, 16
  %s33 = sld [smem:[%s32]]
  %s34 = scalar_lea.smem %s0, 17
  %s35 = sld [smem:[%s34]]
  %s36 = scalar_lea.smem %s0, 18
  %s37 = sld [smem:[%s36]]
  %s38 = scalar_lea.smem %s0, 19
  %s39 = sld [smem:[%s38]]
  %s40 = scalar_lea.smem %s0, 20
  %s41 = sld [smem:[%s40]]
  %s42 = scalar_lea.smem %s0, 21
  %s43 = sld [smem:[%s42]]
  %s44 = scalar_lea.smem %s0, 22
  %s45 = sld [smem:[%s44]]
  %s46 = scalar_lea.smem %s0, 23
  %s47 = sld [smem:[%s46]]
  %s48 = scalar_lea.smem %s0, 24
  %s49 = sld [smem:[%s48]]
  %s50 = scalar_lea.smem %s0, 25
  %s51 = sld [smem:[%s50]]
  %s52 = scalar_lea.smem %s0, 26
  %s53 = sld [smem:[%s52]]
  %s54 = scalar_lea.smem %s0, 27
  %s55 = sld [smem:[%s54]]
  %s56 = scalar_lea.smem %s0, 28
  %s57 = sld [smem:[%s56]]
  %s58 = scalar_lea.smem %s0, 29
  %s59 = sld [smem:[%s58]]
  %s60 = scalar_lea.smem %s0, 30
  %s61 = sld [smem:[%s60]]
  %s62 = scalar_lea.smem %s0, 31
  %s63 = sld [smem:[%s62]]
  %s64 = scalar_lea.smem %s0, 32
  %s65 = sld [smem:[%s64]]
  %s66 = scalar_lea.smem %s0, 33
  %s67 = sld [smem:[%s66]]
  %s68 = scalar_lea.smem %s0, 34
  %s69 = sld [smem:[%s68]]
  %s70 = scalar_lea.smem %s0, 35
  %s71 = sld [smem:[%s70]]
  %s72 = scalar_lea.smem %s0, 36
  %s73 = sld [smem:[%s72]]
  %s74 = scalar_lea.smem %s0, 37
  %s75 = sld [smem:[%s74]]
  %s76 = scalar_lea.smem %s0, 38
  %s77 = sld [smem:[%s76]]
  %s78 = scalar_lea.smem %s0, 39
  %s79 = sld [smem:[%s78]]
  %s80 = scalar_lea.smem %s0, 40
  %s81 = sld [smem:[%s80]]
  %s82 = sld [smem:[#allocation0]]
  $region193: #{forward.1} parent=0
    _
  %s84 = ssub.s32 1, %s82
  %s85 = scalar_select 0, %s84, %s82
  loop: start=0, step=1, limit=4
  $region2: #{forward.1} parent=0 // loop_pre_header
    _
  $region3: #{forward.1} parent=0 // loop_header
    %s87 = sphi 0, %s91
    %p88 = scmp.ge.s32.totalorder %s87, 4
    %s97 = sphi 0, %s99
    %s100 = sphi 0, %s97
    %s101 = sphi 0, %s100
    %s117 = sphi 0, %s101
    %s121 = sphi 0, %s121
    %s123 = sphi 0, %s121
    %s124 = sphi 0, %s123
    %s138 = sphi 0, %s124
    %s142 = sphi 0, %s142
    %s144 = sphi 0, %s142
    %s145 = sphi 0, %s144
    %s159 = sphi 0, %s145
    %s163 = sphi 0, %s163
    %s165 = sphi 0, %s163
    %s166 = sphi 0, %s165
    %s180 = sphi 0, %s166
    %s184 = sphi 0, %s184
    %s186 = sphi 0, %s184
    %s187 = sphi 0, %s186
    %s201 = sphi 0, %s187
    %s205 = sphi 0, %s205
    %s207 = sphi 0, %s205
    %s208 = sphi 0, %s207
    %s222 = sphi 0, %s208
    %s226 = sphi 0, %s226
    %s228 = sphi 0, %s226
    %s229 = sphi 0, %s228
    %s243 = sphi 0, %s229
    %s247 = sphi 0, %s247
    %s249 = sphi 0, %s247
    %s250 = sphi 0, %s249
    %s264 = sphi 0, %s250
    %s268 = sphi 0, %s268
    %s270 = sphi 0, %s268
    %s271 = sphi 0, %s270
    %s285 = sphi 0, %s271
    %s289 = sphi 0, %s289
    %s291 = sphi 0, %s289
    %s292 = sphi 0, %s291
    %s306 = sphi 0, %s292
    %s310 = sphi 0, %s310
    %s312 = sphi 0, %s310
    %s313 = sphi 0, %s312
    %s327 = sphi 0, %s313
    %s331 = sphi 0, %s331
    %s333 = sphi 0, %s331
    %s334 = sphi 0, %s333
    %s348 = sphi 0, %s334
    %s352 = sphi 0, %s352
    %s354 = sphi 0, %s352
    %s355 = sphi 0, %s354
    %s369 = sphi 0, %s355
    %s373 = sphi 0, %s373
    %s375 = sphi 0, %s373
    %s376 = sphi 0, %s375
    %s390 = sphi 0, %s376
    %s394 = sphi 0, %s394
    %s396 = sphi 0, %s394
    %s397 = sphi 0, %s396
    %s411 = sphi 0, %s397
    %s415 = sphi 0, %s415
    %s417 = sphi 0, %s415
    %s418 = sphi 0, %s417
    %s432 = sphi 0, %s418
    %s436 = sphi 0, %s436
    %s438 = sphi 0, %s436
    %s439 = sphi 0, %s438
    %s453 = sphi 0, %s439
    %s457 = sphi 0, %s457
    %s459 = sphi 0, %s457
    %s460 = sphi 0, %s459
    %s474 = sphi 0, %s460
    %s478 = sphi 0, %s478
    %s480 = sphi 0, %s478
    %s481 = sphi 0, %s480
    %s495 = sphi 0, %s481
    %s499 = sphi 0, %s499
    %s501 = sphi 0, %s499
    %s502 = sphi 0, %s501
    %s516 = sphi 0, %s502
    %s520 = sphi 0, %s520
    %s522 = sphi 0, %s520
    %s523 = sphi 0, %s522
    %s537 = sphi 0, %s523
    %s541 = sphi 0, %s541
    %s543 = sphi 0, %s541
    %s544 = sphi 0, %s543
    %s558 = sphi 0, %s544
    %s562 = sphi 0, %s562
    %s564 = sphi 0, %s562
    %s565 = sphi 0, %s564
    %s579 = sphi 0, %s565
    %s583 = sphi 0, %s583
    %s585 = sphi 0, %s583
    %s586 = sphi 0, %s585
    %s600 = sphi 0, %s586
    %s604 = sphi 0, %s604
    %s606 = sphi 0, %s604
    %s607 = sphi 0, %s606
    %s621 = sphi 0, %s607
    %s625 = sphi 0, %s625
    %s627 = sphi 0, %s625
    %s628 = sphi 0, %s627
    %s642 = sphi 0, %s628
    %s646 = sphi 0, %s646
    %s648 = sphi 0, %s646
    %s649 = sphi 0, %s648
    %s663 = sphi 0, %s649
    %s667 = sphi 0, %s667
    %s669 = sphi 0, %s667
    %s670 = sphi 0, %s669
    %s684 = sphi 0, %s670
    %s688 = sphi 0, %s688
    %s690 = sphi 0, %s688
    %s691 = sphi 0, %s690
    %s705 = sphi 0, %s691
    %s709 = sphi 0, %s709
    %s711 = sphi 0, %s709
    %s712 = sphi 0, %s711
    %s726 = sphi 0, %s712
    %s730 = sphi 0, %s730
    %s732 = sphi 0, %s730
    %s733 = sphi 0, %s732
    %s747 = sphi 0, %s733
    %s751 = sphi 0, %s751
    %s753 = sphi 0, %s751
    %s754 = sphi 0, %s753
    %s768 = sphi 0, %s754
    %s772 = sphi 0, %s772
    %s774 = sphi 0, %s772
    %s775 = sphi 0, %s774
    %s789 = sphi 0, %s775
    %s793 = sphi 0, %s793
    %s795 = sphi 0, %s793
    %s796 = sphi 0, %s795
    %s810 = sphi 0, %s796
    %s814 = sphi 0, %s814
    %s816 = sphi 0, %s814
    %s817 = sphi 0, %s816
    %s831 = sphi 0, %s817
    %s835 = sphi 0, %s835
    %s837 = sphi 0, %s835
    %s838 = sphi 0, %s837
    %s852 = sphi 0, %s838
    %s856 = sphi 0, %s856
    %s858 = sphi 0, %s856
    %s859 = sphi 0, %s858
    %s873 = sphi 0, %s859
    %s877 = sphi 0, %s877
    %s879 = sphi 0, %s877
    %s880 = sphi 0, %s879
    %s894 = sphi 0, %s880
    %s898 = sphi 0, %s898
    %s900 = sphi 0, %s898
    %s901 = sphi 0, %s900
    %s915 = sphi 0, %s901
    %s919 = sphi 0, %s919
    %s921 = sphi 0, %s919
    %s922 = sphi 0, %s921
    %s936 = sphi 0, %s922
    %s942 = sphi 0, %s944
    %s945 = sphi 0, %s942
    %s946 = sphi 0, %s945
    %s962 = sphi 0, %s946
  $region4: #{forward.1} parent=0 // loop_header_branch
    %90 = sbr.rel (%p88) target = $region8
  $region5: #{forward.1} parent=0 // loop_body
    %s92 = ssub.s32 %s87, 1
    %s93 = ssub.s32 %s87, 2
    %s94 = sadd.s32 %s87, 1
    %s95 = ssub.s32 %s87, %s94
    %p96 = scmp.eq.s32.totalorder %s95, 0
    %s98 = sadd.s32 %s97, 1
    %s99 = scalar_select %p96, %s97, %s98
    %p102 = pneg %p96
    %p103 = scmp.eq.s32.totalorder %s87, 1
    %p104 = por %p102, %p103
    %p105 = scmp.ne.s32.totalorder %s97, %s100
    %p106 = scmp.eq.s32.totalorder %s87, 0
    %p107 = por %p105, %p106
    %p108 = scmp.ne.s32.totalorder %s97, %s100
    %p109 = scmp.eq.s32.totalorder %s92, 1
    %p110 = por %p108, %p109
    %p111 = scmp.ne.s32.totalorder %s100, %s101
    %p112 = scmp.eq.s32.totalorder %s92, 0
    %p113 = por %p111, %p112
    %p114 = scmp.ne.s32.totalorder %s100, %s101
    %p115 = scmp.eq.s32.totalorder %s93, 1
    %p116 = por %p114, %p115
    %p118 = scmp.ne.s32.totalorder %s101, %s117
    %p119 = scmp.eq.s32.totalorder %s93, 0
    %p120 = por %p118, %p119
    %s122 = sadd.s32 %s121, 1
    %p125 = scmp.eq.s32.totalorder %s87, 1
    %p126 = scmp.ne.s32.totalorder %s121, %s123
    %p127 = scmp.eq.s32.totalorder %s87, 0
    %p128 = por %p126, %p127
    %p129 = scmp.ne.s32.totalorder %s121, %s123
    %p130 = scmp.eq.s32.totalorder %s92, 1
    %p131 = por %p129, %p130
    %p132 = scmp.ne.s32.totalorder %s123, %s124
    %p133 = scmp.eq.s32.totalorder %s92, 0
    %p134 = por %p132, %p133
    %p135 = scmp.ne.s32.totalorder %s123, %s124
    %p136 = scmp.eq.s32.totalorder %s93, 1
    %p137 = por %p135, %p136
    %p139 = scmp.ne.s32.totalorder %s124, %s138
    %p140 = scmp.eq.s32.totalorder %s93, 0
    %p141 = por %p139, %p140
    %s143 = sadd.s32 %s142, 1
    %p146 = scmp.eq.s32.totalorder %s87, 1
    %p147 = scmp.ne.s32.totalorder %s142, %s144
    %p148 = scmp.eq.s32.totalorder %s87, 0
    %p149 = por %p147, %p148
    %p150 = scmp.ne.s32.totalorder %s142, %s144
    %p151 = scmp.eq.s32.totalorder %s92, 1
    %p152 = por %p150, %p151
    %p153 = scmp.ne.s32.totalorder %s144, %s145
    %p154 = scmp.eq.s32.totalorder %s92, 0
    %p155 = por %p153, %p154
    %p156 = scmp.ne.s32.totalorder %s144, %s145
    %p157 = scmp.eq.s32.totalorder %s93, 1
    %p158 = por %p156, %p157
    %p160 = scmp.ne.s32.totalorder %s145, %s159
    %p161 = scmp.eq.s32.totalorder %s93, 0
    %p162 = por %p160, %p161
    %s164 = sadd.s32 %s163, 1
    %p167 = scmp.eq.s32.totalorder %s87, 1
    %p168 = scmp.ne.s32.totalorder %s163, %s165
    %p169 = scmp.eq.s32.totalorder %s87, 0
    %p170 = por %p168, %p169
    %p171 = scmp.ne.s32.totalorder %s163, %s165
    %p172 = scmp.eq.s32.totalorder %s92, 1
    %p173 = por %p171, %p172
    %p174 = scmp.ne.s32.totalorder %s165, %s166
    %p175 = scmp.eq.s32.totalorder %s92, 0
    %p176 = por %p174, %p175
    %p177 = scmp.ne.s32.totalorder %s165, %s166
    %p178 = scmp.eq.s32.totalorder %s93, 1
    %p179 = por %p177, %p178
    %p181 = scmp.ne.s32.totalorder %s166, %s180
    %p182 = scmp.eq.s32.totalorder %s93, 0
    %p183 = por %p181, %p182
    %s185 = sadd.s32 %s184, 1
    %p188 = scmp.eq.s32.totalorder %s87, 1
    %p189 = scmp.ne.s32.totalorder %s184, %s186
    %p190 = scmp.eq.s32.totalorder %s87, 0
    %p191 = por %p189, %p190
    %p192 = scmp.ne.s32.totalorder %s184, %s186
    %p193 = scmp.eq.s32.totalorder %s92, 1
    %p194 = por %p192, %p193
    %p195 = scmp.ne.s32.totalorder %s186, %s187
    %p196 = scmp.eq.s32.totalorder %s92, 0
    %p197 = por %p195, %p196
    %p198 = scmp.ne.s32.totalorder %s186, %s187
    %p199 = scmp.eq.s32.totalorder %s93, 1
    %p200 = por %p198, %p199
    %p202 = scmp.ne.s32.totalorder %s187, %s201
    %p203 = scmp.eq.s32.totalorder %s93, 0
    %p204 = por %p202, %p203
    %s206 = sadd.s32 %s205, 1
    %p209 = scmp.eq.s32.totalorder %s87, 1
    %p210 = scmp.ne.s32.totalorder %s205, %s207
    %p211 = scmp.eq.s32.totalorder %s87, 0
    %p212 = por %p210, %p211
    %p213 = scmp.ne.s32.totalorder %s205, %s207
    %p214 = scmp.eq.s32.totalorder %s92, 1
    %p215 = por %p213, %p214
    %p216 = scmp.ne.s32.totalorder %s207, %s208
    %p217 = scmp.eq.s32.totalorder %s92, 0
    %p218 = por %p216, %p217
    %p219 = scmp.ne.s32.totalorder %s207, %s208
    %p220 = scmp.eq.s32.totalorder %s93, 1
    %p221 = por %p219, %p220
    %p223 = scmp.ne.s32.totalorder %s208, %s222
    %p224 = scmp.eq.s32.totalorder %s93, 0
    %p225 = por %p223, %p224
    %s227 = sadd.s32 %s226, 1
    %p230 = scmp.eq.s32.totalorder %s87, 1
    %p231 = scmp.ne.s32.totalorder %s226, %s228
    %p232 = scmp.eq.s32.totalorder %s87, 0
    %p233 = por %p231, %p232
    %p234 = scmp.ne.s32.totalorder %s226, %s228
    %p235 = scmp.eq.s32.totalorder %s92, 1
    %p236 = por %p234, %p235
    %p237 = scmp.ne.s32.totalorder %s228, %s229
    %p238 = scmp.eq.s32.totalorder %s92, 0
    %p239 = por %p237, %p238
    %p240 = scmp.ne.s32.totalorder %s228, %s229
    %p241 = scmp.eq.s32.totalorder %s93, 1
    %p242 = por %p240, %p241
    %p244 = scmp.ne.s32.totalorder %s229, %s243
    %p245 = scmp.eq.s32.totalorder %s93, 0
    %p246 = por %p244, %p245
    %s248 = sadd.s32 %s247, 1
    %p251 = scmp.eq.s32.totalorder %s87, 1
    %p252 = scmp.ne.s32.totalorder %s247, %s249
    %p253 = scmp.eq.s32.totalorder %s87, 0
    %p254 = por %p252, %p253
    %p255 = scmp.ne.s32.totalorder %s247, %s249
    %p256 = scmp.eq.s32.totalorder %s92, 1
    %p257 = por %p255, %p256
    %p258 = scmp.ne.s32.totalorder %s249, %s250
    %p259 = scmp.eq.s32.totalorder %s92, 0
    %p260 = por %p258, %p259
    %p261 = scmp.ne.s32.totalorder %s249, %s250
    %p262 = scmp.eq.s32.totalorder %s93, 1
    %p263 = por %p261, %p262
    %p265 = scmp.ne.s32.totalorder %s250, %s264
    %p266 = scmp.eq.s32.totalorder %s93, 0
    %p267 = por %p265, %p266
    %s269 = sadd.s32 %s268, 1
    %p272 = scmp.eq.s32.totalorder %s87, 1
    %p273 = scmp.ne.s32.totalorder %s268, %s270
    %p274 = scmp.eq.s32.totalorder %s87, 0
    %p275 = por %p273, %p274
    %p276 = scmp.ne.s32.totalorder %s268, %s270
    %p277 = scmp.eq.s32.totalorder %s92, 1
    %p278 = por %p276, %p277
    %p279 = scmp.ne.s32.totalorder %s270, %s271
    %p280 = scmp.eq.s32.totalorder %s92, 0
    %p281 = por %p279, %p280
    %p282 = scmp.ne.s32.totalorder %s270, %s271
    %p283 = scmp.eq.s32.totalorder %s93, 1
    %p284 = por %p282, %p283
    %p286 = scmp.ne.s32.totalorder %s271, %s285
    %p287 = scmp.eq.s32.totalorder %s93, 0
    %p288 = por %p286, %p287
    %s290 = sadd.s32 %s289, 1
    %p293 = scmp.eq.s32.totalorder %s87, 1
    %p294 = scmp.ne.s32.totalorder %s289, %s291
    %p295 = scmp.eq.s32.totalorder %s87, 0
    %p296 = por %p294, %p295
    %p297 = scmp.ne.s32.totalorder %s289, %s291
    %p298 = scmp.eq.s32.totalorder %s92, 1
    %p299 = por %p297, %p298
    %p300 = scmp.ne.s32.totalorder %s291, %s292
    %p301 = scmp.eq.s32.totalorder %s92, 0
    %p302 = por %p300, %p301
    %p303 = scmp.ne.s32.totalorder %s291, %s292
    %p304 = scmp.eq.s32.totalorder %s93, 1
    %p305 = por %p303, %p304
    %p307 = scmp.ne.s32.totalorder %s292, %s306
    %p308 = scmp.eq.s32.totalorder %s93, 0
    %p309 = por %p307, %p308
    %s311 = sadd.s32 %s310, 1
    %p314 = scmp.eq.s32.totalorder %s87, 1
    %p315 = scmp.ne.s32.totalorder %s310, %s312
    %p316 = scmp.eq.s32.totalorder %s87, 0
    %p317 = por %p315, %p316
    %p318 = scmp.ne.s32.totalorder %s310, %s312
    %p319 = scmp.eq.s32.totalorder %s92, 1
    %p320 = por %p318, %p319
    %p321 = scmp.ne.s32.totalorder %s312, %s313
    %p322 = scmp.eq.s32.totalorder %s92, 0
    %p323 = por %p321, %p322
    %p324 = scmp.ne.s32.totalorder %s312, %s313
    %p325 = scmp.eq.s32.totalorder %s93, 1
    %p326 = por %p324, %p325
    %p328 = scmp.ne.s32.totalorder %s313, %s327
    %p329 = scmp.eq.s32.totalorder %s93, 0
    %p330 = por %p328, %p329
    %s332 = sadd.s32 %s331, 1
    %p335 = scmp.eq.s32.totalorder %s87, 1
    %p336 = scmp.ne.s32.totalorder %s331, %s333
    %p337 = scmp.eq.s32.totalorder %s87, 0
    %p338 = por %p336, %p337
    %p339 = scmp.ne.s32.totalorder %s331, %s333
    %p340 = scmp.eq.s32.totalorder %s92, 1
    %p341 = por %p339, %p340
    %p342 = scmp.ne.s32.totalorder %s333, %s334
    %p343 = scmp.eq.s32.totalorder %s92, 0
    %p344 = por %p342, %p343
    %p345 = scmp.ne.s32.totalorder %s333, %s334
    %p346 = scmp.eq.s32.totalorder %s93, 1
    %p347 = por %p345, %p346
    %p349 = scmp.ne.s32.totalorder %s334, %s348
    %p350 = scmp.eq.s32.totalorder %s93, 0
    %p351 = por %p349, %p350
    %s353 = sadd.s32 %s352, 1
    %p356 = scmp.eq.s32.totalorder %s87, 1
    %p357 = scmp.ne.s32.totalorder %s352, %s354
    %p358 = scmp.eq.s32.totalorder %s87, 0
    %p359 = por %p357, %p358
    %p360 = scmp.ne.s32.totalorder %s352, %s354
    %p361 = scmp.eq.s32.totalorder %s92, 1
    %p362 = por %p360, %p361
    %p363 = scmp.ne.s32.totalorder %s354, %s355
    %p364 = scmp.eq.s32.totalorder %s92, 0
    %p365 = por %p363, %p364
    %p366 = scmp.ne.s32.totalorder %s354, %s355
    %p367 = scmp.eq.s32.totalorder %s93, 1
    %p368 = por %p366, %p367
    %p370 = scmp.ne.s32.totalorder %s355, %s369
    %p371 = scmp.eq.s32.totalorder %s93, 0
    %p372 = por %p370, %p371
    %s374 = sadd.s32 %s373, 1
    %p377 = scmp.eq.s32.totalorder %s87, 1
    %p378 = scmp.ne.s32.totalorder %s373, %s375
    %p379 = scmp.eq.s32.totalorder %s87, 0
    %p380 = por %p378, %p379
    %p381 = scmp.ne.s32.totalorder %s373, %s375
    %p382 = scmp.eq.s32.totalorder %s92, 1
    %p383 = por %p381, %p382
    %p384 = scmp.ne.s32.totalorder %s375, %s376
    %p385 = scmp.eq.s32.totalorder %s92, 0
    %p386 = por %p384, %p385
    %p387 = scmp.ne.s32.totalorder %s375, %s376
    %p388 = scmp.eq.s32.totalorder %s93, 1
    %p389 = por %p387, %p388
    %p391 = scmp.ne.s32.totalorder %s376, %s390
    %p392 = scmp.eq.s32.totalorder %s93, 0
    %p393 = por %p391, %p392
    %s395 = sadd.s32 %s394, 1
    %p398 = scmp.eq.s32.totalorder %s87, 1
    %p399 = scmp.ne.s32.totalorder %s394, %s396
    %p400 = scmp.eq.s32.totalorder %s87, 0
    %p401 = por %p399, %p400
    %p402 = scmp.ne.s32.totalorder %s394, %s396
    %p403 = scmp.eq.s32.totalorder %s92, 1
    %p404 = por %p402, %p403
    %p405 = scmp.ne.s32.totalorder %s396, %s397
    %p406 = scmp.eq.s32.totalorder %s92, 0
    %p407 = por %p405, %p406
    %p408 = scmp.ne.s32.totalorder %s396, %s397
    %p409 = scmp.eq.s32.totalorder %s93, 1
    %p410 = por %p408, %p409
    %p412 = scmp.ne.s32.totalorder %s397, %s411
    %p413 = scmp.eq.s32.totalorder %s93, 0
    %p414 = por %p412, %p413
    %s416 = sadd.s32 %s415, 1
    %p419 = scmp.eq.s32.totalorder %s87, 1
    %p420 = scmp.ne.s32.totalorder %s415, %s417
    %p421 = scmp.eq.s32.totalorder %s87, 0
    %p422 = por %p420, %p421
    %p423 = scmp.ne.s32.totalorder %s415, %s417
    %p424 = scmp.eq.s32.totalorder %s92, 1
    %p425 = por %p423, %p424
    %p426 = scmp.ne.s32.totalorder %s417, %s418
    %p427 = scmp.eq.s32.totalorder %s92, 0
    %p428 = por %p426, %p427
    %p429 = scmp.ne.s32.totalorder %s417, %s418
    %p430 = scmp.eq.s32.totalorder %s93, 1
    %p431 = por %p429, %p430
    %p433 = scmp.ne.s32.totalorder %s418, %s432
    %p434 = scmp.eq.s32.totalorder %s93, 0
    %p435 = por %p433, %p434
    %s437 = sadd.s32 %s436, 1
    %p440 = scmp.eq.s32.totalorder %s87, 1
    %p441 = scmp.ne.s32.totalorder %s436, %s438
    %p442 = scmp.eq.s32.totalorder %s87, 0
    %p443 = por %p441, %p442
    %p444 = scmp.ne.s32.totalorder %s436, %s438
    %p445 = scmp.eq.s32.totalorder %s92, 1
    %p446 = por %p444, %p445
    %p447 = scmp.ne.s32.totalorder %s438, %s439
    %p448 = scmp.eq.s32.totalorder %s92, 0
    %p449 = por %p447, %p448
    %p450 = scmp.ne.s32.totalorder %s438, %s439
    %p451 = scmp.eq.s32.totalorder %s93, 1
    %p452 = por %p450, %p451
    %p454 = scmp.ne.s32.totalorder %s439, %s453
    %p455 = scmp.eq.s32.totalorder %s93, 0
    %p456 = por %p454, %p455
    %s458 = sadd.s32 %s457, 1
    %p461 = scmp.eq.s32.totalorder %s87, 1
    %p462 = scmp.ne.s32.totalorder %s457, %s459
    %p463 = scmp.eq.s32.totalorder %s87, 0
    %p464 = por %p462, %p463
    %p465 = scmp.ne.s32.totalorder %s457, %s459
    %p466 = scmp.eq.s32.totalorder %s92, 1
    %p467 = por %p465, %p466
    %p468 = scmp.ne.s32.totalorder %s459, %s460
    %p469 = scmp.eq.s32.totalorder %s92, 0
    %p470 = por %p468, %p469
    %p471 = scmp.ne.s32.totalorder %s459, %s460
    %p472 = scmp.eq.s32.totalorder %s93, 1
    %p473 = por %p471, %p472
    %p475 = scmp.ne.s32.totalorder %s460, %s474
    %p476 = scmp.eq.s32.totalorder %s93, 0
    %p477 = por %p475, %p476
    %s479 = sadd.s32 %s478, 1
    %p482 = scmp.eq.s32.totalorder %s87, 1
    %p483 = scmp.ne.s32.totalorder %s478, %s480
    %p484 = scmp.eq.s32.totalorder %s87, 0
    %p485 = por %p483, %p484
    %p486 = scmp.ne.s32.totalorder %s478, %s480
    %p487 = scmp.eq.s32.totalorder %s92, 1
    %p488 = por %p486, %p487
    %p489 = scmp.ne.s32.totalorder %s480, %s481
    %p490 = scmp.eq.s32.totalorder %s92, 0
    %p491 = por %p489, %p490
    %p492 = scmp.ne.s32.totalorder %s480, %s481
    %p493 = scmp.eq.s32.totalorder %s93, 1
    %p494 = por %p492, %p493
    %p496 = scmp.ne.s32.totalorder %s481, %s495
    %p497 = scmp.eq.s32.totalorder %s93, 0
    %p498 = por %p496, %p497
    %s500 = sadd.s32 %s499, 1
    %p503 = scmp.eq.s32.totalorder %s87, 1
    %p504 = scmp.ne.s32.totalorder %s499, %s501
    %p505 = scmp.eq.s32.totalorder %s87, 0
    %p506 = por %p504, %p505
    %p507 = scmp.ne.s32.totalorder %s499, %s501
    %p508 = scmp.eq.s32.totalorder %s92, 1
    %p509 = por %p507, %p508
    %p510 = scmp.ne.s32.totalorder %s501, %s502
    %p511 = scmp.eq.s32.totalorder %s92, 0
    %p512 = por %p510, %p511
    %p513 = scmp.ne.s32.totalorder %s501, %s502
    %p514 = scmp.eq.s32.totalorder %s93, 1
    %p515 = por %p513, %p514
    %p517 = scmp.ne.s32.totalorder %s502, %s516
    %p518 = scmp.eq.s32.totalorder %s93, 0
    %p519 = por %p517, %p518
    %s521 = sadd.s32 %s520, 1
    %p524 = scmp.eq.s32.totalorder %s87, 1
    %p525 = scmp.ne.s32.totalorder %s520, %s522
    %p526 = scmp.eq.s32.totalorder %s87, 0
    %p527 = por %p525, %p526
    %p528 = scmp.ne.s32.totalorder %s520, %s522
    %p529 = scmp.eq.s32.totalorder %s92, 1
    %p530 = por %p528, %p529
    %p531 = scmp.ne.s32.totalorder %s522, %s523
    %p532 = scmp.eq.s32.totalorder %s92, 0
    %p533 = por %p531, %p532
    %p534 = scmp.ne.s32.totalorder %s522, %s523
    %p535 = scmp.eq.s32.totalorder %s93, 1
    %p536 = por %p534, %p535
    %p538 = scmp.ne.s32.totalorder %s523, %s537
    %p539 = scmp.eq.s32.totalorder %s93, 0
    %p540 = por %p538, %p539
    %s542 = sadd.s32 %s541, 1
    %p545 = scmp.eq.s32.totalorder %s87, 1
    %p546 = scmp.ne.s32.totalorder %s541, %s543
    %p547 = scmp.eq.s32.totalorder %s87, 0
    %p548 = por %p546, %p547
    %p549 = scmp.ne.s32.totalorder %s541, %s543
    %p550 = scmp.eq.s32.totalorder %s92, 1
    %p551 = por %p549, %p550
    %p552 = scmp.ne.s32.totalorder %s543, %s544
    %p553 = scmp.eq.s32.totalorder %s92, 0
    %p554 = por %p552, %p553
    %p555 = scmp.ne.s32.totalorder %s543, %s544
    %p556 = scmp.eq.s32.totalorder %s93, 1
    %p557 = por %p555, %p556
    %p559 = scmp.ne.s32.totalorder %s544, %s558
    %p560 = scmp.eq.s32.totalorder %s93, 0
    %p561 = por %p559, %p560
    %s563 = sadd.s32 %s562, 1
    %p566 = scmp.eq.s32.totalorder %s87, 1
    %p567 = scmp.ne.s32.totalorder %s562, %s564
    %p568 = scmp.eq.s32.totalorder %s87, 0
    %p569 = por %p567, %p568
    %p570 = scmp.ne.s32.totalorder %s562, %s564
    %p571 = scmp.eq.s32.totalorder %s92, 1
    %p572 = por %p570, %p571
    %p573 = scmp.ne.s32.totalorder %s564, %s565
    %p574 = scmp.eq.s32.totalorder %s92, 0
    %p575 = por %p573, %p574
    %p576 = scmp.ne.s32.totalorder %s564, %s565
    %p577 = scmp.eq.s32.totalorder %s93, 1
    %p578 = por %p576, %p577
    %p580 = scmp.ne.s32.totalorder %s565, %s579
    %p581 = scmp.eq.s32.totalorder %s93, 0
    %p582 = por %p580, %p581
    %s584 = sadd.s32 %s583, 1
    %p587 = scmp.eq.s32.totalorder %s87, 1
    %p588 = scmp.ne.s32.totalorder %s583, %s585
    %p589 = scmp.eq.s32.totalorder %s87, 0
    %p590 = por %p588, %p589
    %p591 = scmp.ne.s32.totalorder %s583, %s585
    %p592 = scmp.eq.s32.totalorder %s92, 1
    %p593 = por %p591, %p592
    %p594 = scmp.ne.s32.totalorder %s585, %s586
    %p595 = scmp.eq.s32.totalorder %s92, 0
    %p596 = por %p594, %p595
    %p597 = scmp.ne.s32.totalorder %s585, %s586
    %p598 = scmp.eq.s32.totalorder %s93, 1
    %p599 = por %p597, %p598
    %p601 = scmp.ne.s32.totalorder %s586, %s600
    %p602 = scmp.eq.s32.totalorder %s93, 0
    %p603 = por %p601, %p602
    %s605 = sadd.s32 %s604, 1
    %p608 = scmp.eq.s32.totalorder %s87, 1
    %p609 = scmp.ne.s32.totalorder %s604, %s606
    %p610 = scmp.eq.s32.totalorder %s87, 0
    %p611 = por %p609, %p610
    %p612 = scmp.ne.s32.totalorder %s604, %s606
    %p613 = scmp.eq.s32.totalorder %s92, 1
    %p614 = por %p612, %p613
    %p615 = scmp.ne.s32.totalorder %s606, %s607
    %p616 = scmp.eq.s32.totalorder %s92, 0
    %p617 = por %p615, %p616
    %p618 = scmp.ne.s32.totalorder %s606, %s607
    %p619 = scmp.eq.s32.totalorder %s93, 1
    %p620 = por %p618, %p619
    %p622 = scmp.ne.s32.totalorder %s607, %s621
    %p623 = scmp.eq.s32.totalorder %s93, 0
    %p624 = por %p622, %p623
    %s626 = sadd.s32 %s625, 1
    %p629 = scmp.eq.s32.totalorder %s87, 1
    %p630 = scmp.ne.s32.totalorder %s625, %s627
    %p631 = scmp.eq.s32.totalorder %s87, 0
    %p632 = por %p630, %p631
    %p633 = scmp.ne.s32.totalorder %s625, %s627
    %p634 = scmp.eq.s32.totalorder %s92, 1
    %p635 = por %p633, %p634
    %p636 = scmp.ne.s32.totalorder %s627, %s628
    %p637 = scmp.eq.s32.totalorder %s92, 0
    %p638 = por %p636, %p637
    %p639 = scmp.ne.s32.totalorder %s627, %s628
    %p640 = scmp.eq.s32.totalorder %s93, 1
    %p641 = por %p639, %p640
    %p643 = scmp.ne.s32.totalorder %s628, %s642
    %p644 = scmp.eq.s32.totalorder %s93, 0
    %p645 = por %p643, %p644
    %s647 = sadd.s32 %s646, 1
    %p650 = scmp.eq.s32.totalorder %s87, 1
    %p651 = scmp.ne.s32.totalorder %s646, %s648
    %p652 = scmp.eq.s32.totalorder %s87, 0
    %p653 = por %p651, %p652
    %p654 = scmp.ne.s32.totalorder %s646, %s648
    %p655 = scmp.eq.s32.totalorder %s92, 1
    %p656 = por %p654, %p655
    %p657 = scmp.ne.s32.totalorder %s648, %s649
    %p658 = scmp.eq.s32.totalorder %s92, 0
    %p659 = por %p657, %p658
    %p660 = scmp.ne.s32.totalorder %s648, %s649
    %p661 = scmp.eq.s32.totalorder %s93, 1
    %p662 = por %p660, %p661
    %p664 = scmp.ne.s32.totalorder %s649, %s663
    %p665 = scmp.eq.s32.totalorder %s93, 0
    %p666 = por %p664, %p665
    %s668 = sadd.s32 %s667, 1
    %p671 = scmp.eq.s32.totalorder %s87, 1
    %p672 = scmp.ne.s32.totalorder %s667, %s669
    %p673 = scmp.eq.s32.totalorder %s87, 0
    %p674 = por %p672, %p673
    %p675 = scmp.ne.s32.totalorder %s667, %s669
    %p676 = scmp.eq.s32.totalorder %s92, 1
    %p677 = por %p675, %p676
    %p678 = scmp.ne.s32.totalorder %s669, %s670
    %p679 = scmp.eq.s32.totalorder %s92, 0
    %p680 = por %p678, %p679
    %p681 = scmp.ne.s32.totalorder %s669, %s670
    %p682 = scmp.eq.s32.totalorder %s93, 1
    %p683 = por %p681, %p682
    %p685 = scmp.ne.s32.totalorder %s670, %s684
    %p686 = scmp.eq.s32.totalorder %s93, 0
    %p687 = por %p685, %p686
    %s689 = sadd.s32 %s688, 1
    %p692 = scmp.eq.s32.totalorder %s87, 1
    %p693 = scmp.ne.s32.totalorder %s688, %s690
    %p694 = scmp.eq.s32.totalorder %s87, 0
    %p695 = por %p693, %p694
    %p696 = scmp.ne.s32.totalorder %s688, %s690
    %p697 = scmp.eq.s32.totalorder %s92, 1
    %p698 = por %p696, %p697
    %p699 = scmp.ne.s32.totalorder %s690, %s691
    %p700 = scmp.eq.s32.totalorder %s92, 0
    %p701 = por %p699, %p700
    %p702 = scmp.ne.s32.totalorder %s690, %s691
    %p703 = scmp.eq.s32.totalorder %s93, 1
    %p704 = por %p702, %p703
    %p706 = scmp.ne.s32.totalorder %s691, %s705
    %p707 = scmp.eq.s32.totalorder %s93, 0
    %p708 = por %p706, %p707
    %s710 = sadd.s32 %s709, 1
    %p713 = scmp.eq.s32.totalorder %s87, 1
    %p714 = scmp.ne.s32.totalorder %s709, %s711
    %p715 = scmp.eq.s32.totalorder %s87, 0
    %p716 = por %p714, %p715
    %p717 = scmp.ne.s32.totalorder %s709, %s711
    %p718 = scmp.eq.s32.totalorder %s92, 1
    %p719 = por %p717, %p718
    %p720 = scmp.ne.s32.totalorder %s711, %s712
    %p721 = scmp.eq.s32.totalorder %s92, 0
    %p722 = por %p720, %p721
    %p723 = scmp.ne.s32.totalorder %s711, %s712
    %p724 = scmp.eq.s32.totalorder %s93, 1
    %p725 = por %p723, %p724
    %p727 = scmp.ne.s32.totalorder %s712, %s726
    %p728 = scmp.eq.s32.totalorder %s93, 0
    %p729 = por %p727, %p728
    %s731 = sadd.s32 %s730, 1
    %p734 = scmp.eq.s32.totalorder %s87, 1
    %p735 = scmp.ne.s32.totalorder %s730, %s732
    %p736 = scmp.eq.s32.totalorder %s87, 0
    %p737 = por %p735, %p736
    %p738 = scmp.ne.s32.totalorder %s730, %s732
    %p739 = scmp.eq.s32.totalorder %s92, 1
    %p740 = por %p738, %p739
    %p741 = scmp.ne.s32.totalorder %s732, %s733
    %p742 = scmp.eq.s32.totalorder %s92, 0
    %p743 = por %p741, %p742
    %p744 = scmp.ne.s32.totalorder %s732, %s733
    %p745 = scmp.eq.s32.totalorder %s93, 1
    %p746 = por %p744, %p745
    %p748 = scmp.ne.s32.totalorder %s733, %s747
    %p749 = scmp.eq.s32.totalorder %s93, 0
    %p750 = por %p748, %p749
    %s752 = sadd.s32 %s751, 1
    %p755 = scmp.eq.s32.totalorder %s87, 1
    %p756 = scmp.ne.s32.totalorder %s751, %s753
    %p757 = scmp.eq.s32.totalorder %s87, 0
    %p758 = por %p756, %p757
    %p759 = scmp.ne.s32.totalorder %s751, %s753
    %p760 = scmp.eq.s32.totalorder %s92, 1
    %p761 = por %p759, %p760
    %p762 = scmp.ne.s32.totalorder %s753, %s754
    %p763 = scmp.eq.s32.totalorder %s92, 0
    %p764 = por %p762, %p763
    %p765 = scmp.ne.s32.totalorder %s753, %s754
    %p766 = scmp.eq.s32.totalorder %s93, 1
    %p767 = por %p765, %p766
    %p769 = scmp.ne.s32.totalorder %s754, %s768
    %p770 = scmp.eq.s32.totalorder %s93, 0
    %p771 = por %p769, %p770
    %s773 = sadd.s32 %s772, 1
    %p776 = scmp.eq.s32.totalorder %s87, 1
    %p777 = scmp.ne.s32.totalorder %s772, %s774
    %p778 = scmp.eq.s32.totalorder %s87, 0
    %p779 = por %p777, %p778
    %p780 = scmp.ne.s32.totalorder %s772, %s774
    %p781 = scmp.eq.s32.totalorder %s92, 1
    %p782 = por %p780, %p781
    %p783 = scmp.ne.s32.totalorder %s774, %s775
    %p784 = scmp.eq.s32.totalorder %s92, 0
    %p785 = por %p783, %p784
    %p786 = scmp.ne.s32.totalorder %s774, %s775
    %p787 = scmp.eq.s32.totalorder %s93, 1
    %p788 = por %p786, %p787
    %p790 = scmp.ne.s32.totalorder %s775, %s789
    %p791 = scmp.eq.s32.totalorder %s93, 0
    %p792 = por %p790, %p791
    %s794 = sadd.s32 %s793, 1
    %p797 = scmp.eq.s32.totalorder %s87, 1
    %p798 = scmp.ne.s32.totalorder %s793, %s795
    %p799 = scmp.eq.s32.totalorder %s87, 0
    %p800 = por %p798, %p799
    %p801 = scmp.ne.s32.totalorder %s793, %s795
    %p802 = scmp.eq.s32.totalorder %s92, 1
    %p803 = por %p801, %p802
    %p804 = scmp.ne.s32.totalorder %s795, %s796
    %p805 = scmp.eq.s32.totalorder %s92, 0
    %p806 = por %p804, %p805
    %p807 = scmp.ne.s32.totalorder %s795, %s796
    %p808 = scmp.eq.s32.totalorder %s93, 1
    %p809 = por %p807, %p808
    %p811 = scmp.ne.s32.totalorder %s796, %s810
    %p812 = scmp.eq.s32.totalorder %s93, 0
    %p813 = por %p811, %p812
    %s815 = sadd.s32 %s814, 1
    %p818 = scmp.eq.s32.totalorder %s87, 1
    %p819 = scmp.ne.s32.totalorder %s814, %s816
    %p820 = scmp.eq.s32.totalorder %s87, 0
    %p821 = por %p819, %p820
    %p822 = scmp.ne.s32.totalorder %s814, %s816
    %p823 = scmp.eq.s32.totalorder %s92, 1
    %p824 = por %p822, %p823
    %p825 = scmp.ne.s32.totalorder %s816, %s817
    %p826 = scmp.eq.s32.totalorder %s92, 0
    %p827 = por %p825, %p826
    %p828 = scmp.ne.s32.totalorder %s816, %s817
    %p829 = scmp.eq.s32.totalorder %s93, 1
    %p830 = por %p828, %p829
    %p832 = scmp.ne.s32.totalorder %s817, %s831
    %p833 = scmp.eq.s32.totalorder %s93, 0
    %p834 = por %p832, %p833
    %s836 = sadd.s32 %s835, 1
    %p839 = scmp.eq.s32.totalorder %s87, 1
    %p840 = scmp.ne.s32.totalorder %s835, %s837
    %p841 = scmp.eq.s32.totalorder %s87, 0
    %p842 = por %p840, %p841
    %p843 = scmp.ne.s32.totalorder %s835, %s837
    %p844 = scmp.eq.s32.totalorder %s92, 1
    %p845 = por %p843, %p844
    %p846 = scmp.ne.s32.totalorder %s837, %s838
    %p847 = scmp.eq.s32.totalorder %s92, 0
    %p848 = por %p846, %p847
    %p849 = scmp.ne.s32.totalorder %s837, %s838
    %p850 = scmp.eq.s32.totalorder %s93, 1
    %p851 = por %p849, %p850
    %p853 = scmp.ne.s32.totalorder %s838, %s852
    %p854 = scmp.eq.s32.totalorder %s93, 0
    %p855 = por %p853, %p854
    %s857 = sadd.s32 %s856, 1
    %p860 = scmp.eq.s32.totalorder %s87, 1
    %p861 = scmp.ne.s32.totalorder %s856, %s858
    %p862 = scmp.eq.s32.totalorder %s87, 0
    %p863 = por %p861, %p862
    %p864 = scmp.ne.s32.totalorder %s856, %s858
    %p865 = scmp.eq.s32.totalorder %s92, 1
    %p866 = por %p864, %p865
    %p867 = scmp.ne.s32.totalorder %s858, %s859
    %p868 = scmp.eq.s32.totalorder %s92, 0
    %p869 = por %p867, %p868
    %p870 = scmp.ne.s32.totalorder %s858, %s859
    %p871 = scmp.eq.s32.totalorder %s93, 1
    %p872 = por %p870, %p871
    %p874 = scmp.ne.s32.totalorder %s859, %s873
    %p875 = scmp.eq.s32.totalorder %s93, 0
    %p876 = por %p874, %p875
    %s878 = sadd.s32 %s877, 1
    %p881 = scmp.eq.s32.totalorder %s87, 1
    %p882 = scmp.ne.s32.totalorder %s877, %s879
    %p883 = scmp.eq.s32.totalorder %s87, 0
    %p884 = por %p882, %p883
    %p885 = scmp.ne.s32.totalorder %s877, %s879
    %p886 = scmp.eq.s32.totalorder %s92, 1
    %p887 = por %p885, %p886
    %p888 = scmp.ne.s32.totalorder %s879, %s880
    %p889 = scmp.eq.s32.totalorder %s92, 0
    %p890 = por %p888, %p889
    %p891 = scmp.ne.s32.totalorder %s879, %s880
    %p892 = scmp.eq.s32.totalorder %s93, 1
    %p893 = por %p891, %p892
    %p895 = scmp.ne.s32.totalorder %s880, %s894
    %p896 = scmp.eq.s32.totalorder %s93, 0
    %p897 = por %p895, %p896
    %s899 = sadd.s32 %s898, 1
    %p902 = scmp.eq.s32.totalorder %s87, 1
    %p903 = scmp.ne.s32.totalorder %s898, %s900
    %p904 = scmp.eq.s32.totalorder %s87, 0
    %p905 = por %p903, %p904
    %p906 = scmp.ne.s32.totalorder %s898, %s900
    %p907 = scmp.eq.s32.totalorder %s92, 1
    %p908 = por %p906, %p907
    %p909 = scmp.ne.s32.totalorder %s900, %s901
    %p910 = scmp.eq.s32.totalorder %s92, 0
    %p911 = por %p909, %p910
    %p912 = scmp.ne.s32.totalorder %s900, %s901
    %p913 = scmp.eq.s32.totalorder %s93, 1
    %p914 = por %p912, %p913
    %p916 = scmp.ne.s32.totalorder %s901, %s915
    %p917 = scmp.eq.s32.totalorder %s93, 0
    %p918 = por %p916, %p917
    %s920 = sadd.s32 %s919, 1
    %p923 = scmp.eq.s32.totalorder %s87, 1
    %p924 = scmp.ne.s32.totalorder %s919, %s921
    %p925 = scmp.eq.s32.totalorder %s87, 0
    %p926 = por %p924, %p925
    %p927 = scmp.ne.s32.totalorder %s919, %s921
    %p928 = scmp.eq.s32.totalorder %s92, 1
    %p929 = por %p927, %p928
    %p930 = scmp.ne.s32.totalorder %s921, %s922
    %p931 = scmp.eq.s32.totalorder %s92, 0
    %p932 = por %p930, %p931
    %p933 = scmp.ne.s32.totalorder %s921, %s922
    %p934 = scmp.eq.s32.totalorder %s93, 1
    %p935 = por %p933, %p934
    %p937 = scmp.ne.s32.totalorder %s922, %s936
    %p938 = scmp.eq.s32.totalorder %s93, 0
    %p939 = por %p937, %p938
    %s940 = ssub.s32 %s87, %s94
    %p941 = scmp.eq.s32.totalorder %s940, 0
    %s943 = sadd.s32 %s942, 1
    %s944 = scalar_select %p941, %s942, %s943
    %p947 = pneg %p941
    %p948 = scmp.eq.s32.totalorder %s87, 1
    %p949 = por %p947, %p948
    %p950 = scmp.ne.s32.totalorder %s942, %s945
    %p951 = scmp.eq.s32.totalorder %s87, 0
    %p952 = por %p950, %p951
    %p953 = scmp.ne.s32.totalorder %s942, %s945
    %p954 = scmp.eq.s32.totalorder %s92, 1
    %p955 = por %p953, %p954
    %p956 = scmp.ne.s32.totalorder %s945, %s946
    %p957 = scmp.eq.s32.totalorder %s92, 0
    %p958 = por %p956, %p957
    %p959 = scmp.ne.s32.totalorder %s945, %s946
    %p960 = scmp.eq.s32.totalorder %s93, 1
    %p961 = por %p959, %p960
    %p963 = scmp.ne.s32.totalorder %s946, %s962
    %p964 = scmp.eq.s32.totalorder %s93, 0
    %p965 = por %p963, %p964
    %p966 = scmp.le.s32.totalorder 1, %s87
    %p967 = scmp.lt.s32.totalorder %s87, 3
    %p968 = pnand %p966, %p967
    %p969 = pneg %p968
    // Predicated region
    $region9: #{forward.1} parent=5 // pred_check
      _
    $region10: #{forward.1} parent=5 // pred_check_branch
      %971 = sbr.rel (%p968) target = $region12
    $region11: #{forward.1} parent=5 // pred_region
      %s972 = ssub.s32 %s87, 1
      // Predicated region
      $region13: #{forward.1} parent=11 // pred_check
        %p973 = pneg %p134
      $region14: #{forward.1} parent=11 // pred_check_branch
        %975 = sbr.rel (%p973) target = $region16
      $region15: #{forward.1} parent=11 // pred_region
        _
      $region16: #{forward.1} parent=11 // pred_fallthru
        _
      // Predicated region
      $region17: #{forward.1} parent=11 // pred_check
        %p976 = pneg %p155
      $region18: #{forward.1} parent=11 // pred_check_branch
        %978 = sbr.rel (%p976) target = $region20
      $region19: #{forward.1} parent=11 // pred_region
        _
      $region20: #{forward.1} parent=11 // pred_fallthru
        _
      // Predicated region
      $region21: #{forward.1} parent=11 // pred_check
        %p979 = pneg %p176
      $region22: #{forward.1} parent=11 // pred_check_branch
        %981 = sbr.rel (%p979) target = $region24
      $region23: #{forward.1} parent=11 // pred_region
        _
      $region24: #{forward.1} parent=11 // pred_fallthru
        _
      // Predicated region
      $region25: #{forward.1} parent=11 // pred_check
        %p982 = pneg %p197
      $region26: #{forward.1} parent=11 // pred_check_branch
        %984 = sbr.rel (%p982) target = $region28
      $region27: #{forward.1} parent=11 // pred_region
        _
      $region28: #{forward.1} parent=11 // pred_fallthru
        _
      // Predicated region
      $region29: #{forward.1} parent=11 // pred_check
        %p985 = pneg %p218
      $region30: #{forward.1} parent=11 // pred_check_branch
        %987 = sbr.rel (%p985) target = $region32
      $region31: #{forward.1} parent=11 // pred_region
        _
      $region32: #{forward.1} parent=11 // pred_fallthru
        _
      // Predicated region
      $region33: #{forward.1} parent=11 // pred_check
        %p988 = pneg %p239
      $region34: #{forward.1} parent=11 // pred_check_branch
        %990 = sbr.rel (%p988) target = $region36
      $region35: #{forward.1} parent=11 // pred_region
        _
      $region36: #{forward.1} parent=11 // pred_fallthru
        _
      // Predicated region
      $region37: #{forward.1} parent=11 // pred_check
        %p991 = pneg %p260
      $region38: #{forward.1} parent=11 // pred_check_branch
        %993 = sbr.rel (%p991) target = $region40
      $region39: #{forward.1} parent=11 // pred_region
        _
      $region40: #{forward.1} parent=11 // pred_fallthru
        _
      // Predicated region
      $region41: #{forward.1} parent=11 // pred_check
        %p994 = pneg %p281
      $region42: #{forward.1} parent=11 // pred_check_branch
        %996 = sbr.rel (%p994) target = $region44
      $region43: #{forward.1} parent=11 // pred_region
        _
      $region44: #{forward.1} parent=11 // pred_fallthru
        _
      // Predicated region
      $region45: #{forward.1} parent=11 // pred_check
        %p997 = pneg %p302
      $region46: #{forward.1} parent=11 // pred_check_branch
        %999 = sbr.rel (%p997) target = $region48
      $region47: #{forward.1} parent=11 // pred_region
        _
      $region48: #{forward.1} parent=11 // pred_fallthru
        _
      // Predicated region
      $region49: #{forward.1} parent=11 // pred_check
        %p1000 = pneg %p323
      $region50: #{forward.1} parent=11 // pred_check_branch
        %1002 = sbr.rel (%p1000) target = $region52
      $region51: #{forward.1} parent=11 // pred_region
        _
      $region52: #{forward.1} parent=11 // pred_fallthru
        _
      // Predicated region
      $region53: #{forward.1} parent=11 // pred_check
        %p1003 = pneg %p344
      $region54: #{forward.1} parent=11 // pred_check_branch
        %1005 = sbr.rel (%p1003) target = $region56
      $region55: #{forward.1} parent=11 // pred_region
        _
      $region56: #{forward.1} parent=11 // pred_fallthru
        _
      // Predicated region
      $region57: #{forward.1} parent=11 // pred_check
        %p1006 = pneg %p365
      $region58: #{forward.1} parent=11 // pred_check_branch
        %1008 = sbr.rel (%p1006) target = $region60
      $region59: #{forward.1} parent=11 // pred_region
        _
      $region60: #{forward.1} parent=11 // pred_fallthru
        _
      // Predicated region
      $region61: #{forward.1} parent=11 // pred_check
        %p1009 = pneg %p386
      $region62: #{forward.1} parent=11 // pred_check_branch
        %1011 = sbr.rel (%p1009) target = $region64
      $region63: #{forward.1} parent=11 // pred_region
        _
      $region64: #{forward.1} parent=11 // pred_fallthru
        _
      // Predicated region
      $region65: #{forward.1} parent=11 // pred_check
        %p1012 = pneg %p407
      $region66: #{forward.1} parent=11 // pred_check_branch
        %1014 = sbr.rel (%p1012) target = $region68
      $region67: #{forward.1} parent=11 // pred_region
        _
      $region68: #{forward.1} parent=11 // pred_fallthru
        _
      // Predicated region
      $region69: #{forward.1} parent=11 // pred_check
        %p1015 = pneg %p428
      $region70: #{forward.1} parent=11 // pred_check_branch
        %1017 = sbr.rel (%p1015) target = $region72
      $region71: #{forward.1} parent=11 // pred_region
        _
      $region72: #{forward.1} parent=11 // pred_fallthru
        _
      // Predicated region
      $region73: #{forward.1} parent=11 // pred_check
        %p1018 = pneg %p449
      $region74: #{forward.1} parent=11 // pred_check_branch
        %1020 = sbr.rel (%p1018) target = $region76
      $region75: #{forward.1} parent=11 // pred_region
        _
      $region76: #{forward.1} parent=11 // pred_fallthru
        _
      // Predicated region
      $region77: #{forward.1} parent=11 // pred_check
        %p1021 = pneg %p470
      $region78: #{forward.1} parent=11 // pred_check_branch
        %1023 = sbr.rel (%p1021) target = $region80
      $region79: #{forward.1} parent=11 // pred_region
        _
      $region80: #{forward.1} parent=11 // pred_fallthru
        _
      // Predicated region
      $region81: #{forward.1} parent=11 // pred_check
        %p1024 = pneg %p491
      $region82: #{forward.1} parent=11 // pred_check_branch
        %1026 = sbr.rel (%p1024) target = $region84
      $region83: #{forward.1} parent=11 // pred_region
        _
      $region84: #{forward.1} parent=11 // pred_fallthru
        _
      // Predicated region
      $region85: #{forward.1} parent=11 // pred_check
        %p1027 = pneg %p512
      $region86: #{forward.1} parent=11 // pred_check_branch
        %1029 = sbr.rel (%p1027) target = $region88
      $region87: #{forward.1} parent=11 // pred_region
        _
      $region88: #{forward.1} parent=11 // pred_fallthru
        _
      // Predicated region
      $region89: #{forward.1} parent=11 // pred_check
        %p1030 = pneg %p533
      $region90: #{forward.1} parent=11 // pred_check_branch
        %1032 = sbr.rel (%p1030) target = $region92
      $region91: #{forward.1} parent=11 // pred_region
        _
      $region92: #{forward.1} parent=11 // pred_fallthru
        _
      // Predicated region
      $region93: #{forward.1} parent=11 // pred_check
        %p1033 = pneg %p554
      $region94: #{forward.1} parent=11 // pred_check_branch
        %1035 = sbr.rel (%p1033) target = $region96
      $region95: #{forward.1} parent=11 // pred_region
        _
      $region96: #{forward.1} parent=11 // pred_fallthru
        _
      // Predicated region
      $region97: #{forward.1} parent=11 // pred_check
        %p1036 = pneg %p575
      $region98: #{forward.1} parent=11 // pred_check_branch
        %1038 = sbr.rel (%p1036) target = $region100
      $region99: #{forward.1} parent=11 // pred_region
        _
      $region100: #{forward.1} parent=11 // pred_fallthru
        _
      // Predicated region
      $region101: #{forward.1} parent=11 // pred_check
        %p1039 = pneg %p596
      $region102: #{forward.1} parent=11 // pred_check_branch
        %1041 = sbr.rel (%p1039) target = $region104
      $region103: #{forward.1} parent=11 // pred_region
        _
      $region104: #{forward.1} parent=11 // pred_fallthru
        _
      // Predicated region
      $region105: #{forward.1} parent=11 // pred_check
        %p1042 = pneg %p617
      $region106: #{forward.1} parent=11 // pred_check_branch
        %1044 = sbr.rel (%p1042) target = $region108
      $region107: #{forward.1} parent=11 // pred_region
        _
      $region108: #{forward.1} parent=11 // pred_fallthru
        _
      // Predicated region
      $region109: #{forward.1} parent=11 // pred_check
        %p1045 = pneg %p638
      $region110: #{forward.1} parent=11 // pred_check_branch
        %1047 = sbr.rel (%p1045) target = $region112
      $region111: #{forward.1} parent=11 // pred_region
        _
      $region112: #{forward.1} parent=11 // pred_fallthru
        _
      // Predicated region
      $region113: #{forward.1} parent=11 // pred_check
        %p1048 = pneg %p659
      $region114: #{forward.1} parent=11 // pred_check_branch
        %1050 = sbr.rel (%p1048) target = $region116
      $region115: #{forward.1} parent=11 // pred_region
        _
      $region116: #{forward.1} parent=11 // pred_fallthru
        _
      // Predicated region
      $region117: #{forward.1} parent=11 // pred_check
        %p1051 = pneg %p680
      $region118: #{forward.1} parent=11 // pred_check_branch
        %1053 = sbr.rel (%p1051) target = $region120
      $region119: #{forward.1} parent=11 // pred_region
        _
      $region120: #{forward.1} parent=11 // pred_fallthru
        _
      // Predicated region
      $region121: #{forward.1} parent=11 // pred_check
        %p1054 = pneg %p701
      $region122: #{forward.1} parent=11 // pred_check_branch
        %1056 = sbr.rel (%p1054) target = $region124
      $region123: #{forward.1} parent=11 // pred_region
        _
      $region124: #{forward.1} parent=11 // pred_fallthru
        _
      // Predicated region
      $region125: #{forward.1} parent=11 // pred_check
        %p1057 = pneg %p722
      $region126: #{forward.1} parent=11 // pred_check_branch
        %1059 = sbr.rel (%p1057) target = $region128
      $region127: #{forward.1} parent=11 // pred_region
        _
      $region128: #{forward.1} parent=11 // pred_fallthru
        _
      // Predicated region
      $region129: #{forward.1} parent=11 // pred_check
        %p1060 = pneg %p743
      $region130: #{forward.1} parent=11 // pred_check_branch
        %1062 = sbr.rel (%p1060) target = $region132
      $region131: #{forward.1} parent=11 // pred_region
        _
      $region132: #{forward.1} parent=11 // pred_fallthru
        _
      // Predicated region
      $region133: #{forward.1} parent=11 // pred_check
        %p1063 = pneg %p764
      $region134: #{forward.1} parent=11 // pred_check_branch
        %1065 = sbr.rel (%p1063) target = $region136
      $region135: #{forward.1} parent=11 // pred_region
        _
      $region136: #{forward.1} parent=11 // pred_fallthru
        _
      // Predicated region
      $region137: #{forward.1} parent=11 // pred_check
        %p1066 = pneg %p785
      $region138: #{forward.1} parent=11 // pred_check_branch
        %1068 = sbr.rel (%p1066) target = $region140
      $region139: #{forward.1} parent=11 // pred_region
        _
      $region140: #{forward.1} parent=11 // pred_fallthru
        _
      // Predicated region
      $region141: #{forward.1} parent=11 // pred_check
        %p1069 = pneg %p806
      $region142: #{forward.1} parent=11 // pred_check_branch
        %1071 = sbr.rel (%p1069) target = $region144
      $region143: #{forward.1} parent=11 // pred_region
        _
      $region144: #{forward.1} parent=11 // pred_fallthru
        _
      // Predicated region
      $region145: #{forward.1} parent=11 // pred_check
        %p1072 = pneg %p827
      $region146: #{forward.1} parent=11 // pred_check_branch
        %1074 = sbr.rel (%p1072) target = $region148
      $region147: #{forward.1} parent=11 // pred_region
        _
      $region148: #{forward.1} parent=11 // pred_fallthru
        _
      // Predicated region
      $region149: #{forward.1} parent=11 // pred_check
        %p1075 = pneg %p848
      $region150: #{forward.1} parent=11 // pred_check_branch
        %1077 = sbr.rel (%p1075) target = $region152
      $region151: #{forward.1} parent=11 // pred_region
        _
      $region152: #{forward.1} parent=11 // pred_fallthru
        _
      // Predicated region
      $region153: #{forward.1} parent=11 // pred_check
        %p1078 = pneg %p869
      $region154: #{forward.1} parent=11 // pred_check_branch
        %1080 = sbr.rel (%p1078) target = $region156
      $region155: #{forward.1} parent=11 // pred_region
        _
      $region156: #{forward.1} parent=11 // pred_fallthru
        _
      // Predicated region
      $region157: #{forward.1} parent=11 // pred_check
        %p1081 = pneg %p890
      $region158: #{forward.1} parent=11 // pred_check_branch
        %1083 = sbr.rel (%p1081) target = $region160
      $region159: #{forward.1} parent=11 // pred_region
        _
      $region160: #{forward.1} parent=11 // pred_fallthru
        _
      // Predicated region
      $region161: #{forward.1} parent=11 // pred_check
        %p1084 = pneg %p911
      $region162: #{forward.1} parent=11 // pred_check_branch
        %1086 = sbr.rel (%p1084) target = $region164
      $region163: #{forward.1} parent=11 // pred_region
        _
      $region164: #{forward.1} parent=11 // pred_fallthru
        _
      // Predicated region
      $region165: #{forward.1} parent=11 // pred_check
        %p1087 = pneg %p932
      $region166: #{forward.1} parent=11 // pred_check_branch
        %1089 = sbr.rel (%p1087) target = $region168
      $region167: #{forward.1} parent=11 // pred_region
        _
      $region168: #{forward.1} parent=11 // pred_fallthru
        _
    $region12: #{forward.1} parent=5 // pred_fallthru
      _
    %p1090 = scmp.lt.s32.totalorder %s87, 2
    // Predicated region
    $region169: #{forward.1} parent=5 // pred_check
      %p1091 = pneg %p1090
    $region170: #{forward.1} parent=5 // pred_check_branch
      %1093 = sbr.rel (%p1091) target = $region172
    $region171: #{forward.1} parent=5 // pred_region
      // Predicated region
      $region173: #{forward.1} parent=171 // pred_check
        %p1094 = pneg %p107
      $region174: #{forward.1} parent=171 // pred_check_branch
        %1096 = sbr.rel (%p1094) target = $region176
      $region175: #{forward.1} parent=171 // pred_region
        %s1097 = smul.u32 32, %s87
        %p1098 = scmp.lt.s32.totalorder %s1097, 63
        %s1099 = scalar_select %p1098, %s1097, 63
        %s1100 = smul.addr %s1099, 8
        %s1101 = scalar_lea.vmem %s1, %s1100
        %s1102 = smul.u32 32, %s87
      $region176: #{forward.1} parent=171 // pred_fallthru
        _
    $region172: #{forward.1} parent=5 // pred_fallthru
      _
    %p1103 = scmp.le.s32.totalorder 1, %s87
    %p1104 = scmp.lt.s32.totalorder %s87, 3
    %p1105 = pnand %p1103, %p1104
    %p1106 = pneg %p1105
    // Predicated region
    $region177: #{forward.1} parent=5 // pred_check
      _
    $region178: #{forward.1} parent=5 // pred_check_branch
      %1108 = sbr.rel (%p1105) target = $region180
    $region179: #{forward.1} parent=5 // pred_region
      %s1109 = ssub.s32 %s87, 1
      %s1110 = smul.u32 32, %s92
      %p1111 = scmp.lt.s32.totalorder %s1110, 63
      %s1112 = scalar_select %p1111, %s1110, 63
      %s1113 = smul.addr %s1112, 8
      %s1114 = scalar_lea.vmem %s1, %s1113
      %p1115 = pneg %p113
      %p1116 = pneg %p110
      %p1117 = pneg %p134
      %p1118 = pneg %p131
      %p1119 = pneg %p155
      %p1120 = pneg %p152
      %p1121 = pneg %p176
      %p1122 = pneg %p173
      %p1123 = pneg %p197
      %p1124 = pneg %p194
      %p1125 = pneg %p218
      %p1126 = pneg %p215
      %p1127 = pneg %p239
      %p1128 = pneg %p236
      %p1129 = pneg %p260
      %p1130 = pneg %p257
      %p1131 = pneg %p281
      %p1132 = pneg %p278
      %p1133 = pneg %p302
      %p1134 = pneg %p299
      %p1135 = pneg %p323
      %p1136 = pneg %p320
      %p1137 = pneg %p344
      %p1138 = pneg %p341
      %p1139 = pneg %p365
      %p1140 = pneg %p362
      %p1141 = pneg %p386
      %p1142 = pneg %p383
      %p1143 = pneg %p407
      %p1144 = pneg %p404
      %p1145 = pneg %p428
      %p1146 = pneg %p425
      %p1147 = pneg %p449
      %p1148 = pneg %p446
      %p1149 = pneg %p470
      %p1150 = pneg %p467
      %p1151 = pneg %p491
      %p1152 = pneg %p488
      %p1153 = pneg %p512
      %p1154 = pneg %p509
      %p1155 = pneg %p533
      %p1156 = pneg %p530
      %p1157 = pneg %p554
      %p1158 = pneg %p551
      %p1159 = pneg %p575
      %p1160 = pneg %p572
      %p1161 = pneg %p596
      %p1162 = pneg %p593
      %p1163 = pneg %p617
      %p1164 = pneg %p614
      %p1165 = pneg %p638
      %p1166 = pneg %p635
      %p1167 = pneg %p659
      %p1168 = pneg %p656
      %p1169 = pneg %p680
      %p1170 = pneg %p677
      %p1171 = pneg %p701
      %p1172 = pneg %p698
      %p1173 = pneg %p722
      %p1174 = pneg %p719
      %p1175 = pneg %p743
      %p1176 = pneg %p740
      %p1177 = pneg %p764
      %p1178 = pneg %p761
      %p1179 = pneg %p785
      %p1180 = pneg %p782
      %p1181 = pneg %p806
      %p1182 = pneg %p803
      %p1183 = pneg %p827
      %p1184 = pneg %p824
      %p1185 = pneg %p848
      %p1186 = pneg %p845
      %p1187 = pneg %p869
      %p1188 = pneg %p866
      %p1189 = pneg %p890
      %p1190 = pneg %p887
      %p1191 = pneg %p911
      %p1192 = pneg %p908
      %p1193 = pneg %p932
      %p1194 = pneg %p929
      %p1195 = pneg %p958
      %p1196 = pneg %p955
      %p1197 = scmp.lt.s32.totalorder %s92, 1
      %s1198 = scalar_select %p1197, %s92, 1
      %s1199 = smul.addr %s1198, 8
      %s1200 = scalar_lea.vmem %s81, %s1199
      %s1201 = smul.u32 32, %s92
      %p1202 = scmp.lt.s32.totalorder %s1201, 63
      %s1203 = scalar_select %p1202, %s1201, 63
      %s1204 = smul.addr %s1203, 8
      %s1205 = scalar_lea.vmem %s1, %s1204
      %s1206 = smul.u32 32, %s92
      %p1207 = scmp.lt.s32.totalorder %s92, 1
      %s1208 = scalar_select %p1207, %s92, 1
      %s1209 = smul.addr %s1208, 8
      %s1210 = scalar_lea.vmem %s81, %s1209
      %v1212 = vld [vmem:[%s3] sm:$0xff]
      %v1213 = vld [vmem:[%s3 + $0x8] sm:$0xff]
      %v1214 = vld [vmem:[%s3 + $0x10] sm:$0xff]
      %v1215 = vld [vmem:[%s3 + $0x18] sm:$0xff]
      %v1216 = vld [vmem:[%s3 + $0x20] sm:$0xff]
      %v1217 = vld [vmem:[%s3 + $0x28] sm:$0xff]
      %v1218 = vld [vmem:[%s3 + $0x30] sm:$0xff]
      %v1219 = vld [vmem:[%s3 + $0x38] sm:$0xff]
      %v1220 = vld [vmem:[%s3 + $0x40] sm:$0xff]
      %v1221 = vld [vmem:[%s3 + $0x48] sm:$0xff]
      %v1222 = vld [vmem:[%s3 + $0x50] sm:$0xff]
      %v1223 = vld [vmem:[%s3 + $0x58] sm:$0xff]
      %v1224 = vld [vmem:[%s3 + $0x60] sm:$0xff]
      %v1225 = vld [vmem:[%s3 + $0x68] sm:$0xff]
      %v1226 = vld [vmem:[%s3 + $0x70] sm:$0xff]
      %v1227 = vld [vmem:[%s3 + $0x78] sm:$0xff]
      %v1228 = vld [vmem:[%s3 + $0x80] sm:$0xff]
      %v1229 = vld [vmem:[%s3 + $0x88] sm:$0xff]
      %v1230 = vld [vmem:[%s3 + $0x90] sm:$0xff]
      %v1231 = vld [vmem:[%s3 + $0x98] sm:$0xff]
      %v1232 = vld [vmem:[%s3 + $0xa0] sm:$0xff]
      %v1233 = vld [vmem:[%s3 + $0xa8] sm:$0xff]
      %v1234 = vld [vmem:[%s3 + $0xb0] sm:$0xff]
      %v1235 = vld [vmem:[%s3 + $0xb8] sm:$0xff]
      %v1236 = vld [vmem:[%s3 + $0xc0] sm:$0xff]
      %v1237 = vld [vmem:[%s3 + $0xc8] sm:$0xff]
      %v1238 = vld [vmem:[%s3 + $0xd0] sm:$0xff]
      %v1239 = vld [vmem:[%s3 + $0xd8] sm:$0xff]
      %v1240 = vld [vmem:[%s3 + $0xe0] sm:$0xff]
      %v1241 = vld [vmem:[%s3 + $0xe8] sm:$0xff]
      %v1242 = vld [vmem:[%s3 + $0xf0] sm:$0xff]
      %v1243 = vld [vmem:[%s3 + $0xf8] sm:$0xff]
      %v1244 = vld [vmem:[%s5] sm:$0xff]
      %v1245 = vld [vmem:[%s5 + $0x8] sm:$0xff]
      %v1246 = vld [vmem:[%s5 + $0x10] sm:$0xff]
      %v1247 = vld [vmem:[%s5 + $0x18] sm:$0xff]
      %v1248 = vld [vmem:[%s5 + $0x20] sm:$0xff]
      %v1249 = vld [vmem:[%s5 + $0x28] sm:$0xff]
      %v1250 = vld [vmem:[%s5 + $0x30] sm:$0xff]
      %v1251 = vld [vmem:[%s5 + $0x38] sm:$0xff]
      %v1252 = vld [vmem:[%s7] sm:$0xff]
      %v1253 = vld [vmem:[%s7 + $0x8] sm:$0xff]
      %v1254 = vld [vmem:[%s1205] sm:$0xff]
      %v1255 = vld [vmem:[%s1205 + $0x8] sm:$0xff]
      %v1256 = vld [vmem:[%s1205 + $0x10] sm:$0xff]
      %v1257 = vld [vmem:[%s1205 + $0x18] sm:$0xff]
      %v1258 = vld [vmem:[%s1205 + $0x20] sm:$0xff]
      %v1259 = vld [vmem:[%s1205 + $0x28] sm:$0xff]
      %v1260 = vld [vmem:[%s1205 + $0x30] sm:$0xff]
      %v1261 = vld [vmem:[%s1205 + $0x38] sm:$0xff]
      %v1262 = vld [vmem:[%s1205 + $0x40] sm:$0xff]
      %v1263 = vld [vmem:[%s1205 + $0x48] sm:$0xff]
      %v1264 = vld [vmem:[%s1205 + $0x50] sm:$0xff]
      %v1265 = vld [vmem:[%s1205 + $0x58] sm:$0xff]
      %v1266 = vld [vmem:[%s1205 + $0x60] sm:$0xff]
      %v1267 = vld [vmem:[%s1205 + $0x68] sm:$0xff]
      %v1268 = vld [vmem:[%s1205 + $0x70] sm:$0xff]
      %v1269 = vld [vmem:[%s1205 + $0x78] sm:$0xff]
      %v1270 = vld [vmem:[%s1205 + $0x80] sm:$0xff]
      %v1271 = vld [vmem:[%s1205 + $0x88] sm:$0xff]
      %v1272 = vld [vmem:[%s1205 + $0x90] sm:$0xff]
      %v1273 = vld [vmem:[%s1205 + $0x98] sm:$0xff]
      %v1274 = vld [vmem:[%s1205 + $0xa0] sm:$0xff]
      %v1275 = vld [vmem:[%s1205 + $0xa8] sm:$0xff]
      %v1276 = vld [vmem:[%s1205 + $0xb0] sm:$0xff]
      %v1277 = vld [vmem:[%s1205 + $0xb8] sm:$0xff]
      %v1278 = vld [vmem:[%s1205 + $0xc0] sm:$0xff]
      %v1279 = vld [vmem:[%s1205 + $0xc8] sm:$0xff]
      %v1280 = vld [vmem:[%s1205 + $0xd0] sm:$0xff]
      %v1281 = vld [vmem:[%s1205 + $0xd8] sm:$0xff]
      %v1282 = vld [vmem:[%s1205 + $0xe0] sm:$0xff]
      %v1283 = vld [vmem:[%s1205 + $0xe8] sm:$0xff]
      %v1284 = vld [vmem:[%s1205 + $0xf0] sm:$0xff]
      %v1285 = vld [vmem:[%s1205 + $0xf8] sm:$0xff]
      %v1286 = vrot.slane %v1254, 7
      %v1287 = vrot.slane %v1255, 7
      %v1288 = vrot.slane %v1256, 7
      %v1289 = vrot.slane %v1257, 7
      %v1290 = vrot.slane %v1258, 7
      %v1291 = vrot.slane %v1259, 7
      %v1292 = vrot.slane %v1260, 7
      %v1293 = vrot.slane %v1261, 7
      %v1294 = vrot.slane %v1262, 7
      %v1295 = vrot.slane %v1263, 7
      %v1296 = vrot.slane %v1264, 7
      %v1297 = vrot.slane %v1265, 7
      %v1298 = vrot.slane %v1266, 7
      %v1299 = vrot.slane %v1267, 7
      %v1300 = vrot.slane %v1268, 7
      %v1301 = vrot.slane %v1269, 7
      %v1302 = vrot.slane %v1270, 7
      %v1303 = vrot.slane %v1271, 7
      %v1304 = vrot.slane %v1272, 7
      %v1305 = vrot.slane %v1273, 7
      %v1306 = vrot.slane %v1274, 7
      %v1307 = vrot.slane %v1275, 7
      %v1308 = vrot.slane %v1276, 7
      %v1309 = vrot.slane %v1277, 7
      %v1310 = vrot.slane %v1278, 7
      %v1311 = vrot.slane %v1279, 7
      %v1312 = vrot.slane %v1280, 7
      %v1313 = vrot.slane %v1281, 7
      %v1314 = vrot.slane %v1282, 7
      %v1315 = vrot.slane %v1283, 7
      %v1316 = vrot.slane %v1284, 7
      %v1317 = vrot.slane %v1285, 7
      %v1318 = vlaneseq
      %v1319 = vshrl.u32 %v1318, 7
      %vm1320 = vcmp.lt.s32.totalorder %v1319, 1
      %v1321 = vsel %vm1320, %v1316, %v1317
      %v1322 = vsel %vm1320, %v1315, %v1316
      %v1323 = vsel %vm1320, %v1314, %v1315
      %v1324 = vsel %vm1320, %v1313, %v1314
      %v1325 = vsel %vm1320, %v1312, %v1313
      %v1326 = vsel %vm1320, %v1311, %v1312
      %v1327 = vsel %vm1320, %v1310, %v1311
      %v1328 = vsel %vm1320, %v1309, %v1310
      %v1329 = vsel %vm1320, %v1308, %v1309
      %v1330 = vsel %vm1320, %v1307, %v1308
      %v1331 = vsel %vm1320, %v1306, %v1307
      %v1332 = vsel %vm1320, %v1305, %v1306
      %v1333 = vsel %vm1320, %v1304, %v1305
      %v1334 = vsel %vm1320, %v1303, %v1304
      %v1335 = vsel %vm1320, %v1302, %v1303
      %v1336 = vsel %vm1320, %v1301, %v1302
      %v1337 = vsel %vm1320, %v1300, %v1301
      %v1338 = vsel %vm1320, %v1299, %v1300
      %v1339 = vsel %vm1320, %v1298, %v1299
      %v1340 = vsel %vm1320, %v1297, %v1298
      %v1341 = vsel %vm1320, %v1296, %v1297
      %v1342 = vsel %vm1320, %v1295, %v1296
      %v1343 = vsel %vm1320, %v1294, %v1295
      %v1344 = vsel %vm1320, %v1293, %v1294
      %v1345 = vsel %vm1320, %v1292, %v1293
      %v1346 = vsel %vm1320, %v1291, %v1292
      %v1347 = vsel %vm1320, %v1290, %v1291
      %v1348 = vsel %vm1320, %v1289, %v1290
      %v1349 = vsel %vm1320, %v1288, %v1289
      %v1350 = vsel %vm1320, %v1287, %v1288
      %v1351 = vsel %vm1320, %v1286, %v1287
      %v1352 = vsel %vm1320, %v1317, %v1286
      %v1353 = vmul.f32 %v1322, %v1212
      %v1354 = vmul.f32 %v1321, %v1213
      %v1355 = vmul.f32 %v1352, %v1214
      %v1356 = vmul.f32 %v1351, %v1215
      %v1357 = vmul.f32 %v1350, %v1216
      %v1358 = vmul.f32 %v1349, %v1217
      %v1359 = vmul.f32 %v1348, %v1218
      %v1360 = vmul.f32 %v1347, %v1219
      %v1361 = vmul.f32 %v1346, %v1220
      %v1362 = vmul.f32 %v1345, %v1221
      %v1363 = vmul.f32 %v1344, %v1222
      %v1364 = vmul.f32 %v1343, %v1223
      %v1365 = vmul.f32 %v1342, %v1224
      %v1366 = vmul.f32 %v1341, %v1225
      %v1367 = vmul.f32 %v1340, %v1226
      %v1368 = vmul.f32 %v1339, %v1227
      %v1369 = vmul.f32 %v1338, %v1228
      %v1370 = vmul.f32 %v1337, %v1229
      %v1371 = vmul.f32 %v1336, %v1230
      %v1372 = vmul.f32 %v1335, %v1231
      %v1373 = vmul.f32 %v1334, %v1232
      %v1374 = vmul.f32 %v1333, %v1233
      %v1375 = vmul.f32 %v1332, %v1234
      %v1376 = vmul.f32 %v1331, %v1235
      %v1377 = vmul.f32 %v1330, %v1236
      %v1378 = vmul.f32 %v1329, %v1237
      %v1379 = vmul.f32 %v1328, %v1238
      %v1380 = vmul.f32 %v1327, %v1239
      %v1381 = vmul.f32 %v1326, %v1240
      %v1382 = vmul.f32 %v1325, %v1241
      %v1383 = vmul.f32 %v1324, %v1242
      %v1384 = vmul.f32 %v1323, %v1243
      %1417 = vrot.lane.b32.xlu0 %v1212, 127
      %v1418 = vpop.permute.xlu0 %1417
      %1419 = vrot.lane.b32.xlu0 %v1213, 127
      %v1420 = vpop.permute.xlu0 %1419
      %1421 = vrot.lane.b32.xlu0 %v1214, 127
      %v1422 = vpop.permute.xlu0 %1421
      %1423 = vrot.lane.b32.xlu0 %v1215, 127
      %v1424 = vpop.permute.xlu0 %1423
      %1425 = vrot.lane.b32.xlu0 %v1216, 127
      %v1426 = vpop.permute.xlu0 %1425
      %1427 = vrot.lane.b32.xlu0 %v1217, 127
      %v1428 = vpop.permute.xlu0 %1427
      %1429 = vrot.lane.b32.xlu0 %v1218, 127
      %v1430 = vpop.permute.xlu0 %1429
      %1431 = vrot.lane.b32.xlu0 %v1219, 127
      %v1432 = vpop.permute.xlu0 %1431
      %1433 = vrot.lane.b32.xlu0 %v1220, 127
      %v1434 = vpop.permute.xlu0 %1433
      %1435 = vrot.lane.b32.xlu0 %v1221, 127
      %v1436 = vpop.permute.xlu0 %1435
      %1437 = vrot.lane.b32.xlu0 %v1222, 127
      %v1438 = vpop.permute.xlu0 %1437
      %1439 = vrot.lane.b32.xlu0 %v1223, 127
      %v1440 = vpop.permute.xlu0 %1439
      %1441 = vrot.lane.b32.xlu0 %v1224, 127
      %v1442 = vpop.permute.xlu0 %1441
      %1443 = vrot.lane.b32.xlu0 %v1225, 127
      %v1444 = vpop.permute.xlu0 %1443
      %1445 = vrot.lane.b32.xlu0 %v1226, 127
      %v1446 = vpop.permute.xlu0 %1445
      %1447 = vrot.lane.b32.xlu0 %v1227, 127
      %v1448 = vpop.permute.xlu0 %1447
      %1449 = vrot.lane.b32.xlu0 %v1228, 127
      %v1450 = vpop.permute.xlu0 %1449
      %1451 = vrot.lane.b32.xlu0 %v1229, 127
      %v1452 = vpop.permute.xlu0 %1451
      %1453 = vrot.lane.b32.xlu0 %v1230, 127
      %v1454 = vpop.permute.xlu0 %1453
      %1455 = vrot.lane.b32.xlu0 %v1231, 127
      %v1456 = vpop.permute.xlu0 %1455
      %1457 = vrot.lane.b32.xlu0 %v1232, 127
      %v1458 = vpop.permute.xlu0 %1457
      %1459 = vrot.lane.b32.xlu0 %v1233, 127
      %v1460 = vpop.permute.xlu0 %1459
      %1461 = vrot.lane.b32.xlu0 %v1234, 127
      %v1462 = vpop.permute.xlu0 %1461
      %1463 = vrot.lane.b32.xlu0 %v1235, 127
      %v1464 = vpop.permute.xlu0 %1463
      %1465 = vrot.lane.b32.xlu0 %v1236, 127
      %v1466 = vpop.permute.xlu0 %1465
      %1467 = vrot.lane.b32.xlu0 %v1237, 127
      %v1468 = vpop.permute.xlu0 %1467
      %1469 = vrot.lane.b32.xlu0 %v1238, 127
      %v1470 = vpop.permute.xlu0 %1469
      %1471 = vrot.lane.b32.xlu0 %v1239, 127
      %v1472 = vpop.permute.xlu0 %1471
      %1473 = vrot.lane.b32.xlu0 %v1240, 127
      %v1474 = vpop.permute.xlu0 %1473
      %1475 = vrot.lane.b32.xlu0 %v1241, 127
      %v1476 = vpop.permute.xlu0 %1475
      %1477 = vrot.lane.b32.xlu0 %v1242, 127
      %v1478 = vpop.permute.xlu0 %1477
      %1479 = vrot.lane.b32.xlu0 %v1243, 127
      %v1480 = vpop.permute.xlu0 %1479
      %v1513 = vmul.f32 %v1284, %v1418
      %v1514 = vmul.f32 %v1285, %v1420
      %v1515 = vmul.f32 %v1254, %v1422
      %v1516 = vmul.f32 %v1255, %v1424
      %v1517 = vmul.f32 %v1256, %v1426
      %v1518 = vmul.f32 %v1257, %v1428
      %v1519 = vmul.f32 %v1258, %v1430
      %v1520 = vmul.f32 %v1259, %v1432
      %v1521 = vmul.f32 %v1260, %v1434
      %v1522 = vmul.f32 %v1261, %v1436
      %v1523 = vmul.f32 %v1262, %v1438
      %v1524 = vmul.f32 %v1263, %v1440
      %v1525 = vmul.f32 %v1264, %v1442
      %v1526 = vmul.f32 %v1265, %v1444
      %v1527 = vmul.f32 %v1266, %v1446
      %v1528 = vmul.f32 %v1267, %v1448
      %v1529 = vmul.f32 %v1268, %v1450
      %v1530 = vmul.f32 %v1269, %v1452
      %v1531 = vmul.f32 %v1270, %v1454
      %v1532 = vmul.f32 %v1271, %v1456
      %v1533 = vmul.f32 %v1272, %v1458
      %v1534 = vmul.f32 %v1273, %v1460
      %v1535 = vmul.f32 %v1274, %v1462
      %v1536 = vmul.f32 %v1275, %v1464
      %v1537 = vmul.f32 %v1276, %v1466
      %v1538 = vmul.f32 %v1277, %v1468
      %v1539 = vmul.f32 %v1278, %v1470
      %v1540 = vmul.f32 %v1279, %v1472
      %v1541 = vmul.f32 %v1280, %v1474
      %v1542 = vmul.f32 %v1281, %v1476
      %v1543 = vmul.f32 %v1282, %v1478
      %v1544 = vmul.f32 %v1283, %v1480
      %v1545 = vrot.slane %v1254, 1
      %v1546 = vrot.slane %v1255, 1
      %v1547 = vrot.slane %v1256, 1
      %v1548 = vrot.slane %v1257, 1
      %v1549 = vrot.slane %v1258, 1
      %v1550 = vrot.slane %v1259, 1
      %v1551 = vrot.slane %v1260, 1
      %v1552 = vrot.slane %v1261, 1
      %v1553 = vrot.slane %v1262, 1
      %v1554 = vrot.slane %v1263, 1
      %v1555 = vrot.slane %v1264, 1
      %v1556 = vrot.slane %v1265, 1
      %v1557 = vrot.slane %v1266, 1
      %v1558 = vrot.slane %v1267, 1
      %v1559 = vrot.slane %v1268, 1
      %v1560 = vrot.slane %v1269, 1
      %v1561 = vrot.slane %v1270, 1
      %v1562 = vrot.slane %v1271, 1
      %v1563 = vrot.slane %v1272, 1
      %v1564 = vrot.slane %v1273, 1
      %v1565 = vrot.slane %v1274, 1
      %v1566 = vrot.slane %v1275, 1
      %v1567 = vrot.slane %v1276, 1
      %v1568 = vrot.slane %v1277, 1
      %v1569 = vrot.slane %v1278, 1
      %v1570 = vrot.slane %v1279, 1
      %v1571 = vrot.slane %v1280, 1
      %v1572 = vrot.slane %v1281, 1
      %v1573 = vrot.slane %v1282, 1
      %v1574 = vrot.slane %v1283, 1
      %v1575 = vrot.slane %v1284, 1
      %v1576 = vrot.slane %v1285, 1
      %vm1577 = vcmp.lt.s32.totalorder %v1319, 7
      %v1578 = vsel %vm1577, %v1575, %v1576
      %v1579 = vsel %vm1577, %v1574, %v1575
      %v1580 = vsel %vm1577, %v1573, %v1574
      %v1581 = vsel %vm1577, %v1572, %v1573
      %v1582 = vsel %vm1577, %v1571, %v1572
      %v1583 = vsel %vm1577, %v1570, %v1571
      %v1584 = vsel %vm1577, %v1569, %v1570
      %v1585 = vsel %vm1577, %v1568, %v1569
      %v1586 = vsel %vm1577, %v1567, %v1568
      %v1587 = vsel %vm1577, %v1566, %v1567
      %v1588 = vsel %vm1577, %v1565, %v1566
      %v1589 = vsel %vm1577, %v1564, %v1565
      %v1590 = vsel %vm1577, %v1563, %v1564
      %v1591 = vsel %vm1577, %v1562, %v1563
      %v1592 = vsel %vm1577, %v1561, %v1562
      %v1593 = vsel %vm1577, %v1560, %v1561
      %v1594 = vsel %vm1577, %v1559, %v1560
      %v1595 = vsel %vm1577, %v1558, %v1559
      %v1596 = vsel %vm1577, %v1557, %v1558
      %v1597 = vsel %vm1577, %v1556, %v1557
      %v1598 = vsel %vm1577, %v1555, %v1556
      %v1599 = vsel %vm1577, %v1554, %v1555
      %v1600 = vsel %vm1577, %v1553, %v1554
      %v1601 = vsel %vm1577, %v1552, %v1553
      %v1602 = vsel %vm1577, %v1551, %v1552
      %v1603 = vsel %vm1577, %v1550, %v1551
      %v1604 = vsel %vm1577, %v1549, %v1550
      %v1605 = vsel %vm1577, %v1548, %v1549
      %v1606 = vsel %vm1577, %v1547, %v1548
      %v1607 = vsel %vm1577, %v1546, %v1547
      %v1608 = vsel %vm1577, %v1545, %v1546
      %v1609 = vsel %vm1577, %v1576, %v1545
      %1610 = vrot.lane.b32.xlu0 %v1212, 126
      %v1611 = vpop.permute.xlu0 %1610
      %1612 = vrot.lane.b32.xlu0 %v1213, 126
      %v1613 = vpop.permute.xlu0 %1612
      %1614 = vrot.lane.b32.xlu0 %v1214, 126
      %v1615 = vpop.permute.xlu0 %1614
      %1616 = vrot.lane.b32.xlu0 %v1215, 126
      %v1617 = vpop.permute.xlu0 %1616
      %1618 = vrot.lane.b32.xlu0 %v1216, 126
      %v1619 = vpop.permute.xlu0 %1618
      %1620 = vrot.lane.b32.xlu0 %v1217, 126
      %v1621 = vpop.permute.xlu0 %1620
      %1622 = vrot.lane.b32.xlu0 %v1218, 126
      %v1623 = vpop.permute.xlu0 %1622
      %1624 = vrot.lane.b32.xlu0 %v1219, 126
      %v1625 = vpop.permute.xlu0 %1624
      %1626 = vrot.lane.b32.xlu0 %v1220, 126
      %v1627 = vpop.permute.xlu0 %1626
      %1628 = vrot.lane.b32.xlu0 %v1221, 126
      %v1629 = vpop.permute.xlu0 %1628
      %1630 = vrot.lane.b32.xlu0 %v1222, 126
      %v1631 = vpop.permute.xlu0 %1630
      %1632 = vrot.lane.b32.xlu0 %v1223, 126
      %v1633 = vpop.permute.xlu0 %1632
      %1634 = vrot.lane.b32.xlu0 %v1224, 126
      %v1635 = vpop.permute.xlu0 %1634
      %1636 = vrot.lane.b32.xlu0 %v1225, 126
      %v1637 = vpop.permute.xlu0 %1636
      %1638 = vrot.lane.b32.xlu0 %v1226, 126
      %v1639 = vpop.permute.xlu0 %1638
      %1640 = vrot.lane.b32.xlu0 %v1227, 126
      %v1641 = vpop.permute.xlu0 %1640
      %1642 = vrot.lane.b32.xlu0 %v1228, 126
      %v1643 = vpop.permute.xlu0 %1642
      %1644 = vrot.lane.b32.xlu0 %v1229, 126
      %v1645 = vpop.permute.xlu0 %1644
      %1646 = vrot.lane.b32.xlu0 %v1230, 126
      %v1647 = vpop.permute.xlu0 %1646
      %1648 = vrot.lane.b32.xlu0 %v1231, 126
      %v1649 = vpop.permute.xlu0 %1648
      %1650 = vrot.lane.b32.xlu0 %v1232, 126
      %v1651 = vpop.permute.xlu0 %1650
      %1652 = vrot.lane.b32.xlu0 %v1233, 126
      %v1653 = vpop.permute.xlu0 %1652
      %1654 = vrot.lane.b32.xlu0 %v1234, 126
      %v1655 = vpop.permute.xlu0 %1654
      %1656 = vrot.lane.b32.xlu0 %v1235, 126
      %v1657 = vpop.permute.xlu0 %1656
      %1658 = vrot.lane.b32.xlu0 %v1236, 126
      %v1659 = vpop.permute.xlu0 %1658
      %1660 = vrot.lane.b32.xlu0 %v1237, 126
      %v1661 = vpop.permute.xlu0 %1660
      %1662 = vrot.lane.b32.xlu0 %v1238, 126
      %v1663 = vpop.permute.xlu0 %1662
      %1664 = vrot.lane.b32.xlu0 %v1239, 126
      %v1665 = vpop.permute.xlu0 %1664
      %1666 = vrot.lane.b32.xlu0 %v1240, 126
      %v1667 = vpop.permute.xlu0 %1666
      %1668 = vrot.lane.b32.xlu0 %v1241, 126
      %v1669 = vpop.permute.xlu0 %1668
      %1670 = vrot.lane.b32.xlu0 %v1242, 126
      %v1671 = vpop.permute.xlu0 %1670
      %1672 = vrot.lane.b32.xlu0 %v1243, 126
      %v1673 = vpop.permute.xlu0 %1672
      %v1706 = vmul.f32 %v1578, %v1611
      %v1707 = vmul.f32 %v1609, %v1613
      %v1708 = vmul.f32 %v1608, %v1615
      %v1709 = vmul.f32 %v1607, %v1617
      %v1710 = vmul.f32 %v1606, %v1619
      %v1711 = vmul.f32 %v1605, %v1621
      %v1712 = vmul.f32 %v1604, %v1623
      %v1713 = vmul.f32 %v1603, %v1625
      %v1714 = vmul.f32 %v1602, %v1627
      %v1715 = vmul.f32 %v1601, %v1629
      %v1716 = vmul.f32 %v1600, %v1631
      %v1717 = vmul.f32 %v1599, %v1633
      %v1718 = vmul.f32 %v1598, %v1635
      %v1719 = vmul.f32 %v1597, %v1637
      %v1720 = vmul.f32 %v1596, %v1639
      %v1721 = vmul.f32 %v1595, %v1641
      %v1722 = vmul.f32 %v1594, %v1643
      %v1723 = vmul.f32 %v1593, %v1645
      %v1724 = vmul.f32 %v1592, %v1647
      %v1725 = vmul.f32 %v1591, %v1649
      %v1726 = vmul.f32 %v1590, %v1651
      %v1727 = vmul.f32 %v1589, %v1653
      %v1728 = vmul.f32 %v1588, %v1655
      %v1729 = vmul.f32 %v1587, %v1657
      %v1730 = vmul.f32 %v1586, %v1659
      %v1731 = vmul.f32 %v1585, %v1661
      %v1732 = vmul.f32 %v1584, %v1663
      %v1733 = vmul.f32 %v1583, %v1665
      %v1734 = vmul.f32 %v1582, %v1667
      %v1735 = vmul.f32 %v1581, %v1669
      %v1736 = vmul.f32 %v1580, %v1671
      %v1737 = vmul.f32 %v1579, %v1673
      %1738 = vrot.lane.b32.xlu0 %v1212, 125
      %v1739 = vpop.permute.xlu0 %1738
      %1740 = vrot.lane.b32.xlu0 %v1213, 125
      %v1741 = vpop.permute.xlu0 %1740
      %1742 = vrot.lane.b32.xlu0 %v1214, 125
      %v1743 = vpop.permute.xlu0 %1742
      %1744 = vrot.lane.b32.xlu0 %v1215, 125
      %v1745 = vpop.permute.xlu0 %1744
      %1746 = vrot.lane.b32.xlu0 %v1216, 125
      %v1747 = vpop.permute.xlu0 %1746
      %1748 = vrot.lane.b32.xlu0 %v1217, 125
      %v1749 = vpop.permute.xlu0 %1748
      %1750 = vrot.lane.b32.xlu0 %v1218, 125
      %v1751 = vpop.permute.xlu0 %1750
      %1752 = vrot.lane.b32.xlu0 %v1219, 125
      %v1753 = vpop.permute.xlu0 %1752
      %1754 = vrot.lane.b32.xlu0 %v1220, 125
      %v1755 = vpop.permute.xlu0 %1754
      %1756 = vrot.lane.b32.xlu0 %v1221, 125
      %v1757 = vpop.permute.xlu0 %1756
      %1758 = vrot.lane.b32.xlu0 %v1222, 125
      %v1759 = vpop.permute.xlu0 %1758
      %1760 = vrot.lane.b32.xlu0 %v1223, 125
      %v1761 = vpop.permute.xlu0 %1760
      %1762 = vrot.lane.b32.xlu0 %v1224, 125
      %v1763 = vpop.permute.xlu0 %1762
      %1764 = vrot.lane.b32.xlu0 %v1225, 125
      %v1765 = vpop.permute.xlu0 %1764
      %1766 = vrot.lane.b32.xlu0 %v1226, 125
      %v1767 = vpop.permute.xlu0 %1766
      %1768 = vrot.lane.b32.xlu0 %v1227, 125
      %v1769 = vpop.permute.xlu0 %1768
      %1770 = vrot.lane.b32.xlu0 %v1228, 125
      %v1771 = vpop.permute.xlu0 %1770
      %1772 = vrot.lane.b32.xlu0 %v1229, 125
      %v1773 = vpop.permute.xlu0 %1772
      %1774 = vrot.lane.b32.xlu0 %v1230, 125
      %v1775 = vpop.permute.xlu0 %1774
      %1776 = vrot.lane.b32.xlu0 %v1231, 125
      %v1777 = vpop.permute.xlu0 %1776
      %1778 = vrot.lane.b32.xlu0 %v1232, 125
      %v1779 = vpop.permute.xlu0 %1778
      %1780 = vrot.lane.b32.xlu0 %v1233, 125
      %v1781 = vpop.permute.xlu0 %1780
      %1782 = vrot.lane.b32.xlu0 %v1234, 125
      %v1783 = vpop.permute.xlu0 %1782
      %1784 = vrot.lane.b32.xlu0 %v1235, 125
      %v1785 = vpop.permute.xlu0 %1784
      %1786 = vrot.lane.b32.xlu0 %v1236, 125
      %v1787 = vpop.permute.xlu0 %1786
      %1788 = vrot.lane.b32.xlu0 %v1237, 125
      %v1789 = vpop.permute.xlu0 %1788
      %1790 = vrot.lane.b32.xlu0 %v1238, 125
      %v1791 = vpop.permute.xlu0 %1790
      %1792 = vrot.lane.b32.xlu0 %v1239, 125
      %v1793 = vpop.permute.xlu0 %1792
      %1794 = vrot.lane.b32.xlu0 %v1240, 125
      %v1795 = vpop.permute.xlu0 %1794
      %1796 = vrot.lane.b32.xlu0 %v1241, 125
      %v1797 = vpop.permute.xlu0 %1796
      %1798 = vrot.lane.b32.xlu0 %v1242, 125
      %v1799 = vpop.permute.xlu0 %1798
      %1800 = vrot.lane.b32.xlu0 %v1243, 125
      %v1801 = vpop.permute.xlu0 %1800
      %v1834 = vmul.f32 %v1352, %v1739
      %v1835 = vmul.f32 %v1351, %v1741
      %v1836 = vmul.f32 %v1350, %v1743
      %v1837 = vmul.f32 %v1349, %v1745
      %v1838 = vmul.f32 %v1348, %v1747
      %v1839 = vmul.f32 %v1347, %v1749
      %v1840 = vmul.f32 %v1346, %v1751
      %v1841 = vmul.f32 %v1345, %v1753
      %v1842 = vmul.f32 %v1344, %v1755
      %v1843 = vmul.f32 %v1343, %v1757
      %v1844 = vmul.f32 %v1342, %v1759
      %v1845 = vmul.f32 %v1341, %v1761
      %v1846 = vmul.f32 %v1340, %v1763
      %v1847 = vmul.f32 %v1339, %v1765
      %v1848 = vmul.f32 %v1338, %v1767
      %v1849 = vmul.f32 %v1337, %v1769
      %v1850 = vmul.f32 %v1336, %v1771
      %v1851 = vmul.f32 %v1335, %v1773
      %v1852 = vmul.f32 %v1334, %v1775
      %v1853 = vmul.f32 %v1333, %v1777
      %v1854 = vmul.f32 %v1332, %v1779
      %v1855 = vmul.f32 %v1331, %v1781
      %v1856 = vmul.f32 %v1330, %v1783
      %v1857 = vmul.f32 %v1329, %v1785
      %v1858 = vmul.f32 %v1328, %v1787
      %v1859 = vmul.f32 %v1327, %v1789
      %v1860 = vmul.f32 %v1326, %v1791
      %v1861 = vmul.f32 %v1325, %v1793
      %v1862 = vmul.f32 %v1324, %v1795
      %v1863 = vmul.f32 %v1323, %v1797
      %v1864 = vmul.f32 %v1322, %v1799
      %v1865 = vmul.f32 %v1321, %v1801
      %1866 = vrot.lane.b32.xlu0 %v1212, 123
      %v1867 = vpop.permute.xlu0 %1866
      %1868 = vrot.lane.b32.xlu0 %v1213, 123
      %v1869 = vpop.permute.xlu0 %1868
      %1870 = vrot.lane.b32.xlu0 %v1214, 123
      %v1871 = vpop.permute.xlu0 %1870
      %1872 = vrot.lane.b32.xlu0 %v1215, 123
      %v1873 = vpop.permute.xlu0 %1872
      %1874 = vrot.lane.b32.xlu0 %v1216, 123
      %v1875 = vpop.permute.xlu0 %1874
      %1876 = vrot.lane.b32.xlu0 %v1217, 123
      %v1877 = vpop.permute.xlu0 %1876
      %1878 = vrot.lane.b32.xlu0 %v1218, 123
      %v1879 = vpop.permute.xlu0 %1878
      %1880 = vrot.lane.b32.xlu0 %v1219, 123
      %v1881 = vpop.permute.xlu0 %1880
      %1882 = vrot.lane.b32.xlu0 %v1220, 123
      %v1883 = vpop.permute.xlu0 %1882
      %1884 = vrot.lane.b32.xlu0 %v1221, 123
      %v1885 = vpop.permute.xlu0 %1884
      %1886 = vrot.lane.b32.xlu0 %v1222, 123
      %v1887 = vpop.permute.xlu0 %1886
      %1888 = vrot.lane.b32.xlu0 %v1223, 123
      %v1889 = vpop.permute.xlu0 %1888
      %1890 = vrot.lane.b32.xlu0 %v1224, 123
      %v1891 = vpop.permute.xlu0 %1890
      %1892 = vrot.lane.b32.xlu0 %v1225, 123
      %v1893 = vpop.permute.xlu0 %1892
      %1894 = vrot.lane.b32.xlu0 %v1226, 123
      %v1895 = vpop.permute.xlu0 %1894
      %1896 = vrot.lane.b32.xlu0 %v1227, 123
      %v1897 = vpop.permute.xlu0 %1896
      %1898 = vrot.lane.b32.xlu0 %v1228, 123
      %v1899 = vpop.permute.xlu0 %1898
      %1900 = vrot.lane.b32.xlu0 %v1229, 123
      %v1901 = vpop.permute.xlu0 %1900
      %1902 = vrot.lane.b32.xlu0 %v1230, 123
      %v1903 = vpop.permute.xlu0 %1902
      %1904 = vrot.lane.b32.xlu0 %v1231, 123
      %v1905 = vpop.permute.xlu0 %1904
      %1906 = vrot.lane.b32.xlu0 %v1232, 123
      %v1907 = vpop.permute.xlu0 %1906
      %1908 = vrot.lane.b32.xlu0 %v1233, 123
      %v1909 = vpop.permute.xlu0 %1908
      %1910 = vrot.lane.b32.xlu0 %v1234, 123
      %v1911 = vpop.permute.xlu0 %1910
      %1912 = vrot.lane.b32.xlu0 %v1235, 123
      %v1913 = vpop.permute.xlu0 %1912
      %1914 = vrot.lane.b32.xlu0 %v1236, 123
      %v1915 = vpop.permute.xlu0 %1914
      %1916 = vrot.lane.b32.xlu0 %v1237, 123
      %v1917 = vpop.permute.xlu0 %1916
      %1918 = vrot.lane.b32.xlu0 %v1238, 123
      %v1919 = vpop.permute.xlu0 %1918
      %1920 = vrot.lane.b32.xlu0 %v1239, 123
      %v1921 = vpop.permute.xlu0 %1920
      %1922 = vrot.lane.b32.xlu0 %v1240, 123
      %v1923 = vpop.permute.xlu0 %1922
      %1924 = vrot.lane.b32.xlu0 %v1241, 123
      %v1925 = vpop.permute.xlu0 %1924
      %1926 = vrot.lane.b32.xlu0 %v1242, 123
      %v1927 = vpop.permute.xlu0 %1926
      %1928 = vrot.lane.b32.xlu0 %v1243, 123
      %v1929 = vpop.permute.xlu0 %1928
      %v1962 = vmul.f32 %v1608, %v1867
      %v1963 = vmul.f32 %v1607, %v1869
      %v1964 = vmul.f32 %v1606, %v1871
      %v1965 = vmul.f32 %v1605, %v1873
      %v1966 = vmul.f32 %v1604, %v1875
      %v1967 = vmul.f32 %v1603, %v1877
      %v1968 = vmul.f32 %v1602, %v1879
      %v1969 = vmul.f32 %v1601, %v1881
      %v1970 = vmul.f32 %v1600, %v1883
      %v1971 = vmul.f32 %v1599, %v1885
      %v1972 = vmul.f32 %v1598, %v1887
      %v1973 = vmul.f32 %v1597, %v1889
      %v1974 = vmul.f32 %v1596, %v1891
      %v1975 = vmul.f32 %v1595, %v1893
      %v1976 = vmul.f32 %v1594, %v1895
      %v1977 = vmul.f32 %v1593, %v1897
      %v1978 = vmul.f32 %v1592, %v1899
      %v1979 = vmul.f32 %v1591, %v1901
      %v1980 = vmul.f32 %v1590, %v1903
      %v1981 = vmul.f32 %v1589, %v1905
      %v1982 = vmul.f32 %v1588, %v1907
      %v1983 = vmul.f32 %v1587, %v1909
      %v1984 = vmul.f32 %v1586, %v1911
      %v1985 = vmul.f32 %v1585, %v1913
      %v1986 = vmul.f32 %v1584, %v1915
      %v1987 = vmul.f32 %v1583, %v1917
      %v1988 = vmul.f32 %v1582, %v1919
      %v1989 = vmul.f32 %v1581, %v1921
      %v1990 = vmul.f32 %v1580, %v1923
      %v1991 = vmul.f32 %v1579, %v1925
      %v1992 = vmul.f32 %v1578, %v1927
      %v1993 = vmul.f32 %v1609, %v1929
      %1994 = vrot.lane.b32.xlu0 %v1212, 122
      %v1995 = vpop.permute.xlu0 %1994
      %1996 = vrot.lane.b32.xlu0 %v1213, 122
      %v1997 = vpop.permute.xlu0 %1996
      %1998 = vrot.lane.b32.xlu0 %v1214, 122
      %v1999 = vpop.permute.xlu0 %1998
      %2000 = vrot.lane.b32.xlu0 %v1215, 122
      %v2001 = vpop.permute.xlu0 %2000
      %2002 = vrot.lane.b32.xlu0 %v1216, 122
      %v2003 = vpop.permute.xlu0 %2002
      %2004 = vrot.lane.b32.xlu0 %v1217, 122
      %v2005 = vpop.permute.xlu0 %2004
      %2006 = vrot.lane.b32.xlu0 %v1218, 122
      %v2007 = vpop.permute.xlu0 %2006
      %2008 = vrot.lane.b32.xlu0 %v1219, 122
      %v2009 = vpop.permute.xlu0 %2008
      %2010 = vrot.lane.b32.xlu0 %v1220, 122
      %v2011 = vpop.permute.xlu0 %2010
      %2012 = vrot.lane.b32.xlu0 %v1221, 122
      %v2013 = vpop.permute.xlu0 %2012
      %2014 = vrot.lane.b32.xlu0 %v1222, 122
      %v2015 = vpop.permute.xlu0 %2014
      %2016 = vrot.lane.b32.xlu0 %v1223, 122
      %v2017 = vpop.permute.xlu0 %2016
      %2018 = vrot.lane.b32.xlu0 %v1224, 122
      %v2019 = vpop.permute.xlu0 %2018
      %2020 = vrot.lane.b32.xlu0 %v1225, 122
      %v2021 = vpop.permute.xlu0 %2020
      %2022 = vrot.lane.b32.xlu0 %v1226, 122
      %v2023 = vpop.permute.xlu0 %2022
      %2024 = vrot.lane.b32.xlu0 %v1227, 122
      %v2025 = vpop.permute.xlu0 %2024
      %2026 = vrot.lane.b32.xlu0 %v1228, 122
      %v2027 = vpop.permute.xlu0 %2026
      %2028 = vrot.lane.b32.xlu0 %v1229, 122
      %v2029 = vpop.permute.xlu0 %2028
      %2030 = vrot.lane.b32.xlu0 %v1230, 122
      %v2031 = vpop.permute.xlu0 %2030
      %2032 = vrot.lane.b32.xlu0 %v1231, 122
      %v2033 = vpop.permute.xlu0 %2032
      %2034 = vrot.lane.b32.xlu0 %v1232, 122
      %v2035 = vpop.permute.xlu0 %2034
      %2036 = vrot.lane.b32.xlu0 %v1233, 122
      %v2037 = vpop.permute.xlu0 %2036
      %2038 = vrot.lane.b32.xlu0 %v1234, 122
      %v2039 = vpop.permute.xlu0 %2038
      %2040 = vrot.lane.b32.xlu0 %v1235, 122
      %v2041 = vpop.permute.xlu0 %2040
      %2042 = vrot.lane.b32.xlu0 %v1236, 122
      %v2043 = vpop.permute.xlu0 %2042
      %2044 = vrot.lane.b32.xlu0 %v1237, 122
      %v2045 = vpop.permute.xlu0 %2044
      %2046 = vrot.lane.b32.xlu0 %v1238, 122
      %v2047 = vpop.permute.xlu0 %2046
      %2048 = vrot.lane.b32.xlu0 %v1239, 122
      %v2049 = vpop.permute.xlu0 %2048
      %2050 = vrot.lane.b32.xlu0 %v1240, 122
      %v2051 = vpop.permute.xlu0 %2050
      %2052 = vrot.lane.b32.xlu0 %v1241, 122
      %v2053 = vpop.permute.xlu0 %2052
      %2054 = vrot.lane.b32.xlu0 %v1242, 122
      %v2055 = vpop.permute.xlu0 %2054
      %2056 = vrot.lane.b32.xlu0 %v1243, 122
      %v2057 = vpop.permute.xlu0 %2056
      %v2090 = vmul.f32 %v1350, %v1995
      %v2091 = vmul.f32 %v1349, %v1997
      %v2092 = vmul.f32 %v1348, %v1999
      %v2093 = vmul.f32 %v1347, %v2001
      %v2094 = vmul.f32 %v1346, %v2003
      %v2095 = vmul.f32 %v1345, %v2005
      %v2096 = vmul.f32 %v1344, %v2007
      %v2097 = vmul.f32 %v1343, %v2009
      %v2098 = vmul.f32 %v1342, %v2011
      %v2099 = vmul.f32 %v1341, %v2013
      %v2100 = vmul.f32 %v1340, %v2015
      %v2101 = vmul.f32 %v1339, %v2017
      %v2102 = vmul.f32 %v1338, %v2019
      %v2103 = vmul.f32 %v1337, %v2021
      %v2104 = vmul.f32 %v1336, %v2023
      %v2105 = vmul.f32 %v1335, %v2025
      %v2106 = vmul.f32 %v1334, %v2027
      %v2107 = vmul.f32 %v1333, %v2029
      %v2108 = vmul.f32 %v1332, %v2031
      %v2109 = vmul.f32 %v1331, %v2033
      %v2110 = vmul.f32 %v1330, %v2035
      %v2111 = vmul.f32 %v1329, %v2037
      %v2112 = vmul.f32 %v1328, %v2039
      %v2113 = vmul.f32 %v1327, %v2041
      %v2114 = vmul.f32 %v1326, %v2043
      %v2115 = vmul.f32 %v1325, %v2045
      %v2116 = vmul.f32 %v1324, %v2047
      %v2117 = vmul.f32 %v1323, %v2049
      %v2118 = vmul.f32 %v1322, %v2051
      %v2119 = vmul.f32 %v1321, %v2053
      %v2120 = vmul.f32 %v1352, %v2055
      %v2121 = vmul.f32 %v1351, %v2057
      %2122 = vrot.lane.b32.xlu0 %v1212, 121
      %v2123 = vpop.permute.xlu0 %2122
      %2124 = vrot.lane.b32.xlu0 %v1213, 121
      %v2125 = vpop.permute.xlu0 %2124
      %2126 = vrot.lane.b32.xlu0 %v1214, 121
      %v2127 = vpop.permute.xlu0 %2126
      %2128 = vrot.lane.b32.xlu0 %v1215, 121
      %v2129 = vpop.permute.xlu0 %2128
      %2130 = vrot.lane.b32.xlu0 %v1216, 121
      %v2131 = vpop.permute.xlu0 %2130
      %2132 = vrot.lane.b32.xlu0 %v1217, 121
      %v2133 = vpop.permute.xlu0 %2132
      %2134 = vrot.lane.b32.xlu0 %v1218, 121
      %v2135 = vpop.permute.xlu0 %2134
      %2136 = vrot.lane.b32.xlu0 %v1219, 121
      %v2137 = vpop.permute.xlu0 %2136
      %2138 = vrot.lane.b32.xlu0 %v1220, 121
      %v2139 = vpop.permute.xlu0 %2138
      %2140 = vrot.lane.b32.xlu0 %v1221, 121
      %v2141 = vpop.permute.xlu0 %2140
      %2142 = vrot.lane.b32.xlu0 %v1222, 121
      %v2143 = vpop.permute.xlu0 %2142
      %2144 = vrot.lane.b32.xlu0 %v1223, 121
      %v2145 = vpop.permute.xlu0 %2144
      %2146 = vrot.lane.b32.xlu0 %v1224, 121
      %v2147 = vpop.permute.xlu0 %2146
      %2148 = vrot.lane.b32.xlu0 %v1225, 121
      %v2149 = vpop.permute.xlu0 %2148
      %2150 = vrot.lane.b32.xlu0 %v1226, 121
      %v2151 = vpop.permute.xlu0 %2150
      %2152 = vrot.lane.b32.xlu0 %v1227, 121
      %v2153 = vpop.permute.xlu0 %2152
      %2154 = vrot.lane.b32.xlu0 %v1228, 121
      %v2155 = vpop.permute.xlu0 %2154
      %2156 = vrot.lane.b32.xlu0 %v1229, 121
      %v2157 = vpop.permute.xlu0 %2156
      %2158 = vrot.lane.b32.xlu0 %v1230, 121
      %v2159 = vpop.permute.xlu0 %2158
      %2160 = vrot.lane.b32.xlu0 %v1231, 121
      %v2161 = vpop.permute.xlu0 %2160
      %2162 = vrot.lane.b32.xlu0 %v1232, 121
      %v2163 = vpop.permute.xlu0 %2162
      %2164 = vrot.lane.b32.xlu0 %v1233, 121
      %v2165 = vpop.permute.xlu0 %2164
      %2166 = vrot.lane.b32.xlu0 %v1234, 121
      %v2167 = vpop.permute.xlu0 %2166
      %2168 = vrot.lane.b32.xlu0 %v1235, 121
      %v2169 = vpop.permute.xlu0 %2168
      %2170 = vrot.lane.b32.xlu0 %v1236, 121
      %v2171 = vpop.permute.xlu0 %2170
      %2172 = vrot.lane.b32.xlu0 %v1237, 121
      %v2173 = vpop.permute.xlu0 %2172
      %2174 = vrot.lane.b32.xlu0 %v1238, 121
      %v2175 = vpop.permute.xlu0 %2174
      %2176 = vrot.lane.b32.xlu0 %v1239, 121
      %v2177 = vpop.permute.xlu0 %2176
      %2178 = vrot.lane.b32.xlu0 %v1240, 121
      %v2179 = vpop.permute.xlu0 %2178
      %2180 = vrot.lane.b32.xlu0 %v1241, 121
      %v2181 = vpop.permute.xlu0 %2180
      %2182 = vrot.lane.b32.xlu0 %v1242, 121
      %v2183 = vpop.permute.xlu0 %2182
      %2184 = vrot.lane.b32.xlu0 %v1243, 121
      %v2185 = vpop.permute.xlu0 %2184
      %v2218 = vmul.f32 %v1256, %v2123
      %v2219 = vmul.f32 %v1257, %v2125
      %v2220 = vmul.f32 %v1258, %v2127
      %v2221 = vmul.f32 %v1259, %v2129
      %v2222 = vmul.f32 %v1260, %v2131
      %v2223 = vmul.f32 %v1261, %v2133
      %v2224 = vmul.f32 %v1262, %v2135
      %v2225 = vmul.f32 %v1263, %v2137
      %v2226 = vmul.f32 %v1264, %v2139
      %v2227 = vmul.f32 %v1265, %v2141
      %v2228 = vmul.f32 %v1266, %v2143
      %v2229 = vmul.f32 %v1267, %v2145
      %v2230 = vmul.f32 %v1268, %v2147
      %v2231 = vmul.f32 %v1269, %v2149
      %v2232 = vmul.f32 %v1270, %v2151
      %v2233 = vmul.f32 %v1271, %v2153
      %v2234 = vmul.f32 %v1272, %v2155
      %v2235 = vmul.f32 %v1273, %v2157
      %v2236 = vmul.f32 %v1274, %v2159
      %v2237 = vmul.f32 %v1275, %v2161
      %v2238 = vmul.f32 %v1276, %v2163
      %v2239 = vmul.f32 %v1277, %v2165
      %v2240 = vmul.f32 %v1278, %v2167
      %v2241 = vmul.f32 %v1279, %v2169
      %v2242 = vmul.f32 %v1280, %v2171
      %v2243 = vmul.f32 %v1281, %v2173
      %v2244 = vmul.f32 %v1282, %v2175
      %v2245 = vmul.f32 %v1283, %v2177
      %v2246 = vmul.f32 %v1284, %v2179
      %v2247 = vmul.f32 %v1285, %v2181
      %v2248 = vmul.f32 %v1254, %v2183
      %v2249 = vmul.f32 %v1255, %v2185
      %2250 = vrot.lane.b32.xlu0 %v1212, 120
      %v2251 = vpop.permute.xlu0 %2250
      %2252 = vrot.lane.b32.xlu0 %v1213, 120
      %v2253 = vpop.permute.xlu0 %2252
      %2254 = vrot.lane.b32.xlu0 %v1214, 120
      %v2255 = vpop.permute.xlu0 %2254
      %2256 = vrot.lane.b32.xlu0 %v1215, 120
      %v2257 = vpop.permute.xlu0 %2256
      %2258 = vrot.lane.b32.xlu0 %v1216, 120
      %v2259 = vpop.permute.xlu0 %2258
      %2260 = vrot.lane.b32.xlu0 %v1217, 120
      %v2261 = vpop.permute.xlu0 %2260
      %2262 = vrot.lane.b32.xlu0 %v1218, 120
      %v2263 = vpop.permute.xlu0 %2262
      %2264 = vrot.lane.b32.xlu0 %v1219, 120
      %v2265 = vpop.permute.xlu0 %2264
      %2266 = vrot.lane.b32.xlu0 %v1220, 120
      %v2267 = vpop.permute.xlu0 %2266
      %2268 = vrot.lane.b32.xlu0 %v1221, 120
      %v2269 = vpop.permute.xlu0 %2268
      %2270 = vrot.lane.b32.xlu0 %v1222, 120
      %v2271 = vpop.permute.xlu0 %2270
      %2272 = vrot.lane.b32.xlu0 %v1223, 120
      %v2273 = vpop.permute.xlu0 %2272
      %2274 = vrot.lane.b32.xlu0 %v1224, 120
      %v2275 = vpop.permute.xlu0 %2274
      %2276 = vrot.lane.b32.xlu0 %v1225, 120
      %v2277 = vpop.permute.xlu0 %2276
      %2278 = vrot.lane.b32.xlu0 %v1226, 120
      %v2279 = vpop.permute.xlu0 %2278
      %2280 = vrot.lane.b32.xlu0 %v1227, 120
      %v2281 = vpop.permute.xlu0 %2280
      %2282 = vrot.lane.b32.xlu0 %v1228, 120
      %v2283 = vpop.permute.xlu0 %2282
      %2284 = vrot.lane.b32.xlu0 %v1229, 120
      %v2285 = vpop.permute.xlu0 %2284
      %2286 = vrot.lane.b32.xlu0 %v1230, 120
      %v2287 = vpop.permute.xlu0 %2286
      %2288 = vrot.lane.b32.xlu0 %v1231, 120
      %v2289 = vpop.permute.xlu0 %2288
      %2290 = vrot.lane.b32.xlu0 %v1232, 120
      %v2291 = vpop.permute.xlu0 %2290
      %2292 = vrot.lane.b32.xlu0 %v1233, 120
      %v2293 = vpop.permute.xlu0 %2292
      %2294 = vrot.lane.b32.xlu0 %v1234, 120
      %v2295 = vpop.permute.xlu0 %2294
      %2296 = vrot.lane.b32.xlu0 %v1235, 120
      %v2297 = vpop.permute.xlu0 %2296
      %2298 = vrot.lane.b32.xlu0 %v1236, 120
      %v2299 = vpop.permute.xlu0 %2298
      %2300 = vrot.lane.b32.xlu0 %v1237, 120
      %v2301 = vpop.permute.xlu0 %2300
      %2302 = vrot.lane.b32.xlu0 %v1238, 120
      %v2303 = vpop.permute.xlu0 %2302
      %2304 = vrot.lane.b32.xlu0 %v1239, 120
      %v2305 = vpop.permute.xlu0 %2304
      %2306 = vrot.lane.b32.xlu0 %v1240, 120
      %v2307 = vpop.permute.xlu0 %2306
      %2308 = vrot.lane.b32.xlu0 %v1241, 120
      %v2309 = vpop.permute.xlu0 %2308
      %2310 = vrot.lane.b32.xlu0 %v1242, 120
      %v2311 = vpop.permute.xlu0 %2310
      %2312 = vrot.lane.b32.xlu0 %v1243, 120
      %v2313 = vpop.permute.xlu0 %2312
      %v2346 = vmul.f32 %v1606, %v2251
      %v2347 = vmul.f32 %v1605, %v2253
      %v2348 = vmul.f32 %v1604, %v2255
      %v2349 = vmul.f32 %v1603, %v2257
      %v2350 = vmul.f32 %v1602, %v2259
      %v2351 = vmul.f32 %v1601, %v2261
      %v2352 = vmul.f32 %v1600, %v2263
      %v2353 = vmul.f32 %v1599, %v2265
      %v2354 = vmul.f32 %v1598, %v2267
      %v2355 = vmul.f32 %v1597, %v2269
      %v2356 = vmul.f32 %v1596, %v2271
      %v2357 = vmul.f32 %v1595, %v2273
      %v2358 = vmul.f32 %v1594, %v2275
      %v2359 = vmul.f32 %v1593, %v2277
      %v2360 = vmul.f32 %v1592, %v2279
      %v2361 = vmul.f32 %v1591, %v2281
      %v2362 = vmul.f32 %v1590, %v2283
      %v2363 = vmul.f32 %v1589, %v2285
      %v2364 = vmul.f32 %v1588, %v2287
      %v2365 = vmul.f32 %v1587, %v2289
      %v2366 = vmul.f32 %v1586, %v2291
      %v2367 = vmul.f32 %v1585, %v2293
      %v2368 = vmul.f32 %v1584, %v2295
      %v2369 = vmul.f32 %v1583, %v2297
      %v2370 = vmul.f32 %v1582, %v2299
      %v2371 = vmul.f32 %v1581, %v2301
      %v2372 = vmul.f32 %v1580, %v2303
      %v2373 = vmul.f32 %v1579, %v2305
      %v2374 = vmul.f32 %v1578, %v2307
      %v2375 = vmul.f32 %v1609, %v2309
      %v2376 = vmul.f32 %v1608, %v2311
      %v2377 = vmul.f32 %v1607, %v2313
      %2410 = vrot.lane.b32.xlu0 %v1513, 1
      %v2411 = vpop.permute.xlu0 %2410
      %2412 = vrot.lane.b32.xlu0 %v1514, 1
      %v2413 = vpop.permute.xlu0 %2412
      %2414 = vrot.lane.b32.xlu0 %v1515, 1
      %v2415 = vpop.permute.xlu0 %2414
      %2416 = vrot.lane.b32.xlu0 %v1516, 1
      %v2417 = vpop.permute.xlu0 %2416
      %2418 = vrot.lane.b32.xlu0 %v1517, 1
      %v2419 = vpop.permute.xlu0 %2418
      %2420 = vrot.lane.b32.xlu0 %v1518, 1
      %v2421 = vpop.permute.xlu0 %2420
      %2422 = vrot.lane.b32.xlu0 %v1519, 1
      %v2423 = vpop.permute.xlu0 %2422
      %2424 = vrot.lane.b32.xlu0 %v1520, 1
      %v2425 = vpop.permute.xlu0 %2424
      %2426 = vrot.lane.b32.xlu0 %v1521, 1
      %v2427 = vpop.permute.xlu0 %2426
      %2428 = vrot.lane.b32.xlu0 %v1522, 1
      %v2429 = vpop.permute.xlu0 %2428
      %2430 = vrot.lane.b32.xlu0 %v1523, 1
      %v2431 = vpop.permute.xlu0 %2430
      %2432 = vrot.lane.b32.xlu0 %v1524, 1
      %v2433 = vpop.permute.xlu0 %2432
      %2434 = vrot.lane.b32.xlu0 %v1525, 1
      %v2435 = vpop.permute.xlu0 %2434
      %2436 = vrot.lane.b32.xlu0 %v1526, 1
      %v2437 = vpop.permute.xlu0 %2436
      %2438 = vrot.lane.b32.xlu0 %v1527, 1
      %v2439 = vpop.permute.xlu0 %2438
      %2440 = vrot.lane.b32.xlu0 %v1528, 1
      %v2441 = vpop.permute.xlu0 %2440
      %2442 = vrot.lane.b32.xlu0 %v1529, 1
      %v2443 = vpop.permute.xlu0 %2442
      %2444 = vrot.lane.b32.xlu0 %v1530, 1
      %v2445 = vpop.permute.xlu0 %2444
      %2446 = vrot.lane.b32.xlu0 %v1531, 1
      %v2447 = vpop.permute.xlu0 %2446
      %2448 = vrot.lane.b32.xlu0 %v1532, 1
      %v2449 = vpop.permute.xlu0 %2448
      %2450 = vrot.lane.b32.xlu0 %v1533, 1
      %v2451 = vpop.permute.xlu0 %2450
      %2452 = vrot.lane.b32.xlu0 %v1534, 1
      %v2453 = vpop.permute.xlu0 %2452
      %2454 = vrot.lane.b32.xlu0 %v1535, 1
      %v2455 = vpop.permute.xlu0 %2454
      %2456 = vrot.lane.b32.xlu0 %v1536, 1
      %v2457 = vpop.permute.xlu0 %2456
      %2458 = vrot.lane.b32.xlu0 %v1537, 1
      %v2459 = vpop.permute.xlu0 %2458
      %2460 = vrot.lane.b32.xlu0 %v1538, 1
      %v2461 = vpop.permute.xlu0 %2460
      %2462 = vrot.lane.b32.xlu0 %v1539, 1
      %v2463 = vpop.permute.xlu0 %2462
      %2464 = vrot.lane.b32.xlu0 %v1540, 1
      %v2465 = vpop.permute.xlu0 %2464
      %2466 = vrot.lane.b32.xlu0 %v1541, 1
      %v2467 = vpop.permute.xlu0 %2466
      %2468 = vrot.lane.b32.xlu0 %v1542, 1
      %v2469 = vpop.permute.xlu0 %2468
      %2470 = vrot.lane.b32.xlu0 %v1543, 1
      %v2471 = vpop.permute.xlu0 %2470
      %2472 = vrot.lane.b32.xlu0 %v1544, 1
      %v2473 = vpop.permute.xlu0 %2472
      %2538 = vrot.lane.b32.xlu0 %v1706, 2
      %v2539 = vpop.permute.xlu0 %2538
      %2540 = vrot.lane.b32.xlu0 %v1707, 2
      %v2541 = vpop.permute.xlu0 %2540
      %2542 = vrot.lane.b32.xlu0 %v1708, 2
      %v2543 = vpop.permute.xlu0 %2542
      %2544 = vrot.lane.b32.xlu0 %v1709, 2
      %v2545 = vpop.permute.xlu0 %2544
      %2546 = vrot.lane.b32.xlu0 %v1710, 2
      %v2547 = vpop.permute.xlu0 %2546
      %2548 = vrot.lane.b32.xlu0 %v1711, 2
      %v2549 = vpop.permute.xlu0 %2548
      %2550 = vrot.lane.b32.xlu0 %v1712, 2
      %v2551 = vpop.permute.xlu0 %2550
      %2552 = vrot.lane.b32.xlu0 %v1713, 2
      %v2553 = vpop.permute.xlu0 %2552
      %2554 = vrot.lane.b32.xlu0 %v1714, 2
      %v2555 = vpop.permute.xlu0 %2554
      %2556 = vrot.lane.b32.xlu0 %v1715, 2
      %v2557 = vpop.permute.xlu0 %2556
      %2558 = vrot.lane.b32.xlu0 %v1716, 2
      %v2559 = vpop.permute.xlu0 %2558
      %2560 = vrot.lane.b32.xlu0 %v1717, 2
      %v2561 = vpop.permute.xlu0 %2560
      %2562 = vrot.lane.b32.xlu0 %v1718, 2
      %v2563 = vpop.permute.xlu0 %2562
      %2564 = vrot.lane.b32.xlu0 %v1719, 2
      %v2565 = vpop.permute.xlu0 %2564
      %2566 = vrot.lane.b32.xlu0 %v1720, 2
      %v2567 = vpop.permute.xlu0 %2566
      %2568 = vrot.lane.b32.xlu0 %v1721, 2
      %v2569 = vpop.permute.xlu0 %2568
      %2570 = vrot.lane.b32.xlu0 %v1722, 2
      %v2571 = vpop.permute.xlu0 %2570
      %2572 = vrot.lane.b32.xlu0 %v1723, 2
      %v2573 = vpop.permute.xlu0 %2572
      %2574 = vrot.lane.b32.xlu0 %v1724, 2
      %v2575 = vpop.permute.xlu0 %2574
      %2576 = vrot.lane.b32.xlu0 %v1725, 2
      %v2577 = vpop.permute.xlu0 %2576
      %2578 = vrot.lane.b32.xlu0 %v1726, 2
      %v2579 = vpop.permute.xlu0 %2578
      %2580 = vrot.lane.b32.xlu0 %v1727, 2
      %v2581 = vpop.permute.xlu0 %2580
      %2582 = vrot.lane.b32.xlu0 %v1728, 2
      %v2583 = vpop.permute.xlu0 %2582
      %2584 = vrot.lane.b32.xlu0 %v1729, 2
      %v2585 = vpop.permute.xlu0 %2584
      %2586 = vrot.lane.b32.xlu0 %v1730, 2
      %v2587 = vpop.permute.xlu0 %2586
      %2588 = vrot.lane.b32.xlu0 %v1731, 2
      %v2589 = vpop.permute.xlu0 %2588
      %2590 = vrot.lane.b32.xlu0 %v1732, 2
      %v2591 = vpop.permute.xlu0 %2590
      %2592 = vrot.lane.b32.xlu0 %v1733, 2
      %v2593 = vpop.permute.xlu0 %2592
      %2594 = vrot.lane.b32.xlu0 %v1734, 2
      %v2595 = vpop.permute.xlu0 %2594
      %2596 = vrot.lane.b32.xlu0 %v1735, 2
      %v2597 = vpop.permute.xlu0 %2596
      %2598 = vrot.lane.b32.xlu0 %v1736, 2
      %v2599 = vpop.permute.xlu0 %2598
      %2600 = vrot.lane.b32.xlu0 %v1737, 2
      %v2601 = vpop.permute.xlu0 %2600
      %2666 = vrot.lane.b32.xlu0 %v1834, 3
      %v2667 = vpop.permute.xlu0 %2666
      %2668 = vrot.lane.b32.xlu0 %v1835, 3
      %v2669 = vpop.permute.xlu0 %2668
      %2670 = vrot.lane.b32.xlu0 %v1836, 3
      %v2671 = vpop.permute.xlu0 %2670
      %2672 = vrot.lane.b32.xlu0 %v1837, 3
      %v2673 = vpop.permute.xlu0 %2672
      %2674 = vrot.lane.b32.xlu0 %v1838, 3
      %v2675 = vpop.permute.xlu0 %2674
      %2676 = vrot.lane.b32.xlu0 %v1839, 3
      %v2677 = vpop.permute.xlu0 %2676
      %2678 = vrot.lane.b32.xlu0 %v1840, 3
      %v2679 = vpop.permute.xlu0 %2678
      %2680 = vrot.lane.b32.xlu0 %v1841, 3
      %v2681 = vpop.permute.xlu0 %2680
      %2682 = vrot.lane.b32.xlu0 %v1842, 3
      %v2683 = vpop.permute.xlu0 %2682
      %2684 = vrot.lane.b32.xlu0 %v1843, 3
      %v2685 = vpop.permute.xlu0 %2684
      %2686 = vrot.lane.b32.xlu0 %v1844, 3
      %v2687 = vpop.permute.xlu0 %2686
      %2688 = vrot.lane.b32.xlu0 %v1845, 3
      %v2689 = vpop.permute.xlu0 %2688
      %2690 = vrot.lane.b32.xlu0 %v1846, 3
      %v2691 = vpop.permute.xlu0 %2690
      %2692 = vrot.lane.b32.xlu0 %v1847, 3
      %v2693 = vpop.permute.xlu0 %2692
      %2694 = vrot.lane.b32.xlu0 %v1848, 3
      %v2695 = vpop.permute.xlu0 %2694
      %2696 = vrot.lane.b32.xlu0 %v1849, 3
      %v2697 = vpop.permute.xlu0 %2696
      %2698 = vrot.lane.b32.xlu0 %v1850, 3
      %v2699 = vpop.permute.xlu0 %2698
      %2700 = vrot.lane.b32.xlu0 %v1851, 3
      %v2701 = vpop.permute.xlu0 %2700
      %2702 = vrot.lane.b32.xlu0 %v1852, 3
      %v2703 = vpop.permute.xlu0 %2702
      %2704 = vrot.lane.b32.xlu0 %v1853, 3
      %v2705 = vpop.permute.xlu0 %2704
      %2706 = vrot.lane.b32.xlu0 %v1854, 3
      %v2707 = vpop.permute.xlu0 %2706
      %2708 = vrot.lane.b32.xlu0 %v1855, 3
      %v2709 = vpop.permute.xlu0 %2708
      %2710 = vrot.lane.b32.xlu0 %v1856, 3
      %v2711 = vpop.permute.xlu0 %2710
      %2712 = vrot.lane.b32.xlu0 %v1857, 3
      %v2713 = vpop.permute.xlu0 %2712
      %2714 = vrot.lane.b32.xlu0 %v1858, 3
      %v2715 = vpop.permute.xlu0 %2714
      %2716 = vrot.lane.b32.xlu0 %v1859, 3
      %v2717 = vpop.permute.xlu0 %2716
      %2718 = vrot.lane.b32.xlu0 %v1860, 3
      %v2719 = vpop.permute.xlu0 %2718
      %2720 = vrot.lane.b32.xlu0 %v1861, 3
      %v2721 = vpop.permute.xlu0 %2720
      %2722 = vrot.lane.b32.xlu0 %v1862, 3
      %v2723 = vpop.permute.xlu0 %2722
      %2724 = vrot.lane.b32.xlu0 %v1863, 3
      %v2725 = vpop.permute.xlu0 %2724
      %2726 = vrot.lane.b32.xlu0 %v1864, 3
      %v2727 = vpop.permute.xlu0 %2726
      %2728 = vrot.lane.b32.xlu0 %v1865, 3
      %v2729 = vpop.permute.xlu0 %2728
      %2794 = vrot.lane.b32.xlu0 %v1254, 4
      %v2795 = vpop.permute.xlu0 %2794
      %2796 = vrot.lane.b32.xlu0 %v1255, 4
      %v2797 = vpop.permute.xlu0 %2796
      %2798 = vrot.lane.b32.xlu0 %v1256, 4
      %v2799 = vpop.permute.xlu0 %2798
      %2800 = vrot.lane.b32.xlu0 %v1257, 4
      %v2801 = vpop.permute.xlu0 %2800
      %2802 = vrot.lane.b32.xlu0 %v1258, 4
      %v2803 = vpop.permute.xlu0 %2802
      %2804 = vrot.lane.b32.xlu0 %v1259, 4
      %v2805 = vpop.permute.xlu0 %2804
      %2806 = vrot.lane.b32.xlu0 %v1260, 4
      %v2807 = vpop.permute.xlu0 %2806
      %2808 = vrot.lane.b32.xlu0 %v1261, 4
      %v2809 = vpop.permute.xlu0 %2808
      %2810 = vrot.lane.b32.xlu0 %v1262, 4
      %v2811 = vpop.permute.xlu0 %2810
      %2812 = vrot.lane.b32.xlu0 %v1263, 4
      %v2813 = vpop.permute.xlu0 %2812
      %2814 = vrot.lane.b32.xlu0 %v1264, 4
      %v2815 = vpop.permute.xlu0 %2814
      %2816 = vrot.lane.b32.xlu0 %v1265, 4
      %v2817 = vpop.permute.xlu0 %2816
      %2818 = vrot.lane.b32.xlu0 %v1266, 4
      %v2819 = vpop.permute.xlu0 %2818
      %2820 = vrot.lane.b32.xlu0 %v1267, 4
      %v2821 = vpop.permute.xlu0 %2820
      %2822 = vrot.lane.b32.xlu0 %v1268, 4
      %v2823 = vpop.permute.xlu0 %2822
      %2824 = vrot.lane.b32.xlu0 %v1269, 4
      %v2825 = vpop.permute.xlu0 %2824
      %2826 = vrot.lane.b32.xlu0 %v1270, 4
      %v2827 = vpop.permute.xlu0 %2826
      %2828 = vrot.lane.b32.xlu0 %v1271, 4
      %v2829 = vpop.permute.xlu0 %2828
      %2830 = vrot.lane.b32.xlu0 %v1272, 4
      %v2831 = vpop.permute.xlu0 %2830
      %2832 = vrot.lane.b32.xlu0 %v1273, 4
      %v2833 = vpop.permute.xlu0 %2832
      %2834 = vrot.lane.b32.xlu0 %v1274, 4
      %v2835 = vpop.permute.xlu0 %2834
      %2836 = vrot.lane.b32.xlu0 %v1275, 4
      %v2837 = vpop.permute.xlu0 %2836
      %2838 = vrot.lane.b32.xlu0 %v1276, 4
      %v2839 = vpop.permute.xlu0 %2838
      %2840 = vrot.lane.b32.xlu0 %v1277, 4
      %v2841 = vpop.permute.xlu0 %2840
      %2842 = vrot.lane.b32.xlu0 %v1278, 4
      %v2843 = vpop.permute.xlu0 %2842
      %2844 = vrot.lane.b32.xlu0 %v1279, 4
      %v2845 = vpop.permute.xlu0 %2844
      %2846 = vrot.lane.b32.xlu0 %v1280, 4
      %v2847 = vpop.permute.xlu0 %2846
      %2848 = vrot.lane.b32.xlu0 %v1281, 4
      %v2849 = vpop.permute.xlu0 %2848
      %2850 = vrot.lane.b32.xlu0 %v1282, 4
      %v2851 = vpop.permute.xlu0 %2850
      %2852 = vrot.lane.b32.xlu0 %v1283, 4
      %v2853 = vpop.permute.xlu0 %2852
      %2854 = vrot.lane.b32.xlu0 %v1284, 4
      %v2855 = vpop.permute.xlu0 %2854
      %2856 = vrot.lane.b32.xlu0 %v1285, 4
      %v2857 = vpop.permute.xlu0 %2856
      %2922 = vrot.lane.b32.xlu0 %v1962, 5
      %v2923 = vpop.permute.xlu0 %2922
      %2924 = vrot.lane.b32.xlu0 %v1963, 5
      %v2925 = vpop.permute.xlu0 %2924
      %2926 = vrot.lane.b32.xlu0 %v1964, 5
      %v2927 = vpop.permute.xlu0 %2926
      %2928 = vrot.lane.b32.xlu0 %v1965, 5
      %v2929 = vpop.permute.xlu0 %2928
      %2930 = vrot.lane.b32.xlu0 %v1966, 5
      %v2931 = vpop.permute.xlu0 %2930
      %2932 = vrot.lane.b32.xlu0 %v1967, 5
      %v2933 = vpop.permute.xlu0 %2932
      %2934 = vrot.lane.b32.xlu0 %v1968, 5
      %v2935 = vpop.permute.xlu0 %2934
      %2936 = vrot.lane.b32.xlu0 %v1969, 5
      %v2937 = vpop.permute.xlu0 %2936
      %2938 = vrot.lane.b32.xlu0 %v1970, 5
      %v2939 = vpop.permute.xlu0 %2938
      %2940 = vrot.lane.b32.xlu0 %v1971, 5
      %v2941 = vpop.permute.xlu0 %2940
      %2942 = vrot.lane.b32.xlu0 %v1972, 5
      %v2943 = vpop.permute.xlu0 %2942
      %2944 = vrot.lane.b32.xlu0 %v1973, 5
      %v2945 = vpop.permute.xlu0 %2944
      %2946 = vrot.lane.b32.xlu0 %v1974, 5
      %v2947 = vpop.permute.xlu0 %2946
      %2948 = vrot.lane.b32.xlu0 %v1975, 5
      %v2949 = vpop.permute.xlu0 %2948
      %2950 = vrot.lane.b32.xlu0 %v1976, 5
      %v2951 = vpop.permute.xlu0 %2950
      %2952 = vrot.lane.b32.xlu0 %v1977, 5
      %v2953 = vpop.permute.xlu0 %2952
      %2954 = vrot.lane.b32.xlu0 %v1978, 5
      %v2955 = vpop.permute.xlu0 %2954
      %2956 = vrot.lane.b32.xlu0 %v1979, 5
      %v2957 = vpop.permute.xlu0 %2956
      %2958 = vrot.lane.b32.xlu0 %v1980, 5
      %v2959 = vpop.permute.xlu0 %2958
      %2960 = vrot.lane.b32.xlu0 %v1981, 5
      %v2961 = vpop.permute.xlu0 %2960
      %2962 = vrot.lane.b32.xlu0 %v1982, 5
      %v2963 = vpop.permute.xlu0 %2962
      %2964 = vrot.lane.b32.xlu0 %v1983, 5
      %v2965 = vpop.permute.xlu0 %2964
      %2966 = vrot.lane.b32.xlu0 %v1984, 5
      %v2967 = vpop.permute.xlu0 %2966
      %2968 = vrot.lane.b32.xlu0 %v1985, 5
      %v2969 = vpop.permute.xlu0 %2968
      %2970 = vrot.lane.b32.xlu0 %v1986, 5
      %v2971 = vpop.permute.xlu0 %2970
      %2972 = vrot.lane.b32.xlu0 %v1987, 5
      %v2973 = vpop.permute.xlu0 %2972
      %2974 = vrot.lane.b32.xlu0 %v1988, 5
      %v2975 = vpop.permute.xlu0 %2974
      %2976 = vrot.lane.b32.xlu0 %v1989, 5
      %v2977 = vpop.permute.xlu0 %2976
      %2978 = vrot.lane.b32.xlu0 %v1990, 5
      %v2979 = vpop.permute.xlu0 %2978
      %2980 = vrot.lane.b32.xlu0 %v1991, 5
      %v2981 = vpop.permute.xlu0 %2980
      %2982 = vrot.lane.b32.xlu0 %v1992, 5
      %v2983 = vpop.permute.xlu0 %2982
      %2984 = vrot.lane.b32.xlu0 %v1993, 5
      %v2985 = vpop.permute.xlu0 %2984
      %3050 = vrot.lane.b32.xlu0 %v2090, 6
      %v3051 = vpop.permute.xlu0 %3050
      %3052 = vrot.lane.b32.xlu0 %v2091, 6
      %v3053 = vpop.permute.xlu0 %3052
      %3054 = vrot.lane.b32.xlu0 %v2092, 6
      %v3055 = vpop.permute.xlu0 %3054
      %3056 = vrot.lane.b32.xlu0 %v2093, 6
      %v3057 = vpop.permute.xlu0 %3056
      %3058 = vrot.lane.b32.xlu0 %v2094, 6
      %v3059 = vpop.permute.xlu0 %3058
      %3060 = vrot.lane.b32.xlu0 %v2095, 6
      %v3061 = vpop.permute.xlu0 %3060
      %3062 = vrot.lane.b32.xlu0 %v2096, 6
      %v3063 = vpop.permute.xlu0 %3062
      %3064 = vrot.lane.b32.xlu0 %v2097, 6
      %v3065 = vpop.permute.xlu0 %3064
      %3066 = vrot.lane.b32.xlu0 %v2098, 6
      %v3067 = vpop.permute.xlu0 %3066
      %3068 = vrot.lane.b32.xlu0 %v2099, 6
      %v3069 = vpop.permute.xlu0 %3068
      %3070 = vrot.lane.b32.xlu0 %v2100, 6
      %v3071 = vpop.permute.xlu0 %3070
      %3072 = vrot.lane.b32.xlu0 %v2101, 6
      %v3073 = vpop.permute.xlu0 %3072
      %3074 = vrot.lane.b32.xlu0 %v2102, 6
      %v3075 = vpop.permute.xlu0 %3074
      %3076 = vrot.lane.b32.xlu0 %v2103, 6
      %v3077 = vpop.permute.xlu0 %3076
      %3078 = vrot.lane.b32.xlu0 %v2104, 6
      %v3079 = vpop.permute.xlu0 %3078
      %3080 = vrot.lane.b32.xlu0 %v2105, 6
      %v3081 = vpop.permute.xlu0 %3080
      %3082 = vrot.lane.b32.xlu0 %v2106, 6
      %v3083 = vpop.permute.xlu0 %3082
      %3084 = vrot.lane.b32.xlu0 %v2107, 6
      %v3085 = vpop.permute.xlu0 %3084
      %3086 = vrot.lane.b32.xlu0 %v2108, 6
      %v3087 = vpop.permute.xlu0 %3086
      %3088 = vrot.lane.b32.xlu0 %v2109, 6
      %v3089 = vpop.permute.xlu0 %3088
      %3090 = vrot.lane.b32.xlu0 %v2110, 6
      %v3091 = vpop.permute.xlu0 %3090
      %3092 = vrot.lane.b32.xlu0 %v2111, 6
      %v3093 = vpop.permute.xlu0 %3092
      %3094 = vrot.lane.b32.xlu0 %v2112, 6
      %v3095 = vpop.permute.xlu0 %3094
      %3096 = vrot.lane.b32.xlu0 %v2113, 6
      %v3097 = vpop.permute.xlu0 %3096
      %3098 = vrot.lane.b32.xlu0 %v2114, 6
      %v3099 = vpop.permute.xlu0 %3098
      %3100 = vrot.lane.b32.xlu0 %v2115, 6
      %v3101 = vpop.permute.xlu0 %3100
      %3102 = vrot.lane.b32.xlu0 %v2116, 6
      %v3103 = vpop.permute.xlu0 %3102
      %3104 = vrot.lane.b32.xlu0 %v2117, 6
      %v3105 = vpop.permute.xlu0 %3104
      %3106 = vrot.lane.b32.xlu0 %v2118, 6
      %v3107 = vpop.permute.xlu0 %3106
      %3108 = vrot.lane.b32.xlu0 %v2119, 6
      %v3109 = vpop.permute.xlu0 %3108
      %3110 = vrot.lane.b32.xlu0 %v2120, 6
      %v3111 = vpop.permute.xlu0 %3110
      %3112 = vrot.lane.b32.xlu0 %v2121, 6
      %v3113 = vpop.permute.xlu0 %3112
      %3178 = vrot.lane.b32.xlu0 %v2218, 7
      %v3179 = vpop.permute.xlu0 %3178
      %3180 = vrot.lane.b32.xlu0 %v2219, 7
      %v3181 = vpop.permute.xlu0 %3180
      %3182 = vrot.lane.b32.xlu0 %v2220, 7
      %v3183 = vpop.permute.xlu0 %3182
      %3184 = vrot.lane.b32.xlu0 %v2221, 7
      %v3185 = vpop.permute.xlu0 %3184
      %3186 = vrot.lane.b32.xlu0 %v2222, 7
      %v3187 = vpop.permute.xlu0 %3186
      %3188 = vrot.lane.b32.xlu0 %v2223, 7
      %v3189 = vpop.permute.xlu0 %3188
      %3190 = vrot.lane.b32.xlu0 %v2224, 7
      %v3191 = vpop.permute.xlu0 %3190
      %3192 = vrot.lane.b32.xlu0 %v2225, 7
      %v3193 = vpop.permute.xlu0 %3192
      %3194 = vrot.lane.b32.xlu0 %v2226, 7
      %v3195 = vpop.permute.xlu0 %3194
      %3196 = vrot.lane.b32.xlu0 %v2227, 7
      %v3197 = vpop.permute.xlu0 %3196
      %3198 = vrot.lane.b32.xlu0 %v2228, 7
      %v3199 = vpop.permute.xlu0 %3198
      %3200 = vrot.lane.b32.xlu0 %v2229, 7
      %v3201 = vpop.permute.xlu0 %3200
      %3202 = vrot.lane.b32.xlu0 %v2230, 7
      %v3203 = vpop.permute.xlu0 %3202
      %3204 = vrot.lane.b32.xlu0 %v2231, 7
      %v3205 = vpop.permute.xlu0 %3204
      %3206 = vrot.lane.b32.xlu0 %v2232, 7
      %v3207 = vpop.permute.xlu0 %3206
      %3208 = vrot.lane.b32.xlu0 %v2233, 7
      %v3209 = vpop.permute.xlu0 %3208
      %3210 = vrot.lane.b32.xlu0 %v2234, 7
      %v3211 = vpop.permute.xlu0 %3210
      %3212 = vrot.lane.b32.xlu0 %v2235, 7
      %v3213 = vpop.permute.xlu0 %3212
      %3214 = vrot.lane.b32.xlu0 %v2236, 7
      %v3215 = vpop.permute.xlu0 %3214
      %3216 = vrot.lane.b32.xlu0 %v2237, 7
      %v3217 = vpop.permute.xlu0 %3216
      %3218 = vrot.lane.b32.xlu0 %v2238, 7
      %v3219 = vpop.permute.xlu0 %3218
      %3220 = vrot.lane.b32.xlu0 %v2239, 7
      %v3221 = vpop.permute.xlu0 %3220
      %3222 = vrot.lane.b32.xlu0 %v2240, 7
      %v3223 = vpop.permute.xlu0 %3222
      %3224 = vrot.lane.b32.xlu0 %v2241, 7
      %v3225 = vpop.permute.xlu0 %3224
      %3226 = vrot.lane.b32.xlu0 %v2242, 7
      %v3227 = vpop.permute.xlu0 %3226
      %3228 = vrot.lane.b32.xlu0 %v2243, 7
      %v3229 = vpop.permute.xlu0 %3228
      %3230 = vrot.lane.b32.xlu0 %v2244, 7
      %v3231 = vpop.permute.xlu0 %3230
      %3232 = vrot.lane.b32.xlu0 %v2245, 7
      %v3233 = vpop.permute.xlu0 %3232
      %3234 = vrot.lane.b32.xlu0 %v2246, 7
      %v3235 = vpop.permute.xlu0 %3234
      %3236 = vrot.lane.b32.xlu0 %v2247, 7
      %v3237 = vpop.permute.xlu0 %3236
      %3238 = vrot.lane.b32.xlu0 %v2248, 7
      %v3239 = vpop.permute.xlu0 %3238
      %3240 = vrot.lane.b32.xlu0 %v2249, 7
      %v3241 = vpop.permute.xlu0 %3240
      %3306 = vrot.lane.b32.xlu0 %v2346, 8
      %v3307 = vpop.permute.xlu0 %3306
      %3308 = vrot.lane.b32.xlu0 %v2347, 8
      %v3309 = vpop.permute.xlu0 %3308
      %3310 = vrot.lane.b32.xlu0 %v2348, 8
      %v3311 = vpop.permute.xlu0 %3310
      %3312 = vrot.lane.b32.xlu0 %v2349, 8
      %v3313 = vpop.permute.xlu0 %3312
      %3314 = vrot.lane.b32.xlu0 %v2350, 8
      %v3315 = vpop.permute.xlu0 %3314
      %3316 = vrot.lane.b32.xlu0 %v2351, 8
      %v3317 = vpop.permute.xlu0 %3316
      %3318 = vrot.lane.b32.xlu0 %v2352, 8
      %v3319 = vpop.permute.xlu0 %3318
      %3320 = vrot.lane.b32.xlu0 %v2353, 8
      %v3321 = vpop.permute.xlu0 %3320
      %3322 = vrot.lane.b32.xlu0 %v2354, 8
      %v3323 = vpop.permute.xlu0 %3322
      %3324 = vrot.lane.b32.xlu0 %v2355, 8
      %v3325 = vpop.permute.xlu0 %3324
      %3326 = vrot.lane.b32.xlu0 %v2356, 8
      %v3327 = vpop.permute.xlu0 %3326
      %3328 = vrot.lane.b32.xlu0 %v2357, 8
      %v3329 = vpop.permute.xlu0 %3328
      %3330 = vrot.lane.b32.xlu0 %v2358, 8
      %v3331 = vpop.permute.xlu0 %3330
      %3332 = vrot.lane.b32.xlu0 %v2359, 8
      %v3333 = vpop.permute.xlu0 %3332
      %3334 = vrot.lane.b32.xlu0 %v2360, 8
      %v3335 = vpop.permute.xlu0 %3334
      %3336 = vrot.lane.b32.xlu0 %v2361, 8
      %v3337 = vpop.permute.xlu0 %3336
      %3338 = vrot.lane.b32.xlu0 %v2362, 8
      %v3339 = vpop.permute.xlu0 %3338
      %3340 = vrot.lane.b32.xlu0 %v2363, 8
      %v3341 = vpop.permute.xlu0 %3340
      %3342 = vrot.lane.b32.xlu0 %v2364, 8
      %v3343 = vpop.permute.xlu0 %3342
      %3344 = vrot.lane.b32.xlu0 %v2365, 8
      %v3345 = vpop.permute.xlu0 %3344
      %3346 = vrot.lane.b32.xlu0 %v2366, 8
      %v3347 = vpop.permute.xlu0 %3346
      %3348 = vrot.lane.b32.xlu0 %v2367, 8
      %v3349 = vpop.permute.xlu0 %3348
      %3350 = vrot.lane.b32.xlu0 %v2368, 8
      %v3351 = vpop.permute.xlu0 %3350
      %3352 = vrot.lane.b32.xlu0 %v2369, 8
      %v3353 = vpop.permute.xlu0 %3352
      %3354 = vrot.lane.b32.xlu0 %v2370, 8
      %v3355 = vpop.permute.xlu0 %3354
      %3356 = vrot.lane.b32.xlu0 %v2371, 8
      %v3357 = vpop.permute.xlu0 %3356
      %3358 = vrot.lane.b32.xlu0 %v2372, 8
      %v3359 = vpop.permute.xlu0 %3358
      %3360 = vrot.lane.b32.xlu0 %v2373, 8
      %v3361 = vpop.permute.xlu0 %3360
      %3362 = vrot.lane.b32.xlu0 %v2374, 8
      %v3363 = vpop.permute.xlu0 %3362
      %3364 = vrot.lane.b32.xlu0 %v2375, 8
      %v3365 = vpop.permute.xlu0 %3364
      %3366 = vrot.lane.b32.xlu0 %v2376, 8
      %v3367 = vpop.permute.xlu0 %3366
      %3368 = vrot.lane.b32.xlu0 %v2377, 8
      %v3369 = vpop.permute.xlu0 %3368
      %vm3402 = vcmask 7168
      %v3403 = vsel %vm3402, %v1353, %v2411
      %v3404 = vsel %vm3402, %v1354, %v2413
      %v3405 = vsel %vm3402, %v1355, %v2415
      %v3406 = vsel %vm3402, %v1356, %v2417
      %v3407 = vsel %vm3402, %v1357, %v2419
      %v3408 = vsel %vm3402, %v1358, %v2421
      %v3409 = vsel %vm3402, %v1359, %v2423
      %v3410 = vsel %vm3402, %v1360, %v2425
      %v3411 = vsel %vm3402, %v1361, %v2427
      %v3412 = vsel %vm3402, %v1362, %v2429
      %v3413 = vsel %vm3402, %v1363, %v2431
      %v3414 = vsel %vm3402, %v1364, %v2433
      %v3415 = vsel %vm3402, %v1365, %v2435
      %v3416 = vsel %vm3402, %v1366, %v2437
      %v3417 = vsel %vm3402, %v1367, %v2439
      %v3418 = vsel %vm3402, %v1368, %v2441
      %v3419 = vsel %vm3402, %v1369, %v2443
      %v3420 = vsel %vm3402, %v1370, %v2445
      %v3421 = vsel %vm3402, %v1371, %v2447
      %v3422 = vsel %vm3402, %v1372, %v2449
      %v3423 = vsel %vm3402, %v1373, %v2451
      %v3424 = vsel %vm3402, %v1374, %v2453
      %v3425 = vsel %vm3402, %v1375, %v2455
      %v3426 = vsel %vm3402, %v1376, %v2457
      %v3427 = vsel %vm3402, %v1377, %v2459
      %v3428 = vsel %vm3402, %v1378, %v2461
      %v3429 = vsel %vm3402, %v1379, %v2463
      %v3430 = vsel %vm3402, %v1380, %v2465
      %v3431 = vsel %vm3402, %v1381, %v2467
      %v3432 = vsel %vm3402, %v1382, %v2469
      %v3433 = vsel %vm3402, %v1383, %v2471
      %v3434 = vsel %vm3402, %v1384, %v2473
      %vm3435 = vcmask 15360
      %v3436 = vsel %vm3435, %v3403, %v2539
      %v3437 = vsel %vm3435, %v3404, %v2541
      %v3438 = vsel %vm3435, %v3405, %v2543
      %v3439 = vsel %vm3435, %v3406, %v2545
      %v3440 = vsel %vm3435, %v3407, %v2547
      %v3441 = vsel %vm3435, %v3408, %v2549
      %v3442 = vsel %vm3435, %v3409, %v2551
      %v3443 = vsel %vm3435, %v3410, %v2553
      %v3444 = vsel %vm3435, %v3411, %v2555
      %v3445 = vsel %vm3435, %v3412, %v2557
      %v3446 = vsel %vm3435, %v3413, %v2559
      %v3447 = vsel %vm3435, %v3414, %v2561
      %v3448 = vsel %vm3435, %v3415, %v2563
      %v3449 = vsel %vm3435, %v3416, %v2565
      %v3450 = vsel %vm3435, %v3417, %v2567
      %v3451 = vsel %vm3435, %v3418, %v2569
      %v3452 = vsel %vm3435, %v3419, %v2571
      %v3453 = vsel %vm3435, %v3420, %v2573
      %v3454 = vsel %vm3435, %v3421, %v2575
      %v3455 = vsel %vm3435, %v3422, %v2577
      %v3456 = vsel %vm3435, %v3423, %v2579
      %v3457 = vsel %vm3435, %v3424, %v2581
      %v3458 = vsel %vm3435, %v3425, %v2583
      %v3459 = vsel %vm3435, %v3426, %v2585
      %v3460 = vsel %vm3435, %v3427, %v2587
      %v3461 = vsel %vm3435, %v3428, %v2589
      %v3462 = vsel %vm3435, %v3429, %v2591
      %v3463 = vsel %vm3435, %v3430, %v2593
      %v3464 = vsel %vm3435, %v3431, %v2595
      %v3465 = vsel %vm3435, %v3432, %v2597
      %v3466 = vsel %vm3435, %v3433, %v2599
      %v3467 = vsel %vm3435, %v3434, %v2601
      %vm3468 = vcmask 23552
      %v3469 = vsel %vm3468, %v3436, %v2667
      %v3470 = vsel %vm3468, %v3437, %v2669
      %v3471 = vsel %vm3468, %v3438, %v2671
      %v3472 = vsel %vm3468, %v3439, %v2673
      %v3473 = vsel %vm3468, %v3440, %v2675
      %v3474 = vsel %vm3468, %v3441, %v2677
      %v3475 = vsel %vm3468, %v3442, %v2679
      %v3476 = vsel %vm3468, %v3443, %v2681
      %v3477 = vsel %vm3468, %v3444, %v2683
      %v3478 = vsel %vm3468, %v3445, %v2685
      %v3479 = vsel %vm3468, %v3446, %v2687
      %v3480 = vsel %vm3468, %v3447, %v2689
      %v3481 = vsel %vm3468, %v3448, %v2691
      %v3482 = vsel %vm3468, %v3449, %v2693
      %v3483 = vsel %vm3468, %v3450, %v2695
      %v3484 = vsel %vm3468, %v3451, %v2697
      %v3485 = vsel %vm3468, %v3452, %v2699
      %v3486 = vsel %vm3468, %v3453, %v2701
      %v3487 = vsel %vm3468, %v3454, %v2703
      %v3488 = vsel %vm3468, %v3455, %v2705
      %v3489 = vsel %vm3468, %v3456, %v2707
      %v3490 = vsel %vm3468, %v3457, %v2709
      %v3491 = vsel %vm3468, %v3458, %v2711
      %v3492 = vsel %vm3468, %v3459, %v2713
      %v3493 = vsel %vm3468, %v3460, %v2715
      %v3494 = vsel %vm3468, %v3461, %v2717
      %v3495 = vsel %vm3468, %v3462, %v2719
      %v3496 = vsel %vm3468, %v3463, %v2721
      %v3497 = vsel %vm3468, %v3464, %v2723
      %v3498 = vsel %vm3468, %v3465, %v2725
      %v3499 = vsel %vm3468, %v3466, %v2727
      %v3500 = vsel %vm3468, %v3467, %v2729
      %vm3501 = vcmask 31744
      %v3502 = vsel %vm3501, %v3469, %v2795
      %v3503 = vsel %vm3501, %v3470, %v2797
      %v3504 = vsel %vm3501, %v3471, %v2799
      %v3505 = vsel %vm3501, %v3472, %v2801
      %v3506 = vsel %vm3501, %v3473, %v2803
      %v3507 = vsel %vm3501, %v3474, %v2805
      %v3508 = vsel %vm3501, %v3475, %v2807
      %v3509 = vsel %vm3501, %v3476, %v2809
      %v3510 = vsel %vm3501, %v3477, %v2811
      %v3511 = vsel %vm3501, %v3478, %v2813
      %v3512 = vsel %vm3501, %v3479, %v2815
      %v3513 = vsel %vm3501, %v3480, %v2817
      %v3514 = vsel %vm3501, %v3481, %v2819
      %v3515 = vsel %vm3501, %v3482, %v2821
      %v3516 = vsel %vm3501, %v3483, %v2823
      %v3517 = vsel %vm3501, %v3484, %v2825
      %v3518 = vsel %vm3501, %v3485, %v2827
      %v3519 = vsel %vm3501, %v3486, %v2829
      %v3520 = vsel %vm3501, %v3487, %v2831
      %v3521 = vsel %vm3501, %v3488, %v2833
      %v3522 = vsel %vm3501, %v3489, %v2835
      %v3523 = vsel %vm3501, %v3490, %v2837
      %v3524 = vsel %vm3501, %v3491, %v2839
      %v3525 = vsel %vm3501, %v3492, %v2841
      %v3526 = vsel %vm3501, %v3493, %v2843
      %v3527 = vsel %vm3501, %v3494, %v2845
      %v3528 = vsel %vm3501, %v3495, %v2847
      %v3529 = vsel %vm3501, %v3496, %v2849
      %v3530 = vsel %vm3501, %v3497, %v2851
      %v3531 = vsel %vm3501, %v3498, %v2853
      %v3532 = vsel %vm3501, %v3499, %v2855
      %v3533 = vsel %vm3501, %v3500, %v2857
      %vm3534 = vcmask 39936
      %v3535 = vsel %vm3534, %v3502, %v2923
      %v3536 = vsel %vm3534, %v3503, %v2925
      %v3537 = vsel %vm3534, %v3504, %v2927
      %v3538 = vsel %vm3534, %v3505, %v2929
      %v3539 = vsel %vm3534, %v3506, %v2931
      %v3540 = vsel %vm3534, %v3507, %v2933
      %v3541 = vsel %vm3534, %v3508, %v2935
      %v3542 = vsel %vm3534, %v3509, %v2937
      %v3543 = vsel %vm3534, %v3510, %v2939
      %v3544 = vsel %vm3534, %v3511, %v2941
      %v3545 = vsel %vm3534, %v3512, %v2943
      %v3546 = vsel %vm3534, %v3513, %v2945
      %v3547 = vsel %vm3534, %v3514, %v2947
      %v3548 = vsel %vm3534, %v3515, %v2949
      %v3549 = vsel %vm3534, %v3516, %v2951
      %v3550 = vsel %vm3534, %v3517, %v2953
      %v3551 = vsel %vm3534, %v3518, %v2955
      %v3552 = vsel %vm3534, %v3519, %v2957
      %v3553 = vsel %vm3534, %v3520, %v2959
      %v3554 = vsel %vm3534, %v3521, %v2961
      %v3555 = vsel %vm3534, %v3522, %v2963
      %v3556 = vsel %vm3534, %v3523, %v2965
      %v3557 = vsel %vm3534, %v3524, %v2967
      %v3558 = vsel %vm3534, %v3525, %v2969
      %v3559 = vsel %vm3534, %v3526, %v2971
      %v3560 = vsel %vm3534, %v3527, %v2973
      %v3561 = vsel %vm3534, %v3528, %v2975
      %v3562 = vsel %vm3534, %v3529, %v2977
      %v3563 = vsel %vm3534, %v3530, %v2979
      %v3564 = vsel %vm3534, %v3531, %v2981
      %v3565 = vsel %vm3534, %v3532, %v2983
      %v3566 = vsel %vm3534, %v3533, %v2985
      %vm3567 = vcmask 48128
      %v3568 = vsel %vm3567, %v3535, %v3051
      %v3569 = vsel %vm3567, %v3536, %v3053
      %v3570 = vsel %vm3567, %v3537, %v3055
      %v3571 = vsel %vm3567, %v3538, %v3057
      %v3572 = vsel %vm3567, %v3539, %v3059
      %v3573 = vsel %vm3567, %v3540, %v3061
      %v3574 = vsel %vm3567, %v3541, %v3063
      %v3575 = vsel %vm3567, %v3542, %v3065
      %v3576 = vsel %vm3567, %v3543, %v3067
      %v3577 = vsel %vm3567, %v3544, %v3069
      %v3578 = vsel %vm3567, %v3545, %v3071
      %v3579 = vsel %vm3567, %v3546, %v3073
      %v3580 = vsel %vm3567, %v3547, %v3075
      %v3581 = vsel %vm3567, %v3548, %v3077
      %v3582 = vsel %vm3567, %v3549, %v3079
      %v3583 = vsel %vm3567, %v3550, %v3081
      %v3584 = vsel %vm3567, %v3551, %v3083
      %v3585 = vsel %vm3567, %v3552, %v3085
      %v3586 = vsel %vm3567, %v3553, %v3087
      %v3587 = vsel %vm3567, %v3554, %v3089
      %v3588 = vsel %vm3567, %v3555, %v3091
      %v3589 = vsel %vm3567, %v3556, %v3093
      %v3590 = vsel %vm3567, %v3557, %v3095
      %v3591 = vsel %vm3567, %v3558, %v3097
      %v3592 = vsel %vm3567, %v3559, %v3099
      %v3593 = vsel %vm3567, %v3560, %v3101
      %v3594 = vsel %vm3567, %v3561, %v3103
      %v3595 = vsel %vm3567, %v3562, %v3105
      %v3596 = vsel %vm3567, %v3563, %v3107
      %v3597 = vsel %vm3567, %v3564, %v3109
      %v3598 = vsel %vm3567, %v3565, %v3111
      %v3599 = vsel %vm3567, %v3566, %v3113
      %vm3600 = vcmask 56320
      %v3601 = vsel %vm3600, %v3568, %v3179
      %v3602 = vsel %vm3600, %v3569, %v3181
      %v3603 = vsel %vm3600, %v3570, %v3183
      %v3604 = vsel %vm3600, %v3571, %v3185
      %v3605 = vsel %vm3600, %v3572, %v3187
      %v3606 = vsel %vm3600, %v3573, %v3189
      %v3607 = vsel %vm3600, %v3574, %v3191
      %v3608 = vsel %vm3600, %v3575, %v3193
      %v3609 = vsel %vm3600, %v3576, %v3195
      %v3610 = vsel %vm3600, %v3577, %v3197
      %v3611 = vsel %vm3600, %v3578, %v3199
      %v3612 = vsel %vm3600, %v3579, %v3201
      %v3613 = vsel %vm3600, %v3580, %v3203
      %v3614 = vsel %vm3600, %v3581, %v3205
      %v3615 = vsel %vm3600, %v3582, %v3207
      %v3616 = vsel %vm3600, %v3583, %v3209
      %v3617 = vsel %vm3600, %v3584, %v3211
      %v3618 = vsel %vm3600, %v3585, %v3213
      %v3619 = vsel %vm3600, %v3586, %v3215
      %v3620 = vsel %vm3600, %v3587, %v3217
      %v3621 = vsel %vm3600, %v3588, %v3219
      %v3622 = vsel %vm3600, %v3589, %v3221
      %v3623 = vsel %vm3600, %v3590, %v3223
      %v3624 = vsel %vm3600, %v3591, %v3225
      %v3625 = vsel %vm3600, %v3592, %v3227
      %v3626 = vsel %vm3600, %v3593, %v3229
      %v3627 = vsel %vm3600, %v3594, %v3231
      %v3628 = vsel %vm3600, %v3595, %v3233
      %v3629 = vsel %vm3600, %v3596, %v3235
      %v3630 = vsel %vm3600, %v3597, %v3237
      %v3631 = vsel %vm3600, %v3598, %v3239
      %v3632 = vsel %vm3600, %v3599, %v3241
      %vm3633 = vcmask 64512
      %v3634 = vsel %vm3633, %v3601, %v3307
      %v3635 = vsel %vm3633, %v3602, %v3309
      %v3636 = vsel %vm3633, %v3603, %v3311
      %v3637 = vsel %vm3633, %v3604, %v3313
      %v3638 = vsel %vm3633, %v3605, %v3315
      %v3639 = vsel %vm3633, %v3606, %v3317
      %v3640 = vsel %vm3633, %v3607, %v3319
      %v3641 = vsel %vm3633, %v3608, %v3321
      %v3642 = vsel %vm3633, %v3609, %v3323
      %v3643 = vsel %vm3633, %v3610, %v3325
      %v3644 = vsel %vm3633, %v3611, %v3327
      %v3645 = vsel %vm3633, %v3612, %v3329
      %v3646 = vsel %vm3633, %v3613, %v3331
      %v3647 = vsel %vm3633, %v3614, %v3333
      %v3648 = vsel %vm3633, %v3615, %v3335
      %v3649 = vsel %vm3633, %v3616, %v3337
      %v3650 = vsel %vm3633, %v3617, %v3339
      %v3651 = vsel %vm3633, %v3618, %v3341
      %v3652 = vsel %vm3633, %v3619, %v3343
      %v3653 = vsel %vm3633, %v3620, %v3345
      %v3654 = vsel %vm3633, %v3621, %v3347
      %v3655 = vsel %vm3633, %v3622, %v3349
      %v3656 = vsel %vm3633, %v3623, %v3351
      %v3657 = vsel %vm3633, %v3624, %v3353
      %v3658 = vsel %vm3633, %v3625, %v3355
      %v3659 = vsel %vm3633, %v3626, %v3357
      %v3660 = vsel %vm3633, %v3627, %v3359
      %v3661 = vsel %vm3633, %v3628, %v3361
      %v3662 = vsel %vm3633, %v3629, %v3363
      %v3663 = vsel %vm3633, %v3630, %v3365
      %v3664 = vsel %vm3633, %v3631, %v3367
      %v3665 = vsel %vm3633, %v3632, %v3369
      %v3666 = vpack.c.bf16 %v3635, %v3634
      %v3667 = vpack.c.bf16 %v3637, %v3636
      %v3668 = vpack.c.bf16 %v3639, %v3638
      %v3669 = vpack.c.bf16 %v3641, %v3640
      %v3670 = vpack.c.bf16 %v3643, %v3642
      %v3671 = vpack.c.bf16 %v3645, %v3644
      %v3672 = vpack.c.bf16 %v3647, %v3646
      %v3673 = vpack.c.bf16 %v3649, %v3648
      %v3674 = vpack.c.bf16 %v3651, %v3650
      %v3675 = vpack.c.bf16 %v3653, %v3652
      %v3676 = vpack.c.bf16 %v3655, %v3654
      %v3677 = vpack.c.bf16 %v3657, %v3656
      %v3678 = vpack.c.bf16 %v3659, %v3658
      %v3679 = vpack.c.bf16 %v3661, %v3660
      %v3680 = vpack.c.bf16 %v3663, %v3662
      %v3681 = vpack.c.bf16 %v3665, %v3664
      %v3682 = vld [vmem:[%s17] sm:$0xf]
      %v3683 = vld [vmem:[%s17 + $0x4] sm:$0x1]
      %v3684 = vld [vmem:[%s19] sm:$0x1]
      %v3686 = vlaneseq
      %v3687 = vshrl.u32 %v3686, 7
      %v3688 = vsub.s32 0, %v3687
      %v3689 = vrot.slane %v3684, %v3688
      %v3693 = vunpack.c.l.b16 %v3682
      %v3694 = vunpack.c.l.b16 %v3683
      %v3695 = vpack.c.b16 %v3694, %v3693
      %vm3696 = vcmask 72704
      %v3698 = vsel %vm3696, %v3666, 0
      %v3701 = vsel %vm3696, %v3667, 0
      %v3704 = vsel %vm3696, %v3668, 0
      %v3707 = vsel %vm3696, %v3669, 0
      %v3710 = vsel %vm3696, %v3670, 0
      %v3713 = vsel %vm3696, %v3671, 0
      %v3716 = vsel %vm3696, %v3672, 0
      %v3719 = vsel %vm3696, %v3673, 0
      %v3722 = vsel %vm3696, %v3674, 0
      %v3725 = vsel %vm3696, %v3675, 0
      %v3728 = vsel %vm3696, %v3676, 0
      %v3731 = vsel %vm3696, %v3677, 0
      %v3734 = vsel %vm3696, %v3678, 0
      %v3737 = vsel %vm3696, %v3679, 0
      %v3740 = vsel %vm3696, %v3680, 0
      %v3743 = vsel %vm3696, %v3681, 0
      %vm3745 = vcmask 1043456
      %vm3746 = vcmask 1044480
      %v3747 = vsel %vm3745, 4294967295, 65535
      %v3748 = vsel %vm3746, %v3747, 0
      %v3750 = vand.u32 %v3695, %v3748
      %3752 = vmatprep.subr.bf16.mxu0 0
      %3753 = vmatpush1.bf16.msra.mxu0 %v3750
      %3754 = vmatprep.subr.bf16.mxu0 0
      %3755 = vmatpush1.bf16.msra.mxu0 0
      %3756 = vmatprep.subr.bf16.mxu0 0
      %3757 = vmatpush1.bf16.msra.mxu0 0
      %3758 = vmatprep.subr.bf16.mxu0 0
      %3759 = vmatpush1.bf16.msra.mxu0 0
      %3760 = vmatprep.subr.bf16.mxu0 0
      %3761 = vmatpush1.bf16.msra.mxu0 0
      %3762 = vmatprep.subr.bf16.mxu0 0
      %3763 = vmatpush1.bf16.msra.mxu0 0
      %3764 = vmatprep.subr.bf16.mxu0 0
      %3765 = vmatpush1.bf16.msra.mxu0 0
      %3766 = vmatprep.subr.bf16.mxu0 0
      %3767 = vmatpush1.bf16.msra.mxu0 0
      %3768 = vmatprep.subr.bf16.mxu0 0
      %3769 = vmatpush1.bf16.msra.mxu0 0
      %3770 = vmatprep.subr.bf16.mxu0 0
      %3771 = vmatpush1.bf16.msra.mxu0 0
      %3772 = vmatprep.subr.bf16.mxu0 0
      %3773 = vmatpush1.bf16.msra.mxu0 0
      %3774 = vmatprep.subr.bf16.mxu0 0
      %3775 = vmatpush1.bf16.msra.mxu0 0
      %3776 = vmatprep.subr.bf16.mxu0 0
      %3777 = vmatpush1.bf16.msra.mxu0 0
      %3778 = vmatprep.subr.bf16.mxu0 0
      %3779 = vmatpush1.bf16.msra.mxu0 0
      %3780 = vmatprep.subr.bf16.mxu0 0
      %3781 = vmatpush1.bf16.msra.mxu0 0
      %3782 = vmatprep.subr.bf16.mxu0 0
      %3783 = vmatpush1.bf16.msra.mxu0 0
      %3784 = vmatprep.mubr.bf16.mxu0 0
      %3785 = vmatmul.mubr.bf16.gmra.mrb[0].mxu0 %v3698
      %v3786 = vpop.f32.mrb[0].mxu0
      %v3787 = vadd.f32 %v3689, %v3786
      %v3788 = vpop.f32.mrb[0].mxu0
      %v3789 = vpop.f32.mrb[0].mxu0
      %v3790 = vadd.f32 %v3689, %v3789
      %v3791 = vpop.f32.mrb[0].mxu0
      %3792 = vmatprep.mubr.bf16.mxu0 0
      %3793 = vmatmul.mubr.bf16.gmra.mrb[0].mxu0 %v3701
      %v3794 = vpop.f32.mrb[0].mxu0
      %v3795 = vadd.f32 %v3689, %v3794
      %v3796 = vpop.f32.mrb[0].mxu0
      %v3797 = vpop.f32.mrb[0].mxu0
      %v3798 = vadd.f32 %v3689, %v3797
      %v3799 = vpop.f32.mrb[0].mxu0
      %3800 = vmatprep.mubr.bf16.mxu0 0
      %3801 = vmatmul.mubr.bf16.gmra.mrb[0].mxu0 %v3704
      %v3802 = vpop.f32.mrb[0].mxu0
      %v3803 = vadd.f32 %v3689, %v3802
      %v3804 = vpop.f32.mrb[0].mxu0
      %v3805 = vpop.f32.mrb[0].mxu0
      %v3806 = vadd.f32 %v3689, %v3805
      %v3807 = vpop.f32.mrb[0].mxu0
      %3808 = vmatprep.mubr.bf16.mxu0 0
      %3809 = vmatmul.mubr.bf16.gmra.mrb[0].mxu0 %v3707
      %v3810 = vpop.f32.mrb[0].mxu0
      %v3811 = vadd.f32 %v3689, %v3810
      %v3812 = vpop.f32.mrb[0].mxu0
      %v3813 = vpop.f32.mrb[0].mxu0
      %v3814 = vadd.f32 %v3689, %v3813
      %v3815 = vpop.f32.mrb[0].mxu0
      %3816 = vmatprep.mubr.bf16.mxu0 0
      %3817 = vmatmul.mubr.bf16.gmra.mrb[0].mxu0 %v3710
      %v3818 = vpop.f32.mrb[0].mxu0
      %v3819 = vadd.f32 %v3689, %v3818
      %v3820 = vpop.f32.mrb[0].mxu0
      %v3821 = vpop.f32.mrb[0].mxu0
      %v3822 = vadd.f32 %v3689, %v3821
      %v3823 = vpop.f32.mrb[0].mxu0
      %3824 = vmatprep.mubr.bf16.mxu0 0
      %3825 = vmatmul.mubr.bf16.gmra.mrb[0].mxu0 %v3713
      %v3826 = vpop.f32.mrb[0].mxu0
      %v3827 = vadd.f32 %v3689, %v3826
      %v3828 = vpop.f32.mrb[0].mxu0
      %v3829 = vpop.f32.mrb[0].mxu0
      %v3830 = vadd.f32 %v3689, %v3829
      %v3831 = vpop.f32.mrb[0].mxu0
      %3832 = vmatprep.mubr.bf16.mxu0 0
      %3833 = vmatmul.mubr.bf16.gmra.mrb[0].mxu0 %v3716
      %v3834 = vpop.f32.mrb[0].mxu0
      %v3835 = vadd.f32 %v3689, %v3834
      %v3836 = vpop.f32.mrb[0].mxu0
      %v3837 = vpop.f32.mrb[0].mxu0
      %v3838 = vadd.f32 %v3689, %v3837
      %v3839 = vpop.f32.mrb[0].mxu0
      %3840 = vmatprep.mubr.bf16.mxu0 0
      %3841 = vmatmul.mubr.bf16.gmra.mrb[0].mxu0 %v3719
      %v3842 = vpop.f32.mrb[0].mxu0
      %v3843 = vadd.f32 %v3689, %v3842
      %v3844 = vpop.f32.mrb[0].mxu0
      %v3845 = vpop.f32.mrb[0].mxu0
      %v3846 = vadd.f32 %v3689, %v3845
      %v3847 = vpop.f32.mrb[0].mxu0
      %3848 = vmatprep.mubr.bf16.mxu0 0
      %3849 = vmatmul.mubr.bf16.gmra.mrb[0].mxu0 %v3722
      %v3850 = vpop.f32.mrb[0].mxu0
      %v3851 = vadd.f32 %v3689, %v3850
      %v3852 = vpop.f32.mrb[0].mxu0
      %v3853 = vpop.f32.mrb[0].mxu0
      %v3854 = vadd.f32 %v3689, %v3853
      %v3855 = vpop.f32.mrb[0].mxu0
      %3856 = vmatprep.mubr.bf16.mxu0 0
      %3857 = vmatmul.mubr.bf16.gmra.mrb[0].mxu0 %v3725
      %v3858 = vpop.f32.mrb[0].mxu0
      %v3859 = vadd.f32 %v3689, %v3858
      %v3860 = vpop.f32.mrb[0].mxu0
      %v3861 = vpop.f32.mrb[0].mxu0
      %v3862 = vadd.f32 %v3689, %v3861
      %v3863 = vpop.f32.mrb[0].mxu0
      %3864 = vmatprep.mubr.bf16.mxu0 0
      %3865 = vmatmul.mubr.bf16.gmra.mrb[0].mxu0 %v3728
      %v3866 = vpop.f32.mrb[0].mxu0
      %v3867 = vadd.f32 %v3689, %v3866
      %v3868 = vpop.f32.mrb[0].mxu0
      %v3869 = vpop.f32.mrb[0].mxu0
      %v3870 = vadd.f32 %v3689, %v3869
      %v3871 = vpop.f32.mrb[0].mxu0
      %3872 = vmatprep.mubr.bf16.mxu0 0
      %3873 = vmatmul.mubr.bf16.gmra.mrb[0].mxu0 %v3731
      %v3874 = vpop.f32.mrb[0].mxu0
      %v3875 = vadd.f32 %v3689, %v3874
      %v3876 = vpop.f32.mrb[0].mxu0
      %v3877 = vpop.f32.mrb[0].mxu0
      %v3878 = vadd.f32 %v3689, %v3877
      %v3879 = vpop.f32.mrb[0].mxu0
      %3880 = vmatprep.mubr.bf16.mxu0 0
      %3881 = vmatmul.mubr.bf16.gmra.mrb[0].mxu0 %v3734
      %v3882 = vpop.f32.mrb[0].mxu0
      %v3883 = vadd.f32 %v3689, %v3882
      %v3884 = vpop.f32.mrb[0].mxu0
      %v3885 = vpop.f32.mrb[0].mxu0
      %v3886 = vadd.f32 %v3689, %v3885
      %v3887 = vpop.f32.mrb[0].mxu0
      %3888 = vmatprep.mubr.bf16.mxu0 0
      %3889 = vmatmul.mubr.bf16.gmra.mrb[0].mxu0 %v3737
      %v3890 = vpop.f32.mrb[0].mxu0
      %v3891 = vadd.f32 %v3689, %v3890
      %v3892 = vpop.f32.mrb[0].mxu0
      %v3893 = vpop.f32.mrb[0].mxu0
      %v3894 = vadd.f32 %v3689, %v3893
      %v3895 = vpop.f32.mrb[0].mxu0
      %3896 = vmatprep.mubr.bf16.mxu0 0
      %3897 = vmatmul.mubr.bf16.gmra.mrb[0].mxu0 %v3740
      %v3898 = vpop.f32.mrb[0].mxu0
      %v3899 = vadd.f32 %v3689, %v3898
      %v3900 = vpop.f32.mrb[0].mxu0
      %v3901 = vpop.f32.mrb[0].mxu0
      %v3902 = vadd.f32 %v3689, %v3901
      %v3903 = vpop.f32.mrb[0].mxu0
      %3904 = vmatprep.mubr.bf16.mxu0 0
      %3905 = vmatmul.mubr.bf16.gmra.mrb[0].mxu0 %v3743
      %v3906 = vpop.f32.mrb[0].mxu0
      %v3907 = vadd.f32 %v3689, %v3906
      %v3908 = vpop.f32.mrb[0].mxu0
      %v3909 = vpop.f32.mrb[0].mxu0
      %v3910 = vadd.f32 %v3689, %v3909
      %v3911 = vpop.f32.mrb[0].mxu0
      %3912 = vdwg.mxu0
      %v3913 = vmax.f32 %v3787, 0.0
      %v3914 = vmax.f32 %v3790, 0.0
      %v3915 = vmax.f32 %v3795, 0.0
      %v3916 = vmax.f32 %v3798, 0.0
      %v3917 = vmax.f32 %v3803, 0.0
      %v3918 = vmax.f32 %v3806, 0.0
      %v3919 = vmax.f32 %v3811, 0.0
      %v3920 = vmax.f32 %v3814, 0.0
      %v3921 = vmax.f32 %v3819, 0.0
      %v3922 = vmax.f32 %v3822, 0.0
      %v3923 = vmax.f32 %v3827, 0.0
      %v3924 = vmax.f32 %v3830, 0.0
      %v3925 = vmax.f32 %v3835, 0.0
      %v3926 = vmax.f32 %v3838, 0.0
      %v3927 = vmax.f32 %v3843, 0.0
      %v3928 = vmax.f32 %v3846, 0.0
      %v3929 = vmax.f32 %v3851, 0.0
      %v3930 = vmax.f32 %v3854, 0.0
      %v3931 = vmax.f32 %v3859, 0.0
      %v3932 = vmax.f32 %v3862, 0.0
      %v3933 = vmax.f32 %v3867, 0.0
      %v3934 = vmax.f32 %v3870, 0.0
      %v3935 = vmax.f32 %v3875, 0.0
      %v3936 = vmax.f32 %v3878, 0.0
      %v3937 = vmax.f32 %v3883, 0.0
      %v3938 = vmax.f32 %v3886, 0.0
      %v3939 = vmax.f32 %v3891, 0.0
      %v3940 = vmax.f32 %v3894, 0.0
      %v3941 = vmax.f32 %v3899, 0.0
      %v3942 = vmax.f32 %v3902, 0.0
      %v3943 = vmax.f32 %v3907, 0.0
      %v3944 = vmax.f32 %v3910, 0.0
      %vm3945 = vcmp.gt.f32.partialorder %v1212, 0.5
      %vm3946 = vcmp.gt.f32.partialorder %v1213, 0.5
      %vm3947 = vcmp.gt.f32.partialorder %v1214, 0.5
      %vm3948 = vcmp.gt.f32.partialorder %v1215, 0.5
      %vm3949 = vcmp.gt.f32.partialorder %v1216, 0.5
      %vm3950 = vcmp.gt.f32.partialorder %v1217, 0.5
      %vm3951 = vcmp.gt.f32.partialorder %v1218, 0.5
      %vm3952 = vcmp.gt.f32.partialorder %v1219, 0.5
      %vm3953 = vcmp.gt.f32.partialorder %v1220, 0.5
      %vm3954 = vcmp.gt.f32.partialorder %v1221, 0.5
      %vm3955 = vcmp.gt.f32.partialorder %v1222, 0.5
      %vm3956 = vcmp.gt.f32.partialorder %v1223, 0.5
      %vm3957 = vcmp.gt.f32.partialorder %v1224, 0.5
      %vm3958 = vcmp.gt.f32.partialorder %v1225, 0.5
      %vm3959 = vcmp.gt.f32.partialorder %v1226, 0.5
      %vm3960 = vcmp.gt.f32.partialorder %v1227, 0.5
      %vm3961 = vcmp.gt.f32.partialorder %v1228, 0.5
      %vm3962 = vcmp.gt.f32.partialorder %v1229, 0.5
      %vm3963 = vcmp.gt.f32.partialorder %v1230, 0.5
      %vm3964 = vcmp.gt.f32.partialorder %v1231, 0.5
      %vm3965 = vcmp.gt.f32.partialorder %v1232, 0.5
      %vm3966 = vcmp.gt.f32.partialorder %v1233, 0.5
      %vm3967 = vcmp.gt.f32.partialorder %v1234, 0.5
      %vm3968 = vcmp.gt.f32.partialorder %v1235, 0.5
      %vm3969 = vcmp.gt.f32.partialorder %v1236, 0.5
      %vm3970 = vcmp.gt.f32.partialorder %v1237, 0.5
      %vm3971 = vcmp.gt.f32.partialorder %v1238, 0.5
      %vm3972 = vcmp.gt.f32.partialorder %v1239, 0.5
      %vm3973 = vcmp.gt.f32.partialorder %v1240, 0.5
      %vm3974 = vcmp.gt.f32.partialorder %v1241, 0.5
      %vm3975 = vcmp.gt.f32.partialorder %v1242, 0.5
      %vm3976 = vcmp.gt.f32.partialorder %v1243, 0.5
      %v3977 = vsel %vm3945, 1, 0
      %v3978 = vsel %vm3946, 1, 0
      %v3979 = vsel %vm3947, 1, 0
      %v3980 = vsel %vm3948, 1, 0
      %v3981 = vsel %vm3949, 1, 0
      %v3982 = vsel %vm3950, 1, 0
      %v3983 = vsel %vm3951, 1, 0
      %v3984 = vsel %vm3952, 1, 0
      %v3985 = vsel %vm3953, 1, 0
      %v3986 = vsel %vm3954, 1, 0
      %v3987 = vsel %vm3955, 1, 0
      %v3988 = vsel %vm3956, 1, 0
      %v3989 = vsel %vm3957, 1, 0
      %v3990 = vsel %vm3958, 1, 0
      %v3991 = vsel %vm3959, 1, 0
      %v3992 = vsel %vm3960, 1, 0
      %v3993 = vsel %vm3961, 1, 0
      %v3994 = vsel %vm3962, 1, 0
      %v3995 = vsel %vm3963, 1, 0
      %v3996 = vsel %vm3964, 1, 0
      %v3997 = vsel %vm3965, 1, 0
      %v3998 = vsel %vm3966, 1, 0
      %v3999 = vsel %vm3967, 1, 0
      %v4000 = vsel %vm3968, 1, 0
      %v4001 = vsel %vm3969, 1, 0
      %v4002 = vsel %vm3970, 1, 0
      %v4003 = vsel %vm3971, 1, 0
      %v4004 = vsel %vm3972, 1, 0
      %v4005 = vsel %vm3973, 1, 0
      %v4006 = vsel %vm3974, 1, 0
      %v4007 = vsel %vm3975, 1, 0
      %v4008 = vsel %vm3976, 1, 0
      %4009 = vset.pattern.permute.xlu0 1
      %4010 = vperm.xlu0 %4009, %v3977
      %v4011 = vpop.permute.xlu0 %4010
      %4012 = vset.pattern.permute.xlu0 1
      %4013 = vperm.xlu0 %4012, %v3978
      %v4014 = vpop.permute.xlu0 %4013
      %4015 = vset.pattern.permute.xlu0 1
      %4016 = vperm.xlu0 %4015, %v3979
      %v4017 = vpop.permute.xlu0 %4016
      %4018 = vset.pattern.permute.xlu0 1
      %4019 = vperm.xlu0 %4018, %v3980
      %v4020 = vpop.permute.xlu0 %4019
      %4021 = vset.pattern.permute.xlu0 1
      %4022 = vperm.xlu0 %4021, %v3981
      %v4023 = vpop.permute.xlu0 %4022
      %4024 = vset.pattern.permute.xlu0 1
      %4025 = vperm.xlu0 %4024, %v3982
      %v4026 = vpop.permute.xlu0 %4025
      %4027 = vset.pattern.permute.xlu0 1
      %4028 = vperm.xlu0 %4027, %v3983
      %v4029 = vpop.permute.xlu0 %4028
      %4030 = vset.pattern.permute.xlu0 1
      %4031 = vperm.xlu0 %4030, %v3984
      %v4032 = vpop.permute.xlu0 %4031
      %4033 = vset.pattern.permute.xlu0 1
      %4034 = vperm.xlu0 %4033, %v3985
      %v4035 = vpop.permute.xlu0 %4034
      %4036 = vset.pattern.permute.xlu0 1
      %4037 = vperm.xlu0 %4036, %v3986
      %v4038 = vpop.permute.xlu0 %4037
      %4039 = vset.pattern.permute.xlu0 1
      %4040 = vperm.xlu0 %4039, %v3987
      %v4041 = vpop.permute.xlu0 %4040
      %4042 = vset.pattern.permute.xlu0 1
      %4043 = vperm.xlu0 %4042, %v3988
      %v4044 = vpop.permute.xlu0 %4043
      %4045 = vset.pattern.permute.xlu0 1
      %4046 = vperm.xlu0 %4045, %v3989
      %v4047 = vpop.permute.xlu0 %4046
      %4048 = vset.pattern.permute.xlu0 1
      %4049 = vperm.xlu0 %4048, %v3990
      %v4050 = vpop.permute.xlu0 %4049
      %4051 = vset.pattern.permute.xlu0 1
      %4052 = vperm.xlu0 %4051, %v3991
      %v4053 = vpop.permute.xlu0 %4052
      %4054 = vset.pattern.permute.xlu0 1
      %4055 = vperm.xlu0 %4054, %v3992
      %v4056 = vpop.permute.xlu0 %4055
      %4057 = vset.pattern.permute.xlu0 1
      %4058 = vperm.xlu0 %4057, %v3993
      %v4059 = vpop.permute.xlu0 %4058
      %4060 = vset.pattern.permute.xlu0 1
      %4061 = vperm.xlu0 %4060, %v3994
      %v4062 = vpop.permute.xlu0 %4061
      %4063 = vset.pattern.permute.xlu0 1
      %4064 = vperm.xlu0 %4063, %v3995
      %v4065 = vpop.permute.xlu0 %4064
      %4066 = vset.pattern.permute.xlu0 1
      %4067 = vperm.xlu0 %4066, %v3996
      %v4068 = vpop.permute.xlu0 %4067
      %4069 = vset.pattern.permute.xlu0 1
      %4070 = vperm.xlu0 %4069, %v3997
      %v4071 = vpop.permute.xlu0 %4070
      %4072 = vset.pattern.permute.xlu0 1
      %4073 = vperm.xlu0 %4072, %v3998
      %v4074 = vpop.permute.xlu0 %4073
      %4075 = vset.pattern.permute.xlu0 1
      %4076 = vperm.xlu0 %4075, %v3999
      %v4077 = vpop.permute.xlu0 %4076
      %4078 = vset.pattern.permute.xlu0 1
      %4079 = vperm.xlu0 %4078, %v4000
      %v4080 = vpop.permute.xlu0 %4079
      %4081 = vset.pattern.permute.xlu0 1
      %4082 = vperm.xlu0 %4081, %v4001
      %v4083 = vpop.permute.xlu0 %4082
      %4084 = vset.pattern.permute.xlu0 1
      %4085 = vperm.xlu0 %4084, %v4002
      %v4086 = vpop.permute.xlu0 %4085
      %4087 = vset.pattern.permute.xlu0 1
      %4088 = vperm.xlu0 %4087, %v4003
      %v4089 = vpop.permute.xlu0 %4088
      %4090 = vset.pattern.permute.xlu0 1
      %4091 = vperm.xlu0 %4090, %v4004
      %v4092 = vpop.permute.xlu0 %4091
      %4093 = vset.pattern.permute.xlu0 1
      %4094 = vperm.xlu0 %4093, %v4005
      %v4095 = vpop.permute.xlu0 %4094
      %4096 = vset.pattern.permute.xlu0 1
      %4097 = vperm.xlu0 %4096, %v4006
      %v4098 = vpop.permute.xlu0 %4097
      %4099 = vset.pattern.permute.xlu0 1
      %4100 = vperm.xlu0 %4099, %v4007
      %v4101 = vpop.permute.xlu0 %4100
      %4102 = vset.pattern.permute.xlu0 1
      %4103 = vperm.xlu0 %4102, %v4008
      %v4104 = vpop.permute.xlu0 %4103
      %vm4105 = vcmp.eq.s32.totalorder %v4011, 1
      %vm4106 = vcmp.eq.s32.totalorder %v4014, 1
      %vm4107 = vcmp.eq.s32.totalorder %v4017, 1
      %vm4108 = vcmp.eq.s32.totalorder %v4020, 1
      %vm4109 = vcmp.eq.s32.totalorder %v4023, 1
      %vm4110 = vcmp.eq.s32.totalorder %v4026, 1
      %vm4111 = vcmp.eq.s32.totalorder %v4029, 1
      %vm4112 = vcmp.eq.s32.totalorder %v4032, 1
      %vm4113 = vcmp.eq.s32.totalorder %v4035, 1
      %vm4114 = vcmp.eq.s32.totalorder %v4038, 1
      %vm4115 = vcmp.eq.s32.totalorder %v4041, 1
      %vm4116 = vcmp.eq.s32.totalorder %v4044, 1
      %vm4117 = vcmp.eq.s32.totalorder %v4047, 1
      %vm4118 = vcmp.eq.s32.totalorder %v4050, 1
      %vm4119 = vcmp.eq.s32.totalorder %v4053, 1
      %vm4120 = vcmp.eq.s32.totalorder %v4056, 1
      %vm4121 = vcmp.eq.s32.totalorder %v4059, 1
      %vm4122 = vcmp.eq.s32.totalorder %v4062, 1
      %vm4123 = vcmp.eq.s32.totalorder %v4065, 1
      %vm4124 = vcmp.eq.s32.totalorder %v4068, 1
      %vm4125 = vcmp.eq.s32.totalorder %v4071, 1
      %vm4126 = vcmp.eq.s32.totalorder %v4074, 1
      %vm4127 = vcmp.eq.s32.totalorder %v4077, 1
      %vm4128 = vcmp.eq.s32.totalorder %v4080, 1
      %vm4129 = vcmp.eq.s32.totalorder %v4083, 1
      %vm4130 = vcmp.eq.s32.totalorder %v4086, 1
      %vm4131 = vcmp.eq.s32.totalorder %v4089, 1
      %vm4132 = vcmp.eq.s32.totalorder %v4092, 1
      %vm4133 = vcmp.eq.s32.totalorder %v4095, 1
      %vm4134 = vcmp.eq.s32.totalorder %v4098, 1
      %vm4135 = vcmp.eq.s32.totalorder %v4101, 1
      %vm4136 = vcmp.eq.s32.totalorder %v4104, 1
      %v4137 = vsel %vm4105, %v3943, -1e+30
      %v4138 = vsel %vm4106, %v3944, -1e+30
      %v4139 = vsel %vm4107, %v3913, -1e+30
      %v4140 = vsel %vm4108, %v3914, -1e+30
      %v4141 = vsel %vm4109, %v3915, -1e+30
      %v4142 = vsel %vm4110, %v3916, -1e+30
      %v4143 = vsel %vm4111, %v3917, -1e+30
      %v4144 = vsel %vm4112, %v3918, -1e+30
      %v4145 = vsel %vm4113, %v3919, -1e+30
      %v4146 = vsel %vm4114, %v3920, -1e+30
      %v4147 = vsel %vm4115, %v3921, -1e+30
      %v4148 = vsel %vm4116, %v3922, -1e+30
      %v4149 = vsel %vm4117, %v3923, -1e+30
      %v4150 = vsel %vm4118, %v3924, -1e+30
      %v4151 = vsel %vm4119, %v3925, -1e+30
      %v4152 = vsel %vm4120, %v3926, -1e+30
      %v4153 = vsel %vm4121, %v3927, -1e+30
      %v4154 = vsel %vm4122, %v3928, -1e+30
      %v4155 = vsel %vm4123, %v3929, -1e+30
      %v4156 = vsel %vm4124, %v3930, -1e+30
      %v4157 = vsel %vm4125, %v3931, -1e+30
      %v4158 = vsel %vm4126, %v3932, -1e+30
      %v4159 = vsel %vm4127, %v3933, -1e+30
      %v4160 = vsel %vm4128, %v3934, -1e+30
      %v4161 = vsel %vm4129, %v3935, -1e+30
      %v4162 = vsel %vm4130, %v3936, -1e+30
      %v4163 = vsel %vm4131, %v3937, -1e+30
      %v4164 = vsel %vm4132, %v3938, -1e+30
      %v4165 = vsel %vm4133, %v3939, -1e+30
      %v4166 = vsel %vm4134, %v3940, -1e+30
      %v4167 = vsel %vm4135, %v3941, -1e+30
      %v4168 = vsel %vm4136, %v3942, -1e+30
      %4169 = vset.pattern.permute.xlu0 7
      %4170 = vperm.xlu0 %4169, %v3977
      %v4171 = vpop.permute.xlu0 %4170
      %4172 = vset.pattern.permute.xlu0 7
      %4173 = vperm.xlu0 %4172, %v3978
      %v4174 = vpop.permute.xlu0 %4173
      %4175 = vset.pattern.permute.xlu0 7
      %4176 = vperm.xlu0 %4175, %v3979
      %v4177 = vpop.permute.xlu0 %4176
      %4178 = vset.pattern.permute.xlu0 7
      %4179 = vperm.xlu0 %4178, %v3980
      %v4180 = vpop.permute.xlu0 %4179
      %4181 = vset.pattern.permute.xlu0 7
      %4182 = vperm.xlu0 %4181, %v3981
      %v4183 = vpop.permute.xlu0 %4182
      %4184 = vset.pattern.permute.xlu0 7
      %4185 = vperm.xlu0 %4184, %v3982
      %v4186 = vpop.permute.xlu0 %4185
      %4187 = vset.pattern.permute.xlu0 7
      %4188 = vperm.xlu0 %4187, %v3983
      %v4189 = vpop.permute.xlu0 %4188
      %4190 = vset.pattern.permute.xlu0 7
      %4191 = vperm.xlu0 %4190, %v3984
      %v4192 = vpop.permute.xlu0 %4191
      %4193 = vset.pattern.permute.xlu0 7
      %4194 = vperm.xlu0 %4193, %v3985
      %v4195 = vpop.permute.xlu0 %4194
      %4196 = vset.pattern.permute.xlu0 7
      %4197 = vperm.xlu0 %4196, %v3986
      %v4198 = vpop.permute.xlu0 %4197
      %4199 = vset.pattern.permute.xlu0 7
      %4200 = vperm.xlu0 %4199, %v3987
      %v4201 = vpop.permute.xlu0 %4200
      %4202 = vset.pattern.permute.xlu0 7
      %4203 = vperm.xlu0 %4202, %v3988
      %v4204 = vpop.permute.xlu0 %4203
      %4205 = vset.pattern.permute.xlu0 7
      %4206 = vperm.xlu0 %4205, %v3989
      %v4207 = vpop.permute.xlu0 %4206
      %4208 = vset.pattern.permute.xlu0 7
      %4209 = vperm.xlu0 %4208, %v3990
      %v4210 = vpop.permute.xlu0 %4209
      %4211 = vset.pattern.permute.xlu0 7
      %4212 = vperm.xlu0 %4211, %v3991
      %v4213 = vpop.permute.xlu0 %4212
      %4214 = vset.pattern.permute.xlu0 7
      %4215 = vperm.xlu0 %4214, %v3992
      %v4216 = vpop.permute.xlu0 %4215
      %4217 = vset.pattern.permute.xlu0 7
      %4218 = vperm.xlu0 %4217, %v3993
      %v4219 = vpop.permute.xlu0 %4218
      %4220 = vset.pattern.permute.xlu0 7
      %4221 = vperm.xlu0 %4220, %v3994
      %v4222 = vpop.permute.xlu0 %4221
      %4223 = vset.pattern.permute.xlu0 7
      %4224 = vperm.xlu0 %4223, %v3995
      %v4225 = vpop.permute.xlu0 %4224
      %4226 = vset.pattern.permute.xlu0 7
      %4227 = vperm.xlu0 %4226, %v3996
      %v4228 = vpop.permute.xlu0 %4227
      %4229 = vset.pattern.permute.xlu0 7
      %4230 = vperm.xlu0 %4229, %v3997
      %v4231 = vpop.permute.xlu0 %4230
      %4232 = vset.pattern.permute.xlu0 7
      %4233 = vperm.xlu0 %4232, %v3998
      %v4234 = vpop.permute.xlu0 %4233
      %4235 = vset.pattern.permute.xlu0 7
      %4236 = vperm.xlu0 %4235, %v3999
      %v4237 = vpop.permute.xlu0 %4236
      %4238 = vset.pattern.permute.xlu0 7
      %4239 = vperm.xlu0 %4238, %v4000
      %v4240 = vpop.permute.xlu0 %4239
      %4241 = vset.pattern.permute.xlu0 7
      %4242 = vperm.xlu0 %4241, %v4001
      %v4243 = vpop.permute.xlu0 %4242
      %4244 = vset.pattern.permute.xlu0 7
      %4245 = vperm.xlu0 %4244, %v4002
      %v4246 = vpop.permute.xlu0 %4245
      %4247 = vset.pattern.permute.xlu0 7
      %4248 = vperm.xlu0 %4247, %v4003
      %v4249 = vpop.permute.xlu0 %4248
      %4250 = vset.pattern.permute.xlu0 7
      %4251 = vperm.xlu0 %4250, %v4004
      %v4252 = vpop.permute.xlu0 %4251
      %4253 = vset.pattern.permute.xlu0 7
      %4254 = vperm.xlu0 %4253, %v4005
      %v4255 = vpop.permute.xlu0 %4254
      %4256 = vset.pattern.permute.xlu0 7
      %4257 = vperm.xlu0 %4256, %v4006
      %v4258 = vpop.permute.xlu0 %4257
      %4259 = vset.pattern.permute.xlu0 7
      %4260 = vperm.xlu0 %4259, %v4007
      %v4261 = vpop.permute.xlu0 %4260
      %4262 = vset.pattern.permute.xlu0 7
      %4263 = vperm.xlu0 %4262, %v4008
      %v4264 = vpop.permute.xlu0 %4263
      %vm4265 = vcmp.eq.s32.totalorder %v4171, 1
      %vm4266 = vcmp.eq.s32.totalorder %v4174, 1
      %vm4267 = vcmp.eq.s32.totalorder %v4177, 1
      %vm4268 = vcmp.eq.s32.totalorder %v4180, 1
      %vm4269 = vcmp.eq.s32.totalorder %v4183, 1
      %vm4270 = vcmp.eq.s32.totalorder %v4186, 1
      %vm4271 = vcmp.eq.s32.totalorder %v4189, 1
      %vm4272 = vcmp.eq.s32.totalorder %v4192, 1
      %vm4273 = vcmp.eq.s32.totalorder %v4195, 1
      %vm4274 = vcmp.eq.s32.totalorder %v4198, 1
      %vm4275 = vcmp.eq.s32.totalorder %v4201, 1
      %vm4276 = vcmp.eq.s32.totalorder %v4204, 1
      %vm4277 = vcmp.eq.s32.totalorder %v4207, 1
      %vm4278 = vcmp.eq.s32.totalorder %v4210, 1
      %vm4279 = vcmp.eq.s32.totalorder %v4213, 1
      %vm4280 = vcmp.eq.s32.totalorder %v4216, 1
      %vm4281 = vcmp.eq.s32.totalorder %v4219, 1
      %vm4282 = vcmp.eq.s32.totalorder %v4222, 1
      %vm4283 = vcmp.eq.s32.totalorder %v4225, 1
      %vm4284 = vcmp.eq.s32.totalorder %v4228, 1
      %vm4285 = vcmp.eq.s32.totalorder %v4231, 1
      %vm4286 = vcmp.eq.s32.totalorder %v4234, 1
      %vm4287 = vcmp.eq.s32.totalorder %v4237, 1
      %vm4288 = vcmp.eq.s32.totalorder %v4240, 1
      %vm4289 = vcmp.eq.s32.totalorder %v4243, 1
      %vm4290 = vcmp.eq.s32.totalorder %v4246, 1
      %vm4291 = vcmp.eq.s32.totalorder %v4249, 1
      %vm4292 = vcmp.eq.s32.totalorder %v4252, 1
      %vm4293 = vcmp.eq.s32.totalorder %v4255, 1
      %vm4294 = vcmp.eq.s32.totalorder %v4258, 1
      %vm4295 = vcmp.eq.s32.totalorder %v4261, 1
      %vm4296 = vcmp.eq.s32.totalorder %v4264, 1
      %v4297 = vsel %vm4265, %v3915, -1e+30
      %v4298 = vsel %vm4266, %v3916, -1e+30
      %v4299 = vsel %vm4267, %v3917, -1e+30
      %v4300 = vsel %vm4268, %v3918, -1e+30
      %v4301 = vsel %vm4269, %v3919, -1e+30
      %v4302 = vsel %vm4270, %v3920, -1e+30
      %v4303 = vsel %vm4271, %v3921, -1e+30
      %v4304 = vsel %vm4272, %v3922, -1e+30
      %v4305 = vsel %vm4273, %v3923, -1e+30
      %v4306 = vsel %vm4274, %v3924, -1e+30
      %v4307 = vsel %vm4275, %v3925, -1e+30
      %v4308 = vsel %vm4276, %v3926, -1e+30
      %v4309 = vsel %vm4277, %v3927, -1e+30
      %v4310 = vsel %vm4278, %v3928, -1e+30
      %v4311 = vsel %vm4279, %v3929, -1e+30
      %v4312 = vsel %vm4280, %v3930, -1e+30
      %v4313 = vsel %vm4281, %v3931, -1e+30
      %v4314 = vsel %vm4282, %v3932, -1e+30
      %v4315 = vsel %vm4283, %v3933, -1e+30
      %v4316 = vsel %vm4284, %v3934, -1e+30
      %v4317 = vsel %vm4285, %v3935, -1e+30
      %v4318 = vsel %vm4286, %v3936, -1e+30
      %v4319 = vsel %vm4287, %v3937, -1e+30
      %v4320 = vsel %vm4288, %v3938, -1e+30
      %v4321 = vsel %vm4289, %v3939, -1e+30
      %v4322 = vsel %vm4290, %v3940, -1e+30
      %v4323 = vsel %vm4291, %v3941, -1e+30
      %v4324 = vsel %vm4292, %v3942, -1e+30
      %v4325 = vsel %vm4293, %v3943, -1e+30
      %v4326 = vsel %vm4294, %v3944, -1e+30
      %v4327 = vsel %vm4295, %v3913, -1e+30
      %v4328 = vsel %vm4296, %v3914, -1e+30
      %v4329 = vmax.f32 %v4137, %v4297
      %v4330 = vmax.f32 %v4138, %v4298
      %v4331 = vmax.f32 %v4139, %v4299
      %v4332 = vmax.f32 %v4140, %v4300
      %v4333 = vmax.f32 %v4141, %v4301
      %v4334 = vmax.f32 %v4142, %v4302
      %v4335 = vmax.f32 %v4143, %v4303
      %v4336 = vmax.f32 %v4144, %v4304
      %v4337 = vmax.f32 %v4145, %v4305
      %v4338 = vmax.f32 %v4146, %v4306
      %v4339 = vmax.f32 %v4147, %v4307
      %v4340 = vmax.f32 %v4148, %v4308
      %v4341 = vmax.f32 %v4149, %v4309
      %v4342 = vmax.f32 %v4150, %v4310
      %v4343 = vmax.f32 %v4151, %v4311
      %v4344 = vmax.f32 %v4152, %v4312
      %v4345 = vmax.f32 %v4153, %v4313
      %v4346 = vmax.f32 %v4154, %v4314
      %v4347 = vmax.f32 %v4155, %v4315
      %v4348 = vmax.f32 %v4156, %v4316
      %v4349 = vmax.f32 %v4157, %v4317
      %v4350 = vmax.f32 %v4158, %v4318
      %v4351 = vmax.f32 %v4159, %v4319
      %v4352 = vmax.f32 %v4160, %v4320
      %v4353 = vmax.f32 %v4161, %v4321
      %v4354 = vmax.f32 %v4162, %v4322
      %v4355 = vmax.f32 %v4163, %v4323
      %v4356 = vmax.f32 %v4164, %v4324
      %v4357 = vmax.f32 %v4165, %v4325
      %v4358 = vmax.f32 %v4166, %v4326
      %v4359 = vmax.f32 %v4167, %v4327
      %v4360 = vmax.f32 %v4168, %v4328
      %v4361 = vmax.f32 %v4329, %v3913
      %v4362 = vmax.f32 %v4330, %v3914
      %v4363 = vmax.f32 %v4331, %v3915
      %v4364 = vmax.f32 %v4332, %v3916
      %v4365 = vmax.f32 %v4333, %v3917
      %v4366 = vmax.f32 %v4334, %v3918
      %v4367 = vmax.f32 %v4335, %v3919
      %v4368 = vmax.f32 %v4336, %v3920
      %v4369 = vmax.f32 %v4337, %v3921
      %v4370 = vmax.f32 %v4338, %v3922
      %v4371 = vmax.f32 %v4339, %v3923
      %v4372 = vmax.f32 %v4340, %v3924
      %v4373 = vmax.f32 %v4341, %v3925
      %v4374 = vmax.f32 %v4342, %v3926
      %v4375 = vmax.f32 %v4343, %v3927
      %v4376 = vmax.f32 %v4344, %v3928
      %v4377 = vmax.f32 %v4345, %v3929
      %v4378 = vmax.f32 %v4346, %v3930
      %v4379 = vmax.f32 %v4347, %v3931
      %v4380 = vmax.f32 %v4348, %v3932
      %v4381 = vmax.f32 %v4349, %v3933
      %v4382 = vmax.f32 %v4350, %v3934
      %v4383 = vmax.f32 %v4351, %v3935
      %v4384 = vmax.f32 %v4352, %v3936
      %v4385 = vmax.f32 %v4353, %v3937
      %v4386 = vmax.f32 %v4354, %v3938
      %v4387 = vmax.f32 %v4355, %v3939
      %v4388 = vmax.f32 %v4356, %v3940
      %v4389 = vmax.f32 %v4357, %v3941
      %v4390 = vmax.f32 %v4358, %v3942
      %v4391 = vmax.f32 %v4359, %v3943
      %v4392 = vmax.f32 %v4360, %v3944
      %v4393 = vrot.slane %v4361, 7
      %v4394 = vrot.slane %v4362, 7
      %v4395 = vrot.slane %v4363, 7
      %v4396 = vrot.slane %v4364, 7
      %v4397 = vrot.slane %v4365, 7
      %v4398 = vrot.slane %v4366, 7
      %v4399 = vrot.slane %v4367, 7
      %v4400 = vrot.slane %v4368, 7
      %v4401 = vrot.slane %v4369, 7
      %v4402 = vrot.slane %v4370, 7
      %v4403 = vrot.slane %v4371, 7
      %v4404 = vrot.slane %v4372, 7
      %v4405 = vrot.slane %v4373, 7
      %v4406 = vrot.slane %v4374, 7
      %v4407 = vrot.slane %v4375, 7
      %v4408 = vrot.slane %v4376, 7
      %v4409 = vrot.slane %v4377, 7
      %v4410 = vrot.slane %v4378, 7
      %v4411 = vrot.slane %v4379, 7
      %v4412 = vrot.slane %v4380, 7
      %v4413 = vrot.slane %v4381, 7
      %v4414 = vrot.slane %v4382, 7
      %v4415 = vrot.slane %v4383, 7
      %v4416 = vrot.slane %v4384, 7
      %v4417 = vrot.slane %v4385, 7
      %v4418 = vrot.slane %v4386, 7
      %v4419 = vrot.slane %v4387, 7
      %v4420 = vrot.slane %v4388, 7
      %v4421 = vrot.slane %v4389, 7
      %v4422 = vrot.slane %v4390, 7
      %v4423 = vrot.slane %v4391, 7
      %v4424 = vrot.slane %v4392, 7
      %v4425 = vsel %vm1320, %v4423, %v4424
      %v4426 = vsel %vm1320, %v4422, %v4423
      %v4427 = vsel %vm1320, %v4421, %v4422
      %v4428 = vsel %vm1320, %v4420, %v4421
      %v4429 = vsel %vm1320, %v4419, %v4420
      %v4430 = vsel %vm1320, %v4418, %v4419
      %v4431 = vsel %vm1320, %v4417, %v4418
      %v4432 = vsel %vm1320, %v4416, %v4417
      %v4433 = vsel %vm1320, %v4415, %v4416
      %v4434 = vsel %vm1320, %v4414, %v4415
      %v4435 = vsel %vm1320, %v4413, %v4414
      %v4436 = vsel %vm1320, %v4412, %v4413
      %v4437 = vsel %vm1320, %v4411, %v4412
      %v4438 = vsel %vm1320, %v4410, %v4411
      %v4439 = vsel %vm1320, %v4409, %v4410
      %v4440 = vsel %vm1320, %v4408, %v4409
      %v4441 = vsel %vm1320, %v4407, %v4408
      %v4442 = vsel %vm1320, %v4406, %v4407
      %v4443 = vsel %vm1320, %v4405, %v4406
      %v4444 = vsel %vm1320, %v4404, %v4405
      %v4445 = vsel %vm1320, %v4403, %v4404
      %v4446 = vsel %vm1320, %v4402, %v4403
      %v4447 = vsel %vm1320, %v4401, %v4402
      %v4448 = vsel %vm1320, %v4400, %v4401
      %v4449 = vsel %vm1320, %v4399, %v4400
      %v4450 = vsel %vm1320, %v4398, %v4399
      %v4451 = vsel %vm1320, %v4397, %v4398
      %v4452 = vsel %vm1320, %v4396, %v4397
      %v4453 = vsel %vm1320, %v4395, %v4396
      %v4454 = vsel %vm1320, %v4394, %v4395
      %v4455 = vsel %vm1320, %v4393, %v4394
      %v4456 = vsel %vm1320, %v4424, %v4393
      %4457 = vset.pattern.permute.xlu0 3
      %4458 = vperm.xlu0 %4457, %v3977
      %v4459 = vpop.permute.xlu0 %4458
      %4460 = vset.pattern.permute.xlu0 3
      %4461 = vperm.xlu0 %4460, %v3978
      %v4462 = vpop.permute.xlu0 %4461
      %4463 = vset.pattern.permute.xlu0 3
      %4464 = vperm.xlu0 %4463, %v3979
      %v4465 = vpop.permute.xlu0 %4464
      %4466 = vset.pattern.permute.xlu0 3
      %4467 = vperm.xlu0 %4466, %v3980
      %v4468 = vpop.permute.xlu0 %4467
      %4469 = vset.pattern.permute.xlu0 3
      %4470 = vperm.xlu0 %4469, %v3981
      %v4471 = vpop.permute.xlu0 %4470
      %4472 = vset.pattern.permute.xlu0 3
      %4473 = vperm.xlu0 %4472, %v3982
      %v4474 = vpop.permute.xlu0 %4473
      %4475 = vset.pattern.permute.xlu0 3
      %4476 = vperm.xlu0 %4475, %v3983
      %v4477 = vpop.permute.xlu0 %4476
      %4478 = vset.pattern.permute.xlu0 3
      %4479 = vperm.xlu0 %4478, %v3984
      %v4480 = vpop.permute.xlu0 %4479
      %4481 = vset.pattern.permute.xlu0 3
      %4482 = vperm.xlu0 %4481, %v3985
      %v4483 = vpop.permute.xlu0 %4482
      %4484 = vset.pattern.permute.xlu0 3
      %4485 = vperm.xlu0 %4484, %v3986
      %v4486 = vpop.permute.xlu0 %4485
      %4487 = vset.pattern.permute.xlu0 3
      %4488 = vperm.xlu0 %4487, %v3987
      %v4489 = vpop.permute.xlu0 %4488
      %4490 = vset.pattern.permute.xlu0 3
      %4491 = vperm.xlu0 %4490, %v3988
      %v4492 = vpop.permute.xlu0 %4491
      %4493 = vset.pattern.permute.xlu0 3
      %4494 = vperm.xlu0 %4493, %v3989
      %v4495 = vpop.permute.xlu0 %4494
      %4496 = vset.pattern.permute.xlu0 3
      %4497 = vperm.xlu0 %4496, %v3990
      %v4498 = vpop.permute.xlu0 %4497
      %4499 = vset.pattern.permute.xlu0 3
      %4500 = vperm.xlu0 %4499, %v3991
      %v4501 = vpop.permute.xlu0 %4500
      %4502 = vset.pattern.permute.xlu0 3
      %4503 = vperm.xlu0 %4502, %v3992
      %v4504 = vpop.permute.xlu0 %4503
      %4505 = vset.pattern.permute.xlu0 3
      %4506 = vperm.xlu0 %4505, %v3993
      %v4507 = vpop.permute.xlu0 %4506
      %4508 = vset.pattern.permute.xlu0 3
      %4509 = vperm.xlu0 %4508, %v3994
      %v4510 = vpop.permute.xlu0 %4509
      %4511 = vset.pattern.permute.xlu0 3
      %4512 = vperm.xlu0 %4511, %v3995
      %v4513 = vpop.permute.xlu0 %4512
      %4514 = vset.pattern.permute.xlu0 3
      %4515 = vperm.xlu0 %4514, %v3996
      %v4516 = vpop.permute.xlu0 %4515
      %4517 = vset.pattern.permute.xlu0 3
      %4518 = vperm.xlu0 %4517, %v3997
      %v4519 = vpop.permute.xlu0 %4518
      %4520 = vset.pattern.permute.xlu0 3
      %4521 = vperm.xlu0 %4520, %v3998
      %v4522 = vpop.permute.xlu0 %4521
      %4523 = vset.pattern.permute.xlu0 3
      %4524 = vperm.xlu0 %4523, %v3999
      %v4525 = vpop.permute.xlu0 %4524
      %4526 = vset.pattern.permute.xlu0 3
      %4527 = vperm.xlu0 %4526, %v4000
      %v4528 = vpop.permute.xlu0 %4527
      %4529 = vset.pattern.permute.xlu0 3
      %4530 = vperm.xlu0 %4529, %v4001
      %v4531 = vpop.permute.xlu0 %4530
      %4532 = vset.pattern.permute.xlu0 3
      %4533 = vperm.xlu0 %4532, %v4002
      %v4534 = vpop.permute.xlu0 %4533
      %4535 = vset.pattern.permute.xlu0 3
      %4536 = vperm.xlu0 %4535, %v4003
      %v4537 = vpop.permute.xlu0 %4536
      %4538 = vset.pattern.permute.xlu0 3
      %4539 = vperm.xlu0 %4538, %v4004
      %v4540 = vpop.permute.xlu0 %4539
      %4541 = vset.pattern.permute.xlu0 3
      %4542 = vperm.xlu0 %4541, %v4005
      %v4543 = vpop.permute.xlu0 %4542
      %4544 = vset.pattern.permute.xlu0 3
      %4545 = vperm.xlu0 %4544, %v4006
      %v4546 = vpop.permute.xlu0 %4545
      %4547 = vset.pattern.permute.xlu0 3
      %4548 = vperm.xlu0 %4547, %v4007
      %v4549 = vpop.permute.xlu0 %4548
      %4550 = vset.pattern.permute.xlu0 3
      %4551 = vperm.xlu0 %4550, %v4008
      %v4552 = vpop.permute.xlu0 %4551
      %vm4553 = vcmp.eq.s32.totalorder %v4459, 1
      %vm4554 = vcmp.eq.s32.totalorder %v4462, 1
      %vm4555 = vcmp.eq.s32.totalorder %v4465, 1
      %vm4556 = vcmp.eq.s32.totalorder %v4468, 1
      %vm4557 = vcmp.eq.s32.totalorder %v4471, 1
      %vm4558 = vcmp.eq.s32.totalorder %v4474, 1
      %vm4559 = vcmp.eq.s32.totalorder %v4477, 1
      %vm4560 = vcmp.eq.s32.totalorder %v4480, 1
      %vm4561 = vcmp.eq.s32.totalorder %v4483, 1
      %vm4562 = vcmp.eq.s32.totalorder %v4486, 1
      %vm4563 = vcmp.eq.s32.totalorder %v4489, 1
      %vm4564 = vcmp.eq.s32.totalorder %v4492, 1
      %vm4565 = vcmp.eq.s32.totalorder %v4495, 1
      %vm4566 = vcmp.eq.s32.totalorder %v4498, 1
      %vm4567 = vcmp.eq.s32.totalorder %v4501, 1
      %vm4568 = vcmp.eq.s32.totalorder %v4504, 1
      %vm4569 = vcmp.eq.s32.totalorder %v4507, 1
      %vm4570 = vcmp.eq.s32.totalorder %v4510, 1
      %vm4571 = vcmp.eq.s32.totalorder %v4513, 1
      %vm4572 = vcmp.eq.s32.totalorder %v4516, 1
      %vm4573 = vcmp.eq.s32.totalorder %v4519, 1
      %vm4574 = vcmp.eq.s32.totalorder %v4522, 1
      %vm4575 = vcmp.eq.s32.totalorder %v4525, 1
      %vm4576 = vcmp.eq.s32.totalorder %v4528, 1
      %vm4577 = vcmp.eq.s32.totalorder %v4531, 1
      %vm4578 = vcmp.eq.s32.totalorder %v4534, 1
      %vm4579 = vcmp.eq.s32.totalorder %v4537, 1
      %vm4580 = vcmp.eq.s32.totalorder %v4540, 1
      %vm4581 = vcmp.eq.s32.totalorder %v4543, 1
      %vm4582 = vcmp.eq.s32.totalorder %v4546, 1
      %vm4583 = vcmp.eq.s32.totalorder %v4549, 1
      %vm4584 = vcmp.eq.s32.totalorder %v4552, 1
      %v4585 = vsel %vm4553, %v4456, -1e+30
      %v4586 = vsel %vm4554, %v4455, -1e+30
      %v4587 = vsel %vm4555, %v4454, -1e+30
      %v4588 = vsel %vm4556, %v4453, -1e+30
      %v4589 = vsel %vm4557, %v4452, -1e+30
      %v4590 = vsel %vm4558, %v4451, -1e+30
      %v4591 = vsel %vm4559, %v4450, -1e+30
      %v4592 = vsel %vm4560, %v4449, -1e+30
      %v4593 = vsel %vm4561, %v4448, -1e+30
      %v4594 = vsel %vm4562, %v4447, -1e+30
      %v4595 = vsel %vm4563, %v4446, -1e+30
      %v4596 = vsel %vm4564, %v4445, -1e+30
      %v4597 = vsel %vm4565, %v4444, -1e+30
      %v4598 = vsel %vm4566, %v4443, -1e+30
      %v4599 = vsel %vm4567, %v4442, -1e+30
      %v4600 = vsel %vm4568, %v4441, -1e+30
      %v4601 = vsel %vm4569, %v4440, -1e+30
      %v4602 = vsel %vm4570, %v4439, -1e+30
      %v4603 = vsel %vm4571, %v4438, -1e+30
      %v4604 = vsel %vm4572, %v4437, -1e+30
      %v4605 = vsel %vm4573, %v4436, -1e+30
      %v4606 = vsel %vm4574, %v4435, -1e+30
      %v4607 = vsel %vm4575, %v4434, -1e+30
      %v4608 = vsel %vm4576, %v4433, -1e+30
      %v4609 = vsel %vm4577, %v4432, -1e+30
      %v4610 = vsel %vm4578, %v4431, -1e+30
      %v4611 = vsel %vm4579, %v4430, -1e+30
      %v4612 = vsel %vm4580, %v4429, -1e+30
      %v4613 = vsel %vm4581, %v4428, -1e+30
      %v4614 = vsel %vm4582, %v4427, -1e+30
      %v4615 = vsel %vm4583, %v4426, -1e+30
      %v4616 = vsel %vm4584, %v4425, -1e+30
      %v4617 = vrot.slane %v4361, 1
      %v4618 = vrot.slane %v4362, 1
      %v4619 = vrot.slane %v4363, 1
      %v4620 = vrot.slane %v4364, 1
      %v4621 = vrot.slane %v4365, 1
      %v4622 = vrot.slane %v4366, 1
      %v4623 = vrot.slane %v4367, 1
      %v4624 = vrot.slane %v4368, 1
      %v4625 = vrot.slane %v4369, 1
      %v4626 = vrot.slane %v4370, 1
      %v4627 = vrot.slane %v4371, 1
      %v4628 = vrot.slane %v4372, 1
      %v4629 = vrot.slane %v4373, 1
      %v4630 = vrot.slane %v4374, 1
      %v4631 = vrot.slane %v4375, 1
      %v4632 = vrot.slane %v4376, 1
      %v4633 = vrot.slane %v4377, 1
      %v4634 = vrot.slane %v4378, 1
      %v4635 = vrot.slane %v4379, 1
      %v4636 = vrot.slane %v4380, 1
      %v4637 = vrot.slane %v4381, 1
      %v4638 = vrot.slane %v4382, 1
      %v4639 = vrot.slane %v4383, 1
      %v4640 = vrot.slane %v4384, 1
      %v4641 = vrot.slane %v4385, 1
      %v4642 = vrot.slane %v4386, 1
      %v4643 = vrot.slane %v4387, 1
      %v4644 = vrot.slane %v4388, 1
      %v4645 = vrot.slane %v4389, 1
      %v4646 = vrot.slane %v4390, 1
      %v4647 = vrot.slane %v4391, 1
      %v4648 = vrot.slane %v4392, 1
      %v4649 = vsel %vm1577, %v4647, %v4648
      %v4650 = vsel %vm1577, %v4646, %v4647
      %v4651 = vsel %vm1577, %v4645, %v4646
      %v4652 = vsel %vm1577, %v4644, %v4645
      %v4653 = vsel %vm1577, %v4643, %v4644
      %v4654 = vsel %vm1577, %v4642, %v4643
      %v4655 = vsel %vm1577, %v4641, %v4642
      %v4656 = vsel %vm1577, %v4640, %v4641
      %v4657 = vsel %vm1577, %v4639, %v4640
      %v4658 = vsel %vm1577, %v4638, %v4639
      %v4659 = vsel %vm1577, %v4637, %v4638
      %v4660 = vsel %vm1577, %v4636, %v4637
      %v4661 = vsel %vm1577, %v4635, %v4636
      %v4662 = vsel %vm1577, %v4634, %v4635
      %v4663 = vsel %vm1577, %v4633, %v4634
      %v4664 = vsel %vm1577, %v4632, %v4633
      %v4665 = vsel %vm1577, %v4631, %v4632
      %v4666 = vsel %vm1577, %v4630, %v4631
      %v4667 = vsel %vm1577, %v4629, %v4630
      %v4668 = vsel %vm1577, %v4628, %v4629
      %v4669 = vsel %vm1577, %v4627, %v4628
      %v4670 = vsel %vm1577, %v4626, %v4627
      %v4671 = vsel %vm1577, %v4625, %v4626
      %v4672 = vsel %vm1577, %v4624, %v4625
      %v4673 = vsel %vm1577, %v4623, %v4624
      %v4674 = vsel %vm1577, %v4622, %v4623
      %v4675 = vsel %vm1577, %v4621, %v4622
      %v4676 = vsel %vm1577, %v4620, %v4621
      %v4677 = vsel %vm1577, %v4619, %v4620
      %v4678 = vsel %vm1577, %v4618, %v4619
      %v4679 = vsel %vm1577, %v4617, %v4618
      %v4680 = vsel %vm1577, %v4648, %v4617
      %4681 = vset.pattern.permute.xlu0 5
      %4682 = vperm.xlu0 %4681, %v3977
      %v4683 = vpop.permute.xlu0 %4682
      %4684 = vset.pattern.permute.xlu0 5
      %4685 = vperm.xlu0 %4684, %v3978
      %v4686 = vpop.permute.xlu0 %4685
      %4687 = vset.pattern.permute.xlu0 5
      %4688 = vperm.xlu0 %4687, %v3979
      %v4689 = vpop.permute.xlu0 %4688
      %4690 = vset.pattern.permute.xlu0 5
      %4691 = vperm.xlu0 %4690, %v3980
      %v4692 = vpop.permute.xlu0 %4691
      %4693 = vset.pattern.permute.xlu0 5
      %4694 = vperm.xlu0 %4693, %v3981
      %v4695 = vpop.permute.xlu0 %4694
      %4696 = vset.pattern.permute.xlu0 5
      %4697 = vperm.xlu0 %4696, %v3982
      %v4698 = vpop.permute.xlu0 %4697
      %4699 = vset.pattern.permute.xlu0 5
      %4700 = vperm.xlu0 %4699, %v3983
      %v4701 = vpop.permute.xlu0 %4700
      %4702 = vset.pattern.permute.xlu0 5
      %4703 = vperm.xlu0 %4702, %v3984
      %v4704 = vpop.permute.xlu0 %4703
      %4705 = vset.pattern.permute.xlu0 5
      %4706 = vperm.xlu0 %4705, %v3985
      %v4707 = vpop.permute.xlu0 %4706
      %4708 = vset.pattern.permute.xlu0 5
      %4709 = vperm.xlu0 %4708, %v3986
      %v4710 = vpop.permute.xlu0 %4709
      %4711 = vset.pattern.permute.xlu0 5
      %4712 = vperm.xlu0 %4711, %v3987
      %v4713 = vpop.permute.xlu0 %4712
      %4714 = vset.pattern.permute.xlu0 5
      %4715 = vperm.xlu0 %4714, %v3988
      %v4716 = vpop.permute.xlu0 %4715
      %4717 = vset.pattern.permute.xlu0 5
      %4718 = vperm.xlu0 %4717, %v3989
      %v4719 = vpop.permute.xlu0 %4718
      %4720 = vset.pattern.permute.xlu0 5
      %4721 = vperm.xlu0 %4720, %v3990
      %v4722 = vpop.permute.xlu0 %4721
      %4723 = vset.pattern.permute.xlu0 5
      %4724 = vperm.xlu0 %4723, %v3991
      %v4725 = vpop.permute.xlu0 %4724
      %4726 = vset.pattern.permute.xlu0 5
      %4727 = vperm.xlu0 %4726, %v3992
      %v4728 = vpop.permute.xlu0 %4727
      %4729 = vset.pattern.permute.xlu0 5
      %4730 = vperm.xlu0 %4729, %v3993
      %v4731 = vpop.permute.xlu0 %4730
      %4732 = vset.pattern.permute.xlu0 5
      %4733 = vperm.xlu0 %4732, %v3994
      %v4734 = vpop.permute.xlu0 %4733
      %4735 = vset.pattern.permute.xlu0 5
      %4736 = vperm.xlu0 %4735, %v3995
      %v4737 = vpop.permute.xlu0 %4736
      %4738 = vset.pattern.permute.xlu0 5
      %4739 = vperm.xlu0 %4738, %v3996
      %v4740 = vpop.permute.xlu0 %4739
      %4741 = vset.pattern.permute.xlu0 5
      %4742 = vperm.xlu0 %4741, %v3997
      %v4743 = vpop.permute.xlu0 %4742
      %4744 = vset.pattern.permute.xlu0 5
      %4745 = vperm.xlu0 %4744, %v3998
      %v4746 = vpop.permute.xlu0 %4745
      %4747 = vset.pattern.permute.xlu0 5
      %4748 = vperm.xlu0 %4747, %v3999
      %v4749 = vpop.permute.xlu0 %4748
      %4750 = vset.pattern.permute.xlu0 5
      %4751 = vperm.xlu0 %4750, %v4000
      %v4752 = vpop.permute.xlu0 %4751
      %4753 = vset.pattern.permute.xlu0 5
      %4754 = vperm.xlu0 %4753, %v4001
      %v4755 = vpop.permute.xlu0 %4754
      %4756 = vset.pattern.permute.xlu0 5
      %4757 = vperm.xlu0 %4756, %v4002
      %v4758 = vpop.permute.xlu0 %4757
      %4759 = vset.pattern.permute.xlu0 5
      %4760 = vperm.xlu0 %4759, %v4003
      %v4761 = vpop.permute.xlu0 %4760
      %4762 = vset.pattern.permute.xlu0 5
      %4763 = vperm.xlu0 %4762, %v4004
      %v4764 = vpop.permute.xlu0 %4763
      %4765 = vset.pattern.permute.xlu0 5
      %4766 = vperm.xlu0 %4765, %v4005
      %v4767 = vpop.permute.xlu0 %4766
      %4768 = vset.pattern.permute.xlu0 5
      %4769 = vperm.xlu0 %4768, %v4006
      %v4770 = vpop.permute.xlu0 %4769
      %4771 = vset.pattern.permute.xlu0 5
      %4772 = vperm.xlu0 %4771, %v4007
      %v4773 = vpop.permute.xlu0 %4772
      %4774 = vset.pattern.permute.xlu0 5
      %4775 = vperm.xlu0 %4774, %v4008
      %v4776 = vpop.permute.xlu0 %4775
      %vm4777 = vcmp.eq.s32.totalorder %v4683, 1
      %vm4778 = vcmp.eq.s32.totalorder %v4686, 1
      %vm4779 = vcmp.eq.s32.totalorder %v4689, 1
      %vm4780 = vcmp.eq.s32.totalorder %v4692, 1
      %vm4781 = vcmp.eq.s32.totalorder %v4695, 1
      %vm4782 = vcmp.eq.s32.totalorder %v4698, 1
      %vm4783 = vcmp.eq.s32.totalorder %v4701, 1
      %vm4784 = vcmp.eq.s32.totalorder %v4704, 1
      %vm4785 = vcmp.eq.s32.totalorder %v4707, 1
      %vm4786 = vcmp.eq.s32.totalorder %v4710, 1
      %vm4787 = vcmp.eq.s32.totalorder %v4713, 1
      %vm4788 = vcmp.eq.s32.totalorder %v4716, 1
      %vm4789 = vcmp.eq.s32.totalorder %v4719, 1
      %vm4790 = vcmp.eq.s32.totalorder %v4722, 1
      %vm4791 = vcmp.eq.s32.totalorder %v4725, 1
      %vm4792 = vcmp.eq.s32.totalorder %v4728, 1
      %vm4793 = vcmp.eq.s32.totalorder %v4731, 1
      %vm4794 = vcmp.eq.s32.totalorder %v4734, 1
      %vm4795 = vcmp.eq.s32.totalorder %v4737, 1
      %vm4796 = vcmp.eq.s32.totalorder %v4740, 1
      %vm4797 = vcmp.eq.s32.totalorder %v4743, 1
      %vm4798 = vcmp.eq.s32.totalorder %v4746, 1
      %vm4799 = vcmp.eq.s32.totalorder %v4749, 1
      %vm4800 = vcmp.eq.s32.totalorder %v4752, 1
      %vm4801 = vcmp.eq.s32.totalorder %v4755, 1
      %vm4802 = vcmp.eq.s32.totalorder %v4758, 1
      %vm4803 = vcmp.eq.s32.totalorder %v4761, 1
      %vm4804 = vcmp.eq.s32.totalorder %v4764, 1
      %vm4805 = vcmp.eq.s32.totalorder %v4767, 1
      %vm4806 = vcmp.eq.s32.totalorder %v4770, 1
      %vm4807 = vcmp.eq.s32.totalorder %v4773, 1
      %vm4808 = vcmp.eq.s32.totalorder %v4776, 1
      %v4809 = vsel %vm4777, %v4679, -1e+30
      %v4810 = vsel %vm4778, %v4678, -1e+30
      %v4811 = vsel %vm4779, %v4677, -1e+30
      %v4812 = vsel %vm4780, %v4676, -1e+30
      %v4813 = vsel %vm4781, %v4675, -1e+30
      %v4814 = vsel %vm4782, %v4674, -1e+30
      %v4815 = vsel %vm4783, %v4673, -1e+30
      %v4816 = vsel %vm4784, %v4672, -1e+30
      %v4817 = vsel %vm4785, %v4671, -1e+30
      %v4818 = vsel %vm4786, %v4670, -1e+30
      %v4819 = vsel %vm4787, %v4669, -1e+30
      %v4820 = vsel %vm4788, %v4668, -1e+30
      %v4821 = vsel %vm4789, %v4667, -1e+30
      %v4822 = vsel %vm4790, %v4666, -1e+30
      %v4823 = vsel %vm4791, %v4665, -1e+30
      %v4824 = vsel %vm4792, %v4664, -1e+30
      %v4825 = vsel %vm4793, %v4663, -1e+30
      %v4826 = vsel %vm4794, %v4662, -1e+30
      %v4827 = vsel %vm4795, %v4661, -1e+30
      %v4828 = vsel %vm4796, %v4660, -1e+30
      %v4829 = vsel %vm4797, %v4659, -1e+30
      %v4830 = vsel %vm4798, %v4658, -1e+30
      %v4831 = vsel %vm4799, %v4657, -1e+30
      %v4832 = vsel %vm4800, %v4656, -1e+30
      %v4833 = vsel %vm4801, %v4655, -1e+30
      %v4834 = vsel %vm4802, %v4654, -1e+30
      %v4835 = vsel %vm4803, %v4653, -1e+30
      %v4836 = vsel %vm4804, %v4652, -1e+30
      %v4837 = vsel %vm4805, %v4651, -1e+30
      %v4838 = vsel %vm4806, %v4650, -1e+30
      %v4839 = vsel %vm4807, %v4649, -1e+30
      %v4840 = vsel %vm4808, %v4680, -1e+30
      %v4841 = vmax.f32 %v4585, %v4809
      %v4842 = vmax.f32 %v4586, %v4810
      %v4843 = vmax.f32 %v4587, %v4811
      %v4844 = vmax.f32 %v4588, %v4812
      %v4845 = vmax.f32 %v4589, %v4813
      %v4846 = vmax.f32 %v4590, %v4814
      %v4847 = vmax.f32 %v4591, %v4815
      %v4848 = vmax.f32 %v4592, %v4816
      %v4849 = vmax.f32 %v4593, %v4817
      %v4850 = vmax.f32 %v4594, %v4818
      %v4851 = vmax.f32 %v4595, %v4819
      %v4852 = vmax.f32 %v4596, %v4820
      %v4853 = vmax.f32 %v4597, %v4821
      %v4854 = vmax.f32 %v4598, %v4822
      %v4855 = vmax.f32 %v4599, %v4823
      %v4856 = vmax.f32 %v4600, %v4824
      %v4857 = vmax.f32 %v4601, %v4825
      %v4858 = vmax.f32 %v4602, %v4826
      %v4859 = vmax.f32 %v4603, %v4827
      %v4860 = vmax.f32 %v4604, %v4828
      %v4861 = vmax.f32 %v4605, %v4829
      %v4862 = vmax.f32 %v4606, %v4830
      %v4863 = vmax.f32 %v4607, %v4831
      %v4864 = vmax.f32 %v4608, %v4832
      %v4865 = vmax.f32 %v4609, %v4833
      %v4866 = vmax.f32 %v4610, %v4834
      %v4867 = vmax.f32 %v4611, %v4835
      %v4868 = vmax.f32 %v4612, %v4836
      %v4869 = vmax.f32 %v4613, %v4837
      %v4870 = vmax.f32 %v4614, %v4838
      %v4871 = vmax.f32 %v4615, %v4839
      %v4872 = vmax.f32 %v4616, %v4840
      %v4873 = vmax.f32 %v4841, %v4361
      %v4874 = vmax.f32 %v4842, %v4362
      %v4875 = vmax.f32 %v4843, %v4363
      %v4876 = vmax.f32 %v4844, %v4364
      %v4877 = vmax.f32 %v4845, %v4365
      %v4878 = vmax.f32 %v4846, %v4366
      %v4879 = vmax.f32 %v4847, %v4367
      %v4880 = vmax.f32 %v4848, %v4368
      %v4881 = vmax.f32 %v4849, %v4369
      %v4882 = vmax.f32 %v4850, %v4370
      %v4883 = vmax.f32 %v4851, %v4371
      %v4884 = vmax.f32 %v4852, %v4372
      %v4885 = vmax.f32 %v4853, %v4373
      %v4886 = vmax.f32 %v4854, %v4374
      %v4887 = vmax.f32 %v4855, %v4375
      %v4888 = vmax.f32 %v4856, %v4376
      %v4889 = vmax.f32 %v4857, %v4377
      %v4890 = vmax.f32 %v4858, %v4378
      %v4891 = vmax.f32 %v4859, %v4379
      %v4892 = vmax.f32 %v4860, %v4380
      %v4893 = vmax.f32 %v4861, %v4381
      %v4894 = vmax.f32 %v4862, %v4382
      %v4895 = vmax.f32 %v4863, %v4383
      %v4896 = vmax.f32 %v4864, %v4384
      %v4897 = vmax.f32 %v4865, %v4385
      %v4898 = vmax.f32 %v4866, %v4386
      %v4899 = vmax.f32 %v4867, %v4387
      %v4900 = vmax.f32 %v4868, %v4388
      %v4901 = vmax.f32 %v4869, %v4389
      %v4902 = vmax.f32 %v4870, %v4390
      %v4903 = vmax.f32 %v4871, %v4391
      %v4904 = vmax.f32 %v4872, %v4392
      %v4905 = vld [vmem:[%s9] sm:$0xff]
      %v4906 = vld [vmem:[%s9 + $0x8] sm:$0xff]
      %v4907 = vld [vmem:[%s9 + $0x10] sm:$0xff]
      %v4908 = vld [vmem:[%s9 + $0x18] sm:$0xff]
      %v4909 = vld [vmem:[%s9 + $0x20] sm:$0xff]
      %v4910 = vld [vmem:[%s9 + $0x28] sm:$0xff]
      %v4911 = vld [vmem:[%s9 + $0x30] sm:$0xff]
      %v4912 = vld [vmem:[%s9 + $0x38] sm:$0xff]
      %v4913 = vpack.c.bf16 %v4874, %v4873
      %v4914 = vpack.c.bf16 %v4876, %v4875
      %v4915 = vpack.c.bf16 %v4878, %v4877
      %v4916 = vpack.c.bf16 %v4880, %v4879
      %v4917 = vpack.c.bf16 %v4882, %v4881
      %v4918 = vpack.c.bf16 %v4884, %v4883
      %v4919 = vpack.c.bf16 %v4886, %v4885
      %v4920 = vpack.c.bf16 %v4888, %v4887
      %v4921 = vpack.c.bf16 %v4890, %v4889
      %v4922 = vpack.c.bf16 %v4892, %v4891
      %v4923 = vpack.c.bf16 %v4894, %v4893
      %v4924 = vpack.c.bf16 %v4896, %v4895
      %v4925 = vpack.c.bf16 %v4898, %v4897
      %v4926 = vpack.c.bf16 %v4900, %v4899
      %v4927 = vpack.c.bf16 %v4902, %v4901
      %v4928 = vpack.c.bf16 %v4904, %v4903
      %v4937 = vunpack.c.l.b16 %v4905
      %v4938 = vunpack.c.h.b16 %v4905
      %v4939 = vunpack.c.l.b16 %v4906
      %v4940 = vunpack.c.h.b16 %v4906
      %v4941 = vunpack.c.l.b16 %v4907
      %v4942 = vunpack.c.h.b16 %v4907
      %v4943 = vunpack.c.l.b16 %v4908
      %v4944 = vunpack.c.h.b16 %v4908
      %v4945 = vunpack.c.l.b16 %v4909
      %v4946 = vunpack.c.h.b16 %v4909
      %v4947 = vunpack.c.l.b16 %v4910
      %v4948 = vunpack.c.h.b16 %v4910
      %v4949 = vunpack.c.l.b16 %v4911
      %v4950 = vunpack.c.h.b16 %v4911
      %v4951 = vunpack.c.l.b16 %v4912
      %v4952 = vunpack.c.h.b16 %v4912
      %v4953 = vpack.c.b16 %v4939, %v4937
      %v4954 = vpack.c.b16 %v4940, %v4938
      %v4955 = vpack.c.b16 %v4943, %v4941
      %v4956 = vpack.c.b16 %v4944, %v4942
      %v4957 = vpack.c.b16 %v4947, %v4945
      %v4958 = vpack.c.b16 %v4948, %v4946
      %v4959 = vpack.c.b16 %v4951, %v4949
      %v4960 = vpack.c.b16 %v4952, %v4950
      %4969 = vmatprep.subr.bf16.mxu0 0
      %4970 = vmatpush1.bf16.msra.mxu0 %v4913
      %4971 = vmatprep.subr.bf16.mxu0 0
      %4972 = vmatpush1.bf16.msra.mxu0 %v4914
      %4973 = vmatprep.subr.bf16.mxu0 0
      %4974 = vmatpush1.bf16.msra.mxu0 %v4915
      %4975 = vmatprep.subr.bf16.mxu0 0
      %4976 = vmatpush1.bf16.msra.mxu0 %v4916
      %4977 = vmatprep.subr.bf16.mxu0 0
      %4978 = vmatpush1.bf16.msra.mxu0 %v4917
      %4979 = vmatprep.subr.bf16.mxu0 0
      %4980 = vmatpush1.bf16.msra.mxu0 %v4918
      %4981 = vmatprep.subr.bf16.mxu0 0
      %4982 = vmatpush1.bf16.msra.mxu0 %v4919
      %4983 = vmatprep.subr.bf16.mxu0 0
      %4984 = vmatpush1.bf16.msra.mxu0 %v4920
      %4985 = vmatprep.subr.bf16.mxu0 0
      %4986 = vmatpush1.bf16.msra.mxu0 %v4921
      %4987 = vmatprep.subr.bf16.mxu0 0
      %4988 = vmatpush1.bf16.msra.mxu0 %v4922
      %4989 = vmatprep.subr.bf16.mxu0 0
      %4990 = vmatpush1.bf16.msra.mxu0 %v4923
      %4991 = vmatprep.subr.bf16.mxu0 0
      %4992 = vmatpush1.bf16.msra.mxu0 %v4924
      %4993 = vmatprep.subr.bf16.mxu0 0
      %4994 = vmatpush1.bf16.msra.mxu0 %v4925
      %4995 = vmatprep.subr.bf16.mxu0 0
      %4996 = vmatpush1.bf16.msra.mxu0 %v4926
      %4997 = vmatprep.subr.bf16.mxu0 0
      %4998 = vmatpush1.bf16.msra.mxu0 %v4927
      %4999 = vmatprep.subr.bf16.mxu0 0
      %5000 = vmatpush1.bf16.msra.mxu0 %v4928
      %5001 = vmatprep.mubr.bf16.mxu0 %v4954
      %5002 = vmatmul.mubr.bf16.gmra.mrb[0].mxu0 %v4953
      %v5003 = vpop.f32.mrb[0].mxu0
      %v5004 = vadd.f32 0.0, %v5003
      %v5005 = vpop.f32.mrb[0].mxu0
      %v5006 = vpop.f32.mrb[0].mxu0
      %v5007 = vadd.f32 0.0, %v5006
      %v5008 = vpop.f32.mrb[0].mxu0
      %5009 = vmatprep.mubr.bf16.mxu0 %v4956
      %5010 = vmatmul.mubr.bf16.gmra.mrb[0].mxu0 %v4955
      %v5011 = vpop.f32.mrb[0].mxu0
      %v5012 = vadd.f32 0.0, %v5011
      %v5013 = vpop.f32.mrb[0].mxu0
      %v5014 = vpop.f32.mrb[0].mxu0
      %v5015 = vadd.f32 0.0, %v5014
      %v5016 = vpop.f32.mrb[0].mxu0
      %5017 = vmatprep.mubr.bf16.mxu0 %v4958
      %5018 = vmatmul.mubr.bf16.gmra.mrb[0].mxu0 %v4957
      %v5019 = vpop.f32.mrb[0].mxu0
      %v5020 = vadd.f32 0.0, %v5019
      %v5021 = vpop.f32.mrb[0].mxu0
      %v5022 = vpop.f32.mrb[0].mxu0
      %v5023 = vadd.f32 0.0, %v5022
      %v5024 = vpop.f32.mrb[0].mxu0
      %5025 = vmatprep.mubr.bf16.mxu0 %v4960
      %5026 = vmatmul.mubr.bf16.gmra.mrb[0].mxu0 %v4959
      %v5027 = vpop.f32.mrb[0].mxu0
      %v5028 = vadd.f32 0.0, %v5027
      %v5029 = vpop.f32.mrb[0].mxu0
      %v5030 = vpop.f32.mrb[0].mxu0
      %v5031 = vadd.f32 0.0, %v5030
      %v5032 = vpop.f32.mrb[0].mxu0
      %5033 = vdwg.mxu0
      %v5034 = vrot.slane %v5004, 7
      %v5035 = vrot.slane %v5007, 7
      %v5036 = vrot.slane %v5012, 7
      %v5037 = vrot.slane %v5015, 7
      %v5038 = vrot.slane %v5020, 7
      %v5039 = vrot.slane %v5023, 7
      %v5040 = vrot.slane %v5028, 7
      %v5041 = vrot.slane %v5031, 7
      %v5042 = vsel %vm1320, %v5040, %v5041
      %v5043 = vsel %vm1320, %v5039, %v5040
      %v5044 = vsel %vm1320, %v5038, %v5039
      %v5045 = vsel %vm1320, %v5037, %v5038
      %v5046 = vsel %vm1320, %v5036, %v5037
      %v5047 = vsel %vm1320, %v5035, %v5036
      %v5048 = vsel %vm1320, %v5034, %v5035
      %v5049 = vsel %vm1320, %v5041, %v5034
      %5051 = vset.pattern.permute.xlu0 0
      %5052 = vperm.xlu0 %5051, %v1244
      %v5053 = vpop.permute.xlu0 %5052
      %5056 = vset.pattern.permute.xlu0 0
      %5057 = vperm.xlu0 %5056, %v1245
      %v5058 = vpop.permute.xlu0 %5057
      %5061 = vset.pattern.permute.xlu0 0
      %5062 = vperm.xlu0 %5061, %v1246
      %v5063 = vpop.permute.xlu0 %5062
      %5066 = vset.pattern.permute.xlu0 0
      %5067 = vperm.xlu0 %5066, %v1247
      %v5068 = vpop.permute.xlu0 %5067
      %5071 = vset.pattern.permute.xlu0 0
      %5072 = vperm.xlu0 %5071, %v1248
      %v5073 = vpop.permute.xlu0 %5072
      %5076 = vset.pattern.permute.xlu0 0
      %5077 = vperm.xlu0 %5076, %v1249
      %v5078 = vpop.permute.xlu0 %5077
      %5081 = vset.pattern.permute.xlu0 0
      %5082 = vperm.xlu0 %5081, %v1250
      %v5083 = vpop.permute.xlu0 %5082
      %5086 = vset.pattern.permute.xlu0 0
      %5087 = vperm.xlu0 %5086, %v1251
      %v5088 = vpop.permute.xlu0 %5087
      %v5090 = vmul.f32 %v5042, %v5053
      %v5091 = vmul.f32 %v5049, %v5058
      %v5092 = vmul.f32 %v5048, %v5063
      %v5093 = vmul.f32 %v5047, %v5068
      %v5094 = vmul.f32 %v5046, %v5073
      %v5095 = vmul.f32 %v5045, %v5078
      %v5096 = vmul.f32 %v5044, %v5083
      %v5097 = vmul.f32 %v5043, %v5088
      %5098 = vset.pattern.permute.xlu0 1
      %5099 = vperm.xlu0 %5098, %v1244
      %v5100 = vpop.permute.xlu0 %5099
      %5102 = vset.pattern.permute.xlu0 1
      %5103 = vperm.xlu0 %5102, %v1245
      %v5104 = vpop.permute.xlu0 %5103
      %5106 = vset.pattern.permute.xlu0 1
      %5107 = vperm.xlu0 %5106, %v1246
      %v5108 = vpop.permute.xlu0 %5107
      %5110 = vset.pattern.permute.xlu0 1
      %5111 = vperm.xlu0 %5110, %v1247
      %v5112 = vpop.permute.xlu0 %5111
      %5114 = vset.pattern.permute.xlu0 1
      %5115 = vperm.xlu0 %5114, %v1248
      %v5116 = vpop.permute.xlu0 %5115
      %5118 = vset.pattern.permute.xlu0 1
      %5119 = vperm.xlu0 %5118, %v1249
      %v5120 = vpop.permute.xlu0 %5119
      %5122 = vset.pattern.permute.xlu0 1
      %5123 = vperm.xlu0 %5122, %v1250
      %v5124 = vpop.permute.xlu0 %5123
      %5126 = vset.pattern.permute.xlu0 1
      %5127 = vperm.xlu0 %5126, %v1251
      %v5128 = vpop.permute.xlu0 %5127
      %v5130 = vmul.f32 %v5031, %v5100
      %v5131 = vmul.f32 %v5004, %v5104
      %v5132 = vmul.f32 %v5007, %v5108
      %v5133 = vmul.f32 %v5012, %v5112
      %v5134 = vmul.f32 %v5015, %v5116
      %v5135 = vmul.f32 %v5020, %v5120
      %v5136 = vmul.f32 %v5023, %v5124
      %v5137 = vmul.f32 %v5028, %v5128
      %v5138 = vrot.slane %v5004, 1
      %v5139 = vrot.slane %v5007, 1
      %v5140 = vrot.slane %v5012, 1
      %v5141 = vrot.slane %v5015, 1
      %v5142 = vrot.slane %v5020, 1
      %v5143 = vrot.slane %v5023, 1
      %v5144 = vrot.slane %v5028, 1
      %v5145 = vrot.slane %v5031, 1
      %v5146 = vsel %vm1577, %v5144, %v5145
      %v5147 = vsel %vm1577, %v5143, %v5144
      %v5148 = vsel %vm1577, %v5142, %v5143
      %v5149 = vsel %vm1577, %v5141, %v5142
      %v5150 = vsel %vm1577, %v5140, %v5141
      %v5151 = vsel %vm1577, %v5139, %v5140
      %v5152 = vsel %vm1577, %v5138, %v5139
      %v5153 = vsel %vm1577, %v5145, %v5138
      %5154 = vset.pattern.permute.xlu0 2
      %5155 = vperm.xlu0 %5154, %v1244
      %v5156 = vpop.permute.xlu0 %5155
      %5158 = vset.pattern.permute.xlu0 2
      %5159 = vperm.xlu0 %5158, %v1245
      %v5160 = vpop.permute.xlu0 %5159
      %5162 = vset.pattern.permute.xlu0 2
      %5163 = vperm.xlu0 %5162, %v1246
      %v5164 = vpop.permute.xlu0 %5163
      %5166 = vset.pattern.permute.xlu0 2
      %5167 = vperm.xlu0 %5166, %v1247
      %v5168 = vpop.permute.xlu0 %5167
      %5170 = vset.pattern.permute.xlu0 2
      %5171 = vperm.xlu0 %5170, %v1248
      %v5172 = vpop.permute.xlu0 %5171
      %5174 = vset.pattern.permute.xlu0 2
      %5175 = vperm.xlu0 %5174, %v1249
      %v5176 = vpop.permute.xlu0 %5175
      %5178 = vset.pattern.permute.xlu0 2
      %5179 = vperm.xlu0 %5178, %v1250
      %v5180 = vpop.permute.xlu0 %5179
      %5182 = vset.pattern.permute.xlu0 2
      %5183 = vperm.xlu0 %5182, %v1251
      %v5184 = vpop.permute.xlu0 %5183
      %v5186 = vmul.f32 %v5153, %v5156
      %v5187 = vmul.f32 %v5152, %v5160
      %v5188 = vmul.f32 %v5151, %v5164
      %v5189 = vmul.f32 %v5150, %v5168
      %v5190 = vmul.f32 %v5149, %v5172
      %v5191 = vmul.f32 %v5148, %v5176
      %v5192 = vmul.f32 %v5147, %v5180
      %v5193 = vmul.f32 %v5146, %v5184
      %5194 = vset.pattern.permute.xlu0 3
      %5195 = vperm.xlu0 %5194, %v1244
      %v5196 = vpop.permute.xlu0 %5195
      %5198 = vset.pattern.permute.xlu0 3
      %5199 = vperm.xlu0 %5198, %v1245
      %v5200 = vpop.permute.xlu0 %5199
      %5202 = vset.pattern.permute.xlu0 3
      %5203 = vperm.xlu0 %5202, %v1246
      %v5204 = vpop.permute.xlu0 %5203
      %5206 = vset.pattern.permute.xlu0 3
      %5207 = vperm.xlu0 %5206, %v1247
      %v5208 = vpop.permute.xlu0 %5207
      %5210 = vset.pattern.permute.xlu0 3
      %5211 = vperm.xlu0 %5210, %v1248
      %v5212 = vpop.permute.xlu0 %5211
      %5214 = vset.pattern.permute.xlu0 3
      %5215 = vperm.xlu0 %5214, %v1249
      %v5216 = vpop.permute.xlu0 %5215
      %5218 = vset.pattern.permute.xlu0 3
      %5219 = vperm.xlu0 %5218, %v1250
      %v5220 = vpop.permute.xlu0 %5219
      %5222 = vset.pattern.permute.xlu0 3
      %5223 = vperm.xlu0 %5222, %v1251
      %v5224 = vpop.permute.xlu0 %5223
      %v5226 = vmul.f32 %v5049, %v5196
      %v5227 = vmul.f32 %v5048, %v5200
      %v5228 = vmul.f32 %v5047, %v5204
      %v5229 = vmul.f32 %v5046, %v5208
      %v5230 = vmul.f32 %v5045, %v5212
      %v5231 = vmul.f32 %v5044, %v5216
      %v5232 = vmul.f32 %v5043, %v5220
      %v5233 = vmul.f32 %v5042, %v5224
      %5234 = vset.pattern.permute.xlu0 5
      %5235 = vperm.xlu0 %5234, %v1244
      %v5236 = vpop.permute.xlu0 %5235
      %5238 = vset.pattern.permute.xlu0 5
      %5239 = vperm.xlu0 %5238, %v1245
      %v5240 = vpop.permute.xlu0 %5239
      %5242 = vset.pattern.permute.xlu0 5
      %5243 = vperm.xlu0 %5242, %v1246
      %v5244 = vpop.permute.xlu0 %5243
      %5246 = vset.pattern.permute.xlu0 5
      %5247 = vperm.xlu0 %5246, %v1247
      %v5248 = vpop.permute.xlu0 %5247
      %5250 = vset.pattern.permute.xlu0 5
      %5251 = vperm.xlu0 %5250, %v1248
      %v5252 = vpop.permute.xlu0 %5251
      %5254 = vset.pattern.permute.xlu0 5
      %5255 = vperm.xlu0 %5254, %v1249
      %v5256 = vpop.permute.xlu0 %5255
      %5258 = vset.pattern.permute.xlu0 5
      %5259 = vperm.xlu0 %5258, %v1250
      %v5260 = vpop.permute.xlu0 %5259
      %5262 = vset.pattern.permute.xlu0 5
      %5263 = vperm.xlu0 %5262, %v1251
      %v5264 = vpop.permute.xlu0 %5263
      %v5266 = vmul.f32 %v5152, %v5236
      %v5267 = vmul.f32 %v5151, %v5240
      %v5268 = vmul.f32 %v5150, %v5244
      %v5269 = vmul.f32 %v5149, %v5248
      %v5270 = vmul.f32 %v5148, %v5252
      %v5271 = vmul.f32 %v5147, %v5256
      %v5272 = vmul.f32 %v5146, %v5260
      %v5273 = vmul.f32 %v5153, %v5264
      %5274 = vset.pattern.permute.xlu0 6
      %5275 = vperm.xlu0 %5274, %v1244
      %v5276 = vpop.permute.xlu0 %5275
      %5278 = vset.pattern.permute.xlu0 6
      %5279 = vperm.xlu0 %5278, %v1245
      %v5280 = vpop.permute.xlu0 %5279
      %5282 = vset.pattern.permute.xlu0 6
      %5283 = vperm.xlu0 %5282, %v1246
      %v5284 = vpop.permute.xlu0 %5283
      %5286 = vset.pattern.permute.xlu0 6
      %5287 = vperm.xlu0 %5286, %v1247
      %v5288 = vpop.permute.xlu0 %5287
      %5290 = vset.pattern.permute.xlu0 6
      %5291 = vperm.xlu0 %5290, %v1248
      %v5292 = vpop.permute.xlu0 %5291
      %5294 = vset.pattern.permute.xlu0 6
      %5295 = vperm.xlu0 %5294, %v1249
      %v5296 = vpop.permute.xlu0 %5295
      %5298 = vset.pattern.permute.xlu0 6
      %5299 = vperm.xlu0 %5298, %v1250
      %v5300 = vpop.permute.xlu0 %5299
      %5302 = vset.pattern.permute.xlu0 6
      %5303 = vperm.xlu0 %5302, %v1251
      %v5304 = vpop.permute.xlu0 %5303
      %v5306 = vmul.f32 %v5048, %v5276
      %v5307 = vmul.f32 %v5047, %v5280
      %v5308 = vmul.f32 %v5046, %v5284
      %v5309 = vmul.f32 %v5045, %v5288
      %v5310 = vmul.f32 %v5044, %v5292
      %v5311 = vmul.f32 %v5043, %v5296
      %v5312 = vmul.f32 %v5042, %v5300
      %v5313 = vmul.f32 %v5049, %v5304
      %5314 = vset.pattern.permute.xlu0 7
      %5315 = vperm.xlu0 %5314, %v1244
      %v5316 = vpop.permute.xlu0 %5315
      %5318 = vset.pattern.permute.xlu0 7
      %5319 = vperm.xlu0 %5318, %v1245
      %v5320 = vpop.permute.xlu0 %5319
      %5322 = vset.pattern.permute.xlu0 7
      %5323 = vperm.xlu0 %5322, %v1246
      %v5324 = vpop.permute.xlu0 %5323
      %5326 = vset.pattern.permute.xlu0 7
      %5327 = vperm.xlu0 %5326, %v1247
      %v5328 = vpop.permute.xlu0 %5327
      %5330 = vset.pattern.permute.xlu0 7
      %5331 = vperm.xlu0 %5330, %v1248
      %v5332 = vpop.permute.xlu0 %5331
      %5334 = vset.pattern.permute.xlu0 7
      %5335 = vperm.xlu0 %5334, %v1249
      %v5336 = vpop.permute.xlu0 %5335
      %5338 = vset.pattern.permute.xlu0 7
      %5339 = vperm.xlu0 %5338, %v1250
      %v5340 = vpop.permute.xlu0 %5339
      %5342 = vset.pattern.permute.xlu0 7
      %5343 = vperm.xlu0 %5342, %v1251
      %v5344 = vpop.permute.xlu0 %5343
      %v5346 = vmul.f32 %v5007, %v5316
      %v5347 = vmul.f32 %v5012, %v5320
      %v5348 = vmul.f32 %v5015, %v5324
      %v5349 = vmul.f32 %v5020, %v5328
      %v5350 = vmul.f32 %v5023, %v5332
      %v5351 = vmul.f32 %v5028, %v5336
      %v5352 = vmul.f32 %v5031, %v5340
      %v5353 = vmul.f32 %v5004, %v5344
      %5354 = vset.pattern.permute.xlu0 8
      %5355 = vperm.xlu0 %5354, %v1244
      %v5356 = vpop.permute.xlu0 %5355
      %5358 = vset.pattern.permute.xlu0 8
      %5359 = vperm.xlu0 %5358, %v1245
      %v5360 = vpop.permute.xlu0 %5359
      %5362 = vset.pattern.permute.xlu0 8
      %5363 = vperm.xlu0 %5362, %v1246
      %v5364 = vpop.permute.xlu0 %5363
      %5366 = vset.pattern.permute.xlu0 8
      %5367 = vperm.xlu0 %5366, %v1247
      %v5368 = vpop.permute.xlu0 %5367
      %5370 = vset.pattern.permute.xlu0 8
      %5371 = vperm.xlu0 %5370, %v1248
      %v5372 = vpop.permute.xlu0 %5371
      %5374 = vset.pattern.permute.xlu0 8
      %5375 = vperm.xlu0 %5374, %v1249
      %v5376 = vpop.permute.xlu0 %5375
      %5378 = vset.pattern.permute.xlu0 8
      %5379 = vperm.xlu0 %5378, %v1250
      %v5380 = vpop.permute.xlu0 %5379
      %5382 = vset.pattern.permute.xlu0 8
      %5383 = vperm.xlu0 %5382, %v1251
      %v5384 = vpop.permute.xlu0 %5383
      %v5386 = vmul.f32 %v5151, %v5356
      %v5387 = vmul.f32 %v5150, %v5360
      %v5388 = vmul.f32 %v5149, %v5364
      %v5389 = vmul.f32 %v5148, %v5368
      %v5390 = vmul.f32 %v5147, %v5372
      %v5391 = vmul.f32 %v5146, %v5376
      %v5392 = vmul.f32 %v5153, %v5380
      %v5393 = vmul.f32 %v5152, %v5384
      %5402 = vrot.lane.b32.xlu0 %v5130, 32
      %v5403 = vpop.permute.xlu0 %5402
      %5404 = vrot.lane.b32.xlu0 %v5131, 32
      %v5405 = vpop.permute.xlu0 %5404
      %5406 = vrot.lane.b32.xlu0 %v5132, 32
      %v5407 = vpop.permute.xlu0 %5406
      %5408 = vrot.lane.b32.xlu0 %v5133, 32
      %v5409 = vpop.permute.xlu0 %5408
      %5410 = vrot.lane.b32.xlu0 %v5134, 32
      %v5411 = vpop.permute.xlu0 %5410
      %5412 = vrot.lane.b32.xlu0 %v5135, 32
      %v5413 = vpop.permute.xlu0 %5412
      %5414 = vrot.lane.b32.xlu0 %v5136, 32
      %v5415 = vpop.permute.xlu0 %5414
      %5416 = vrot.lane.b32.xlu0 %v5137, 32
      %v5417 = vpop.permute.xlu0 %5416
      %5434 = vrot.lane.b32.xlu0 %v5186, 64
      %v5435 = vpop.permute.xlu0 %5434
      %5436 = vrot.lane.b32.xlu0 %v5187, 64
      %v5437 = vpop.permute.xlu0 %5436
      %5438 = vrot.lane.b32.xlu0 %v5188, 64
      %v5439 = vpop.permute.xlu0 %5438
      %5440 = vrot.lane.b32.xlu0 %v5189, 64
      %v5441 = vpop.permute.xlu0 %5440
      %5442 = vrot.lane.b32.xlu0 %v5190, 64
      %v5443 = vpop.permute.xlu0 %5442
      %5444 = vrot.lane.b32.xlu0 %v5191, 64
      %v5445 = vpop.permute.xlu0 %5444
      %5446 = vrot.lane.b32.xlu0 %v5192, 64
      %v5447 = vpop.permute.xlu0 %5446
      %5448 = vrot.lane.b32.xlu0 %v5193, 64
      %v5449 = vpop.permute.xlu0 %5448
      %5466 = vrot.lane.b32.xlu0 %v5226, 96
      %v5467 = vpop.permute.xlu0 %5466
      %5468 = vrot.lane.b32.xlu0 %v5227, 96
      %v5469 = vpop.permute.xlu0 %5468
      %5470 = vrot.lane.b32.xlu0 %v5228, 96
      %v5471 = vpop.permute.xlu0 %5470
      %5472 = vrot.lane.b32.xlu0 %v5229, 96
      %v5473 = vpop.permute.xlu0 %5472
      %5474 = vrot.lane.b32.xlu0 %v5230, 96
      %v5475 = vpop.permute.xlu0 %5474
      %5476 = vrot.lane.b32.xlu0 %v5231, 96
      %v5477 = vpop.permute.xlu0 %5476
      %5478 = vrot.lane.b32.xlu0 %v5232, 96
      %v5479 = vpop.permute.xlu0 %5478
      %5480 = vrot.lane.b32.xlu0 %v5233, 96
      %v5481 = vpop.permute.xlu0 %5480
      %5498 = vrot.lane.b32.xlu0 %v5266, 32
      %v5499 = vpop.permute.xlu0 %5498
      %5500 = vrot.lane.b32.xlu0 %v5267, 32
      %v5501 = vpop.permute.xlu0 %5500
      %5502 = vrot.lane.b32.xlu0 %v5268, 32
      %v5503 = vpop.permute.xlu0 %5502
      %5504 = vrot.lane.b32.xlu0 %v5269, 32
      %v5505 = vpop.permute.xlu0 %5504
      %5506 = vrot.lane.b32.xlu0 %v5270, 32
      %v5507 = vpop.permute.xlu0 %5506
      %5508 = vrot.lane.b32.xlu0 %v5271, 32
      %v5509 = vpop.permute.xlu0 %5508
      %5510 = vrot.lane.b32.xlu0 %v5272, 32
      %v5511 = vpop.permute.xlu0 %5510
      %5512 = vrot.lane.b32.xlu0 %v5273, 32
      %v5513 = vpop.permute.xlu0 %5512
      %5530 = vrot.lane.b32.xlu0 %v5306, 64
      %v5531 = vpop.permute.xlu0 %5530
      %5532 = vrot.lane.b32.xlu0 %v5307, 64
      %v5533 = vpop.permute.xlu0 %5532
      %5534 = vrot.lane.b32.xlu0 %v5308, 64
      %v5535 = vpop.permute.xlu0 %5534
      %5536 = vrot.lane.b32.xlu0 %v5309, 64
      %v5537 = vpop.permute.xlu0 %5536
      %5538 = vrot.lane.b32.xlu0 %v5310, 64
      %v5539 = vpop.permute.xlu0 %5538
      %5540 = vrot.lane.b32.xlu0 %v5311, 64
      %v5541 = vpop.permute.xlu0 %5540
      %5542 = vrot.lane.b32.xlu0 %v5312, 64
      %v5543 = vpop.permute.xlu0 %5542
      %5544 = vrot.lane.b32.xlu0 %v5313, 64
      %v5545 = vpop.permute.xlu0 %5544
      %5562 = vrot.lane.b32.xlu0 %v5346, 96
      %v5563 = vpop.permute.xlu0 %5562
      %5564 = vrot.lane.b32.xlu0 %v5347, 96
      %v5565 = vpop.permute.xlu0 %5564
      %5566 = vrot.lane.b32.xlu0 %v5348, 96
      %v5567 = vpop.permute.xlu0 %5566
      %5568 = vrot.lane.b32.xlu0 %v5349, 96
      %v5569 = vpop.permute.xlu0 %5568
      %5570 = vrot.lane.b32.xlu0 %v5350, 96
      %v5571 = vpop.permute.xlu0 %5570
      %5572 = vrot.lane.b32.xlu0 %v5351, 96
      %v5573 = vpop.permute.xlu0 %5572
      %5574 = vrot.lane.b32.xlu0 %v5352, 96
      %v5575 = vpop.permute.xlu0 %5574
      %5576 = vrot.lane.b32.xlu0 %v5353, 96
      %v5577 = vpop.permute.xlu0 %5576
      %vm5586 = vcmask 261120
      %v5587 = vsel %vm5586, %v5090, %v5403
      %v5588 = vsel %vm5586, %v5091, %v5405
      %v5589 = vsel %vm5586, %v5092, %v5407
      %v5590 = vsel %vm5586, %v5093, %v5409
      %v5591 = vsel %vm5586, %v5094, %v5411
      %v5592 = vsel %vm5586, %v5095, %v5413
      %v5593 = vsel %vm5586, %v5096, %v5415
      %v5594 = vsel %vm5586, %v5097, %v5417
      %vm5595 = vcmask 523264
      %v5596 = vsel %vm5595, %v5587, %v5435
      %v5597 = vsel %vm5595, %v5588, %v5437
      %v5598 = vsel %vm5595, %v5589, %v5439
      %v5599 = vsel %vm5595, %v5590, %v5441
      %v5600 = vsel %vm5595, %v5591, %v5443
      %v5601 = vsel %vm5595, %v5592, %v5445
      %v5602 = vsel %vm5595, %v5593, %v5447
      %v5603 = vsel %vm5595, %v5594, %v5449
      %vm5604 = vcmask 785408
      %v5605 = vsel %vm5604, %v5596, %v5467
      %v5606 = vsel %vm5604, %v5597, %v5469
      %v5607 = vsel %vm5604, %v5598, %v5471
      %v5608 = vsel %vm5604, %v5599, %v5473
      %v5609 = vsel %vm5604, %v5600, %v5475
      %v5610 = vsel %vm5604, %v5601, %v5477
      %v5611 = vsel %vm5604, %v5602, %v5479
      %v5612 = vsel %vm5604, %v5603, %v5481
      %v5613 = vsel %vm5586, %v5004, %v5499
      %v5614 = vsel %vm5586, %v5007, %v5501
      %v5615 = vsel %vm5586, %v5012, %v5503
      %v5616 = vsel %vm5586, %v5015, %v5505
      %v5617 = vsel %vm5586, %v5020, %v5507
      %v5618 = vsel %vm5586, %v5023, %v5509
      %v5619 = vsel %vm5586, %v5028, %v5511
      %v5620 = vsel %vm5586, %v5031, %v5513
      %v5621 = vsel %vm5595, %v5613, %v5531
      %v5622 = vsel %vm5595, %v5614, %v5533
      %v5623 = vsel %vm5595, %v5615, %v5535
      %v5624 = vsel %vm5595, %v5616, %v5537
      %v5625 = vsel %vm5595, %v5617, %v5539
      %v5626 = vsel %vm5595, %v5618, %v5541
      %v5627 = vsel %vm5595, %v5619, %v5543
      %v5628 = vsel %vm5595, %v5620, %v5545
      %v5629 = vsel %vm5604, %v5621, %v5563
      %v5630 = vsel %vm5604, %v5622, %v5565
      %v5631 = vsel %vm5604, %v5623, %v5567
      %v5632 = vsel %vm5604, %v5624, %v5569
      %v5633 = vsel %vm5604, %v5625, %v5571
      %v5634 = vsel %vm5604, %v5626, %v5573
      %v5635 = vsel %vm5604, %v5627, %v5575
      %v5636 = vsel %vm5604, %v5628, %v5577
      %v5637 = vpack.c.bf16 %v5606, %v5605
      %v5638 = vpack.c.bf16 %v5630, %v5629
      %v5639 = vpack.c.bf16 %v5387, %v5386
      %v5640 = vpack.c.bf16 %v5608, %v5607
      %v5641 = vpack.c.bf16 %v5632, %v5631
      %v5642 = vpack.c.bf16 %v5389, %v5388
      %v5643 = vpack.c.bf16 %v5610, %v5609
      %v5644 = vpack.c.bf16 %v5634, %v5633
      %v5645 = vpack.c.bf16 %v5391, %v5390
      %v5646 = vpack.c.bf16 %v5612, %v5611
      %v5647 = vpack.c.bf16 %v5636, %v5635
      %v5648 = vpack.c.bf16 %v5393, %v5392
      %v5649 = vld [vmem:[%s21] sm:$0xf]
      %v5650 = vld [vmem:[%s21 + $0x4] sm:$0xf]
      %v5651 = vld [vmem:[%s21 + $0x8] sm:$0xf]
      %v5652 = vld [vmem:[%s21 + $0xc] sm:$0xf]
      %v5653 = vld [vmem:[%s21 + $0x10] sm:$0xf]
      %v5654 = vld [vmem:[%s21 + $0x14] sm:$0xf]
      %v5655 = vld [vmem:[%s21 + $0x18] sm:$0xf]
      %v5656 = vld [vmem:[%s21 + $0x1c] sm:$0xf]
      %v5657 = vld [vmem:[%s21 + $0x20] sm:$0xf]
      %v5658 = vld [vmem:[%s21 + $0x24] sm:$0xf]
      %v5659 = vld [vmem:[%s21 + $0x28] sm:$0xf]
      %v5660 = vld [vmem:[%s21 + $0x2c] sm:$0xf]
      %v5661 = vld [vmem:[%s21 + $0x30] sm:$0xf]
      %v5662 = vld [vmem:[%s21 + $0x34] sm:$0xf]
      %v5663 = vld [vmem:[%s21 + $0x38] sm:$0xf]
      %v5664 = vld [vmem:[%s21 + $0x3c] sm:$0xf]
      %v5665 = vld [vmem:[%s21 + $0x40] sm:$0xf]
      %v5666 = vld [vmem:[%s21 + $0x44] sm:$0xf]
      %v5667 = vld [vmem:[%s21 + $0x48] sm:$0xf]
      %v5668 = vld [vmem:[%s21 + $0x4c] sm:$0xf]
      %v5669 = vld [vmem:[%s21 + $0x50] sm:$0xf]
      %v5670 = vld [vmem:[%s21 + $0x54] sm:$0xf]
      %v5671 = vld [vmem:[%s21 + $0x58] sm:$0xf]
      %v5672 = vld [vmem:[%s21 + $0x5c] sm:$0xf]
      %v5673 = vld [vmem:[%s21 + $0x60] sm:$0xf]
      %v5674 = vld [vmem:[%s21 + $0x64] sm:$0xf]
      %v5675 = vld [vmem:[%s21 + $0x68] sm:$0xf]
      %v5676 = vld [vmem:[%s21 + $0x6c] sm:$0xf]
      %v5677 = vld [vmem:[%s21 + $0x70] sm:$0xf]
      %v5678 = vld [vmem:[%s21 + $0x74] sm:$0xf]
      %v5679 = vld [vmem:[%s21 + $0x78] sm:$0xf]
      %v5680 = vld [vmem:[%s21 + $0x7c] sm:$0xf]
      %v5681 = vld [vmem:[%s21 + $0x80] sm:$0xf]
      %v5682 = vld [vmem:[%s21 + $0x84] sm:$0xf]
      %v5683 = vld [vmem:[%s21 + $0x88] sm:$0xf]
      %v5684 = vld [vmem:[%s21 + $0x8c] sm:$0xf]
      %v5685 = vld [vmem:[%s23] sm:$0x1]
      %v5687 = vlaneseq
      %v5688 = vshrl.u32 %v5687, 7
      %v5689 = vsub.s32 0, %v5688
      %v5690 = vrot.slane %v5685, %v5689
      %v5728 = vunpack.c.l.b16 %v5649
      %v5729 = vunpack.c.l.b16 %v5650
      %v5730 = vunpack.c.l.b16 %v5651
      %v5731 = vunpack.c.l.b16 %v5652
      %v5732 = vunpack.c.l.b16 %v5653
      %v5733 = vunpack.c.l.b16 %v5654
      %v5734 = vunpack.c.l.b16 %v5655
      %v5735 = vunpack.c.l.b16 %v5656
      %v5736 = vunpack.c.l.b16 %v5657
      %v5737 = vunpack.c.l.b16 %v5658
      %v5738 = vunpack.c.l.b16 %v5659
      %v5739 = vunpack.c.l.b16 %v5660
      %v5740 = vunpack.c.l.b16 %v5661
      %v5741 = vunpack.c.l.b16 %v5662
      %v5742 = vunpack.c.l.b16 %v5663
      %v5743 = vunpack.c.l.b16 %v5664
      %v5744 = vunpack.c.l.b16 %v5665
      %v5745 = vunpack.c.l.b16 %v5666
      %v5746 = vunpack.c.l.b16 %v5667
      %v5747 = vunpack.c.l.b16 %v5668
      %v5748 = vunpack.c.l.b16 %v5669
      %v5749 = vunpack.c.l.b16 %v5670
      %v5750 = vunpack.c.l.b16 %v5671
      %v5751 = vunpack.c.l.b16 %v5672
      %v5752 = vunpack.c.l.b16 %v5673
      %v5753 = vunpack.c.l.b16 %v5674
      %v5754 = vunpack.c.l.b16 %v5675
      %v5755 = vunpack.c.l.b16 %v5676
      %v5756 = vunpack.c.l.b16 %v5677
      %v5757 = vunpack.c.l.b16 %v5678
      %v5758 = vunpack.c.l.b16 %v5679
      %v5759 = vunpack.c.l.b16 %v5680
      %v5760 = vunpack.c.l.b16 %v5681
      %v5761 = vunpack.c.l.b16 %v5682
      %v5762 = vunpack.c.l.b16 %v5683
      %v5763 = vunpack.c.l.b16 %v5684
      %v5764 = vpack.c.b16 %v5729, %v5728
      %v5765 = vpack.c.b16 %v5731, %v5730
      %v5766 = vpack.c.b16 %v5733, %v5732
      %v5767 = vpack.c.b16 %v5735, %v5734
      %v5768 = vpack.c.b16 %v5737, %v5736
      %v5769 = vpack.c.b16 %v5739, %v5738
      %v5770 = vpack.c.b16 %v5741, %v5740
      %v5771 = vpack.c.b16 %v5743, %v5742
      %v5772 = vpack.c.b16 %v5745, %v5744
      %v5773 = vpack.c.b16 %v5747, %v5746
      %v5774 = vpack.c.b16 %v5749, %v5748
      %v5775 = vpack.c.b16 %v5751, %v5750
      %v5776 = vpack.c.b16 %v5753, %v5752
      %v5777 = vpack.c.b16 %v5755, %v5754
      %v5778 = vpack.c.b16 %v5757, %v5756
      %v5779 = vpack.c.b16 %v5759, %v5758
      %v5780 = vpack.c.b16 %v5761, %v5760
      %v5781 = vpack.c.b16 %v5763, %v5762
      %v5801 = vsel %vm5586, %v5639, 0
      %v5804 = vsel %vm5586, %v5642, 0
      %v5807 = vsel %vm5586, %v5645, 0
      %v5810 = vsel %vm5586, %v5648, 0
      %5812 = vmatprep.subr.bf16.mxu0 0
      %5813 = vmatpush1.bf16.msra.mxu0 %v5764
      %5814 = vmatprep.subr.bf16.mxu0 0
      %5815 = vmatpush1.bf16.msra.mxu0 %v5765
      %5816 = vmatprep.subr.bf16.mxu0 0
      %5817 = vmatpush1.bf16.msra.mxu0 %v5766
      %5818 = vmatprep.subr.bf16.mxu0 0
      %5819 = vmatpush1.bf16.msra.mxu0 %v5767
      %5820 = vmatprep.subr.bf16.mxu0 0
      %5821 = vmatpush1.bf16.msra.mxu0 %v5768
      %5822 = vmatprep.subr.bf16.mxu0 0
      %5823 = vmatpush1.bf16.msra.mxu0 %v5769
      %5824 = vmatprep.subr.bf16.mxu0 0
      %5825 = vmatpush1.bf16.msra.mxu0 %v5770
      %5826 = vmatprep.subr.bf16.mxu0 0
      %5827 = vmatpush1.bf16.msra.mxu0 %v5771
      %5828 = vmatprep.subr.bf16.mxu0 0
      %5829 = vmatpush1.bf16.msra.mxu0 %v5772
      %5830 = vmatprep.subr.bf16.mxu0 0
      %5831 = vmatpush1.bf16.msra.mxu0 %v5773
      %5832 = vmatprep.subr.bf16.mxu0 0
      %5833 = vmatpush1.bf16.msra.mxu0 %v5774
      %5834 = vmatprep.subr.bf16.mxu0 0
      %5835 = vmatpush1.bf16.msra.mxu0 %v5775
      %5836 = vmatprep.subr.bf16.mxu0 0
      %5837 = vmatpush1.bf16.msra.mxu0 %v5776
      %5838 = vmatprep.subr.bf16.mxu0 0
      %5839 = vmatpush1.bf16.msra.mxu0 %v5777
      %5840 = vmatprep.subr.bf16.mxu0 0
      %5841 = vmatpush1.bf16.msra.mxu0 %v5778
      %5842 = vmatprep.subr.bf16.mxu0 0
      %5843 = vmatpush1.bf16.msra.mxu0 %v5779
      %5844 = vmatprep.mubr.bf16.mxu0 %v5638
      %5845 = vmatmul.mubr.bf16.gmra.mrb[0].mxu0 %v5637
      %v5846 = vpop.f32.mrb[0].mxu0
      %v5847 = vadd.f32 %v5690, %v5846
      %v5848 = vpop.f32.mrb[0].mxu0
      %v5849 = vpop.f32.mrb[0].mxu0
      %v5850 = vadd.f32 %v5690, %v5849
      %v5851 = vpop.f32.mrb[0].mxu0
      %5852 = vmatprep.mubr.bf16.mxu0 %v5641
      %5853 = vmatmul.mubr.bf16.gmra.mrb[0].mxu0 %v5640
      %v5854 = vpop.f32.mrb[0].mxu0
      %v5855 = vadd.f32 %v5690, %v5854
      %v5856 = vpop.f32.mrb[0].mxu0
      %v5857 = vpop.f32.mrb[0].mxu0
      %v5858 = vadd.f32 %v5690, %v5857
      %v5859 = vpop.f32.mrb[0].mxu0
      %5860 = vmatprep.mubr.bf16.mxu0 %v5644
      %5861 = vmatmul.mubr.bf16.gmra.mrb[0].mxu0 %v5643
      %v5862 = vpop.f32.mrb[0].mxu0
      %v5863 = vadd.f32 %v5690, %v5862
      %v5864 = vpop.f32.mrb[0].mxu0
      %v5865 = vpop.f32.mrb[0].mxu0
      %v5866 = vadd.f32 %v5690, %v5865
      %v5867 = vpop.f32.mrb[0].mxu0
      %5868 = vmatprep.mubr.bf16.mxu0 %v5647
      %5869 = vmatmul.mubr.bf16.gmra.mrb[0].mxu0 %v5646
      %v5870 = vpop.f32.mrb[0].mxu0
      %v5871 = vadd.f32 %v5690, %v5870
      %v5872 = vpop.f32.mrb[0].mxu0
      %v5873 = vpop.f32.mrb[0].mxu0
      %v5874 = vadd.f32 %v5690, %v5873
      %v5875 = vpop.f32.mrb[0].mxu0
      %5876 = vdwg.mxu0
      %5877 = vmatprep.subr.bf16.mxu0 0
      %5878 = vmatpush1.bf16.msra.mxu0 %v5780
      %5879 = vmatprep.subr.bf16.mxu0 0
      %5880 = vmatpush1.bf16.msra.mxu0 %v5781
      %5881 = vmatprep.subr.bf16.mxu0 0
      %5882 = vmatpush1.bf16.msra.mxu0 0
      %5883 = vmatprep.subr.bf16.mxu0 0
      %5884 = vmatpush1.bf16.msra.mxu0 0
      %5885 = vmatprep.subr.bf16.mxu0 0
      %5886 = vmatpush1.bf16.msra.mxu0 0
      %5887 = vmatprep.subr.bf16.mxu0 0
      %5888 = vmatpush1.bf16.msra.mxu0 0
      %5889 = vmatprep.subr.bf16.mxu0 0
      %5890 = vmatpush1.bf16.msra.mxu0 0
      %5891 = vmatprep.subr.bf16.mxu0 0
      %5892 = vmatpush1.bf16.msra.mxu0 0
      %5893 = vmatprep.subr.bf16.mxu0 0
      %5894 = vmatpush1.bf16.msra.mxu0 0
      %5895 = vmatprep.subr.bf16.mxu0 0
      %5896 = vmatpush1.bf16.msra.mxu0 0
      %5897 = vmatprep.subr.bf16.mxu0 0
      %5898 = vmatpush1.bf16.msra.mxu0 0
      %5899 = vmatprep.subr.bf16.mxu0 0
      %5900 = vmatpush1.bf16.msra.mxu0 0
      %5901 = vmatprep.subr.bf16.mxu0 0
      %5902 = vmatpush1.bf16.msra.mxu0 0
      %5903 = vmatprep.subr.bf16.mxu0 0
      %5904 = vmatpush1.bf16.msra.mxu0 0
      %5905 = vmatprep.subr.bf16.mxu0 0
      %5906 = vmatpush1.bf16.msra.mxu0 0
      %5907 = vmatprep.subr.bf16.mxu0 0
      %5908 = vmatpush1.bf16.msra.mxu0 0
      %5909 = vmatprep.mubr.bf16.mxu0 0
      %5910 = vmatmul.mubr.bf16.gmra.mrb[0].mxu0 %v5801
      %v5911 = vpop.f32.mrb[0].mxu0
      %v5912 = vadd.f32 %v5847, %v5911
      %v5913 = vpop.f32.mrb[0].mxu0
      %v5914 = vpop.f32.mrb[0].mxu0
      %v5915 = vadd.f32 %v5850, %v5914
      %v5916 = vpop.f32.mrb[0].mxu0
      %5917 = vmatprep.mubr.bf16.mxu0 0
      %5918 = vmatmul.mubr.bf16.gmra.mrb[0].mxu0 %v5804
      %v5919 = vpop.f32.mrb[0].mxu0
      %v5920 = vadd.f32 %v5855, %v5919
      %v5921 = vpop.f32.mrb[0].mxu0
      %v5922 = vpop.f32.mrb[0].mxu0
      %v5923 = vadd.f32 %v5858, %v5922
      %v5924 = vpop.f32.mrb[0].mxu0
      %5925 = vmatprep.mubr.bf16.mxu0 0
      %5926 = vmatmul.mubr.bf16.gmra.mrb[0].mxu0 %v5807
      %v5927 = vpop.f32.mrb[0].mxu0
      %v5928 = vadd.f32 %v5863, %v5927
      %v5929 = vpop.f32.mrb[0].mxu0
      %v5930 = vpop.f32.mrb[0].mxu0
      %v5931 = vadd.f32 %v5866, %v5930
      %v5932 = vpop.f32.mrb[0].mxu0
      %5933 = vmatprep.mubr.bf16.mxu0 0
      %5934 = vmatmul.mubr.bf16.gmra.mrb[0].mxu0 %v5810
      %v5935 = vpop.f32.mrb[0].mxu0
      %v5936 = vadd.f32 %v5871, %v5935
      %v5937 = vpop.f32.mrb[0].mxu0
      %v5938 = vpop.f32.mrb[0].mxu0
      %v5939 = vadd.f32 %v5874, %v5938
      %v5940 = vpop.f32.mrb[0].mxu0
      %5941 = vdwg.mxu0
      %v5942 = vmax.f32 %v5912, 0.0
      %v5943 = vmax.f32 %v5915, 0.0
      %v5944 = vmax.f32 %v5920, 0.0
      %v5945 = vmax.f32 %v5923, 0.0
      %v5946 = vmax.f32 %v5928, 0.0
      %v5947 = vmax.f32 %v5931, 0.0
      %v5948 = vmax.f32 %v5936, 0.0
      %v5949 = vmax.f32 %v5939, 0.0
      %vm5950 = vcmp.gt.f32.partialorder %v1244, 0.5
      %vm5951 = vcmp.gt.f32.partialorder %v1245, 0.5
      %vm5952 = vcmp.gt.f32.partialorder %v1246, 0.5
      %vm5953 = vcmp.gt.f32.partialorder %v1247, 0.5
      %vm5954 = vcmp.gt.f32.partialorder %v1248, 0.5
      %vm5955 = vcmp.gt.f32.partialorder %v1249, 0.5
      %vm5956 = vcmp.gt.f32.partialorder %v1250, 0.5
      %vm5957 = vcmp.gt.f32.partialorder %v1251, 0.5
      %v5958 = vsel %vm5950, 1, 0
      %v5959 = vsel %vm5951, 1, 0
      %v5960 = vsel %vm5952, 1, 0
      %v5961 = vsel %vm5953, 1, 0
      %v5962 = vsel %vm5954, 1, 0
      %v5963 = vsel %vm5955, 1, 0
      %v5964 = vsel %vm5956, 1, 0
      %v5965 = vsel %vm5957, 1, 0
      %5966 = vset.pattern.permute.xlu0 1
      %5967 = vperm.xlu0 %5966, %v5958
      %v5968 = vpop.permute.xlu0 %5967
      %5969 = vset.pattern.permute.xlu0 1
      %5970 = vperm.xlu0 %5969, %v5959
      %v5971 = vpop.permute.xlu0 %5970
      %5972 = vset.pattern.permute.xlu0 1
      %5973 = vperm.xlu0 %5972, %v5960
      %v5974 = vpop.permute.xlu0 %5973
      %5975 = vset.pattern.permute.xlu0 1
      %5976 = vperm.xlu0 %5975, %v5961
      %v5977 = vpop.permute.xlu0 %5976
      %5978 = vset.pattern.permute.xlu0 1
      %5979 = vperm.xlu0 %5978, %v5962
      %v5980 = vpop.permute.xlu0 %5979
      %5981 = vset.pattern.permute.xlu0 1
      %5982 = vperm.xlu0 %5981, %v5963
      %v5983 = vpop.permute.xlu0 %5982
      %5984 = vset.pattern.permute.xlu0 1
      %5985 = vperm.xlu0 %5984, %v5964
      %v5986 = vpop.permute.xlu0 %5985
      %5987 = vset.pattern.permute.xlu0 1
      %5988 = vperm.xlu0 %5987, %v5965
      %v5989 = vpop.permute.xlu0 %5988
      %vm5990 = vcmp.eq.s32.totalorder %v5968, 1
      %vm5991 = vcmp.eq.s32.totalorder %v5971, 1
      %vm5992 = vcmp.eq.s32.totalorder %v5974, 1
      %vm5993 = vcmp.eq.s32.totalorder %v5977, 1
      %vm5994 = vcmp.eq.s32.totalorder %v5980, 1
      %vm5995 = vcmp.eq.s32.totalorder %v5983, 1
      %vm5996 = vcmp.eq.s32.totalorder %v5986, 1
      %vm5997 = vcmp.eq.s32.totalorder %v5989, 1
      %v5998 = vsel %vm5990, %v5949, -1e+30
      %v5999 = vsel %vm5991, %v5942, -1e+30
      %v6000 = vsel %vm5992, %v5943, -1e+30
      %v6001 = vsel %vm5993, %v5944, -1e+30
      %v6002 = vsel %vm5994, %v5945, -1e+30
      %v6003 = vsel %vm5995, %v5946, -1e+30
      %v6004 = vsel %vm5996, %v5947, -1e+30
      %v6005 = vsel %vm5997, %v5948, -1e+30
      %6006 = vset.pattern.permute.xlu0 7
      %6007 = vperm.xlu0 %6006, %v5958
      %v6008 = vpop.permute.xlu0 %6007
      %6009 = vset.pattern.permute.xlu0 7
      %6010 = vperm.xlu0 %6009, %v5959
      %v6011 = vpop.permute.xlu0 %6010
      %6012 = vset.pattern.permute.xlu0 7
      %6013 = vperm.xlu0 %6012, %v5960
      %v6014 = vpop.permute.xlu0 %6013
      %6015 = vset.pattern.permute.xlu0 7
      %6016 = vperm.xlu0 %6015, %v5961
      %v6017 = vpop.permute.xlu0 %6016
      %6018 = vset.pattern.permute.xlu0 7
      %6019 = vperm.xlu0 %6018, %v5962
      %v6020 = vpop.permute.xlu0 %6019
      %6021 = vset.pattern.permute.xlu0 7
      %6022 = vperm.xlu0 %6021, %v5963
      %v6023 = vpop.permute.xlu0 %6022
      %6024 = vset.pattern.permute.xlu0 7
      %6025 = vperm.xlu0 %6024, %v5964
      %v6026 = vpop.permute.xlu0 %6025
      %6027 = vset.pattern.permute.xlu0 7
      %6028 = vperm.xlu0 %6027, %v5965
      %v6029 = vpop.permute.xlu0 %6028
      %vm6030 = vcmp.eq.s32.totalorder %v6008, 1
      %vm6031 = vcmp.eq.s32.totalorder %v6011, 1
      %vm6032 = vcmp.eq.s32.totalorder %v6014, 1
      %vm6033 = vcmp.eq.s32.totalorder %v6017, 1
      %vm6034 = vcmp.eq.s32.totalorder %v6020, 1
      %vm6035 = vcmp.eq.s32.totalorder %v6023, 1
      %vm6036 = vcmp.eq.s32.totalorder %v6026, 1
      %vm6037 = vcmp.eq.s32.totalorder %v6029, 1
      %v6038 = vsel %vm6030, %v5943, -1e+30
      %v6039 = vsel %vm6031, %v5944, -1e+30
      %v6040 = vsel %vm6032, %v5945, -1e+30
      %v6041 = vsel %vm6033, %v5946, -1e+30
      %v6042 = vsel %vm6034, %v5947, -1e+30
      %v6043 = vsel %vm6035, %v5948, -1e+30
      %v6044 = vsel %vm6036, %v5949, -1e+30
      %v6045 = vsel %vm6037, %v5942, -1e+30
      %v6046 = vmax.f32 %v5998, %v6038
      %v6047 = vmax.f32 %v5999, %v6039
      %v6048 = vmax.f32 %v6000, %v6040
      %v6049 = vmax.f32 %v6001, %v6041
      %v6050 = vmax.f32 %v6002, %v6042
      %v6051 = vmax.f32 %v6003, %v6043
      %v6052 = vmax.f32 %v6004, %v6044
      %v6053 = vmax.f32 %v6005, %v6045
      %v6054 = vmax.f32 %v6046, %v5942
      %v6055 = vmax.f32 %v6047, %v5943
      %v6056 = vmax.f32 %v6048, %v5944
      %v6057 = vmax.f32 %v6049, %v5945
      %v6058 = vmax.f32 %v6050, %v5946
      %v6059 = vmax.f32 %v6051, %v5947
      %v6060 = vmax.f32 %v6052, %v5948
      %v6061 = vmax.f32 %v6053, %v5949
      %v6062 = vrot.slane %v6054, 7
      %v6063 = vrot.slane %v6055, 7
      %v6064 = vrot.slane %v6056, 7
      %v6065 = vrot.slane %v6057, 7
      %v6066 = vrot.slane %v6058, 7
      %v6067 = vrot.slane %v6059, 7
      %v6068 = vrot.slane %v6060, 7
      %v6069 = vrot.slane %v6061, 7
      %v6070 = vsel %vm1320, %v6068, %v6069
      %v6071 = vsel %vm1320, %v6067, %v6068
      %v6072 = vsel %vm1320, %v6066, %v6067
      %v6073 = vsel %vm1320, %v6065, %v6066
      %v6074 = vsel %vm1320, %v6064, %v6065
      %v6075 = vsel %vm1320, %v6063, %v6064
      %v6076 = vsel %vm1320, %v6062, %v6063
      %v6077 = vsel %vm1320, %v6069, %v6062
      %6078 = vset.pattern.permute.xlu0 3
      %6079 = vperm.xlu0 %6078, %v5958
      %v6080 = vpop.permute.xlu0 %6079
      %6081 = vset.pattern.permute.xlu0 3
      %6082 = vperm.xlu0 %6081, %v5959
      %v6083 = vpop.permute.xlu0 %6082
      %6084 = vset.pattern.permute.xlu0 3
      %6085 = vperm.xlu0 %6084, %v5960
      %v6086 = vpop.permute.xlu0 %6085
      %6087 = vset.pattern.permute.xlu0 3
      %6088 = vperm.xlu0 %6087, %v5961
      %v6089 = vpop.permute.xlu0 %6088
      %6090 = vset.pattern.permute.xlu0 3
      %6091 = vperm.xlu0 %6090, %v5962
      %v6092 = vpop.permute.xlu0 %6091
      %6093 = vset.pattern.permute.xlu0 3
      %6094 = vperm.xlu0 %6093, %v5963
      %v6095 = vpop.permute.xlu0 %6094
      %6096 = vset.pattern.permute.xlu0 3
      %6097 = vperm.xlu0 %6096, %v5964
      %v6098 = vpop.permute.xlu0 %6097
      %6099 = vset.pattern.permute.xlu0 3
      %6100 = vperm.xlu0 %6099, %v5965
      %v6101 = vpop.permute.xlu0 %6100
      %vm6102 = vcmp.eq.s32.totalorder %v6080, 1
      %vm6103 = vcmp.eq.s32.totalorder %v6083, 1
      %vm6104 = vcmp.eq.s32.totalorder %v6086, 1
      %vm6105 = vcmp.eq.s32.totalorder %v6089, 1
      %vm6106 = vcmp.eq.s32.totalorder %v6092, 1
      %vm6107 = vcmp.eq.s32.totalorder %v6095, 1
      %vm6108 = vcmp.eq.s32.totalorder %v6098, 1
      %vm6109 = vcmp.eq.s32.totalorder %v6101, 1
      %v6110 = vsel %vm6102, %v6077, -1e+30
      %v6111 = vsel %vm6103, %v6076, -1e+30
      %v6112 = vsel %vm6104, %v6075, -1e+30
      %v6113 = vsel %vm6105, %v6074, -1e+30
      %v6114 = vsel %vm6106, %v6073, -1e+30
      %v6115 = vsel %vm6107, %v6072, -1e+30
      %v6116 = vsel %vm6108, %v6071, -1e+30
      %v6117 = vsel %vm6109, %v6070, -1e+30
      %v6118 = vrot.slane %v6054, 1
      %v6119 = vrot.slane %v6055, 1
      %v6120 = vrot.slane %v6056, 1
      %v6121 = vrot.slane %v6057, 1
      %v6122 = vrot.slane %v6058, 1
      %v6123 = vrot.slane %v6059, 1
      %v6124 = vrot.slane %v6060, 1
      %v6125 = vrot.slane %v6061, 1
      %v6126 = vsel %vm1577, %v6124, %v6125
      %v6127 = vsel %vm1577, %v6123, %v6124
      %v6128 = vsel %vm1577, %v6122, %v6123
      %v6129 = vsel %vm1577, %v6121, %v6122
      %v6130 = vsel %vm1577, %v6120, %v6121
      %v6131 = vsel %vm1577, %v6119, %v6120
      %v6132 = vsel %vm1577, %v6118, %v6119
      %v6133 = vsel %vm1577, %v6125, %v6118
      %6134 = vset.pattern.permute.xlu0 5
      %6135 = vperm.xlu0 %6134, %v5958
      %v6136 = vpop.permute.xlu0 %6135
      %6137 = vset.pattern.permute.xlu0 5
      %6138 = vperm.xlu0 %6137, %v5959
      %v6139 = vpop.permute.xlu0 %6138
      %6140 = vset.pattern.permute.xlu0 5
      %6141 = vperm.xlu0 %6140, %v5960
      %v6142 = vpop.permute.xlu0 %6141
      %6143 = vset.pattern.permute.xlu0 5
      %6144 = vperm.xlu0 %6143, %v5961
      %v6145 = vpop.permute.xlu0 %6144
      %6146 = vset.pattern.permute.xlu0 5
      %6147 = vperm.xlu0 %6146, %v5962
      %v6148 = vpop.permute.xlu0 %6147
      %6149 = vset.pattern.permute.xlu0 5
      %6150 = vperm.xlu0 %6149, %v5963
      %v6151 = vpop.permute.xlu0 %6150
      %6152 = vset.pattern.permute.xlu0 5
      %6153 = vperm.xlu0 %6152, %v5964
      %v6154 = vpop.permute.xlu0 %6153
      %6155 = vset.pattern.permute.xlu0 5
      %6156 = vperm.xlu0 %6155, %v5965
      %v6157 = vpop.permute.xlu0 %6156
      %vm6158 = vcmp.eq.s32.totalorder %v6136, 1
      %vm6159 = vcmp.eq.s32.totalorder %v6139, 1
      %vm6160 = vcmp.eq.s32.totalorder %v6142, 1
      %vm6161 = vcmp.eq.s32.totalorder %v6145, 1
      %vm6162 = vcmp.eq.s32.totalorder %v6148, 1
      %vm6163 = vcmp.eq.s32.totalorder %v6151, 1
      %vm6164 = vcmp.eq.s32.totalorder %v6154, 1
      %vm6165 = vcmp.eq.s32.totalorder %v6157, 1
      %v6166 = vsel %vm6158, %v6132, -1e+30
      %v6167 = vsel %vm6159, %v6131, -1e+30
      %v6168 = vsel %vm6160, %v6130, -1e+30
      %v6169 = vsel %vm6161, %v6129, -1e+30
      %v6170 = vsel %vm6162, %v6128, -1e+30
      %v6171 = vsel %vm6163, %v6127, -1e+30
      %v6172 = vsel %vm6164, %v6126, -1e+30
      %v6173 = vsel %vm6165, %v6133, -1e+30
      %v6174 = vmax.f32 %v6110, %v6166
      %v6175 = vmax.f32 %v6111, %v6167
      %v6176 = vmax.f32 %v6112, %v6168
      %v6177 = vmax.f32 %v6113, %v6169
      %v6178 = vmax.f32 %v6114, %v6170
      %v6179 = vmax.f32 %v6115, %v6171
      %v6180 = vmax.f32 %v6116, %v6172
      %v6181 = vmax.f32 %v6117, %v6173
      %v6182 = vmax.f32 %v6174, %v6054
      %v6183 = vmax.f32 %v6175, %v6055
      %v6184 = vmax.f32 %v6176, %v6056
      %v6185 = vmax.f32 %v6177, %v6057
      %v6186 = vmax.f32 %v6178, %v6058
      %v6187 = vmax.f32 %v6179, %v6059
      %v6188 = vmax.f32 %v6180, %v6060
      %v6189 = vmax.f32 %v6181, %v6061
      %v6190 = vld [vmem:[%s11] sm:$0xf]
      %v6191 = vld [vmem:[%s11 + $0x4] sm:$0xf]
      %v6192 = vpack.c.bf16 %v6183, %v6182
      %v6193 = vpack.c.bf16 %v6185, %v6184
      %v6194 = vpack.c.bf16 %v6187, %v6186
      %v6195 = vpack.c.bf16 %v6189, %v6188
      %v6198 = vunpack.c.l.b16 %v6190
      %v6199 = vunpack.c.l.b16 %v6191
      %v6200 = vpack.c.b16 %v6199, %v6198
      %v6202 = vsel %vm5595, %v6200, 0
      %6204 = vmatprep.subr.bf16.mxu0 0
      %6205 = vmatpush1.bf16.msra.mxu0 %v6192
      %6206 = vmatprep.subr.bf16.mxu0 0
      %6207 = vmatpush1.bf16.msra.mxu0 %v6193
      %6208 = vmatprep.subr.bf16.mxu0 0
      %6209 = vmatpush1.bf16.msra.mxu0 %v6194
      %6210 = vmatprep.subr.bf16.mxu0 0
      %6211 = vmatpush1.bf16.msra.mxu0 %v6195
      %6212 = vmatprep.subr.bf16.mxu0 0
      %6213 = vmatpush1.bf16.msra.mxu0 0
      %6214 = vmatprep.subr.bf16.mxu0 0
      %6215 = vmatpush1.bf16.msra.mxu0 0
      %6216 = vmatprep.subr.bf16.mxu0 0
      %6217 = vmatpush1.bf16.msra.mxu0 0
      %6218 = vmatprep.subr.bf16.mxu0 0
      %6219 = vmatpush1.bf16.msra.mxu0 0
      %6220 = vmatprep.subr.bf16.mxu0 0
      %6221 = vmatpush1.bf16.msra.mxu0 0
      %6222 = vmatprep.subr.bf16.mxu0 0
      %6223 = vmatpush1.bf16.msra.mxu0 0
      %6224 = vmatprep.subr.bf16.mxu0 0
      %6225 = vmatpush1.bf16.msra.mxu0 0
      %6226 = vmatprep.subr.bf16.mxu0 0
      %6227 = vmatpush1.bf16.msra.mxu0 0
      %6228 = vmatprep.subr.bf16.mxu0 0
      %6229 = vmatpush1.bf16.msra.mxu0 0
      %6230 = vmatprep.subr.bf16.mxu0 0
      %6231 = vmatpush1.bf16.msra.mxu0 0
      %6232 = vmatprep.subr.bf16.mxu0 0
      %6233 = vmatpush1.bf16.msra.mxu0 0
      %6234 = vmatprep.subr.bf16.mxu0 0
      %6235 = vmatpush1.bf16.msra.mxu0 0
      %6236 = vmatprep.mubr.bf16.mxu0 0
      %6237 = vmatmul.mubr.bf16.gmra.mrb[0].mxu0 %v6202
      %v6238 = vpop.f32.mrb[0].mxu0
      %v6239 = vadd.f32 0.0, %v6238
      %v6240 = vpop.f32.mrb[0].mxu0
      %v6241 = vpop.f32.mrb[0].mxu0
      %v6242 = vadd.f32 0.0, %v6241
      %v6243 = vpop.f32.mrb[0].mxu0
      %6244 = vdwg.mxu0
      %v6245 = vpack.c.bf16 %v6242, %v6239
      %v6246 = vld [vmem:[%s25] sm:$0xf]
      %v6247 = vld [vmem:[%s25 + $0x4] sm:$0xf]
      %v6248 = vld [vmem:[%s25 + $0x8] sm:$0xf]
      %v6249 = vld [vmem:[%s25 + $0xc] sm:$0xf]
      %v6250 = vld [vmem:[%s25 + $0x10] sm:$0xf]
      %v6251 = vld [vmem:[%s25 + $0x14] sm:$0xf]
      %v6252 = vld [vmem:[%s25 + $0x18] sm:$0xf]
      %v6253 = vld [vmem:[%s25 + $0x1c] sm:$0xf]
      %v6254 = vld [vmem:[%s27] sm:$0x1]
      %v6256 = vlaneseq
      %v6257 = vshrl.u32 %v6256, 7
      %v6258 = vsub.s32 0, %v6257
      %v6259 = vrot.slane %v6254, %v6258
      %v6269 = vunpack.c.l.b16 %v6246
      %v6270 = vunpack.c.l.b16 %v6247
      %v6271 = vunpack.c.l.b16 %v6248
      %v6272 = vunpack.c.l.b16 %v6249
      %v6273 = vunpack.c.l.b16 %v6250
      %v6274 = vunpack.c.l.b16 %v6251
      %v6275 = vunpack.c.l.b16 %v6252
      %v6276 = vunpack.c.l.b16 %v6253
      %v6277 = vpack.c.b16 %v6270, %v6269
      %v6278 = vpack.c.b16 %v6272, %v6271
      %v6279 = vpack.c.b16 %v6274, %v6273
      %v6280 = vpack.c.b16 %v6276, %v6275
      %v6286 = vsel %vm5595, %v6245, 0
      %6288 = vmatprep.subr.bf16.mxu0 0
      %6289 = vmatpush1.bf16.msra.mxu0 %v6277
      %6290 = vmatprep.subr.bf16.mxu0 0
      %6291 = vmatpush1.bf16.msra.mxu0 %v6278
      %6292 = vmatprep.subr.bf16.mxu0 0
      %6293 = vmatpush1.bf16.msra.mxu0 %v6279
      %6294 = vmatprep.subr.bf16.mxu0 0
      %6295 = vmatpush1.bf16.msra.mxu0 %v6280
      %6296 = vmatprep.subr.bf16.mxu0 0
      %6297 = vmatpush1.bf16.msra.mxu0 0
      %6298 = vmatprep.subr.bf16.mxu0 0
      %6299 = vmatpush1.bf16.msra.mxu0 0
      %6300 = vmatprep.subr.bf16.mxu0 0
      %6301 = vmatpush1.bf16.msra.mxu0 0
      %6302 = vmatprep.subr.bf16.mxu0 0
      %6303 = vmatpush1.bf16.msra.mxu0 0
      %6304 = vmatprep.subr.bf16.mxu0 0
      %6305 = vmatpush1.bf16.msra.mxu0 0
      %6306 = vmatprep.subr.bf16.mxu0 0
      %6307 = vmatpush1.bf16.msra.mxu0 0
      %6308 = vmatprep.subr.bf16.mxu0 0
      %6309 = vmatpush1.bf16.msra.mxu0 0
      %6310 = vmatprep.subr.bf16.mxu0 0
      %6311 = vmatpush1.bf16.msra.mxu0 0
      %6312 = vmatprep.subr.bf16.mxu0 0
      %6313 = vmatpush1.bf16.msra.mxu0 0
      %6314 = vmatprep.subr.bf16.mxu0 0
      %6315 = vmatpush1.bf16.msra.mxu0 0
      %6316 = vmatprep.subr.bf16.mxu0 0
      %6317 = vmatpush1.bf16.msra.mxu0 0
      %6318 = vmatprep.subr.bf16.mxu0 0
      %6319 = vmatpush1.bf16.msra.mxu0 0
      %6320 = vmatprep.mubr.bf16.mxu0 0
      %6321 = vmatmul.mubr.bf16.gmra.mrb[0].mxu0 %v6286
      %v6322 = vpop.f32.mrb[0].mxu0
      %v6323 = vadd.f32 %v6259, %v6322
      %v6324 = vpop.f32.mrb[0].mxu0
      %v6325 = vpop.f32.mrb[0].mxu0
      %v6326 = vadd.f32 %v6259, %v6325
      %v6327 = vpop.f32.mrb[0].mxu0
      %6328 = vdwg.mxu0
      %v6329 = vmax.f32 %v6323, 0.0
      %v6330 = vmax.f32 %v6326, 0.0
      %6333 = vrot.lane.b32.xlu0 %v6329, 64
      %v6334 = vpop.permute.xlu0 %6333
      %6335 = vrot.lane.b32.xlu0 %v6330, 64
      %v6336 = vpop.permute.xlu0 %6335
      %v6339 = vrot.slane %v6334, 3
      %v6340 = vrot.slane %v6336, 3
      %vm6341 = vcmp.lt.s32.totalorder %v1319, 5
      %v6342 = vsel %vm6341, %v6339, %v6340
      %v6343 = vsel %vm6341, %v6340, %v6339
      %6345 = vset.pattern.permute.xlu0 0
      %6346 = vperm.xlu0 %6345, %v1252
      %v6347 = vpop.permute.xlu0 %6346
      %6350 = vset.pattern.permute.xlu0 0
      %6351 = vperm.xlu0 %6350, %v1253
      %v6352 = vpop.permute.xlu0 %6351
      %v6354 = vmul.f32 %v6343, %v6347
      %v6355 = vmul.f32 %v6342, %v6352
      %v6356 = vrot.slane %v6334, 4
      %v6357 = vrot.slane %v6336, 4
      %vm6358 = vcmp.lt.s32.totalorder %v1319, 4
      %v6359 = vsel %vm6358, %v6356, %v6357
      %v6360 = vsel %vm6358, %v6357, %v6356
      %6361 = vset.pattern.permute.xlu0 1
      %6362 = vperm.xlu0 %6361, %v1252
      %v6363 = vpop.permute.xlu0 %6362
      %6365 = vset.pattern.permute.xlu0 1
      %6366 = vperm.xlu0 %6365, %v1253
      %v6367 = vpop.permute.xlu0 %6366
      %v6369 = vmul.f32 %v6360, %v6363
      %v6370 = vmul.f32 %v6359, %v6367
      %v6371 = vrot.slane %v6334, 5
      %v6372 = vrot.slane %v6336, 5
      %vm6373 = vcmp.lt.s32.totalorder %v1319, 3
      %v6374 = vsel %vm6373, %v6371, %v6372
      %v6375 = vsel %vm6373, %v6372, %v6371
      %6376 = vset.pattern.permute.xlu0 2
      %6377 = vperm.xlu0 %6376, %v1252
      %v6378 = vpop.permute.xlu0 %6377
      %6380 = vset.pattern.permute.xlu0 2
      %6381 = vperm.xlu0 %6380, %v1253
      %v6382 = vpop.permute.xlu0 %6381
      %v6384 = vmul.f32 %v6375, %v6378
      %v6385 = vmul.f32 %v6374, %v6382
      %v6386 = vrot.slane %v6334, 7
      %v6387 = vrot.slane %v6336, 7
      %v6388 = vsel %vm1320, %v6386, %v6387
      %v6389 = vsel %vm1320, %v6387, %v6386
      %6390 = vset.pattern.permute.xlu0 3
      %6391 = vperm.xlu0 %6390, %v1252
      %v6392 = vpop.permute.xlu0 %6391
      %6394 = vset.pattern.permute.xlu0 3
      %6395 = vperm.xlu0 %6394, %v1253
      %v6396 = vpop.permute.xlu0 %6395
      %v6398 = vmul.f32 %v6389, %v6392
      %v6399 = vmul.f32 %v6388, %v6396
      %v6400 = vrot.slane %v6334, 1
      %v6401 = vrot.slane %v6336, 1
      %v6402 = vsel %vm1577, %v6400, %v6401
      %v6403 = vsel %vm1577, %v6401, %v6400
      %6404 = vset.pattern.permute.xlu0 5
      %6405 = vperm.xlu0 %6404, %v1252
      %v6406 = vpop.permute.xlu0 %6405
      %6408 = vset.pattern.permute.xlu0 5
      %6409 = vperm.xlu0 %6408, %v1253
      %v6410 = vpop.permute.xlu0 %6409
      %v6412 = vmul.f32 %v6402, %v6406
      %v6413 = vmul.f32 %v6403, %v6410
      %6414 = vset.pattern.permute.xlu0 6
      %6415 = vperm.xlu0 %6414, %v1252
      %v6416 = vpop.permute.xlu0 %6415
      %6418 = vset.pattern.permute.xlu0 6
      %6419 = vperm.xlu0 %6418, %v1253
      %v6420 = vpop.permute.xlu0 %6419
      %v6422 = vmul.f32 %v6342, %v6416
      %v6423 = vmul.f32 %v6343, %v6420
      %6424 = vset.pattern.permute.xlu0 7
      %6425 = vperm.xlu0 %6424, %v1252
      %v6426 = vpop.permute.xlu0 %6425
      %6428 = vset.pattern.permute.xlu0 7
      %6429 = vperm.xlu0 %6428, %v1253
      %v6430 = vpop.permute.xlu0 %6429
      %v6432 = vmul.f32 %v6359, %v6426
      %v6433 = vmul.f32 %v6360, %v6430
      %6434 = vset.pattern.permute.xlu0 8
      %6435 = vperm.xlu0 %6434, %v1252
      %v6436 = vpop.permute.xlu0 %6435
      %6438 = vset.pattern.permute.xlu0 8
      %6439 = vperm.xlu0 %6438, %v1253
      %v6440 = vpop.permute.xlu0 %6439
      %v6442 = vmul.f32 %v6374, %v6436
      %v6443 = vmul.f32 %v6375, %v6440
      %6446 = vrot.lane.b32.xlu0 %v6369, 48
      %v6447 = vpop.permute.xlu0 %6446
      %6448 = vrot.lane.b32.xlu0 %v6370, 48
      %v6449 = vpop.permute.xlu0 %6448
      %6454 = vrot.lane.b32.xlu0 %v6384, 96
      %v6455 = vpop.permute.xlu0 %6454
      %6456 = vrot.lane.b32.xlu0 %v6385, 96
      %v6457 = vpop.permute.xlu0 %6456
      %6462 = vrot.lane.b32.xlu0 %v6398, 16
      %v6463 = vpop.permute.xlu0 %6462
      %6464 = vrot.lane.b32.xlu0 %v6399, 16
      %v6465 = vpop.permute.xlu0 %6464
      %6470 = vrot.lane.b32.xlu0 %v6412, 112
      %v6471 = vpop.permute.xlu0 %6470
      %6472 = vrot.lane.b32.xlu0 %v6413, 112
      %v6473 = vpop.permute.xlu0 %6472
      %6478 = vrot.lane.b32.xlu0 %v6422, 32
      %v6479 = vpop.permute.xlu0 %6478
      %6480 = vrot.lane.b32.xlu0 %v6423, 32
      %v6481 = vpop.permute.xlu0 %6480
      %6486 = vrot.lane.b32.xlu0 %v6432, 80
      %v6487 = vpop.permute.xlu0 %6486
      %6488 = vrot.lane.b32.xlu0 %v6433, 80
      %v6489 = vpop.permute.xlu0 %6488
      %vm6492 = vcmask 392192
      %v6493 = vsel %vm6492, %v6354, %v6447
      %v6494 = vsel %vm6492, %v6355, %v6449
      %v6495 = vsel %vm5604, %v6493, %v6455
      %v6496 = vsel %vm5604, %v6494, %v6457
      %vm6497 = vcmask 130048
      %v6498 = vsel %vm6497, %v6455, %v6463
      %v6499 = vsel %vm6497, %v6457, %v6465
      %v6500 = vsel %vm5595, %v6498, %v6329
      %v6501 = vsel %vm5595, %v6499, %v6330
      %vm6502 = vcmask 916480
      %v6503 = vsel %vm6502, %v6500, %v6471
      %v6504 = vsel %vm6502, %v6501, %v6473
      %v6505 = vsel %vm5586, %v6471, %v6479
      %v6506 = vsel %vm5586, %v6473, %v6481
      %vm6507 = vcmask 654336
      %v6508 = vsel %vm6507, %v6505, %v6487
      %v6509 = vsel %vm6507, %v6506, %v6489
      %v6510 = vpack.c.bf16 %v6496, %v6495
      %v6511 = vpack.c.bf16 %v6504, %v6503
      %v6512 = vpack.c.bf16 %v6509, %v6508
      %v6513 = vpack.c.bf16 %v6443, %v6442
      %v6514 = vld [vmem:[%s29] sm:$0xf]
      %v6515 = vld [vmem:[%s29 + $0x4] sm:$0xf]
      %v6516 = vld [vmem:[%s29 + $0x8] sm:$0xf]
      %v6517 = vld [vmem:[%s29 + $0xc] sm:$0xf]
      %v6518 = vld [vmem:[%s29 + $0x10] sm:$0xf]
      %v6519 = vld [vmem:[%s29 + $0x14] sm:$0xf]
      %v6520 = vld [vmem:[%s29 + $0x18] sm:$0xf]
      %v6521 = vld [vmem:[%s29 + $0x1c] sm:$0xf]
      %v6522 = vld [vmem:[%s29 + $0x20] sm:$0xf]
      %v6523 = vld [vmem:[%s29 + $0x24] sm:$0xf]
      %v6524 = vld [vmem:[%s29 + $0x28] sm:$0xf]
      %v6525 = vld [vmem:[%s29 + $0x2c] sm:$0xf]
      %v6526 = vld [vmem:[%s29 + $0x30] sm:$0xf]
      %v6527 = vld [vmem:[%s29 + $0x34] sm:$0xf]
      %v6528 = vld [vmem:[%s29 + $0x38] sm:$0xf]
      %v6529 = vld [vmem:[%s29 + $0x3c] sm:$0xf]
      %v6530 = vld [vmem:[%s29 + $0x40] sm:$0xf]
      %v6531 = vld [vmem:[%s29 + $0x44] sm:$0xf]
      %v6532 = vld [vmem:[%s29 + $0x48] sm:$0xf]
      %v6533 = vld [vmem:[%s29 + $0x4c] sm:$0xf]
      %v6534 = vld [vmem:[%s29 + $0x50] sm:$0xf]
      %v6535 = vld [vmem:[%s29 + $0x54] sm:$0xf]
      %v6536 = vld [vmem:[%s29 + $0x58] sm:$0xf]
      %v6537 = vld [vmem:[%s29 + $0x5c] sm:$0xf]
      %v6538 = vld [vmem:[%s29 + $0x60] sm:$0xf]
      %v6539 = vld [vmem:[%s29 + $0x64] sm:$0xf]
      %v6540 = vld [vmem:[%s29 + $0x68] sm:$0xf]
      %v6541 = vld [vmem:[%s29 + $0x6c] sm:$0xf]
      %v6542 = vld [vmem:[%s29 + $0x70] sm:$0xf]
      %v6543 = vld [vmem:[%s29 + $0x74] sm:$0xf]
      %v6544 = vld [vmem:[%s29 + $0x78] sm:$0xf]
      %v6545 = vld [vmem:[%s29 + $0x7c] sm:$0xf]
      %v6546 = vld [vmem:[%s29 + $0x80] sm:$0xf]
      %v6547 = vld [vmem:[%s29 + $0x84] sm:$0xf]
      %v6548 = vld [vmem:[%s29 + $0x88] sm:$0xf]
      %v6549 = vld [vmem:[%s29 + $0x8c] sm:$0xf]
      %v6550 = vld [vmem:[%s29 + $0x90] sm:$0xf]
      %v6551 = vld [vmem:[%s29 + $0x94] sm:$0xf]
      %v6552 = vld [vmem:[%s29 + $0x98] sm:$0xf]
      %v6553 = vld [vmem:[%s29 + $0x9c] sm:$0xf]
      %v6554 = vld [vmem:[%s29 + $0xa0] sm:$0xf]
      %v6555 = vld [vmem:[%s29 + $0xa4] sm:$0xf]
      %v6556 = vld [vmem:[%s29 + $0xa8] sm:$0xf]
      %v6557 = vld [vmem:[%s29 + $0xac] sm:$0xf]
      %v6558 = vld [vmem:[%s29 + $0xb0] sm:$0xf]
      %v6559 = vld [vmem:[%s29 + $0xb4] sm:$0xf]
      %v6560 = vld [vmem:[%s29 + $0xb8] sm:$0xf]
      %v6561 = vld [vmem:[%s29 + $0xbc] sm:$0xf]
      %v6562 = vld [vmem:[%s29 + $0xc0] sm:$0xf]
      %v6563 = vld [vmem:[%s29 + $0xc4] sm:$0xf]
      %v6564 = vld [vmem:[%s29 + $0xc8] sm:$0xf]
      %v6565 = vld [vmem:[%s29 + $0xcc] sm:$0xf]
      %v6566 = vld [vmem:[%s29 + $0xd0] sm:$0xf]
      %v6567 = vld [vmem:[%s29 + $0xd4] sm:$0xf]
      %v6568 = vld [vmem:[%s31] sm:$0x1]
      %v6570 = vlaneseq
      %v6571 = vshrl.u32 %v6570, 7
      %v6572 = vsub.s32 0, %v6571
      %v6573 = vrot.slane %v6568, %v6572
      %v6629 = vunpack.c.l.b16 %v6514
      %v6630 = vunpack.c.l.b16 %v6515
      %v6631 = vunpack.c.l.b16 %v6516
      %v6632 = vunpack.c.l.b16 %v6517
      %v6633 = vunpack.c.l.b16 %v6518
      %v6634 = vunpack.c.l.b16 %v6519
      %v6635 = vunpack.c.l.b16 %v6520
      %v6636 = vunpack.c.l.b16 %v6521
      %v6637 = vunpack.c.l.b16 %v6522
      %v6638 = vunpack.c.l.b16 %v6523
      %v6639 = vunpack.c.l.b16 %v6524
      %v6640 = vunpack.c.l.b16 %v6525
      %v6641 = vunpack.c.l.b16 %v6526
      %v6642 = vunpack.c.l.b16 %v6527
      %v6643 = vunpack.c.l.b16 %v6528
      %v6644 = vunpack.c.l.b16 %v6529
      %v6645 = vunpack.c.l.b16 %v6530
      %v6646 = vunpack.c.l.b16 %v6531
      %v6647 = vunpack.c.l.b16 %v6532
      %v6648 = vunpack.c.l.b16 %v6533
      %v6649 = vunpack.c.l.b16 %v6534
      %v6650 = vunpack.c.l.b16 %v6535
      %v6651 = vunpack.c.l.b16 %v6536
      %v6652 = vunpack.c.l.b16 %v6537
      %v6653 = vunpack.c.l.b16 %v6538
      %v6654 = vunpack.c.l.b16 %v6539
      %v6655 = vunpack.c.l.b16 %v6540
      %v6656 = vunpack.c.l.b16 %v6541
      %v6657 = vunpack.c.l.b16 %v6542
      %v6658 = vunpack.c.l.b16 %v6543
      %v6659 = vunpack.c.l.b16 %v6544
      %v6660 = vunpack.c.l.b16 %v6545
      %v6661 = vunpack.c.l.b16 %v6546
      %v6662 = vunpack.c.l.b16 %v6547
      %v6663 = vunpack.c.l.b16 %v6548
      %v6664 = vunpack.c.l.b16 %v6549
      %v6665 = vunpack.c.l.b16 %v6550
      %v6666 = vunpack.c.l.b16 %v6551
      %v6667 = vunpack.c.l.b16 %v6552
      %v6668 = vunpack.c.l.b16 %v6553
      %v6669 = vunpack.c.l.b16 %v6554
      %v6670 = vunpack.c.l.b16 %v6555
      %v6671 = vunpack.c.l.b16 %v6556
      %v6672 = vunpack.c.l.b16 %v6557
      %v6673 = vunpack.c.l.b16 %v6558
      %v6674 = vunpack.c.l.b16 %v6559
      %v6675 = vunpack.c.l.b16 %v6560
      %v6676 = vunpack.c.l.b16 %v6561
      %v6677 = vunpack.c.l.b16 %v6562
      %v6678 = vunpack.c.l.b16 %v6563
      %v6679 = vunpack.c.l.b16 %v6564
      %v6680 = vunpack.c.l.b16 %v6565
      %v6681 = vunpack.c.l.b16 %v6566
      %v6682 = vunpack.c.l.b16 %v6567
      %v6683 = vpack.c.b16 %v6630, %v6629
      %v6684 = vpack.c.b16 %v6632, %v6631
      %v6685 = vpack.c.b16 %v6634, %v6633
      %v6686 = vpack.c.b16 %v6636, %v6635
      %v6687 = vpack.c.b16 %v6638, %v6637
      %v6688 = vpack.c.b16 %v6640, %v6639
      %v6689 = vpack.c.b16 %v6642, %v6641
      %v6690 = vpack.c.b16 %v6644, %v6643
      %v6691 = vpack.c.b16 %v6646, %v6645
      %v6692 = vpack.c.b16 %v6648, %v6647
      %v6693 = vpack.c.b16 %v6650, %v6649
      %v6694 = vpack.c.b16 %v6652, %v6651
      %v6695 = vpack.c.b16 %v6654, %v6653
      %v6696 = vpack.c.b16 %v6656, %v6655
      %v6697 = vpack.c.b16 %v6658, %v6657
      %v6698 = vpack.c.b16 %v6660, %v6659
      %v6699 = vpack.c.b16 %v6662, %v6661
      %v6700 = vpack.c.b16 %v6664, %v6663
      %v6701 = vpack.c.b16 %v6666, %v6665
      %v6702 = vpack.c.b16 %v6668, %v6667
      %v6703 = vpack.c.b16 %v6670, %v6669
      %v6704 = vpack.c.b16 %v6672, %v6671
      %v6705 = vpack.c.b16 %v6674, %v6673
      %v6706 = vpack.c.b16 %v6676, %v6675
      %v6707 = vpack.c.b16 %v6678, %v6677
      %v6708 = vpack.c.b16 %v6680, %v6679
      %v6709 = vpack.c.b16 %v6682, %v6681
      %v6738 = vsel %vm6492, %v6513, 0
      %6740 = vmatprep.subr.bf16.mxu0 0
      %6741 = vmatpush1.bf16.msra.mxu0 %v6683
      %6742 = vmatprep.subr.bf16.mxu0 0
      %6743 = vmatpush1.bf16.msra.mxu0 %v6684
      %6744 = vmatprep.subr.bf16.mxu0 0
      %6745 = vmatpush1.bf16.msra.mxu0 %v6685
      %6746 = vmatprep.subr.bf16.mxu0 0
      %6747 = vmatpush1.bf16.msra.mxu0 %v6686
      %6748 = vmatprep.subr.bf16.mxu0 0
      %6749 = vmatpush1.bf16.msra.mxu0 %v6687
      %6750 = vmatprep.subr.bf16.mxu0 0
      %6751 = vmatpush1.bf16.msra.mxu0 %v6688
      %6752 = vmatprep.subr.bf16.mxu0 0
      %6753 = vmatpush1.bf16.msra.mxu0 %v6689
      %6754 = vmatprep.subr.bf16.mxu0 0
      %6755 = vmatpush1.bf16.msra.mxu0 %v6690
      %6756 = vmatprep.subr.bf16.mxu0 0
      %6757 = vmatpush1.bf16.msra.mxu0 %v6691
      %6758 = vmatprep.subr.bf16.mxu0 0
      %6759 = vmatpush1.bf16.msra.mxu0 %v6692
      %6760 = vmatprep.subr.bf16.mxu0 0
      %6761 = vmatpush1.bf16.msra.mxu0 %v6693
      %6762 = vmatprep.subr.bf16.mxu0 0
      %6763 = vmatpush1.bf16.msra.mxu0 %v6694
      %6764 = vmatprep.subr.bf16.mxu0 0
      %6765 = vmatpush1.bf16.msra.mxu0 %v6695
      %6766 = vmatprep.subr.bf16.mxu0 0
      %6767 = vmatpush1.bf16.msra.mxu0 %v6696
      %6768 = vmatprep.subr.bf16.mxu0 0
      %6769 = vmatpush1.bf16.msra.mxu0 %v6697
      %6770 = vmatprep.subr.bf16.mxu0 0
      %6771 = vmatpush1.bf16.msra.mxu0 %v6698
      %6772 = vmatprep.mubr.bf16.mxu0 %v6511
      %6773 = vmatmul.mubr.bf16.gmra.mrb[0].mxu0 %v6510
      %v6774 = vpop.f32.mrb[0].mxu0
      %v6775 = vadd.f32 %v6573, %v6774
      %v6776 = vpop.f32.mrb[0].mxu0
      %v6777 = vpop.f32.mrb[0].mxu0
      %v6778 = vadd.f32 %v6573, %v6777
      %v6779 = vpop.f32.mrb[0].mxu0
      %6780 = vdwg.mxu0
      %6781 = vmatprep.subr.bf16.mxu0 0
      %6782 = vmatpush1.bf16.msra.mxu0 %v6699
      %6783 = vmatprep.subr.bf16.mxu0 0
      %6784 = vmatpush1.bf16.msra.mxu0 %v6700
      %6785 = vmatprep.subr.bf16.mxu0 0
      %6786 = vmatpush1.bf16.msra.mxu0 %v6701
      %6787 = vmatprep.subr.bf16.mxu0 0
      %6788 = vmatpush1.bf16.msra.mxu0 %v6702
      %6789 = vmatprep.subr.bf16.mxu0 0
      %6790 = vmatpush1.bf16.msra.mxu0 %v6703
      %6791 = vmatprep.subr.bf16.mxu0 0
      %6792 = vmatpush1.bf16.msra.mxu0 %v6704
      %6793 = vmatprep.subr.bf16.mxu0 0
      %6794 = vmatpush1.bf16.msra.mxu0 %v6705
      %6795 = vmatprep.subr.bf16.mxu0 0
      %6796 = vmatpush1.bf16.msra.mxu0 %v6706
      %6797 = vmatprep.subr.bf16.mxu0 0
      %6798 = vmatpush1.bf16.msra.mxu0 %v6707
      %6799 = vmatprep.subr.bf16.mxu0 0
      %6800 = vmatpush1.bf16.msra.mxu0 %v6708
      %6801 = vmatprep.subr.bf16.mxu0 0
      %6802 = vmatpush1.bf16.msra.mxu0 %v6709
      %6803 = vmatprep.subr.bf16.mxu0 0
      %6804 = vmatpush1.bf16.msra.mxu0 0
      %6805 = vmatprep.subr.bf16.mxu0 0
      %6806 = vmatpush1.bf16.msra.mxu0 0
      %6807 = vmatprep.subr.bf16.mxu0 0
      %6808 = vmatpush1.bf16.msra.mxu0 0
      %6809 = vmatprep.subr.bf16.mxu0 0
      %6810 = vmatpush1.bf16.msra.mxu0 0
      %6811 = vmatprep.subr.bf16.mxu0 0
      %6812 = vmatpush1.bf16.msra.mxu0 0
      %6813 = vmatprep.mubr.bf16.mxu0 %v6738
      %6814 = vmatmul.mubr.bf16.gmra.mrb[0].mxu0 %v6512
      %v6815 = vpop.f32.mrb[0].mxu0
      %v6816 = vadd.f32 %v6775, %v6815
      %v6817 = vpop.f32.mrb[0].mxu0
      %v6818 = vpop.f32.mrb[0].mxu0
      %v6819 = vadd.f32 %v6778, %v6818
      %v6820 = vpop.f32.mrb[0].mxu0
      %6821 = vdwg.mxu0
      %v6822 = vmax.f32 %v6816, 0.0
      %v6823 = vmax.f32 %v6819, 0.0
      %6824 = vrot.lane.b32.xlu0 %v6329, 16
      %v6825 = vpop.permute.xlu0 %6824
      %6826 = vrot.lane.b32.xlu0 %v6330, 16
      %v6827 = vpop.permute.xlu0 %6826
      %v6830 = vrot.slane %v6825, 3
      %v6831 = vrot.slane %v6827, 3
      %v6832 = vsel %vm6341, %v6830, %v6831
      %v6833 = vsel %vm6341, %v6831, %v6830
      %v6834 = vmul.f32 %v6833, %v6347
      %v6835 = vmul.f32 %v6832, %v6352
      %v6836 = vrot.slane %v6825, 4
      %v6837 = vrot.slane %v6827, 4
      %v6838 = vsel %vm6358, %v6836, %v6837
      %v6839 = vsel %vm6358, %v6837, %v6836
      %v6840 = vmul.f32 %v6839, %v6363
      %v6841 = vmul.f32 %v6838, %v6367
      %v6842 = vrot.slane %v6825, 5
      %v6843 = vrot.slane %v6827, 5
      %v6844 = vsel %vm6373, %v6842, %v6843
      %v6845 = vsel %vm6373, %v6843, %v6842
      %v6846 = vmul.f32 %v6845, %v6378
      %v6847 = vmul.f32 %v6844, %v6382
      %v6848 = vrot.slane %v6825, 7
      %v6849 = vrot.slane %v6827, 7
      %v6850 = vsel %vm1320, %v6848, %v6849
      %v6851 = vsel %vm1320, %v6849, %v6848
      %v6852 = vmul.f32 %v6851, %v6392
      %v6853 = vmul.f32 %v6850, %v6396
      %v6854 = vrot.slane %v6825, 1
      %v6855 = vrot.slane %v6827, 1
      %v6856 = vsel %vm1577, %v6854, %v6855
      %v6857 = vsel %vm1577, %v6855, %v6854
      %v6858 = vmul.f32 %v6856, %v6406
      %v6859 = vmul.f32 %v6857, %v6410
      %v6860 = vmul.f32 %v6832, %v6416
      %v6861 = vmul.f32 %v6833, %v6420
      %v6862 = vmul.f32 %v6838, %v6426
      %v6863 = vmul.f32 %v6839, %v6430
      %v6864 = vmul.f32 %v6844, %v6436
      %v6865 = vmul.f32 %v6845, %v6440
      %6868 = vrot.lane.b32.xlu0 %v6840, 16
      %v6869 = vpop.permute.xlu0 %6868
      %6870 = vrot.lane.b32.xlu0 %v6841, 16
      %v6871 = vpop.permute.xlu0 %6870
      %6876 = vrot.lane.b32.xlu0 %v6846, 32
      %v6877 = vpop.permute.xlu0 %6876
      %6878 = vrot.lane.b32.xlu0 %v6847, 32
      %v6879 = vpop.permute.xlu0 %6878
      %6884 = vrot.lane.b32.xlu0 %v6852, 48
      %v6885 = vpop.permute.xlu0 %6884
      %6886 = vrot.lane.b32.xlu0 %v6853, 48
      %v6887 = vpop.permute.xlu0 %6886
      %6890 = vrot.lane.b32.xlu0 %v6329, 80
      %v6891 = vpop.permute.xlu0 %6890
      %6892 = vrot.lane.b32.xlu0 %v6330, 80
      %v6893 = vpop.permute.xlu0 %6892
      %6898 = vrot.lane.b32.xlu0 %v6858, 80
      %v6899 = vpop.permute.xlu0 %6898
      %6900 = vrot.lane.b32.xlu0 %v6859, 80
      %v6901 = vpop.permute.xlu0 %6900
      %6906 = vrot.lane.b32.xlu0 %v6860, 96
      %v6907 = vpop.permute.xlu0 %6906
      %6908 = vrot.lane.b32.xlu0 %v6861, 96
      %v6909 = vpop.permute.xlu0 %6908
      %6914 = vrot.lane.b32.xlu0 %v6862, 112
      %v6915 = vpop.permute.xlu0 %6914
      %6916 = vrot.lane.b32.xlu0 %v6863, 112
      %v6917 = vpop.permute.xlu0 %6916
      %v6920 = vsel %vm6497, %v6834, %v6869
      %v6921 = vsel %vm6497, %v6835, %v6871
      %v6922 = vsel %vm5586, %v6920, %v6877
      %v6923 = vsel %vm5586, %v6921, %v6879
      %v6924 = vsel %vm6492, %v6922, %v6885
      %v6925 = vsel %vm6492, %v6923, %v6887
      %v6926 = vsel %vm5595, %v6924, %v6891
      %v6927 = vsel %vm5595, %v6925, %v6893
      %v6928 = vsel %vm6507, %v6926, %v6899
      %v6929 = vsel %vm6507, %v6927, %v6901
      %v6930 = vsel %vm5604, %v6928, %v6907
      %v6931 = vsel %vm5604, %v6929, %v6909
      %v6932 = vsel %vm6502, %v6930, %v6915
      %v6933 = vsel %vm6502, %v6931, %v6917
      %v6934 = vpack.c.bf16 %v6933, %v6932
      %v6935 = vpack.c.bf16 %v6865, %v6864
      %v6936 = vld [vmem:[%s33] sm:$0xf]
      %v6937 = vld [vmem:[%s33 + $0x4] sm:$0xf]
      %v6938 = vld [vmem:[%s33 + $0x8] sm:$0xf]
      %v6939 = vld [vmem:[%s33 + $0xc] sm:$0xf]
      %v6940 = vld [vmem:[%s33 + $0x10] sm:$0xf]
      %v6941 = vld [vmem:[%s33 + $0x14] sm:$0xf]
      %v6942 = vld [vmem:[%s33 + $0x18] sm:$0xf]
      %v6943 = vld [vmem:[%s33 + $0x1c] sm:$0xf]
      %v6944 = vld [vmem:[%s33 + $0x20] sm:$0xf]
      %v6945 = vld [vmem:[%s33 + $0x24] sm:$0xf]
      %v6946 = vld [vmem:[%s33 + $0x28] sm:$0xf]
      %v6947 = vld [vmem:[%s33 + $0x2c] sm:$0xf]
      %v6948 = vld [vmem:[%s33 + $0x30] sm:$0xf]
      %v6949 = vld [vmem:[%s33 + $0x34] sm:$0xf]
      %v6950 = vld [vmem:[%s33 + $0x38] sm:$0xf]
      %v6951 = vld [vmem:[%s33 + $0x3c] sm:$0xf]
      %v6952 = vld [vmem:[%s33 + $0x40] sm:$0xf]
      %v6953 = vld [vmem:[%s33 + $0x44] sm:$0xf]
      %v6954 = vld [vmem:[%s35] sm:$0x1]
      %v6956 = vlaneseq
      %v6957 = vshrl.u32 %v6956, 7
      %v6958 = vsub.s32 0, %v6957
      %v6959 = vrot.slane %v6954, %v6958
      %v6979 = vunpack.c.l.b16 %v6936
      %v6980 = vunpack.c.l.b16 %v6937
      %v6981 = vunpack.c.l.b16 %v6938
      %v6982 = vunpack.c.l.b16 %v6939
      %v6983 = vunpack.c.l.b16 %v6940
      %v6984 = vunpack.c.l.b16 %v6941
      %v6985 = vunpack.c.l.b16 %v6942
      %v6986 = vunpack.c.l.b16 %v6943
      %v6987 = vunpack.c.l.b16 %v6944
      %v6988 = vunpack.c.l.b16 %v6945
      %v6989 = vunpack.c.l.b16 %v6946
      %v6990 = vunpack.c.l.b16 %v6947
      %v6991 = vunpack.c.l.b16 %v6948
      %v6992 = vunpack.c.l.b16 %v6949
      %v6993 = vunpack.c.l.b16 %v6950
      %v6994 = vunpack.c.l.b16 %v6951
      %v6995 = vunpack.c.l.b16 %v6952
      %v6996 = vunpack.c.l.b16 %v6953
      %v6997 = vpack.c.b16 %v6980, %v6979
      %v6998 = vpack.c.b16 %v6982, %v6981
      %v6999 = vpack.c.b16 %v6984, %v6983
      %v7000 = vpack.c.b16 %v6986, %v6985
      %v7001 = vpack.c.b16 %v6988, %v6987
      %v7002 = vpack.c.b16 %v6990, %v6989
      %v7003 = vpack.c.b16 %v6992, %v6991
      %v7004 = vpack.c.b16 %v6994, %v6993
      %v7005 = vpack.c.b16 %v6996, %v6995
      %v7016 = vsel %vm6497, %v6935, 0
      %7018 = vmatprep.subr.bf16.mxu0 0
      %7019 = vmatpush1.bf16.msra.mxu0 %v6997
      %7020 = vmatprep.subr.bf16.mxu0 0
      %7021 = vmatpush1.bf16.msra.mxu0 %v6998
      %7022 = vmatprep.subr.bf16.mxu0 0
      %7023 = vmatpush1.bf16.msra.mxu0 %v6999
      %7024 = vmatprep.subr.bf16.mxu0 0
      %7025 = vmatpush1.bf16.msra.mxu0 %v7000
      %7026 = vmatprep.subr.bf16.mxu0 0
      %7027 = vmatpush1.bf16.msra.mxu0 %v7001
      %7028 = vmatprep.subr.bf16.mxu0 0
      %7029 = vmatpush1.bf16.msra.mxu0 %v7002
      %7030 = vmatprep.subr.bf16.mxu0 0
      %7031 = vmatpush1.bf16.msra.mxu0 %v7003
      %7032 = vmatprep.subr.bf16.mxu0 0
      %7033 = vmatpush1.bf16.msra.mxu0 %v7004
      %7034 = vmatprep.subr.bf16.mxu0 0
      %7035 = vmatpush1.bf16.msra.mxu0 %v7005
      %7036 = vmatprep.subr.bf16.mxu0 0
      %7037 = vmatpush1.bf16.msra.mxu0 0
      %7038 = vmatprep.subr.bf16.mxu0 0
      %7039 = vmatpush1.bf16.msra.mxu0 0
      %7040 = vmatprep.subr.bf16.mxu0 0
      %7041 = vmatpush1.bf16.msra.mxu0 0
      %7042 = vmatprep.subr.bf16.mxu0 0
      %7043 = vmatpush1.bf16.msra.mxu0 0
      %7044 = vmatprep.subr.bf16.mxu0 0
      %7045 = vmatpush1.bf16.msra.mxu0 0
      %7046 = vmatprep.subr.bf16.mxu0 0
      %7047 = vmatpush1.bf16.msra.mxu0 0
      %7048 = vmatprep.subr.bf16.mxu0 0
      %7049 = vmatpush1.bf16.msra.mxu0 0
      %7050 = vmatprep.mubr.bf16.mxu0 %v7016
      %7051 = vmatmul.mubr.bf16.gmra.mrb[0].mxu0 %v6934
      %v7052 = vpop.f32.mrb[0].mxu0
      %v7053 = vadd.f32 %v6959, %v7052
      %v7054 = vpop.f32.mrb[0].mxu0
      %v7055 = vpop.f32.mrb[0].mxu0
      %v7056 = vadd.f32 %v6959, %v7055
      %v7057 = vpop.f32.mrb[0].mxu0
      %7058 = vdwg.mxu0
      %v7059 = vmax.f32 %v7053, 0.0
      %v7060 = vmax.f32 %v7056, 0.0
      %v7061 = vrot.slane %v7059, 3
      %v7062 = vrot.slane %v7060, 3
      %v7063 = vsel %vm6341, %v7061, %v7062
      %v7064 = vsel %vm6341, %v7062, %v7061
      %v7065 = vmul.f32 %v7064, %v6347
      %v7066 = vmul.f32 %v7063, %v6352
      %v7067 = vrot.slane %v7059, 4
      %v7068 = vrot.slane %v7060, 4
      %v7069 = vsel %vm6358, %v7067, %v7068
      %v7070 = vsel %vm6358, %v7068, %v7067
      %v7071 = vmul.f32 %v7070, %v6363
      %v7072 = vmul.f32 %v7069, %v6367
      %v7073 = vrot.slane %v7059, 5
      %v7074 = vrot.slane %v7060, 5
      %v7075 = vsel %vm6373, %v7073, %v7074
      %v7076 = vsel %vm6373, %v7074, %v7073
      %v7077 = vmul.f32 %v7076, %v6378
      %v7078 = vmul.f32 %v7075, %v6382
      %v7079 = vrot.slane %v7059, 7
      %v7080 = vrot.slane %v7060, 7
      %v7081 = vsel %vm1320, %v7079, %v7080
      %v7082 = vsel %vm1320, %v7080, %v7079
      %v7083 = vmul.f32 %v7082, %v6392
      %v7084 = vmul.f32 %v7081, %v6396
      %v7085 = vrot.slane %v7059, 1
      %v7086 = vrot.slane %v7060, 1
      %v7087 = vsel %vm1577, %v7085, %v7086
      %v7088 = vsel %vm1577, %v7086, %v7085
      %v7089 = vmul.f32 %v7087, %v6406
      %v7090 = vmul.f32 %v7088, %v6410
      %v7091 = vmul.f32 %v7063, %v6416
      %v7092 = vmul.f32 %v7064, %v6420
      %v7093 = vmul.f32 %v7069, %v6426
      %v7094 = vmul.f32 %v7070, %v6430
      %v7095 = vmul.f32 %v7075, %v6436
      %v7096 = vmul.f32 %v7076, %v6440
      %7099 = vrot.lane.b32.xlu0 %v7071, 32
      %v7100 = vpop.permute.xlu0 %7099
      %7101 = vrot.lane.b32.xlu0 %v7072, 32
      %v7102 = vpop.permute.xlu0 %7101
      %7107 = vrot.lane.b32.xlu0 %v7077, 64
      %v7108 = vpop.permute.xlu0 %7107
      %7109 = vrot.lane.b32.xlu0 %v7078, 64
      %v7110 = vpop.permute.xlu0 %7109
      %7115 = vrot.lane.b32.xlu0 %v7083, 96
      %v7116 = vpop.permute.xlu0 %7115
      %7117 = vrot.lane.b32.xlu0 %v7084, 96
      %v7118 = vpop.permute.xlu0 %7117
      %7123 = vrot.lane.b32.xlu0 %v7089, 32
      %v7124 = vpop.permute.xlu0 %7123
      %7125 = vrot.lane.b32.xlu0 %v7090, 32
      %v7126 = vpop.permute.xlu0 %7125
      %7131 = vrot.lane.b32.xlu0 %v7091, 64
      %v7132 = vpop.permute.xlu0 %7131
      %7133 = vrot.lane.b32.xlu0 %v7092, 64
      %v7134 = vpop.permute.xlu0 %7133
      %7139 = vrot.lane.b32.xlu0 %v7093, 96
      %v7140 = vpop.permute.xlu0 %7139
      %7141 = vrot.lane.b32.xlu0 %v7094, 96
      %v7142 = vpop.permute.xlu0 %7141
      %v7145 = vsel %vm5586, %v7065, %v7100
      %v7146 = vsel %vm5586, %v7066, %v7102
      %v7147 = vsel %vm5595, %v7145, %v7108
      %v7148 = vsel %vm5595, %v7146, %v7110
      %v7149 = vsel %vm5604, %v7147, %v7116
      %v7150 = vsel %vm5604, %v7148, %v7118
      %v7151 = vsel %vm5586, %v7059, %v7124
      %v7152 = vsel %vm5586, %v7060, %v7126
      %v7153 = vsel %vm5595, %v7151, %v7132
      %v7154 = vsel %vm5595, %v7152, %v7134
      %v7155 = vsel %vm5604, %v7153, %v7140
      %v7156 = vsel %vm5604, %v7154, %v7142
      %v7157 = vpack.c.bf16 %v7150, %v7149
      %v7158 = vpack.c.bf16 %v7156, %v7155
      %v7159 = vpack.c.bf16 %v7096, %v7095
      %v7160 = vld [vmem:[%s37] sm:$0xf]
      %v7161 = vld [vmem:[%s37 + $0x4] sm:$0xf]
      %v7162 = vld [vmem:[%s37 + $0x8] sm:$0xf]
      %v7163 = vld [vmem:[%s37 + $0xc] sm:$0xf]
      %v7164 = vld [vmem:[%s37 + $0x10] sm:$0xf]
      %v7165 = vld [vmem:[%s37 + $0x14] sm:$0xf]
      %v7166 = vld [vmem:[%s37 + $0x18] sm:$0xf]
      %v7167 = vld [vmem:[%s37 + $0x1c] sm:$0xf]
      %v7168 = vld [vmem:[%s37 + $0x20] sm:$0xf]
      %v7169 = vld [vmem:[%s37 + $0x24] sm:$0xf]
      %v7170 = vld [vmem:[%s37 + $0x28] sm:$0xf]
      %v7171 = vld [vmem:[%s37 + $0x2c] sm:$0xf]
      %v7172 = vld [vmem:[%s37 + $0x30] sm:$0xf]
      %v7173 = vld [vmem:[%s37 + $0x34] sm:$0xf]
      %v7174 = vld [vmem:[%s37 + $0x38] sm:$0xf]
      %v7175 = vld [vmem:[%s37 + $0x3c] sm:$0xf]
      %v7176 = vld [vmem:[%s37 + $0x40] sm:$0xf]
      %v7177 = vld [vmem:[%s37 + $0x44] sm:$0xf]
      %v7178 = vld [vmem:[%s37 + $0x48] sm:$0xf]
      %v7179 = vld [vmem:[%s37 + $0x4c] sm:$0xf]
      %v7180 = vld [vmem:[%s37 + $0x50] sm:$0xf]
      %v7181 = vld [vmem:[%s37 + $0x54] sm:$0xf]
      %v7182 = vld [vmem:[%s37 + $0x58] sm:$0xf]
      %v7183 = vld [vmem:[%s37 + $0x5c] sm:$0xf]
      %v7184 = vld [vmem:[%s37 + $0x60] sm:$0xf]
      %v7185 = vld [vmem:[%s37 + $0x64] sm:$0xf]
      %v7186 = vld [vmem:[%s37 + $0x68] sm:$0xf]
      %v7187 = vld [vmem:[%s37 + $0x6c] sm:$0xf]
      %v7188 = vld [vmem:[%s37 + $0x70] sm:$0xf]
      %v7189 = vld [vmem:[%s37 + $0x74] sm:$0xf]
      %v7190 = vld [vmem:[%s37 + $0x78] sm:$0xf]
      %v7191 = vld [vmem:[%s37 + $0x7c] sm:$0xf]
      %v7192 = vld [vmem:[%s37 + $0x80] sm:$0xf]
      %v7193 = vld [vmem:[%s37 + $0x84] sm:$0xf]
      %v7194 = vld [vmem:[%s37 + $0x88] sm:$0xf]
      %v7195 = vld [vmem:[%s37 + $0x8c] sm:$0xf]
      %v7196 = vld [vmem:[%s39] sm:$0x1]
      %v7198 = vlaneseq
      %v7199 = vshrl.u32 %v7198, 7
      %v7200 = vsub.s32 0, %v7199
      %v7201 = vrot.slane %v7196, %v7200
      %v7239 = vunpack.c.l.b16 %v7160
      %v7240 = vunpack.c.l.b16 %v7161
      %v7241 = vunpack.c.l.b16 %v7162
      %v7242 = vunpack.c.l.b16 %v7163
      %v7243 = vunpack.c.l.b16 %v7164
      %v7244 = vunpack.c.l.b16 %v7165
      %v7245 = vunpack.c.l.b16 %v7166
      %v7246 = vunpack.c.l.b16 %v7167
      %v7247 = vunpack.c.l.b16 %v7168
      %v7248 = vunpack.c.l.b16 %v7169
      %v7249 = vunpack.c.l.b16 %v7170
      %v7250 = vunpack.c.l.b16 %v7171
      %v7251 = vunpack.c.l.b16 %v7172
      %v7252 = vunpack.c.l.b16 %v7173
      %v7253 = vunpack.c.l.b16 %v7174
      %v7254 = vunpack.c.l.b16 %v7175
      %v7255 = vunpack.c.l.b16 %v7176
      %v7256 = vunpack.c.l.b16 %v7177
      %v7257 = vunpack.c.l.b16 %v7178
      %v7258 = vunpack.c.l.b16 %v7179
      %v7259 = vunpack.c.l.b16 %v7180
      %v7260 = vunpack.c.l.b16 %v7181
      %v7261 = vunpack.c.l.b16 %v7182
      %v7262 = vunpack.c.l.b16 %v7183
      %v7263 = vunpack.c.l.b16 %v7184
      %v7264 = vunpack.c.l.b16 %v7185
      %v7265 = vunpack.c.l.b16 %v7186
      %v7266 = vunpack.c.l.b16 %v7187
      %v7267 = vunpack.c.l.b16 %v7188
      %v7268 = vunpack.c.l.b16 %v7189
      %v7269 = vunpack.c.l.b16 %v7190
      %v7270 = vunpack.c.l.b16 %v7191
      %v7271 = vunpack.c.l.b16 %v7192
      %v7272 = vunpack.c.l.b16 %v7193
      %v7273 = vunpack.c.l.b16 %v7194
      %v7274 = vunpack.c.l.b16 %v7195
      %v7275 = vpack.c.b16 %v7240, %v7239
      %v7276 = vpack.c.b16 %v7242, %v7241
      %v7277 = vpack.c.b16 %v7244, %v7243
      %v7278 = vpack.c.b16 %v7246, %v7245
      %v7279 = vpack.c.b16 %v7248, %v7247
      %v7280 = vpack.c.b16 %v7250, %v7249
      %v7281 = vpack.c.b16 %v7252, %v7251
      %v7282 = vpack.c.b16 %v7254, %v7253
      %v7283 = vpack.c.b16 %v7256, %v7255
      %v7284 = vpack.c.b16 %v7258, %v7257
      %v7285 = vpack.c.b16 %v7260, %v7259
      %v7286 = vpack.c.b16 %v7262, %v7261
      %v7287 = vpack.c.b16 %v7264, %v7263
      %v7288 = vpack.c.b16 %v7266, %v7265
      %v7289 = vpack.c.b16 %v7268, %v7267
      %v7290 = vpack.c.b16 %v7270, %v7269
      %v7291 = vpack.c.b16 %v7272, %v7271
      %v7292 = vpack.c.b16 %v7274, %v7273
      %v7312 = vsel %vm5586, %v7159, 0
      %7314 = vmatprep.subr.bf16.mxu0 0
      %7315 = vmatpush1.bf16.msra.mxu0 %v7275
      %7316 = vmatprep.subr.bf16.mxu0 0
      %7317 = vmatpush1.bf16.msra.mxu0 %v7276
      %7318 = vmatprep.subr.bf16.mxu0 0
      %7319 = vmatpush1.bf16.msra.mxu0 %v7277
      %7320 = vmatprep.subr.bf16.mxu0 0
      %7321 = vmatpush1.bf16.msra.mxu0 %v7278
      %7322 = vmatprep.subr.bf16.mxu0 0
      %7323 = vmatpush1.bf16.msra.mxu0 %v7279
      %7324 = vmatprep.subr.bf16.mxu0 0
      %7325 = vmatpush1.bf16.msra.mxu0 %v7280
      %7326 = vmatprep.subr.bf16.mxu0 0
      %7327 = vmatpush1.bf16.msra.mxu0 %v7281
      %7328 = vmatprep.subr.bf16.mxu0 0
      %7329 = vmatpush1.bf16.msra.mxu0 %v7282
      %7330 = vmatprep.subr.bf16.mxu0 0
      %7331 = vmatpush1.bf16.msra.mxu0 %v7283
      %7332 = vmatprep.subr.bf16.mxu0 0
      %7333 = vmatpush1.bf16.msra.mxu0 %v7284
      %7334 = vmatprep.subr.bf16.mxu0 0
      %7335 = vmatpush1.bf16.msra.mxu0 %v7285
      %7336 = vmatprep.subr.bf16.mxu0 0
      %7337 = vmatpush1.bf16.msra.mxu0 %v7286
      %7338 = vmatprep.subr.bf16.mxu0 0
      %7339 = vmatpush1.bf16.msra.mxu0 %v7287
      %7340 = vmatprep.subr.bf16.mxu0 0
      %7341 = vmatpush1.bf16.msra.mxu0 %v7288
      %7342 = vmatprep.subr.bf16.mxu0 0
      %7343 = vmatpush1.bf16.msra.mxu0 %v7289
      %7344 = vmatprep.subr.bf16.mxu0 0
      %7345 = vmatpush1.bf16.msra.mxu0 %v7290
      %7346 = vmatprep.mubr.bf16.mxu0 %v7158
      %7347 = vmatmul.mubr.bf16.gmra.mrb[0].mxu0 %v7157
      %v7348 = vpop.f32.mrb[0].mxu0
      %v7349 = vadd.f32 %v7201, %v7348
      %v7350 = vpop.f32.mrb[0].mxu0
      %v7351 = vpop.f32.mrb[0].mxu0
      %v7352 = vadd.f32 %v7201, %v7351
      %v7353 = vpop.f32.mrb[0].mxu0
      %7354 = vdwg.mxu0
      %7355 = vmatprep.subr.bf16.mxu0 0
      %7356 = vmatpush1.bf16.msra.mxu0 %v7291
      %7357 = vmatprep.subr.bf16.mxu0 0
      %7358 = vmatpush1.bf16.msra.mxu0 %v7292
      %7359 = vmatprep.subr.bf16.mxu0 0
      %7360 = vmatpush1.bf16.msra.mxu0 0
      %7361 = vmatprep.subr.bf16.mxu0 0
      %7362 = vmatpush1.bf16.msra.mxu0 0
      %7363 = vmatprep.subr.bf16.mxu0 0
      %7364 = vmatpush1.bf16.msra.mxu0 0
      %7365 = vmatprep.subr.bf16.mxu0 0
      %7366 = vmatpush1.bf16.msra.mxu0 0
      %7367 = vmatprep.subr.bf16.mxu0 0
      %7368 = vmatpush1.bf16.msra.mxu0 0
      %7369 = vmatprep.subr.bf16.mxu0 0
      %7370 = vmatpush1.bf16.msra.mxu0 0
      %7371 = vmatprep.subr.bf16.mxu0 0
      %7372 = vmatpush1.bf16.msra.mxu0 0
      %7373 = vmatprep.subr.bf16.mxu0 0
      %7374 = vmatpush1.bf16.msra.mxu0 0
      %7375 = vmatprep.subr.bf16.mxu0 0
      %7376 = vmatpush1.bf16.msra.mxu0 0
      %7377 = vmatprep.subr.bf16.mxu0 0
      %7378 = vmatpush1.bf16.msra.mxu0 0
      %7379 = vmatprep.subr.bf16.mxu0 0
      %7380 = vmatpush1.bf16.msra.mxu0 0
      %7381 = vmatprep.subr.bf16.mxu0 0
      %7382 = vmatpush1.bf16.msra.mxu0 0
      %7383 = vmatprep.subr.bf16.mxu0 0
      %7384 = vmatpush1.bf16.msra.mxu0 0
      %7385 = vmatprep.subr.bf16.mxu0 0
      %7386 = vmatpush1.bf16.msra.mxu0 0
      %7387 = vmatprep.mubr.bf16.mxu0 0
      %7388 = vmatmul.mubr.bf16.gmra.mrb[0].mxu0 %v7312
      %v7389 = vpop.f32.mrb[0].mxu0
      %v7390 = vadd.f32 %v7349, %v7389
      %v7391 = vpop.f32.mrb[0].mxu0
      %v7392 = vpop.f32.mrb[0].mxu0
      %v7393 = vadd.f32 %v7352, %v7392
      %v7394 = vpop.f32.mrb[0].mxu0
      %7395 = vdwg.mxu0
      %v7396 = vmax.f32 %v7390, 0.0
      %v7397 = vmax.f32 %v7393, 0.0
      %vm7398 = vcmp.gt.f32.partialorder %v1252, 0.5
      %vm7399 = vcmp.gt.f32.partialorder %v1253, 0.5
      %v7400 = vrot.slane %v6239, 4
      %v7401 = vrot.slane %v6242, 4
      %v7402 = vsel %vm6358, %v7400, %v7401
      %v7403 = vsel %vm6358, %v7401, %v7400
      %v7404 = vsel %vm7398, 1, 0
      %v7405 = vsel %vm7399, 1, 0
      %7406 = vset.pattern.permute.xlu0 1
      %7407 = vperm.xlu0 %7406, %v7404
      %v7408 = vpop.permute.xlu0 %7407
      %7409 = vset.pattern.permute.xlu0 1
      %7410 = vperm.xlu0 %7409, %v7405
      %v7411 = vpop.permute.xlu0 %7410
      %vm7412 = vcmp.eq.s32.totalorder %v7408, 1
      %vm7413 = vcmp.eq.s32.totalorder %v7411, 1
      %v7414 = vsel %vm7412, %v7403, -1e+30
      %v7415 = vsel %vm7413, %v7402, -1e+30
      %7416 = vset.pattern.permute.xlu0 7
      %7417 = vperm.xlu0 %7416, %v7404
      %v7418 = vpop.permute.xlu0 %7417
      %7419 = vset.pattern.permute.xlu0 7
      %7420 = vperm.xlu0 %7419, %v7405
      %v7421 = vpop.permute.xlu0 %7420
      %vm7422 = vcmp.eq.s32.totalorder %v7418, 1
      %vm7423 = vcmp.eq.s32.totalorder %v7421, 1
      %v7424 = vsel %vm7422, %v7402, -1e+30
      %v7425 = vsel %vm7423, %v7403, -1e+30
      %v7426 = vmax.f32 %v7414, %v7424
      %v7427 = vmax.f32 %v7415, %v7425
      %v7428 = vmax.f32 %v7426, %v6239
      %v7429 = vmax.f32 %v7427, %v6242
      %v7430 = vrot.slane %v7428, 7
      %v7431 = vrot.slane %v7429, 7
      %v7432 = vsel %vm1320, %v7430, %v7431
      %v7433 = vsel %vm1320, %v7431, %v7430
      %7434 = vset.pattern.permute.xlu0 3
      %7435 = vperm.xlu0 %7434, %v7404
      %v7436 = vpop.permute.xlu0 %7435
      %7437 = vset.pattern.permute.xlu0 3
      %7438 = vperm.xlu0 %7437, %v7405
      %v7439 = vpop.permute.xlu0 %7438
      %vm7440 = vcmp.eq.s32.totalorder %v7436, 1
      %vm7441 = vcmp.eq.s32.totalorder %v7439, 1
      %v7442 = vsel %vm7440, %v7433, -1e+30
      %v7443 = vsel %vm7441, %v7432, -1e+30
      %v7444 = vrot.slane %v7428, 1
      %v7445 = vrot.slane %v7429, 1
      %v7446 = vsel %vm1577, %v7444, %v7445
      %v7447 = vsel %vm1577, %v7445, %v7444
      %7448 = vset.pattern.permute.xlu0 5
      %7449 = vperm.xlu0 %7448, %v7404
      %v7450 = vpop.permute.xlu0 %7449
      %7451 = vset.pattern.permute.xlu0 5
      %7452 = vperm.xlu0 %7451, %v7405
      %v7453 = vpop.permute.xlu0 %7452
      %vm7454 = vcmp.eq.s32.totalorder %v7450, 1
      %vm7455 = vcmp.eq.s32.totalorder %v7453, 1
      %v7456 = vsel %vm7454, %v7446, -1e+30
      %v7457 = vsel %vm7455, %v7447, -1e+30
      %v7458 = vmax.f32 %v7442, %v7456
      %v7459 = vmax.f32 %v7443, %v7457
      %v7460 = vmax.f32 %v7458, %v7428
      %v7461 = vmax.f32 %v7459, %v7429
      %v7462 = vpack.c.bf16 %v7461, %v7460
      %v7463 = vld [vmem:[%s41] sm:$0xf]
      %v7464 = vld [vmem:[%s41 + $0x4] sm:$0xf]
      %v7465 = vld [vmem:[%s41 + $0x8] sm:$0xf]
      %v7466 = vld [vmem:[%s41 + $0xc] sm:$0xf]
      %v7467 = vld [vmem:[%s41 + $0x10] sm:$0xf]
      %v7468 = vld [vmem:[%s41 + $0x14] sm:$0xf]
      %v7469 = vld [vmem:[%s41 + $0x18] sm:$0xf]
      %v7470 = vld [vmem:[%s41 + $0x1c] sm:$0xf]
      %v7471 = vld [vmem:[%s43] sm:$0x1]
      %v7473 = vlaneseq
      %v7474 = vshrl.u32 %v7473, 7
      %v7475 = vsub.s32 0, %v7474
      %v7476 = vrot.slane %v7471, %v7475
      %v7486 = vunpack.c.l.b16 %v7463
      %v7487 = vunpack.c.l.b16 %v7464
      %v7488 = vunpack.c.l.b16 %v7465
      %v7489 = vunpack.c.l.b16 %v7466
      %v7490 = vunpack.c.l.b16 %v7467
      %v7491 = vunpack.c.l.b16 %v7468
      %v7492 = vunpack.c.l.b16 %v7469
      %v7493 = vunpack.c.l.b16 %v7470
      %v7494 = vpack.c.b16 %v7487, %v7486
      %v7495 = vpack.c.b16 %v7489, %v7488
      %v7496 = vpack.c.b16 %v7491, %v7490
      %v7497 = vpack.c.b16 %v7493, %v7492
      %v7503 = vsel %vm5595, %v7462, 0
      %7505 = vmatprep.subr.bf16.mxu0 0
      %7506 = vmatpush1.bf16.msra.mxu0 %v7494
      %7507 = vmatprep.subr.bf16.mxu0 0
      %7508 = vmatpush1.bf16.msra.mxu0 %v7495
      %7509 = vmatprep.subr.bf16.mxu0 0
      %7510 = vmatpush1.bf16.msra.mxu0 %v7496
      %7511 = vmatprep.subr.bf16.mxu0 0
      %7512 = vmatpush1.bf16.msra.mxu0 %v7497
      %7513 = vmatprep.subr.bf16.mxu0 0
      %7514 = vmatpush1.bf16.msra.mxu0 0
      %7515 = vmatprep.subr.bf16.mxu0 0
      %7516 = vmatpush1.bf16.msra.mxu0 0
      %7517 = vmatprep.subr.bf16.mxu0 0
      %7518 = vmatpush1.bf16.msra.mxu0 0
      %7519 = vmatprep.subr.bf16.mxu0 0
      %7520 = vmatpush1.bf16.msra.mxu0 0
      %7521 = vmatprep.subr.bf16.mxu0 0
      %7522 = vmatpush1.bf16.msra.mxu0 0
      %7523 = vmatprep.subr.bf16.mxu0 0
      %7524 = vmatpush1.bf16.msra.mxu0 0
      %7525 = vmatprep.subr.bf16.mxu0 0
      %7526 = vmatpush1.bf16.msra.mxu0 0
      %7527 = vmatprep.subr.bf16.mxu0 0
      %7528 = vmatpush1.bf16.msra.mxu0 0
      %7529 = vmatprep.subr.bf16.mxu0 0
      %7530 = vmatpush1.bf16.msra.mxu0 0
      %7531 = vmatprep.subr.bf16.mxu0 0
      %7532 = vmatpush1.bf16.msra.mxu0 0
      %7533 = vmatprep.subr.bf16.mxu0 0
      %7534 = vmatpush1.bf16.msra.mxu0 0
      %7535 = vmatprep.subr.bf16.mxu0 0
      %7536 = vmatpush1.bf16.msra.mxu0 0
      %7537 = vmatprep.mubr.bf16.mxu0 0
      %7538 = vmatmul.mubr.bf16.gmra.mrb[0].mxu0 %v7503
      %v7539 = vpop.f32.mrb[0].mxu0
      %v7540 = vadd.f32 %v7476, %v7539
      %v7541 = vpop.f32.mrb[0].mxu0
      %v7542 = vpop.f32.mrb[0].mxu0
      %v7543 = vadd.f32 %v7476, %v7542
      %v7544 = vpop.f32.mrb[0].mxu0
      %7545 = vdwg.mxu0
      %v7546 = vmax.f32 %v7540, 0.0
      %v7547 = vmax.f32 %v7543, 0.0
      %7550 = vrot.lane.b32.xlu0 %v6822, 64
      %v7551 = vpop.permute.xlu0 %7550
      %7552 = vrot.lane.b32.xlu0 %v6823, 64
      %v7553 = vpop.permute.xlu0 %7552
      %7558 = vrot.lane.b32.xlu0 %v7546, 32
      %v7559 = vpop.permute.xlu0 %7558
      %7560 = vrot.lane.b32.xlu0 %v7547, 32
      %v7561 = vpop.permute.xlu0 %7560
      %v7564 = vsel %vm5595, %v6329, %v7551
      %v7565 = vsel %vm5595, %v6330, %v7553
      %v7566 = vsel %vm5586, %v7396, %v7559
      %v7567 = vsel %vm5586, %v7397, %v7561
      %v7568 = vld [vmem:[%s45] sm:$0x3]
      %v7570 = vlaneseq
      %v7571 = vshrl.u32 %v7570, 7
      %v7572 = vsub.s32 0, %v7571
      %v7573 = vrot.slane %v7568, %v7572
      %v7574 = vlaneseq
      %v7575 = vshrl.u32 %v7574, 7
      %v7576 = vsub.s32 1, %v7575
      %v7577 = vrot.slane %v7568, %v7576
      %v7580 = vmul.f32 %v7564, %v7573
      %v7581 = vmul.f32 %v7566, %v7577
      %v7582 = vmul.f32 %v7565, %v7573
      %v7583 = vmul.f32 %v7567, %v7577
      %v7584 = vld [vmem:[%s47] sm:$0x3]
      %v7586 = vlaneseq
      %v7587 = vshrl.u32 %v7586, 7
      %v7588 = vsub.s32 0, %v7587
      %v7589 = vrot.slane %v7584, %v7588
      %v7590 = vlaneseq
      %v7591 = vshrl.u32 %v7590, 7
      %v7592 = vsub.s32 1, %v7591
      %v7593 = vrot.slane %v7584, %v7592
      %v7596 = vadd.f32 %v7580, %v7589
      %v7597 = vadd.f32 %v7581, %v7593
      %v7598 = vadd.f32 %v7582, %v7589
      %v7599 = vadd.f32 %v7583, %v7593
      %v7600 = vmax.f32 %v7596, 0.0
      %v7601 = vmax.f32 %v7597, 0.0
      %v7602 = vmax.f32 %v7598, 0.0
      %v7603 = vmax.f32 %v7599, 0.0
      %v7604 = vpack.c.bf16 %v7602, %v7600
      %v7605 = vpack.c.bf16 %v7603, %v7601
      %v7606 = vld [vmem:[%s49] sm:$0xff]
      %v7607 = vld [vmem:[%s49 + $0x8] sm:$0xff]
      %v7608 = vld [vmem:[%s49 + $0x10] sm:$0xff]
      %v7609 = vld [vmem:[%s49 + $0x18] sm:$0xff]
      %v7610 = vld [vmem:[%s49 + $0x20] sm:$0xff]
      %v7611 = vld [vmem:[%s49 + $0x28] sm:$0xff]
      %v7612 = vld [vmem:[%s49 + $0x30] sm:$0xff]
      %v7613 = vld [vmem:[%s49 + $0x38] sm:$0xff]
      %v7614 = vld [vmem:[%s49 + $0x40] sm:$0xff]
      %v7615 = vld [vmem:[%s49 + $0x48] sm:$0xff]
      %v7616 = vld [vmem:[%s49 + $0x50] sm:$0xff]
      %v7617 = vld [vmem:[%s49 + $0x58] sm:$0xff]
      %v7618 = vld [vmem:[%s49 + $0x60] sm:$0xff]
      %v7619 = vld [vmem:[%s49 + $0x68] sm:$0xff]
      %v7620 = vld [vmem:[%s49 + $0x70] sm:$0xff]
      %v7621 = vld [vmem:[%s49 + $0x78] sm:$0xff]
      %v7622 = vld [vmem:[%s49 + $0x80] sm:$0xff]
      %v7623 = vld [vmem:[%s49 + $0x88] sm:$0xff]
      %v7624 = vld [vmem:[%s49 + $0x90] sm:$0xff]
      %v7625 = vld [vmem:[%s49 + $0x98] sm:$0xff]
      %v7626 = vld [vmem:[%s49 + $0xa0] sm:$0xff]
      %v7627 = vld [vmem:[%s49 + $0xa8] sm:$0xff]
      %v7628 = vld [vmem:[%s49 + $0xb0] sm:$0xff]
      %v7629 = vld [vmem:[%s49 + $0xb8] sm:$0xff]
      %v7630 = vld [vmem:[%s51] sm:$0x3]
      %v7632 = vlaneseq
      %v7633 = vshrl.u32 %v7632, 7
      %v7634 = vsub.s32 0, %v7633
      %v7635 = vrot.slane %v7630, %v7634
      %v7636 = vlaneseq
      %v7637 = vshrl.u32 %v7636, 7
      %v7638 = vsub.s32 1, %v7637
      %v7639 = vrot.slane %v7630, %v7638
      %v7666 = vunpack.c.l.b16 %v7606
      %v7667 = vunpack.c.h.b16 %v7606
      %v7668 = vunpack.c.l.b16 %v7607
      %v7669 = vunpack.c.h.b16 %v7607
      %v7670 = vunpack.c.l.b16 %v7608
      %v7671 = vunpack.c.h.b16 %v7608
      %v7672 = vunpack.c.l.b16 %v7609
      %v7673 = vunpack.c.h.b16 %v7609
      %v7674 = vunpack.c.l.b16 %v7610
      %v7675 = vunpack.c.h.b16 %v7610
      %v7676 = vunpack.c.l.b16 %v7611
      %v7677 = vunpack.c.h.b16 %v7611
      %v7678 = vunpack.c.l.b16 %v7612
      %v7679 = vunpack.c.h.b16 %v7612
      %v7680 = vunpack.c.l.b16 %v7613
      %v7681 = vunpack.c.h.b16 %v7613
      %v7682 = vunpack.c.l.b16 %v7614
      %v7683 = vunpack.c.h.b16 %v7614
      %v7684 = vunpack.c.l.b16 %v7615
      %v7685 = vunpack.c.h.b16 %v7615
      %v7686 = vunpack.c.l.b16 %v7616
      %v7687 = vunpack.c.h.b16 %v7616
      %v7688 = vunpack.c.l.b16 %v7617
      %v7689 = vunpack.c.h.b16 %v7617
      %v7690 = vunpack.c.l.b16 %v7618
      %v7691 = vunpack.c.h.b16 %v7618
      %v7692 = vunpack.c.l.b16 %v7619
      %v7693 = vunpack.c.h.b16 %v7619
      %v7694 = vunpack.c.l.b16 %v7620
      %v7695 = vunpack.c.h.b16 %v7620
      %v7696 = vunpack.c.l.b16 %v7621
      %v7697 = vunpack.c.h.b16 %v7621
      %v7698 = vunpack.c.l.b16 %v7622
      %v7699 = vunpack.c.h.b16 %v7622
      %v7700 = vunpack.c.l.b16 %v7623
      %v7701 = vunpack.c.h.b16 %v7623
      %v7702 = vunpack.c.l.b16 %v7624
      %v7703 = vunpack.c.h.b16 %v7624
      %v7704 = vunpack.c.l.b16 %v7625
      %v7705 = vunpack.c.h.b16 %v7625
      %v7706 = vunpack.c.l.b16 %v7626
      %v7707 = vunpack.c.h.b16 %v7626
      %v7708 = vunpack.c.l.b16 %v7627
      %v7709 = vunpack.c.h.b16 %v7627
      %v7710 = vunpack.c.l.b16 %v7628
      %v7711 = vunpack.c.h.b16 %v7628
      %v7712 = vunpack.c.l.b16 %v7629
      %v7713 = vunpack.c.h.b16 %v7629
      %v7714 = vpack.c.b16 %v7668, %v7666
      %v7715 = vpack.c.b16 %v7669, %v7667
      %v7716 = vpack.c.b16 %v7672, %v7670
      %v7717 = vpack.c.b16 %v7673, %v7671
      %v7718 = vpack.c.b16 %v7676, %v7674
      %v7719 = vpack.c.b16 %v7677, %v7675
      %v7720 = vpack.c.b16 %v7680, %v7678
      %v7721 = vpack.c.b16 %v7681, %v7679
      %v7722 = vpack.c.b16 %v7684, %v7682
      %v7723 = vpack.c.b16 %v7685, %v7683
      %v7724 = vpack.c.b16 %v7688, %v7686
      %v7725 = vpack.c.b16 %v7689, %v7687
      %v7726 = vpack.c.b16 %v7692, %v7690
      %v7727 = vpack.c.b16 %v7693, %v7691
      %v7728 = vpack.c.b16 %v7696, %v7694
      %v7729 = vpack.c.b16 %v7697, %v7695
      %v7730 = vpack.c.b16 %v7700, %v7698
      %v7731 = vpack.c.b16 %v7701, %v7699
      %v7732 = vpack.c.b16 %v7704, %v7702
      %v7733 = vpack.c.b16 %v7705, %v7703
      %v7734 = vpack.c.b16 %v7708, %v7706
      %v7735 = vpack.c.b16 %v7709, %v7707
      %v7736 = vpack.c.b16 %v7712, %v7710
      %v7737 = vpack.c.b16 %v7713, %v7711
      %v7763 = vsel %vm5595, %v7605, 0
      %7765 = vmatprep.subr.bf16.mxu0 %v7715
      %7766 = vmatpush1.bf16.msra.mxu0 %v7714
      %7767 = vmatprep.subr.bf16.mxu0 %v7717
      %7768 = vmatpush1.bf16.msra.mxu0 %v7716
      %7769 = vmatprep.subr.bf16.mxu0 %v7719
      %7770 = vmatpush1.bf16.msra.mxu0 %v7718
      %7771 = vmatprep.subr.bf16.mxu0 %v7721
      %7772 = vmatpush1.bf16.msra.mxu0 %v7720
      %7773 = vmatprep.subr.bf16.mxu0 %v7723
      %7774 = vmatpush1.bf16.msra.mxu0 %v7722
      %7775 = vmatprep.subr.bf16.mxu0 %v7725
      %7776 = vmatpush1.bf16.msra.mxu0 %v7724
      %7777 = vmatprep.subr.bf16.mxu0 %v7727
      %7778 = vmatpush1.bf16.msra.mxu0 %v7726
      %7779 = vmatprep.subr.bf16.mxu0 %v7729
      %7780 = vmatpush1.bf16.msra.mxu0 %v7728
      %7781 = vmatprep.subr.bf16.mxu0 %v7731
      %7782 = vmatpush1.bf16.msra.mxu0 %v7730
      %7783 = vmatprep.subr.bf16.mxu0 %v7733
      %7784 = vmatpush1.bf16.msra.mxu0 %v7732
      %7785 = vmatprep.subr.bf16.mxu0 %v7735
      %7786 = vmatpush1.bf16.msra.mxu0 %v7734
      %7787 = vmatprep.subr.bf16.mxu0 %v7737
      %7788 = vmatpush1.bf16.msra.mxu0 %v7736
      %7789 = vmatprep.subr.bf16.mxu0 0
      %7790 = vmatpush1.bf16.msra.mxu0 0
      %7791 = vmatprep.subr.bf16.mxu0 0
      %7792 = vmatpush1.bf16.msra.mxu0 0
      %7793 = vmatprep.subr.bf16.mxu0 0
      %7794 = vmatpush1.bf16.msra.mxu0 0
      %7795 = vmatprep.subr.bf16.mxu0 0
      %7796 = vmatpush1.bf16.msra.mxu0 0
      %7797 = vmatprep.mubr.bf16.mxu0 %v7763
      %7798 = vmatmul.mubr.bf16.gmra.mrb[0].mxu0 %v7604
      %v7799 = vpop.f32.mrb[0].mxu0
      %v7800 = vadd.f32 %v7635, %v7799
      %v7801 = vpop.f32.mrb[0].mxu0
      %v7802 = vadd.f32 %v7639, %v7801
      %v7803 = vpop.f32.mrb[0].mxu0
      %v7804 = vadd.f32 %v7635, %v7803
      %v7805 = vpop.f32.mrb[0].mxu0
      %v7806 = vadd.f32 %v7639, %v7805
      %7807 = vdwg.mxu0
      %v7808 = vmax.f32 %v7800, 0.0
      %v7809 = vmax.f32 %v7802, 0.0
      %v7810 = vmax.f32 %v7804, 0.0
      %v7811 = vmax.f32 %v7806, 0.0
      %v7812 = vrot.slane %v7809, 3
      %v7813 = vrot.slane %v7811, 3
      %v7814 = vsel %vm6341, %v7812, %v7813
      %v7815 = vsel %vm6341, %v7813, %v7812
      %v7816 = vmul.f32 %v7815, %v6347
      %v7817 = vmul.f32 %v7814, %v6352
      %v7818 = vrot.slane %v7809, 4
      %v7819 = vrot.slane %v7811, 4
      %v7820 = vsel %vm6358, %v7818, %v7819
      %v7821 = vsel %vm6358, %v7819, %v7818
      %v7822 = vmul.f32 %v7821, %v6363
      %v7823 = vmul.f32 %v7820, %v6367
      %v7824 = vrot.slane %v7809, 5
      %v7825 = vrot.slane %v7811, 5
      %v7826 = vsel %vm6373, %v7824, %v7825
      %v7827 = vsel %vm6373, %v7825, %v7824
      %v7828 = vmul.f32 %v7827, %v6378
      %v7829 = vmul.f32 %v7826, %v6382
      %v7830 = vrot.slane %v7809, 7
      %v7831 = vrot.slane %v7811, 7
      %v7832 = vsel %vm1320, %v7830, %v7831
      %v7833 = vsel %vm1320, %v7831, %v7830
      %v7834 = vmul.f32 %v7833, %v6392
      %v7835 = vmul.f32 %v7832, %v6396
      %v7836 = vrot.slane %v7809, 1
      %v7837 = vrot.slane %v7811, 1
      %v7838 = vsel %vm1577, %v7836, %v7837
      %v7839 = vsel %vm1577, %v7837, %v7836
      %v7840 = vmul.f32 %v7838, %v6406
      %v7841 = vmul.f32 %v7839, %v6410
      %v7842 = vmul.f32 %v7814, %v6416
      %v7843 = vmul.f32 %v7815, %v6420
      %v7844 = vmul.f32 %v7820, %v6426
      %v7845 = vmul.f32 %v7821, %v6430
      %v7846 = vmul.f32 %v7826, %v6436
      %v7847 = vmul.f32 %v7827, %v6440
      %7850 = vrot.lane.b32.xlu0 %v7822, 64
      %v7851 = vpop.permute.xlu0 %7850
      %7852 = vrot.lane.b32.xlu0 %v7823, 64
      %v7853 = vpop.permute.xlu0 %7852
      %7858 = vrot.lane.b32.xlu0 %v7834, 64
      %v7859 = vpop.permute.xlu0 %7858
      %7860 = vrot.lane.b32.xlu0 %v7835, 64
      %v7861 = vpop.permute.xlu0 %7860
      %7866 = vrot.lane.b32.xlu0 %v7840, 64
      %v7867 = vpop.permute.xlu0 %7866
      %7868 = vrot.lane.b32.xlu0 %v7841, 64
      %v7869 = vpop.permute.xlu0 %7868
      %7874 = vrot.lane.b32.xlu0 %v7844, 64
      %v7875 = vpop.permute.xlu0 %7874
      %7876 = vrot.lane.b32.xlu0 %v7845, 64
      %v7877 = vpop.permute.xlu0 %7876
      %v7880 = vsel %vm5595, %v7816, %v7851
      %v7881 = vsel %vm5595, %v7817, %v7853
      %v7882 = vsel %vm5595, %v7828, %v7859
      %v7883 = vsel %vm5595, %v7829, %v7861
      %v7884 = vsel %vm5595, %v7809, %v7867
      %v7885 = vsel %vm5595, %v7811, %v7869
      %v7886 = vsel %vm5595, %v7842, %v7875
      %v7887 = vsel %vm5595, %v7843, %v7877
      %v7888 = vpack.c.bf16 %v7881, %v7880
      %v7889 = vpack.c.bf16 %v7883, %v7882
      %v7890 = vpack.c.bf16 %v7885, %v7884
      %v7891 = vpack.c.bf16 %v7887, %v7886
      %v7892 = vpack.c.bf16 %v7847, %v7846
      %v7893 = vld [vmem:[%s53] sm:$0xf]
      %v7894 = vld [vmem:[%s53 + $0x4] sm:$0xf]
      %v7895 = vld [vmem:[%s53 + $0x8] sm:$0xf]
      %v7896 = vld [vmem:[%s53 + $0xc] sm:$0xf]
      %v7897 = vld [vmem:[%s53 + $0x10] sm:$0xf]
      %v7898 = vld [vmem:[%s53 + $0x14] sm:$0xf]
      %v7899 = vld [vmem:[%s53 + $0x18] sm:$0xf]
      %v7900 = vld [vmem:[%s53 + $0x1c] sm:$0xf]
      %v7901 = vld [vmem:[%s53 + $0x20] sm:$0xf]
      %v7902 = vld [vmem:[%s53 + $0x24] sm:$0xf]
      %v7903 = vld [vmem:[%s53 + $0x28] sm:$0xf]
      %v7904 = vld [vmem:[%s53 + $0x2c] sm:$0xf]
      %v7905 = vld [vmem:[%s53 + $0x30] sm:$0xf]
      %v7906 = vld [vmem:[%s53 + $0x34] sm:$0xf]
      %v7907 = vld [vmem:[%s53 + $0x38] sm:$0xf]
      %v7908 = vld [vmem:[%s53 + $0x3c] sm:$0xf]
      %v7909 = vld [vmem:[%s53 + $0x40] sm:$0xf]
      %v7910 = vld [vmem:[%s53 + $0x44] sm:$0xf]
      %v7911 = vld [vmem:[%s53 + $0x48] sm:$0xf]
      %v7912 = vld [vmem:[%s53 + $0x4c] sm:$0xf]
      %v7913 = vld [vmem:[%s53 + $0x50] sm:$0xf]
      %v7914 = vld [vmem:[%s53 + $0x54] sm:$0xf]
      %v7915 = vld [vmem:[%s53 + $0x58] sm:$0xf]
      %v7916 = vld [vmem:[%s53 + $0x5c] sm:$0xf]
      %v7917 = vld [vmem:[%s53 + $0x60] sm:$0xf]
      %v7918 = vld [vmem:[%s53 + $0x64] sm:$0xf]
      %v7919 = vld [vmem:[%s53 + $0x68] sm:$0xf]
      %v7920 = vld [vmem:[%s53 + $0x6c] sm:$0xf]
      %v7921 = vld [vmem:[%s53 + $0x70] sm:$0xf]
      %v7922 = vld [vmem:[%s53 + $0x74] sm:$0xf]
      %v7923 = vld [vmem:[%s53 + $0x78] sm:$0xf]
      %v7924 = vld [vmem:[%s53 + $0x7c] sm:$0xf]
      %v7925 = vld [vmem:[%s53 + $0x80] sm:$0xf]
      %v7926 = vld [vmem:[%s53 + $0x84] sm:$0xf]
      %v7927 = vld [vmem:[%s53 + $0x88] sm:$0xf]
      %v7928 = vld [vmem:[%s53 + $0x8c] sm:$0xf]
      %v7929 = vld [vmem:[%s53 + $0x90] sm:$0xf]
      %v7930 = vld [vmem:[%s53 + $0x94] sm:$0xf]
      %v7931 = vld [vmem:[%s53 + $0x98] sm:$0xf]
      %v7932 = vld [vmem:[%s53 + $0x9c] sm:$0xf]
      %v7933 = vld [vmem:[%s53 + $0xa0] sm:$0xf]
      %v7934 = vld [vmem:[%s53 + $0xa4] sm:$0xf]
      %v7935 = vld [vmem:[%s53 + $0xa8] sm:$0xf]
      %v7936 = vld [vmem:[%s53 + $0xac] sm:$0xf]
      %v7937 = vld [vmem:[%s53 + $0xb0] sm:$0xf]
      %v7938 = vld [vmem:[%s53 + $0xb4] sm:$0xf]
      %v7939 = vld [vmem:[%s53 + $0xb8] sm:$0xf]
      %v7940 = vld [vmem:[%s53 + $0xbc] sm:$0xf]
      %v7941 = vld [vmem:[%s53 + $0xc0] sm:$0xf]
      %v7942 = vld [vmem:[%s53 + $0xc4] sm:$0xf]
      %v7943 = vld [vmem:[%s53 + $0xc8] sm:$0xf]
      %v7944 = vld [vmem:[%s53 + $0xcc] sm:$0xf]
      %v7945 = vld [vmem:[%s53 + $0xd0] sm:$0xf]
      %v7946 = vld [vmem:[%s53 + $0xd4] sm:$0xf]
      %v7947 = vld [vmem:[%s53 + $0xd8] sm:$0xf]
      %v7948 = vld [vmem:[%s53 + $0xdc] sm:$0xf]
      %v7949 = vld [vmem:[%s53 + $0xe0] sm:$0xf]
      %v7950 = vld [vmem:[%s53 + $0xe4] sm:$0xf]
      %v7951 = vld [vmem:[%s53 + $0xe8] sm:$0xf]
      %v7952 = vld [vmem:[%s53 + $0xec] sm:$0xf]
      %v7953 = vld [vmem:[%s53 + $0xf0] sm:$0xf]
      %v7954 = vld [vmem:[%s53 + $0xf4] sm:$0xf]
      %v7955 = vld [vmem:[%s53 + $0xf8] sm:$0xf]
      %v7956 = vld [vmem:[%s53 + $0xfc] sm:$0xf]
      %v7957 = vld [vmem:[%s53 + $0x100] sm:$0xf]
      %v7958 = vld [vmem:[%s53 + $0x104] sm:$0xf]
      %v7959 = vld [vmem:[%s53 + $0x108] sm:$0xf]
      %v7960 = vld [vmem:[%s53 + $0x10c] sm:$0xf]
      %v7961 = vld [vmem:[%s53 + $0x110] sm:$0xf]
      %v7962 = vld [vmem:[%s53 + $0x114] sm:$0xf]
      %v7963 = vld [vmem:[%s53 + $0x118] sm:$0xf]
      %v7964 = vld [vmem:[%s53 + $0x11c] sm:$0xf]
      %v7965 = vld [vmem:[%s55] sm:$0x1]
      %v7967 = vlaneseq
      %v7968 = vshrl.u32 %v7967, 7
      %v7969 = vsub.s32 0, %v7968
      %v7970 = vrot.slane %v7965, %v7969
      %v8044 = vunpack.c.l.b16 %v7893
      %v8045 = vunpack.c.l.b16 %v7894
      %v8046 = vunpack.c.l.b16 %v7895
      %v8047 = vunpack.c.l.b16 %v7896
      %v8048 = vunpack.c.l.b16 %v7897
      %v8049 = vunpack.c.l.b16 %v7898
      %v8050 = vunpack.c.l.b16 %v7899
      %v8051 = vunpack.c.l.b16 %v7900
      %v8052 = vunpack.c.l.b16 %v7901
      %v8053 = vunpack.c.l.b16 %v7902
      %v8054 = vunpack.c.l.b16 %v7903
      %v8055 = vunpack.c.l.b16 %v7904
      %v8056 = vunpack.c.l.b16 %v7905
      %v8057 = vunpack.c.l.b16 %v7906
      %v8058 = vunpack.c.l.b16 %v7907
      %v8059 = vunpack.c.l.b16 %v7908
      %v8060 = vunpack.c.l.b16 %v7909
      %v8061 = vunpack.c.l.b16 %v7910
      %v8062 = vunpack.c.l.b16 %v7911
      %v8063 = vunpack.c.l.b16 %v7912
      %v8064 = vunpack.c.l.b16 %v7913
      %v8065 = vunpack.c.l.b16 %v7914
      %v8066 = vunpack.c.l.b16 %v7915
      %v8067 = vunpack.c.l.b16 %v7916
      %v8068 = vunpack.c.l.b16 %v7917
      %v8069 = vunpack.c.l.b16 %v7918
      %v8070 = vunpack.c.l.b16 %v7919
      %v8071 = vunpack.c.l.b16 %v7920
      %v8072 = vunpack.c.l.b16 %v7921
      %v8073 = vunpack.c.l.b16 %v7922
      %v8074 = vunpack.c.l.b16 %v7923
      %v8075 = vunpack.c.l.b16 %v7924
      %v8076 = vunpack.c.l.b16 %v7925
      %v8077 = vunpack.c.l.b16 %v7926
      %v8078 = vunpack.c.l.b16 %v7927
      %v8079 = vunpack.c.l.b16 %v7928
      %v8080 = vunpack.c.l.b16 %v7929
      %v8081 = vunpack.c.l.b16 %v7930
      %v8082 = vunpack.c.l.b16 %v7931
      %v8083 = vunpack.c.l.b16 %v7932
      %v8084 = vunpack.c.l.b16 %v7933
      %v8085 = vunpack.c.l.b16 %v7934
      %v8086 = vunpack.c.l.b16 %v7935
      %v8087 = vunpack.c.l.b16 %v7936
      %v8088 = vunpack.c.l.b16 %v7937
      %v8089 = vunpack.c.l.b16 %v7938
      %v8090 = vunpack.c.l.b16 %v7939
      %v8091 = vunpack.c.l.b16 %v7940
      %v8092 = vunpack.c.l.b16 %v7941
      %v8093 = vunpack.c.l.b16 %v7942
      %v8094 = vunpack.c.l.b16 %v7943
      %v8095 = vunpack.c.l.b16 %v7944
      %v8096 = vunpack.c.l.b16 %v7945
      %v8097 = vunpack.c.l.b16 %v7946
      %v8098 = vunpack.c.l.b16 %v7947
      %v8099 = vunpack.c.l.b16 %v7948
      %v8100 = vunpack.c.l.b16 %v7949
      %v8101 = vunpack.c.l.b16 %v7950
      %v8102 = vunpack.c.l.b16 %v7951
      %v8103 = vunpack.c.l.b16 %v7952
      %v8104 = vunpack.c.l.b16 %v7953
      %v8105 = vunpack.c.l.b16 %v7954
      %v8106 = vunpack.c.l.b16 %v7955
      %v8107 = vunpack.c.l.b16 %v7956
      %v8108 = vunpack.c.l.b16 %v7957
      %v8109 = vunpack.c.l.b16 %v7958
      %v8110 = vunpack.c.l.b16 %v7959
      %v8111 = vunpack.c.l.b16 %v7960
      %v8112 = vunpack.c.l.b16 %v7961
      %v8113 = vunpack.c.l.b16 %v7962
      %v8114 = vunpack.c.l.b16 %v7963
      %v8115 = vunpack.c.l.b16 %v7964
      %v8116 = vpack.c.b16 %v8045, %v8044
      %v8117 = vpack.c.b16 %v8047, %v8046
      %v8118 = vpack.c.b16 %v8049, %v8048
      %v8119 = vpack.c.b16 %v8051, %v8050
      %v8120 = vpack.c.b16 %v8053, %v8052
      %v8121 = vpack.c.b16 %v8055, %v8054
      %v8122 = vpack.c.b16 %v8057, %v8056
      %v8123 = vpack.c.b16 %v8059, %v8058
      %v8124 = vpack.c.b16 %v8061, %v8060
      %v8125 = vpack.c.b16 %v8063, %v8062
      %v8126 = vpack.c.b16 %v8065, %v8064
      %v8127 = vpack.c.b16 %v8067, %v8066
      %v8128 = vpack.c.b16 %v8069, %v8068
      %v8129 = vpack.c.b16 %v8071, %v8070
      %v8130 = vpack.c.b16 %v8073, %v8072
      %v8131 = vpack.c.b16 %v8075, %v8074
      %v8132 = vpack.c.b16 %v8077, %v8076
      %v8133 = vpack.c.b16 %v8079, %v8078
      %v8134 = vpack.c.b16 %v8081, %v8080
      %v8135 = vpack.c.b16 %v8083, %v8082
      %v8136 = vpack.c.b16 %v8085, %v8084
      %v8137 = vpack.c.b16 %v8087, %v8086
      %v8138 = vpack.c.b16 %v8089, %v8088
      %v8139 = vpack.c.b16 %v8091, %v8090
      %v8140 = vpack.c.b16 %v8093, %v8092
      %v8141 = vpack.c.b16 %v8095, %v8094
      %v8142 = vpack.c.b16 %v8097, %v8096
      %v8143 = vpack.c.b16 %v8099, %v8098
      %v8144 = vpack.c.b16 %v8101, %v8100
      %v8145 = vpack.c.b16 %v8103, %v8102
      %v8146 = vpack.c.b16 %v8105, %v8104
      %v8147 = vpack.c.b16 %v8107, %v8106
      %v8148 = vpack.c.b16 %v8109, %v8108
      %v8149 = vpack.c.b16 %v8111, %v8110
      %v8150 = vpack.c.b16 %v8113, %v8112
      %v8151 = vpack.c.b16 %v8115, %v8114
      %v8189 = vsel %vm5595, %v7892, 0
      %8191 = vmatprep.subr.bf16.mxu0 0
      %8192 = vmatpush1.bf16.msra.mxu0 %v8116
      %8193 = vmatprep.subr.bf16.mxu0 0
      %8194 = vmatpush1.bf16.msra.mxu0 %v8117
      %8195 = vmatprep.subr.bf16.mxu0 0
      %8196 = vmatpush1.bf16.msra.mxu0 %v8118
      %8197 = vmatprep.subr.bf16.mxu0 0
      %8198 = vmatpush1.bf16.msra.mxu0 %v8119
      %8199 = vmatprep.subr.bf16.mxu0 0
      %8200 = vmatpush1.bf16.msra.mxu0 %v8120
      %8201 = vmatprep.subr.bf16.mxu0 0
      %8202 = vmatpush1.bf16.msra.mxu0 %v8121
      %8203 = vmatprep.subr.bf16.mxu0 0
      %8204 = vmatpush1.bf16.msra.mxu0 %v8122
      %8205 = vmatprep.subr.bf16.mxu0 0
      %8206 = vmatpush1.bf16.msra.mxu0 %v8123
      %8207 = vmatprep.subr.bf16.mxu0 0
      %8208 = vmatpush1.bf16.msra.mxu0 %v8124
      %8209 = vmatprep.subr.bf16.mxu0 0
      %8210 = vmatpush1.bf16.msra.mxu0 %v8125
      %8211 = vmatprep.subr.bf16.mxu0 0
      %8212 = vmatpush1.bf16.msra.mxu0 %v8126
      %8213 = vmatprep.subr.bf16.mxu0 0
      %8214 = vmatpush1.bf16.msra.mxu0 %v8127
      %8215 = vmatprep.subr.bf16.mxu0 0
      %8216 = vmatpush1.bf16.msra.mxu0 %v8128
      %8217 = vmatprep.subr.bf16.mxu0 0
      %8218 = vmatpush1.bf16.msra.mxu0 %v8129
      %8219 = vmatprep.subr.bf16.mxu0 0
      %8220 = vmatpush1.bf16.msra.mxu0 %v8130
      %8221 = vmatprep.subr.bf16.mxu0 0
      %8222 = vmatpush1.bf16.msra.mxu0 %v8131
      %8223 = vmatprep.mubr.bf16.mxu0 %v7889
      %8224 = vmatmul.mubr.bf16.gmra.mrb[0].mxu0 %v7888
      %v8225 = vpop.f32.mrb[0].mxu0
      %v8226 = vadd.f32 %v7970, %v8225
      %v8227 = vpop.f32.mrb[0].mxu0
      %v8228 = vpop.f32.mrb[0].mxu0
      %v8229 = vadd.f32 %v7970, %v8228
      %v8230 = vpop.f32.mrb[0].mxu0
      %8231 = vdwg.mxu0
      %8232 = vmatprep.subr.bf16.mxu0 0
      %8233 = vmatpush1.bf16.msra.mxu0 %v8132
      %8234 = vmatprep.subr.bf16.mxu0 0
      %8235 = vmatpush1.bf16.msra.mxu0 %v8133
      %8236 = vmatprep.subr.bf16.mxu0 0
      %8237 = vmatpush1.bf16.msra.mxu0 %v8134
      %8238 = vmatprep.subr.bf16.mxu0 0
      %8239 = vmatpush1.bf16.msra.mxu0 %v8135
      %8240 = vmatprep.subr.bf16.mxu0 0
      %8241 = vmatpush1.bf16.msra.mxu0 %v8136
      %8242 = vmatprep.subr.bf16.mxu0 0
      %8243 = vmatpush1.bf16.msra.mxu0 %v8137
      %8244 = vmatprep.subr.bf16.mxu0 0
      %8245 = vmatpush1.bf16.msra.mxu0 %v8138
      %8246 = vmatprep.subr.bf16.mxu0 0
      %8247 = vmatpush1.bf16.msra.mxu0 %v8139
      %8248 = vmatprep.subr.bf16.mxu0 0
      %8249 = vmatpush1.bf16.msra.mxu0 %v8140
      %8250 = vmatprep.subr.bf16.mxu0 0
      %8251 = vmatpush1.bf16.msra.mxu0 %v8141
      %8252 = vmatprep.subr.bf16.mxu0 0
      %8253 = vmatpush1.bf16.msra.mxu0 %v8142
      %8254 = vmatprep.subr.bf16.mxu0 0
      %8255 = vmatpush1.bf16.msra.mxu0 %v8143
      %8256 = vmatprep.subr.bf16.mxu0 0
      %8257 = vmatpush1.bf16.msra.mxu0 %v8144
      %8258 = vmatprep.subr.bf16.mxu0 0
      %8259 = vmatpush1.bf16.msra.mxu0 %v8145
      %8260 = vmatprep.subr.bf16.mxu0 0
      %8261 = vmatpush1.bf16.msra.mxu0 %v8146
      %8262 = vmatprep.subr.bf16.mxu0 0
      %8263 = vmatpush1.bf16.msra.mxu0 %v8147
      %8264 = vmatprep.mubr.bf16.mxu0 %v7891
      %8265 = vmatmul.mubr.bf16.gmra.mrb[0].mxu0 %v7890
      %v8266 = vpop.f32.mrb[0].mxu0
      %v8267 = vadd.f32 %v8226, %v8266
      %v8268 = vpop.f32.mrb[0].mxu0
      %v8269 = vpop.f32.mrb[0].mxu0
      %v8270 = vadd.f32 %v8229, %v8269
      %v8271 = vpop.f32.mrb[0].mxu0
      %8272 = vdwg.mxu0
      %8273 = vmatprep.subr.bf16.mxu0 0
      %8274 = vmatpush1.bf16.msra.mxu0 %v8148
      %8275 = vmatprep.subr.bf16.mxu0 0
      %8276 = vmatpush1.bf16.msra.mxu0 %v8149
      %8277 = vmatprep.subr.bf16.mxu0 0
      %8278 = vmatpush1.bf16.msra.mxu0 %v8150
      %8279 = vmatprep.subr.bf16.mxu0 0
      %8280 = vmatpush1.bf16.msra.mxu0 %v8151
      %8281 = vmatprep.subr.bf16.mxu0 0
      %8282 = vmatpush1.bf16.msra.mxu0 0
      %8283 = vmatprep.subr.bf16.mxu0 0
      %8284 = vmatpush1.bf16.msra.mxu0 0
      %8285 = vmatprep.subr.bf16.mxu0 0
      %8286 = vmatpush1.bf16.msra.mxu0 0
      %8287 = vmatprep.subr.bf16.mxu0 0
      %8288 = vmatpush1.bf16.msra.mxu0 0
      %8289 = vmatprep.subr.bf16.mxu0 0
      %8290 = vmatpush1.bf16.msra.mxu0 0
      %8291 = vmatprep.subr.bf16.mxu0 0
      %8292 = vmatpush1.bf16.msra.mxu0 0
      %8293 = vmatprep.subr.bf16.mxu0 0
      %8294 = vmatpush1.bf16.msra.mxu0 0
      %8295 = vmatprep.subr.bf16.mxu0 0
      %8296 = vmatpush1.bf16.msra.mxu0 0
      %8297 = vmatprep.subr.bf16.mxu0 0
      %8298 = vmatpush1.bf16.msra.mxu0 0
      %8299 = vmatprep.subr.bf16.mxu0 0
      %8300 = vmatpush1.bf16.msra.mxu0 0
      %8301 = vmatprep.subr.bf16.mxu0 0
      %8302 = vmatpush1.bf16.msra.mxu0 0
      %8303 = vmatprep.subr.bf16.mxu0 0
      %8304 = vmatpush1.bf16.msra.mxu0 0
      %8305 = vmatprep.mubr.bf16.mxu0 0
      %8306 = vmatmul.mubr.bf16.gmra.mrb[0].mxu0 %v8189
      %v8307 = vpop.f32.mrb[0].mxu0
      %v8308 = vadd.f32 %v8267, %v8307
      %v8309 = vpop.f32.mrb[0].mxu0
      %v8310 = vpop.f32.mrb[0].mxu0
      %v8311 = vadd.f32 %v8270, %v8310
      %v8312 = vpop.f32.mrb[0].mxu0
      %8313 = vdwg.mxu0
      %v8314 = vmax.f32 %v8308, 0.0
      %v8315 = vmax.f32 %v8311, 0.0
      %8318 = vrot.lane.b32.xlu0 %v7809, 64
      %v8319 = vpop.permute.xlu0 %8318
      %8320 = vrot.lane.b32.xlu0 %v7811, 64
      %v8321 = vpop.permute.xlu0 %8320
      %v8324 = vrot.slane %v8319, 3
      %v8325 = vrot.slane %v8321, 3
      %v8326 = vsel %vm6341, %v8324, %v8325
      %v8327 = vsel %vm6341, %v8325, %v8324
      %v8328 = vmul.f32 %v8327, %v6347
      %v8329 = vmul.f32 %v8326, %v6352
      %v8330 = vrot.slane %v8319, 4
      %v8331 = vrot.slane %v8321, 4
      %v8332 = vsel %vm6358, %v8330, %v8331
      %v8333 = vsel %vm6358, %v8331, %v8330
      %v8334 = vmul.f32 %v8333, %v6363
      %v8335 = vmul.f32 %v8332, %v6367
      %v8336 = vrot.slane %v8319, 5
      %v8337 = vrot.slane %v8321, 5
      %v8338 = vsel %vm6373, %v8336, %v8337
      %v8339 = vsel %vm6373, %v8337, %v8336
      %v8340 = vmul.f32 %v8339, %v6378
      %v8341 = vmul.f32 %v8338, %v6382
      %v8342 = vrot.slane %v8319, 7
      %v8343 = vrot.slane %v8321, 7
      %v8344 = vsel %vm1320, %v8342, %v8343
      %v8345 = vsel %vm1320, %v8343, %v8342
      %v8346 = vmul.f32 %v8345, %v6392
      %v8347 = vmul.f32 %v8344, %v6396
      %v8348 = vrot.slane %v8319, 1
      %v8349 = vrot.slane %v8321, 1
      %v8350 = vsel %vm1577, %v8348, %v8349
      %v8351 = vsel %vm1577, %v8349, %v8348
      %v8352 = vmul.f32 %v8350, %v6406
      %v8353 = vmul.f32 %v8351, %v6410
      %v8354 = vmul.f32 %v8326, %v6416
      %v8355 = vmul.f32 %v8327, %v6420
      %v8356 = vmul.f32 %v8332, %v6426
      %v8357 = vmul.f32 %v8333, %v6430
      %v8358 = vmul.f32 %v8338, %v6436
      %v8359 = vmul.f32 %v8339, %v6440
      %8362 = vrot.lane.b32.xlu0 %v8334, 32
      %v8363 = vpop.permute.xlu0 %8362
      %8364 = vrot.lane.b32.xlu0 %v8335, 32
      %v8365 = vpop.permute.xlu0 %8364
      %8370 = vrot.lane.b32.xlu0 %v8340, 64
      %v8371 = vpop.permute.xlu0 %8370
      %8372 = vrot.lane.b32.xlu0 %v8341, 64
      %v8373 = vpop.permute.xlu0 %8372
      %8378 = vrot.lane.b32.xlu0 %v8346, 96
      %v8379 = vpop.permute.xlu0 %8378
      %8380 = vrot.lane.b32.xlu0 %v8347, 96
      %v8381 = vpop.permute.xlu0 %8380
      %8386 = vrot.lane.b32.xlu0 %v8352, 32
      %v8387 = vpop.permute.xlu0 %8386
      %8388 = vrot.lane.b32.xlu0 %v8353, 32
      %v8389 = vpop.permute.xlu0 %8388
      %8394 = vrot.lane.b32.xlu0 %v8354, 64
      %v8395 = vpop.permute.xlu0 %8394
      %8396 = vrot.lane.b32.xlu0 %v8355, 64
      %v8397 = vpop.permute.xlu0 %8396
      %8402 = vrot.lane.b32.xlu0 %v8356, 96
      %v8403 = vpop.permute.xlu0 %8402
      %8404 = vrot.lane.b32.xlu0 %v8357, 96
      %v8405 = vpop.permute.xlu0 %8404
      %v8408 = vsel %vm5586, %v8328, %v8363
      %v8409 = vsel %vm5586, %v8329, %v8365
      %v8410 = vsel %vm5595, %v8408, %v8371
      %v8411 = vsel %vm5595, %v8409, %v8373
      %v8412 = vsel %vm5604, %v8410, %v8379
      %v8413 = vsel %vm5604, %v8411, %v8381
      %v8414 = vsel %vm5586, %v8319, %v8387
      %v8415 = vsel %vm5586, %v8321, %v8389
      %v8416 = vsel %vm5595, %v8414, %v8395
      %v8417 = vsel %vm5595, %v8415, %v8397
      %v8418 = vsel %vm5604, %v8416, %v8403
      %v8419 = vsel %vm5604, %v8417, %v8405
      %v8420 = vpack.c.bf16 %v8413, %v8412
      %v8421 = vpack.c.bf16 %v8419, %v8418
      %v8422 = vpack.c.bf16 %v8359, %v8358
      %v8423 = vld [vmem:[%s57] sm:$0xf]
      %v8424 = vld [vmem:[%s57 + $0x4] sm:$0xf]
      %v8425 = vld [vmem:[%s57 + $0x8] sm:$0xf]
      %v8426 = vld [vmem:[%s57 + $0xc] sm:$0xf]
      %v8427 = vld [vmem:[%s57 + $0x10] sm:$0xf]
      %v8428 = vld [vmem:[%s57 + $0x14] sm:$0xf]
      %v8429 = vld [vmem:[%s57 + $0x18] sm:$0xf]
      %v8430 = vld [vmem:[%s57 + $0x1c] sm:$0xf]
      %v8431 = vld [vmem:[%s57 + $0x20] sm:$0xf]
      %v8432 = vld [vmem:[%s57 + $0x24] sm:$0xf]
      %v8433 = vld [vmem:[%s57 + $0x28] sm:$0xf]
      %v8434 = vld [vmem:[%s57 + $0x2c] sm:$0xf]
      %v8435 = vld [vmem:[%s57 + $0x30] sm:$0xf]
      %v8436 = vld [vmem:[%s57 + $0x34] sm:$0xf]
      %v8437 = vld [vmem:[%s57 + $0x38] sm:$0xf]
      %v8438 = vld [vmem:[%s57 + $0x3c] sm:$0xf]
      %v8439 = vld [vmem:[%s57 + $0x40] sm:$0xf]
      %v8440 = vld [vmem:[%s57 + $0x44] sm:$0xf]
      %v8441 = vld [vmem:[%s57 + $0x48] sm:$0xf]
      %v8442 = vld [vmem:[%s57 + $0x4c] sm:$0xf]
      %v8443 = vld [vmem:[%s57 + $0x50] sm:$0xf]
      %v8444 = vld [vmem:[%s57 + $0x54] sm:$0xf]
      %v8445 = vld [vmem:[%s57 + $0x58] sm:$0xf]
      %v8446 = vld [vmem:[%s57 + $0x5c] sm:$0xf]
      %v8447 = vld [vmem:[%s57 + $0x60] sm:$0xf]
      %v8448 = vld [vmem:[%s57 + $0x64] sm:$0xf]
      %v8449 = vld [vmem:[%s57 + $0x68] sm:$0xf]
      %v8450 = vld [vmem:[%s57 + $0x6c] sm:$0xf]
      %v8451 = vld [vmem:[%s57 + $0x70] sm:$0xf]
      %v8452 = vld [vmem:[%s57 + $0x74] sm:$0xf]
      %v8453 = vld [vmem:[%s57 + $0x78] sm:$0xf]
      %v8454 = vld [vmem:[%s57 + $0x7c] sm:$0xf]
      %v8455 = vld [vmem:[%s57 + $0x80] sm:$0xf]
      %v8456 = vld [vmem:[%s57 + $0x84] sm:$0xf]
      %v8457 = vld [vmem:[%s57 + $0x88] sm:$0xf]
      %v8458 = vld [vmem:[%s57 + $0x8c] sm:$0xf]
      %v8459 = vld [vmem:[%s59] sm:$0x1]
      %v8461 = vlaneseq
      %v8462 = vshrl.u32 %v8461, 7
      %v8463 = vsub.s32 0, %v8462
      %v8464 = vrot.slane %v8459, %v8463
      %v8502 = vunpack.c.l.b16 %v8423
      %v8503 = vunpack.c.l.b16 %v8424
      %v8504 = vunpack.c.l.b16 %v8425
      %v8505 = vunpack.c.l.b16 %v8426
      %v8506 = vunpack.c.l.b16 %v8427
      %v8507 = vunpack.c.l.b16 %v8428
      %v8508 = vunpack.c.l.b16 %v8429
      %v8509 = vunpack.c.l.b16 %v8430
      %v8510 = vunpack.c.l.b16 %v8431
      %v8511 = vunpack.c.l.b16 %v8432
      %v8512 = vunpack.c.l.b16 %v8433
      %v8513 = vunpack.c.l.b16 %v8434
      %v8514 = vunpack.c.l.b16 %v8435
      %v8515 = vunpack.c.l.b16 %v8436
      %v8516 = vunpack.c.l.b16 %v8437
      %v8517 = vunpack.c.l.b16 %v8438
      %v8518 = vunpack.c.l.b16 %v8439
      %v8519 = vunpack.c.l.b16 %v8440
      %v8520 = vunpack.c.l.b16 %v8441
      %v8521 = vunpack.c.l.b16 %v8442
      %v8522 = vunpack.c.l.b16 %v8443
      %v8523 = vunpack.c.l.b16 %v8444
      %v8524 = vunpack.c.l.b16 %v8445
      %v8525 = vunpack.c.l.b16 %v8446
      %v8526 = vunpack.c.l.b16 %v8447
      %v8527 = vunpack.c.l.b16 %v8448
      %v8528 = vunpack.c.l.b16 %v8449
      %v8529 = vunpack.c.l.b16 %v8450
      %v8530 = vunpack.c.l.b16 %v8451
      %v8531 = vunpack.c.l.b16 %v8452
      %v8532 = vunpack.c.l.b16 %v8453
      %v8533 = vunpack.c.l.b16 %v8454
      %v8534 = vunpack.c.l.b16 %v8455
      %v8535 = vunpack.c.l.b16 %v8456
      %v8536 = vunpack.c.l.b16 %v8457
      %v8537 = vunpack.c.l.b16 %v8458
      %v8538 = vpack.c.b16 %v8503, %v8502
      %v8539 = vpack.c.b16 %v8505, %v8504
      %v8540 = vpack.c.b16 %v8507, %v8506
      %v8541 = vpack.c.b16 %v8509, %v8508
      %v8542 = vpack.c.b16 %v8511, %v8510
      %v8543 = vpack.c.b16 %v8513, %v8512
      %v8544 = vpack.c.b16 %v8515, %v8514
      %v8545 = vpack.c.b16 %v8517, %v8516
      %v8546 = vpack.c.b16 %v8519, %v8518
      %v8547 = vpack.c.b16 %v8521, %v8520
      %v8548 = vpack.c.b16 %v8523, %v8522
      %v8549 = vpack.c.b16 %v8525, %v8524
      %v8550 = vpack.c.b16 %v8527, %v8526
      %v8551 = vpack.c.b16 %v8529, %v8528
      %v8552 = vpack.c.b16 %v8531, %v8530
      %v8553 = vpack.c.b16 %v8533, %v8532
      %v8554 = vpack.c.b16 %v8535, %v8534
      %v8555 = vpack.c.b16 %v8537, %v8536
      %v8575 = vsel %vm5586, %v8422, 0
      %8577 = vmatprep.subr.bf16.mxu0 0
      %8578 = vmatpush1.bf16.msra.mxu0 %v8538
      %8579 = vmatprep.subr.bf16.mxu0 0
      %8580 = vmatpush1.bf16.msra.mxu0 %v8539
      %8581 = vmatprep.subr.bf16.mxu0 0
      %8582 = vmatpush1.bf16.msra.mxu0 %v8540
      %8583 = vmatprep.subr.bf16.mxu0 0
      %8584 = vmatpush1.bf16.msra.mxu0 %v8541
      %8585 = vmatprep.subr.bf16.mxu0 0
      %8586 = vmatpush1.bf16.msra.mxu0 %v8542
      %8587 = vmatprep.subr.bf16.mxu0 0
      %8588 = vmatpush1.bf16.msra.mxu0 %v8543
      %8589 = vmatprep.subr.bf16.mxu0 0
      %8590 = vmatpush1.bf16.msra.mxu0 %v8544
      %8591 = vmatprep.subr.bf16.mxu0 0
      %8592 = vmatpush1.bf16.msra.mxu0 %v8545
      %8593 = vmatprep.subr.bf16.mxu0 0
      %8594 = vmatpush1.bf16.msra.mxu0 %v8546
      %8595 = vmatprep.subr.bf16.mxu0 0
      %8596 = vmatpush1.bf16.msra.mxu0 %v8547
      %8597 = vmatprep.subr.bf16.mxu0 0
      %8598 = vmatpush1.bf16.msra.mxu0 %v8548
      %8599 = vmatprep.subr.bf16.mxu0 0
      %8600 = vmatpush1.bf16.msra.mxu0 %v8549
      %8601 = vmatprep.subr.bf16.mxu0 0
      %8602 = vmatpush1.bf16.msra.mxu0 %v8550
      %8603 = vmatprep.subr.bf16.mxu0 0
      %8604 = vmatpush1.bf16.msra.mxu0 %v8551
      %8605 = vmatprep.subr.bf16.mxu0 0
      %8606 = vmatpush1.bf16.msra.mxu0 %v8552
      %8607 = vmatprep.subr.bf16.mxu0 0
      %8608 = vmatpush1.bf16.msra.mxu0 %v8553
      %8609 = vmatprep.mubr.bf16.mxu0 %v8421
      %8610 = vmatmul.mubr.bf16.gmra.mrb[0].mxu0 %v8420
      %v8611 = vpop.f32.mrb[0].mxu0
      %v8612 = vadd.f32 %v8464, %v8611
      %v8613 = vpop.f32.mrb[0].mxu0
      %v8614 = vpop.f32.mrb[0].mxu0
      %v8615 = vadd.f32 %v8464, %v8614
      %v8616 = vpop.f32.mrb[0].mxu0
      %8617 = vdwg.mxu0
      %8618 = vmatprep.subr.bf16.mxu0 0
      %8619 = vmatpush1.bf16.msra.mxu0 %v8554
      %8620 = vmatprep.subr.bf16.mxu0 0
      %8621 = vmatpush1.bf16.msra.mxu0 %v8555
      %8622 = vmatprep.subr.bf16.mxu0 0
      %8623 = vmatpush1.bf16.msra.mxu0 0
      %8624 = vmatprep.subr.bf16.mxu0 0
      %8625 = vmatpush1.bf16.msra.mxu0 0
      %8626 = vmatprep.subr.bf16.mxu0 0
      %8627 = vmatpush1.bf16.msra.mxu0 0
      %8628 = vmatprep.subr.bf16.mxu0 0
      %8629 = vmatpush1.bf16.msra.mxu0 0
      %8630 = vmatprep.subr.bf16.mxu0 0
      %8631 = vmatpush1.bf16.msra.mxu0 0
      %8632 = vmatprep.subr.bf16.mxu0 0
      %8633 = vmatpush1.bf16.msra.mxu0 0
      %8634 = vmatprep.subr.bf16.mxu0 0
      %8635 = vmatpush1.bf16.msra.mxu0 0
      %8636 = vmatprep.subr.bf16.mxu0 0
      %8637 = vmatpush1.bf16.msra.mxu0 0
      %8638 = vmatprep.subr.bf16.mxu0 0
      %8639 = vmatpush1.bf16.msra.mxu0 0
      %8640 = vmatprep.subr.bf16.mxu0 0
      %8641 = vmatpush1.bf16.msra.mxu0 0
      %8642 = vmatprep.subr.bf16.mxu0 0
      %8643 = vmatpush1.bf16.msra.mxu0 0
      %8644 = vmatprep.subr.bf16.mxu0 0
      %8645 = vmatpush1.bf16.msra.mxu0 0
      %8646 = vmatprep.subr.bf16.mxu0 0
      %8647 = vmatpush1.bf16.msra.mxu0 0
      %8648 = vmatprep.subr.bf16.mxu0 0
      %8649 = vmatpush1.bf16.msra.mxu0 0
      %8650 = vmatprep.mubr.bf16.mxu0 0
      %8651 = vmatmul.mubr.bf16.gmra.mrb[0].mxu0 %v8575
      %v8652 = vpop.f32.mrb[0].mxu0
      %v8653 = vadd.f32 %v8612, %v8652
      %v8654 = vpop.f32.mrb[0].mxu0
      %v8655 = vpop.f32.mrb[0].mxu0
      %v8656 = vadd.f32 %v8615, %v8655
      %v8657 = vpop.f32.mrb[0].mxu0
      %8658 = vdwg.mxu0
      %v8659 = vmax.f32 %v8653, 0.0
      %v8660 = vmax.f32 %v8656, 0.0
      %v8661 = vrot.slane %v8659, 3
      %v8662 = vrot.slane %v8660, 3
      %v8663 = vsel %vm6341, %v8661, %v8662
      %v8664 = vsel %vm6341, %v8662, %v8661
      %v8665 = vmul.f32 %v8664, %v6347
      %v8666 = vmul.f32 %v8663, %v6352
      %v8667 = vrot.slane %v8659, 4
      %v8668 = vrot.slane %v8660, 4
      %v8669 = vsel %vm6358, %v8667, %v8668
      %v8670 = vsel %vm6358, %v8668, %v8667
      %v8671 = vmul.f32 %v8670, %v6363
      %v8672 = vmul.f32 %v8669, %v6367
      %v8673 = vrot.slane %v8659, 5
      %v8674 = vrot.slane %v8660, 5
      %v8675 = vsel %vm6373, %v8673, %v8674
      %v8676 = vsel %vm6373, %v8674, %v8673
      %v8677 = vmul.f32 %v8676, %v6378
      %v8678 = vmul.f32 %v8675, %v6382
      %v8679 = vrot.slane %v8659, 7
      %v8680 = vrot.slane %v8660, 7
      %v8681 = vsel %vm1320, %v8679, %v8680
      %v8682 = vsel %vm1320, %v8680, %v8679
      %v8683 = vmul.f32 %v8682, %v6392
      %v8684 = vmul.f32 %v8681, %v6396
      %v8685 = vrot.slane %v8659, 1
      %v8686 = vrot.slane %v8660, 1
      %v8687 = vsel %vm1577, %v8685, %v8686
      %v8688 = vsel %vm1577, %v8686, %v8685
      %v8689 = vmul.f32 %v8687, %v6406
      %v8690 = vmul.f32 %v8688, %v6410
      %v8691 = vmul.f32 %v8663, %v6416
      %v8692 = vmul.f32 %v8664, %v6420
      %v8693 = vmul.f32 %v8669, %v6426
      %v8694 = vmul.f32 %v8670, %v6430
      %v8695 = vmul.f32 %v8675, %v6436
      %v8696 = vmul.f32 %v8676, %v6440
      %8699 = vrot.lane.b32.xlu0 %v8671, 64
      %v8700 = vpop.permute.xlu0 %8699
      %8701 = vrot.lane.b32.xlu0 %v8672, 64
      %v8702 = vpop.permute.xlu0 %8701
      %8707 = vrot.lane.b32.xlu0 %v8683, 64
      %v8708 = vpop.permute.xlu0 %8707
      %8709 = vrot.lane.b32.xlu0 %v8684, 64
      %v8710 = vpop.permute.xlu0 %8709
      %8715 = vrot.lane.b32.xlu0 %v8689, 64
      %v8716 = vpop.permute.xlu0 %8715
      %8717 = vrot.lane.b32.xlu0 %v8690, 64
      %v8718 = vpop.permute.xlu0 %8717
      %8723 = vrot.lane.b32.xlu0 %v8693, 64
      %v8724 = vpop.permute.xlu0 %8723
      %8725 = vrot.lane.b32.xlu0 %v8694, 64
      %v8726 = vpop.permute.xlu0 %8725
      %v8729 = vsel %vm5595, %v8665, %v8700
      %v8730 = vsel %vm5595, %v8666, %v8702
      %v8731 = vsel %vm5595, %v8677, %v8708
      %v8732 = vsel %vm5595, %v8678, %v8710
      %v8733 = vsel %vm5595, %v8659, %v8716
      %v8734 = vsel %vm5595, %v8660, %v8718
      %v8735 = vsel %vm5595, %v8691, %v8724
      %v8736 = vsel %vm5595, %v8692, %v8726
      %v8737 = vpack.c.bf16 %v8730, %v8729
      %v8738 = vpack.c.bf16 %v8732, %v8731
      %v8739 = vpack.c.bf16 %v8734, %v8733
      %v8740 = vpack.c.bf16 %v8736, %v8735
      %v8741 = vpack.c.bf16 %v8696, %v8695
      %v8742 = vld [vmem:[%s61] sm:$0xf]
      %v8743 = vld [vmem:[%s61 + $0x4] sm:$0xf]
      %v8744 = vld [vmem:[%s61 + $0x8] sm:$0xf]
      %v8745 = vld [vmem:[%s61 + $0xc] sm:$0xf]
      %v8746 = vld [vmem:[%s61 + $0x10] sm:$0xf]
      %v8747 = vld [vmem:[%s61 + $0x14] sm:$0xf]
      %v8748 = vld [vmem:[%s61 + $0x18] sm:$0xf]
      %v8749 = vld [vmem:[%s61 + $0x1c] sm:$0xf]
      %v8750 = vld [vmem:[%s61 + $0x20] sm:$0xf]
      %v8751 = vld [vmem:[%s61 + $0x24] sm:$0xf]
      %v8752 = vld [vmem:[%s61 + $0x28] sm:$0xf]
      %v8753 = vld [vmem:[%s61 + $0x2c] sm:$0xf]
      %v8754 = vld [vmem:[%s61 + $0x30] sm:$0xf]
      %v8755 = vld [vmem:[%s61 + $0x34] sm:$0xf]
      %v8756 = vld [vmem:[%s61 + $0x38] sm:$0xf]
      %v8757 = vld [vmem:[%s61 + $0x3c] sm:$0xf]
      %v8758 = vld [vmem:[%s61 + $0x40] sm:$0xf]
      %v8759 = vld [vmem:[%s61 + $0x44] sm:$0xf]
      %v8760 = vld [vmem:[%s61 + $0x48] sm:$0xf]
      %v8761 = vld [vmem:[%s61 + $0x4c] sm:$0xf]
      %v8762 = vld [vmem:[%s61 + $0x50] sm:$0xf]
      %v8763 = vld [vmem:[%s61 + $0x54] sm:$0xf]
      %v8764 = vld [vmem:[%s61 + $0x58] sm:$0xf]
      %v8765 = vld [vmem:[%s61 + $0x5c] sm:$0xf]
      %v8766 = vld [vmem:[%s61 + $0x60] sm:$0xf]
      %v8767 = vld [vmem:[%s61 + $0x64] sm:$0xf]
      %v8768 = vld [vmem:[%s61 + $0x68] sm:$0xf]
      %v8769 = vld [vmem:[%s61 + $0x6c] sm:$0xf]
      %v8770 = vld [vmem:[%s61 + $0x70] sm:$0xf]
      %v8771 = vld [vmem:[%s61 + $0x74] sm:$0xf]
      %v8772 = vld [vmem:[%s61 + $0x78] sm:$0xf]
      %v8773 = vld [vmem:[%s61 + $0x7c] sm:$0xf]
      %v8774 = vld [vmem:[%s61 + $0x80] sm:$0xf]
      %v8775 = vld [vmem:[%s61 + $0x84] sm:$0xf]
      %v8776 = vld [vmem:[%s61 + $0x88] sm:$0xf]
      %v8777 = vld [vmem:[%s61 + $0x8c] sm:$0xf]
      %v8778 = vld [vmem:[%s61 + $0x90] sm:$0xf]
      %v8779 = vld [vmem:[%s61 + $0x94] sm:$0xf]
      %v8780 = vld [vmem:[%s61 + $0x98] sm:$0xf]
      %v8781 = vld [vmem:[%s61 + $0x9c] sm:$0xf]
      %v8782 = vld [vmem:[%s61 + $0xa0] sm:$0xf]
      %v8783 = vld [vmem:[%s61 + $0xa4] sm:$0xf]
      %v8784 = vld [vmem:[%s61 + $0xa8] sm:$0xf]
      %v8785 = vld [vmem:[%s61 + $0xac] sm:$0xf]
      %v8786 = vld [vmem:[%s61 + $0xb0] sm:$0xf]
      %v8787 = vld [vmem:[%s61 + $0xb4] sm:$0xf]
      %v8788 = vld [vmem:[%s61 + $0xb8] sm:$0xf]
      %v8789 = vld [vmem:[%s61 + $0xbc] sm:$0xf]
      %v8790 = vld [vmem:[%s61 + $0xc0] sm:$0xf]
      %v8791 = vld [vmem:[%s61 + $0xc4] sm:$0xf]
      %v8792 = vld [vmem:[%s61 + $0xc8] sm:$0xf]
      %v8793 = vld [vmem:[%s61 + $0xcc] sm:$0xf]
      %v8794 = vld [vmem:[%s61 + $0xd0] sm:$0xf]
      %v8795 = vld [vmem:[%s61 + $0xd4] sm:$0xf]
      %v8796 = vld [vmem:[%s61 + $0xd8] sm:$0xf]
      %v8797 = vld [vmem:[%s61 + $0xdc] sm:$0xf]
      %v8798 = vld [vmem:[%s61 + $0xe0] sm:$0xf]
      %v8799 = vld [vmem:[%s61 + $0xe4] sm:$0xf]
      %v8800 = vld [vmem:[%s61 + $0xe8] sm:$0xf]
      %v8801 = vld [vmem:[%s61 + $0xec] sm:$0xf]
      %v8802 = vld [vmem:[%s61 + $0xf0] sm:$0xf]
      %v8803 = vld [vmem:[%s61 + $0xf4] sm:$0xf]
      %v8804 = vld [vmem:[%s61 + $0xf8] sm:$0xf]
      %v8805 = vld [vmem:[%s61 + $0xfc] sm:$0xf]
      %v8806 = vld [vmem:[%s61 + $0x100] sm:$0xf]
      %v8807 = vld [vmem:[%s61 + $0x104] sm:$0xf]
      %v8808 = vld [vmem:[%s61 + $0x108] sm:$0xf]
      %v8809 = vld [vmem:[%s61 + $0x10c] sm:$0xf]
      %v8810 = vld [vmem:[%s61 + $0x110] sm:$0xf]
      %v8811 = vld [vmem:[%s61 + $0x114] sm:$0xf]
      %v8812 = vld [vmem:[%s61 + $0x118] sm:$0xf]
      %v8813 = vld [vmem:[%s61 + $0x11c] sm:$0xf]
      %v8814 = vld [vmem:[%s63] sm:$0x1]
      %v8816 = vlaneseq
      %v8817 = vshrl.u32 %v8816, 7
      %v8818 = vsub.s32 0, %v8817
      %v8819 = vrot.slane %v8814, %v8818
      %v8893 = vunpack.c.l.b16 %v8742
      %v8894 = vunpack.c.l.b16 %v8743
      %v8895 = vunpack.c.l.b16 %v8744
      %v8896 = vunpack.c.l.b16 %v8745
      %v8897 = vunpack.c.l.b16 %v8746
      %v8898 = vunpack.c.l.b16 %v8747
      %v8899 = vunpack.c.l.b16 %v8748
      %v8900 = vunpack.c.l.b16 %v8749
      %v8901 = vunpack.c.l.b16 %v8750
      %v8902 = vunpack.c.l.b16 %v8751
      %v8903 = vunpack.c.l.b16 %v8752
      %v8904 = vunpack.c.l.b16 %v8753
      %v8905 = vunpack.c.l.b16 %v8754
      %v8906 = vunpack.c.l.b16 %v8755
      %v8907 = vunpack.c.l.b16 %v8756
      %v8908 = vunpack.c.l.b16 %v8757
      %v8909 = vunpack.c.l.b16 %v8758
      %v8910 = vunpack.c.l.b16 %v8759
      %v8911 = vunpack.c.l.b16 %v8760
      %v8912 = vunpack.c.l.b16 %v8761
      %v8913 = vunpack.c.l.b16 %v8762
      %v8914 = vunpack.c.l.b16 %v8763
      %v8915 = vunpack.c.l.b16 %v8764
      %v8916 = vunpack.c.l.b16 %v8765
      %v8917 = vunpack.c.l.b16 %v8766
      %v8918 = vunpack.c.l.b16 %v8767
      %v8919 = vunpack.c.l.b16 %v8768
      %v8920 = vunpack.c.l.b16 %v8769
      %v8921 = vunpack.c.l.b16 %v8770
      %v8922 = vunpack.c.l.b16 %v8771
      %v8923 = vunpack.c.l.b16 %v8772
      %v8924 = vunpack.c.l.b16 %v8773
      %v8925 = vunpack.c.l.b16 %v8774
      %v8926 = vunpack.c.l.b16 %v8775
      %v8927 = vunpack.c.l.b16 %v8776
      %v8928 = vunpack.c.l.b16 %v8777
      %v8929 = vunpack.c.l.b16 %v8778
      %v8930 = vunpack.c.l.b16 %v8779
      %v8931 = vunpack.c.l.b16 %v8780
      %v8932 = vunpack.c.l.b16 %v8781
      %v8933 = vunpack.c.l.b16 %v8782
      %v8934 = vunpack.c.l.b16 %v8783
      %v8935 = vunpack.c.l.b16 %v8784
      %v8936 = vunpack.c.l.b16 %v8785
      %v8937 = vunpack.c.l.b16 %v8786
      %v8938 = vunpack.c.l.b16 %v8787
      %v8939 = vunpack.c.l.b16 %v8788
      %v8940 = vunpack.c.l.b16 %v8789
      %v8941 = vunpack.c.l.b16 %v8790
      %v8942 = vunpack.c.l.b16 %v8791
      %v8943 = vunpack.c.l.b16 %v8792
      %v8944 = vunpack.c.l.b16 %v8793
      %v8945 = vunpack.c.l.b16 %v8794
      %v8946 = vunpack.c.l.b16 %v8795
      %v8947 = vunpack.c.l.b16 %v8796
      %v8948 = vunpack.c.l.b16 %v8797
      %v8949 = vunpack.c.l.b16 %v8798
      %v8950 = vunpack.c.l.b16 %v8799
      %v8951 = vunpack.c.l.b16 %v8800
      %v8952 = vunpack.c.l.b16 %v8801
      %v8953 = vunpack.c.l.b16 %v8802
      %v8954 = vunpack.c.l.b16 %v8803
      %v8955 = vunpack.c.l.b16 %v8804
      %v8956 = vunpack.c.l.b16 %v8805
      %v8957 = vunpack.c.l.b16 %v8806
      %v8958 = vunpack.c.l.b16 %v8807
      %v8959 = vunpack.c.l.b16 %v8808
      %v8960 = vunpack.c.l.b16 %v8809
      %v8961 = vunpack.c.l.b16 %v8810
      %v8962 = vunpack.c.l.b16 %v8811
      %v8963 = vunpack.c.l.b16 %v8812
      %v8964 = vunpack.c.l.b16 %v8813
      %v8965 = vpack.c.b16 %v8894, %v8893
      %v8966 = vpack.c.b16 %v8896, %v8895
      %v8967 = vpack.c.b16 %v8898, %v8897
      %v8968 = vpack.c.b16 %v8900, %v8899
      %v8969 = vpack.c.b16 %v8902, %v8901
      %v8970 = vpack.c.b16 %v8904, %v8903
      %v8971 = vpack.c.b16 %v8906, %v8905
      %v8972 = vpack.c.b16 %v8908, %v8907
      %v8973 = vpack.c.b16 %v8910, %v8909
      %v8974 = vpack.c.b16 %v8912, %v8911
      %v8975 = vpack.c.b16 %v8914, %v8913
      %v8976 = vpack.c.b16 %v8916, %v8915
      %v8977 = vpack.c.b16 %v8918, %v8917
      %v8978 = vpack.c.b16 %v8920, %v8919
      %v8979 = vpack.c.b16 %v8922, %v8921
      %v8980 = vpack.c.b16 %v8924, %v8923
      %v8981 = vpack.c.b16 %v8926, %v8925
      %v8982 = vpack.c.b16 %v8928, %v8927
      %v8983 = vpack.c.b16 %v8930, %v8929
      %v8984 = vpack.c.b16 %v8932, %v8931
      %v8985 = vpack.c.b16 %v8934, %v8933
      %v8986 = vpack.c.b16 %v8936, %v8935
      %v8987 = vpack.c.b16 %v8938, %v8937
      %v8988 = vpack.c.b16 %v8940, %v8939
      %v8989 = vpack.c.b16 %v8942, %v8941
      %v8990 = vpack.c.b16 %v8944, %v8943
      %v8991 = vpack.c.b16 %v8946, %v8945
      %v8992 = vpack.c.b16 %v8948, %v8947
      %v8993 = vpack.c.b16 %v8950, %v8949
      %v8994 = vpack.c.b16 %v8952, %v8951
      %v8995 = vpack.c.b16 %v8954, %v8953
      %v8996 = vpack.c.b16 %v8956, %v8955
      %v8997 = vpack.c.b16 %v8958, %v8957
      %v8998 = vpack.c.b16 %v8960, %v8959
      %v8999 = vpack.c.b16 %v8962, %v8961
      %v9000 = vpack.c.b16 %v8964, %v8963
      %v9038 = vsel %vm5595, %v8741, 0
      %9040 = vmatprep.subr.bf16.mxu0 0
      %9041 = vmatpush1.bf16.msra.mxu0 %v8965
      %9042 = vmatprep.subr.bf16.mxu0 0
      %9043 = vmatpush1.bf16.msra.mxu0 %v8966
      %9044 = vmatprep.subr.bf16.mxu0 0
      %9045 = vmatpush1.bf16.msra.mxu0 %v8967
      %9046 = vmatprep.subr.bf16.mxu0 0
      %9047 = vmatpush1.bf16.msra.mxu0 %v8968
      %9048 = vmatprep.subr.bf16.mxu0 0
      %9049 = vmatpush1.bf16.msra.mxu0 %v8969
      %9050 = vmatprep.subr.bf16.mxu0 0
      %9051 = vmatpush1.bf16.msra.mxu0 %v8970
      %9052 = vmatprep.subr.bf16.mxu0 0
      %9053 = vmatpush1.bf16.msra.mxu0 %v8971
      %9054 = vmatprep.subr.bf16.mxu0 0
      %9055 = vmatpush1.bf16.msra.mxu0 %v8972
      %9056 = vmatprep.subr.bf16.mxu0 0
      %9057 = vmatpush1.bf16.msra.mxu0 %v8973
      %9058 = vmatprep.subr.bf16.mxu0 0
      %9059 = vmatpush1.bf16.msra.mxu0 %v8974
      %9060 = vmatprep.subr.bf16.mxu0 0
      %9061 = vmatpush1.bf16.msra.mxu0 %v8975
      %9062 = vmatprep.subr.bf16.mxu0 0
      %9063 = vmatpush1.bf16.msra.mxu0 %v8976
      %9064 = vmatprep.subr.bf16.mxu0 0
      %9065 = vmatpush1.bf16.msra.mxu0 %v8977
      %9066 = vmatprep.subr.bf16.mxu0 0
      %9067 = vmatpush1.bf16.msra.mxu0 %v8978
      %9068 = vmatprep.subr.bf16.mxu0 0
      %9069 = vmatpush1.bf16.msra.mxu0 %v8979
      %9070 = vmatprep.subr.bf16.mxu0 0
      %9071 = vmatpush1.bf16.msra.mxu0 %v8980
      %9072 = vmatprep.mubr.bf16.mxu0 %v8738
      %9073 = vmatmul.mubr.bf16.gmra.mrb[0].mxu0 %v8737
      %v9074 = vpop.f32.mrb[0].mxu0
      %v9075 = vadd.f32 %v8819, %v9074
      %v9076 = vpop.f32.mrb[0].mxu0
      %v9077 = vpop.f32.mrb[0].mxu0
      %v9078 = vadd.f32 %v8819, %v9077
      %v9079 = vpop.f32.mrb[0].mxu0
      %9080 = vdwg.mxu0
      %9081 = vmatprep.subr.bf16.mxu0 0
      %9082 = vmatpush1.bf16.msra.mxu0 %v8981
      %9083 = vmatprep.subr.bf16.mxu0 0
      %9084 = vmatpush1.bf16.msra.mxu0 %v8982
      %9085 = vmatprep.subr.bf16.mxu0 0
      %9086 = vmatpush1.bf16.msra.mxu0 %v8983
      %9087 = vmatprep.subr.bf16.mxu0 0
      %9088 = vmatpush1.bf16.msra.mxu0 %v8984
      %9089 = vmatprep.subr.bf16.mxu0 0
      %9090 = vmatpush1.bf16.msra.mxu0 %v8985
      %9091 = vmatprep.subr.bf16.mxu0 0
      %9092 = vmatpush1.bf16.msra.mxu0 %v8986
      %9093 = vmatprep.subr.bf16.mxu0 0
      %9094 = vmatpush1.bf16.msra.mxu0 %v8987
      %9095 = vmatprep.subr.bf16.mxu0 0
      %9096 = vmatpush1.bf16.msra.mxu0 %v8988
      %9097 = vmatprep.subr.bf16.mxu0 0
      %9098 = vmatpush1.bf16.msra.mxu0 %v8989
      %9099 = vmatprep.subr.bf16.mxu0 0
      %9100 = vmatpush1.bf16.msra.mxu0 %v8990
      %9101 = vmatprep.subr.bf16.mxu0 0
      %9102 = vmatpush1.bf16.msra.mxu0 %v8991
      %9103 = vmatprep.subr.bf16.mxu0 0
      %9104 = vmatpush1.bf16.msra.mxu0 %v8992
      %9105 = vmatprep.subr.bf16.mxu0 0
      %9106 = vmatpush1.bf16.msra.mxu0 %v8993
      %9107 = vmatprep.subr.bf16.mxu0 0
      %9108 = vmatpush1.bf16.msra.mxu0 %v8994
      %9109 = vmatprep.subr.bf16.mxu0 0
      %9110 = vmatpush1.bf16.msra.mxu0 %v8995
      %9111 = vmatprep.subr.bf16.mxu0 0
      %9112 = vmatpush1.bf16.msra.mxu0 %v8996
      %9113 = vmatprep.mubr.bf16.mxu0 %v8740
      %9114 = vmatmul.mubr.bf16.gmra.mrb[0].mxu0 %v8739
      %v9115 = vpop.f32.mrb[0].mxu0
      %v9116 = vadd.f32 %v9075, %v9115
      %v9117 = vpop.f32.mrb[0].mxu0
      %v9118 = vpop.f32.mrb[0].mxu0
      %v9119 = vadd.f32 %v9078, %v9118
      %v9120 = vpop.f32.mrb[0].mxu0
      %9121 = vdwg.mxu0
      %9122 = vmatprep.subr.bf16.mxu0 0
      %9123 = vmatpush1.bf16.msra.mxu0 %v8997
      %9124 = vmatprep.subr.bf16.mxu0 0
      %9125 = vmatpush1.bf16.msra.mxu0 %v8998
      %9126 = vmatprep.subr.bf16.mxu0 0
      %9127 = vmatpush1.bf16.msra.mxu0 %v8999
      %9128 = vmatprep.subr.bf16.mxu0 0
      %9129 = vmatpush1.bf16.msra.mxu0 %v9000
      %9130 = vmatprep.subr.bf16.mxu0 0
      %9131 = vmatpush1.bf16.msra.mxu0 0
      %9132 = vmatprep.subr.bf16.mxu0 0
      %9133 = vmatpush1.bf16.msra.mxu0 0
      %9134 = vmatprep.subr.bf16.mxu0 0
      %9135 = vmatpush1.bf16.msra.mxu0 0
      %9136 = vmatprep.subr.bf16.mxu0 0
      %9137 = vmatpush1.bf16.msra.mxu0 0
      %9138 = vmatprep.subr.bf16.mxu0 0
      %9139 = vmatpush1.bf16.msra.mxu0 0
      %9140 = vmatprep.subr.bf16.mxu0 0
      %9141 = vmatpush1.bf16.msra.mxu0 0
      %9142 = vmatprep.subr.bf16.mxu0 0
      %9143 = vmatpush1.bf16.msra.mxu0 0
      %9144 = vmatprep.subr.bf16.mxu0 0
      %9145 = vmatpush1.bf16.msra.mxu0 0
      %9146 = vmatprep.subr.bf16.mxu0 0
      %9147 = vmatpush1.bf16.msra.mxu0 0
      %9148 = vmatprep.subr.bf16.mxu0 0
      %9149 = vmatpush1.bf16.msra.mxu0 0
      %9150 = vmatprep.subr.bf16.mxu0 0
      %9151 = vmatpush1.bf16.msra.mxu0 0
      %9152 = vmatprep.subr.bf16.mxu0 0
      %9153 = vmatpush1.bf16.msra.mxu0 0
      %9154 = vmatprep.mubr.bf16.mxu0 0
      %9155 = vmatmul.mubr.bf16.gmra.mrb[0].mxu0 %v9038
      %v9156 = vpop.f32.mrb[0].mxu0
      %v9157 = vadd.f32 %v9116, %v9156
      %v9158 = vpop.f32.mrb[0].mxu0
      %v9159 = vpop.f32.mrb[0].mxu0
      %v9160 = vadd.f32 %v9119, %v9159
      %v9161 = vpop.f32.mrb[0].mxu0
      %9162 = vdwg.mxu0
      %v9163 = vmax.f32 %v9157, 0.0
      %v9164 = vmax.f32 %v9160, 0.0
      %v9165 = vrot.slane %v7600, 4
      %v9166 = vrot.slane %v7601, 4
      %v9167 = vrot.slane %v7602, 4
      %v9168 = vrot.slane %v7603, 4
      %v9169 = vsel %vm6358, %v9165, %v9167
      %v9170 = vsel %vm6358, %v9166, %v9168
      %v9171 = vsel %vm6358, %v9167, %v9165
      %v9172 = vsel %vm6358, %v9168, %v9166
      %v9173 = vsel %vm7412, %v9171, -1e+30
      %v9174 = vsel %vm7412, %v9172, -1e+30
      %v9175 = vsel %vm7413, %v9169, -1e+30
      %v9176 = vsel %vm7413, %v9170, -1e+30
      %v9177 = vsel %vm7422, %v9169, -1e+30
      %v9178 = vsel %vm7422, %v9170, -1e+30
      %v9179 = vsel %vm7423, %v9171, -1e+30
      %v9180 = vsel %vm7423, %v9172, -1e+30
      %v9181 = vmax.f32 %v9173, %v9177
      %v9182 = vmax.f32 %v9174, %v9178
      %v9183 = vmax.f32 %v9175, %v9179
      %v9184 = vmax.f32 %v9176, %v9180
      %v9185 = vmax.f32 %v9181, %v7600
      %v9186 = vmax.f32 %v9182, %v7601
      %v9187 = vmax.f32 %v9183, %v7602
      %v9188 = vmax.f32 %v9184, %v7603
      %v9189 = vrot.slane %v9185, 7
      %v9190 = vrot.slane %v9186, 7
      %v9191 = vrot.slane %v9187, 7
      %v9192 = vrot.slane %v9188, 7
      %v9193 = vsel %vm1320, %v9189, %v9191
      %v9194 = vsel %vm1320, %v9190, %v9192
      %v9195 = vsel %vm1320, %v9191, %v9189
      %v9196 = vsel %vm1320, %v9192, %v9190
      %v9197 = vsel %vm7440, %v9195, -1e+30
      %v9198 = vsel %vm7440, %v9196, -1e+30
      %v9199 = vsel %vm7441, %v9193, -1e+30
      %v9200 = vsel %vm7441, %v9194, -1e+30
      %v9201 = vrot.slane %v9185, 1
      %v9202 = vrot.slane %v9186, 1
      %v9203 = vrot.slane %v9187, 1
      %v9204 = vrot.slane %v9188, 1
      %v9205 = vsel %vm1577, %v9201, %v9203
      %v9206 = vsel %vm1577, %v9202, %v9204
      %v9207 = vsel %vm1577, %v9203, %v9201
      %v9208 = vsel %vm1577, %v9204, %v9202
      %v9209 = vsel %vm7454, %v9205, -1e+30
      %v9210 = vsel %vm7454, %v9206, -1e+30
      %v9211 = vsel %vm7455, %v9207, -1e+30
      %v9212 = vsel %vm7455, %v9208, -1e+30
      %v9213 = vmax.f32 %v9197, %v9209
      %v9214 = vmax.f32 %v9198, %v9210
      %v9215 = vmax.f32 %v9199, %v9211
      %v9216 = vmax.f32 %v9200, %v9212
      %v9217 = vmax.f32 %v9213, %v9185
      %v9218 = vmax.f32 %v9214, %v9186
      %v9219 = vmax.f32 %v9215, %v9187
      %v9220 = vmax.f32 %v9216, %v9188
      %v9221 = vpack.c.bf16 %v9219, %v9217
      %v9222 = vpack.c.bf16 %v9220, %v9218
      %v9223 = vld [vmem:[%s65] sm:$0xf]
      %v9224 = vld [vmem:[%s65 + $0x4] sm:$0xf]
      %v9225 = vld [vmem:[%s65 + $0x8] sm:$0xf]
      %v9226 = vld [vmem:[%s65 + $0xc] sm:$0xf]
      %v9227 = vld [vmem:[%s65 + $0x10] sm:$0xf]
      %v9228 = vld [vmem:[%s65 + $0x14] sm:$0xf]
      %v9229 = vld [vmem:[%s65 + $0x18] sm:$0xf]
      %v9230 = vld [vmem:[%s65 + $0x1c] sm:$0xf]
      %v9231 = vld [vmem:[%s65 + $0x20] sm:$0xf]
      %v9232 = vld [vmem:[%s65 + $0x24] sm:$0xf]
      %v9233 = vld [vmem:[%s65 + $0x28] sm:$0xf]
      %v9234 = vld [vmem:[%s65 + $0x2c] sm:$0xf]
      %v9235 = vld [vmem:[%s65 + $0x30] sm:$0xf]
      %v9236 = vld [vmem:[%s65 + $0x34] sm:$0xf]
      %v9237 = vld [vmem:[%s65 + $0x38] sm:$0xf]
      %v9238 = vld [vmem:[%s65 + $0x3c] sm:$0xf]
      %v9239 = vld [vmem:[%s65 + $0x40] sm:$0xf]
      %v9240 = vld [vmem:[%s65 + $0x44] sm:$0xf]
      %v9241 = vld [vmem:[%s65 + $0x48] sm:$0xf]
      %v9242 = vld [vmem:[%s65 + $0x4c] sm:$0xf]
      %v9243 = vld [vmem:[%s65 + $0x50] sm:$0xf]
      %v9244 = vld [vmem:[%s65 + $0x54] sm:$0xf]
      %v9245 = vld [vmem:[%s65 + $0x58] sm:$0xf]
      %v9246 = vld [vmem:[%s65 + $0x5c] sm:$0xf]
      %v9247 = vld [vmem:[%s67] sm:$0x1]
      %v9249 = vlaneseq
      %v9250 = vshrl.u32 %v9249, 7
      %v9251 = vsub.s32 0, %v9250
      %v9252 = vrot.slane %v9247, %v9251
      %v9278 = vunpack.c.l.b16 %v9223
      %v9279 = vunpack.c.l.b16 %v9224
      %v9280 = vunpack.c.l.b16 %v9225
      %v9281 = vunpack.c.l.b16 %v9226
      %v9282 = vunpack.c.l.b16 %v9227
      %v9283 = vunpack.c.l.b16 %v9228
      %v9284 = vunpack.c.l.b16 %v9229
      %v9285 = vunpack.c.l.b16 %v9230
      %v9286 = vunpack.c.l.b16 %v9231
      %v9287 = vunpack.c.l.b16 %v9232
      %v9288 = vunpack.c.l.b16 %v9233
      %v9289 = vunpack.c.l.b16 %v9234
      %v9290 = vunpack.c.l.b16 %v9235
      %v9291 = vunpack.c.l.b16 %v9236
      %v9292 = vunpack.c.l.b16 %v9237
      %v9293 = vunpack.c.l.b16 %v9238
      %v9294 = vunpack.c.l.b16 %v9239
      %v9295 = vunpack.c.l.b16 %v9240
      %v9296 = vunpack.c.l.b16 %v9241
      %v9297 = vunpack.c.l.b16 %v9242
      %v9298 = vunpack.c.l.b16 %v9243
      %v9299 = vunpack.c.l.b16 %v9244
      %v9300 = vunpack.c.l.b16 %v9245
      %v9301 = vunpack.c.l.b16 %v9246
      %v9302 = vpack.c.b16 %v9279, %v9278
      %v9303 = vpack.c.b16 %v9281, %v9280
      %v9304 = vpack.c.b16 %v9283, %v9282
      %v9305 = vpack.c.b16 %v9285, %v9284
      %v9306 = vpack.c.b16 %v9287, %v9286
      %v9307 = vpack.c.b16 %v9289, %v9288
      %v9308 = vpack.c.b16 %v9291, %v9290
      %v9309 = vpack.c.b16 %v9293, %v9292
      %v9310 = vpack.c.b16 %v9295, %v9294
      %v9311 = vpack.c.b16 %v9297, %v9296
      %v9312 = vpack.c.b16 %v9299, %v9298
      %v9313 = vpack.c.b16 %v9301, %v9300
      %v9327 = vsel %vm5595, %v9222, 0
      %9329 = vmatprep.subr.bf16.mxu0 0
      %9330 = vmatpush1.bf16.msra.mxu0 %v9302
      %9331 = vmatprep.subr.bf16.mxu0 0
      %9332 = vmatpush1.bf16.msra.mxu0 %v9303
      %9333 = vmatprep.subr.bf16.mxu0 0
      %9334 = vmatpush1.bf16.msra.mxu0 %v9304
      %9335 = vmatprep.subr.bf16.mxu0 0
      %9336 = vmatpush1.bf16.msra.mxu0 %v9305
      %9337 = vmatprep.subr.bf16.mxu0 0
      %9338 = vmatpush1.bf16.msra.mxu0 %v9306
      %9339 = vmatprep.subr.bf16.mxu0 0
      %9340 = vmatpush1.bf16.msra.mxu0 %v9307
      %9341 = vmatprep.subr.bf16.mxu0 0
      %9342 = vmatpush1.bf16.msra.mxu0 %v9308
      %9343 = vmatprep.subr.bf16.mxu0 0
      %9344 = vmatpush1.bf16.msra.mxu0 %v9309
      %9345 = vmatprep.subr.bf16.mxu0 0
      %9346 = vmatpush1.bf16.msra.mxu0 %v9310
      %9347 = vmatprep.subr.bf16.mxu0 0
      %9348 = vmatpush1.bf16.msra.mxu0 %v9311
      %9349 = vmatprep.subr.bf16.mxu0 0
      %9350 = vmatpush1.bf16.msra.mxu0 %v9312
      %9351 = vmatprep.subr.bf16.mxu0 0
      %9352 = vmatpush1.bf16.msra.mxu0 %v9313
      %9353 = vmatprep.subr.bf16.mxu0 0
      %9354 = vmatpush1.bf16.msra.mxu0 0
      %9355 = vmatprep.subr.bf16.mxu0 0
      %9356 = vmatpush1.bf16.msra.mxu0 0
      %9357 = vmatprep.subr.bf16.mxu0 0
      %9358 = vmatpush1.bf16.msra.mxu0 0
      %9359 = vmatprep.subr.bf16.mxu0 0
      %9360 = vmatpush1.bf16.msra.mxu0 0
      %9361 = vmatprep.mubr.bf16.mxu0 %v9327
      %9362 = vmatmul.mubr.bf16.gmra.mrb[0].mxu0 %v9221
      %v9363 = vpop.f32.mrb[0].mxu0
      %v9364 = vadd.f32 %v9252, %v9363
      %v9365 = vpop.f32.mrb[0].mxu0
      %v9366 = vpop.f32.mrb[0].mxu0
      %v9367 = vadd.f32 %v9252, %v9366
      %v9368 = vpop.f32.mrb[0].mxu0
      %9369 = vdwg.mxu0
      %v9370 = vmax.f32 %v9364, 0.0
      %v9371 = vmax.f32 %v9367, 0.0
      %9374 = vrot.lane.b32.xlu0 %v9163, 96
      %v9375 = vpop.permute.xlu0 %9374
      %9376 = vrot.lane.b32.xlu0 %v9164, 96
      %v9377 = vpop.permute.xlu0 %9376
      %9382 = vrot.lane.b32.xlu0 %v9370, 32
      %v9383 = vpop.permute.xlu0 %9382
      %9384 = vrot.lane.b32.xlu0 %v9371, 32
      %v9385 = vpop.permute.xlu0 %9384
      %v9388 = vsel %vm5604, %v8314, %v9375
      %v9389 = vsel %vm5604, %v8315, %v9377
      %v9390 = vsel %vm5586, %v9375, %v9383
      %v9391 = vsel %vm5586, %v9377, %v9385
      %v9392 = vld [vmem:[%s69] sm:$0x7]
      %v9394 = vlaneseq
      %v9395 = vshrl.u32 %v9394, 7
      %v9396 = vsub.s32 0, %v9395
      %v9397 = vrot.slane %v9392, %v9396
      %v9398 = vlaneseq
      %v9399 = vshrl.u32 %v9398, 7
      %v9400 = vsub.s32 1, %v9399
      %v9401 = vrot.slane %v9392, %v9400
      %v9402 = vlaneseq
      %v9403 = vshrl.u32 %v9402, 7
      %v9404 = vsub.s32 2, %v9403
      %v9405 = vrot.slane %v9392, %v9404
      %v9409 = vmul.f32 %v7808, %v9397
      %v9410 = vmul.f32 %v9388, %v9401
      %v9411 = vmul.f32 %v9390, %v9405
      %v9412 = vmul.f32 %v7810, %v9397
      %v9413 = vmul.f32 %v9389, %v9401
      %v9414 = vmul.f32 %v9391, %v9405
      %v9415 = vld [vmem:[%s71] sm:$0x7]
      %v9417 = vlaneseq
      %v9418 = vshrl.u32 %v9417, 7
      %v9419 = vsub.s32 0, %v9418
      %v9420 = vrot.slane %v9415, %v9419
      %v9421 = vlaneseq
      %v9422 = vshrl.u32 %v9421, 7
      %v9423 = vsub.s32 1, %v9422
      %v9424 = vrot.slane %v9415, %v9423
      %v9425 = vlaneseq
      %v9426 = vshrl.u32 %v9425, 7
      %v9427 = vsub.s32 2, %v9426
      %v9428 = vrot.slane %v9415, %v9427
      %v9432 = vadd.f32 %v9409, %v9420
      %v9433 = vadd.f32 %v9410, %v9424
      %v9434 = vadd.f32 %v9411, %v9428
      %v9435 = vadd.f32 %v9412, %v9420
      %v9436 = vadd.f32 %v9413, %v9424
      %v9437 = vadd.f32 %v9414, %v9428
      %v9438 = vmax.f32 %v9432, 0.0
      %v9439 = vmax.f32 %v9433, 0.0
      %v9440 = vmax.f32 %v9434, 0.0
      %v9441 = vmax.f32 %v9435, 0.0
      %v9442 = vmax.f32 %v9436, 0.0
      %v9443 = vmax.f32 %v9437, 0.0
      %v9444 = vrot.slane %v9438, 4
      %v9445 = vrot.slane %v9439, 4
      %v9446 = vrot.slane %v9440, 4
      %v9447 = vrot.slane %v9441, 4
      %v9448 = vrot.slane %v9442, 4
      %v9449 = vrot.slane %v9443, 4
      %v9450 = vsel %vm6358, %v9444, %v9447
      %v9451 = vsel %vm6358, %v9445, %v9448
      %v9452 = vsel %vm6358, %v9446, %v9449
      %v9453 = vsel %vm6358, %v9447, %v9444
      %v9454 = vsel %vm6358, %v9448, %v9445
      %v9455 = vsel %vm6358, %v9449, %v9446
      %v9456 = vsel %vm7412, %v9453, -1e+30
      %v9457 = vsel %vm7412, %v9454, -1e+30
      %v9458 = vsel %vm7412, %v9455, -1e+30
      %v9459 = vsel %vm7413, %v9450, -1e+30
      %v9460 = vsel %vm7413, %v9451, -1e+30
      %v9461 = vsel %vm7413, %v9452, -1e+30
      %v9462 = vsel %vm7422, %v9450, -1e+30
      %v9463 = vsel %vm7422, %v9451, -1e+30
      %v9464 = vsel %vm7422, %v9452, -1e+30
      %v9465 = vsel %vm7423, %v9453, -1e+30
      %v9466 = vsel %vm7423, %v9454, -1e+30
      %v9467 = vsel %vm7423, %v9455, -1e+30
      %v9468 = vmax.f32 %v9456, %v9462
      %v9469 = vmax.f32 %v9457, %v9463
      %v9470 = vmax.f32 %v9458, %v9464
      %v9471 = vmax.f32 %v9459, %v9465
      %v9472 = vmax.f32 %v9460, %v9466
      %v9473 = vmax.f32 %v9461, %v9467
      %v9474 = vmax.f32 %v9468, %v9438
      %v9475 = vmax.f32 %v9469, %v9439
      %v9476 = vmax.f32 %v9470, %v9440
      %v9477 = vmax.f32 %v9471, %v9441
      %v9478 = vmax.f32 %v9472, %v9442
      %v9479 = vmax.f32 %v9473, %v9443
      %v9480 = vrot.slane %v9474, 7
      %v9481 = vrot.slane %v9475, 7
      %v9482 = vrot.slane %v9476, 7
      %v9483 = vrot.slane %v9477, 7
      %v9484 = vrot.slane %v9478, 7
      %v9485 = vrot.slane %v9479, 7
      %v9486 = vsel %vm1320, %v9480, %v9483
      %v9487 = vsel %vm1320, %v9481, %v9484
      %v9488 = vsel %vm1320, %v9482, %v9485
      %v9489 = vsel %vm1320, %v9483, %v9480
      %v9490 = vsel %vm1320, %v9484, %v9481
      %v9491 = vsel %vm1320, %v9485, %v9482
      %v9492 = vsel %vm7440, %v9489, -1e+30
      %v9493 = vsel %vm7440, %v9490, -1e+30
      %v9494 = vsel %vm7440, %v9491, -1e+30
      %v9495 = vsel %vm7441, %v9486, -1e+30
      %v9496 = vsel %vm7441, %v9487, -1e+30
      %v9497 = vsel %vm7441, %v9488, -1e+30
      %v9498 = vrot.slane %v9474, 1
      %v9499 = vrot.slane %v9475, 1
      %v9500 = vrot.slane %v9476, 1
      %v9501 = vrot.slane %v9477, 1
      %v9502 = vrot.slane %v9478, 1
      %v9503 = vrot.slane %v9479, 1
      %v9504 = vsel %vm1577, %v9498, %v9501
      %v9505 = vsel %vm1577, %v9499, %v9502
      %v9506 = vsel %vm1577, %v9500, %v9503
      %v9507 = vsel %vm1577, %v9501, %v9498
      %v9508 = vsel %vm1577, %v9502, %v9499
      %v9509 = vsel %vm1577, %v9503, %v9500
      %v9510 = vsel %vm7454, %v9504, -1e+30
      %v9511 = vsel %vm7454, %v9505, -1e+30
      %v9512 = vsel %vm7454, %v9506, -1e+30
      %v9513 = vsel %vm7455, %v9507, -1e+30
      %v9514 = vsel %vm7455, %v9508, -1e+30
      %v9515 = vsel %vm7455, %v9509, -1e+30
      %v9516 = vmax.f32 %v9492, %v9510
      %v9517 = vmax.f32 %v9493, %v9511
      %v9518 = vmax.f32 %v9494, %v9512
      %v9519 = vmax.f32 %v9495, %v9513
      %v9520 = vmax.f32 %v9496, %v9514
      %v9521 = vmax.f32 %v9497, %v9515
      %v9522 = vmax.f32 %v9516, %v9474
      %v9523 = vmax.f32 %v9517, %v9475
      %v9524 = vmax.f32 %v9518, %v9476
      %v9525 = vmax.f32 %v9519, %v9477
      %v9526 = vmax.f32 %v9520, %v9478
      %v9527 = vmax.f32 %v9521, %v9479
      %v9528 = vld [vmem:[%s13] sm:$0xf]
      %v9530 = vsel %vm6497, %v9528, 0
      %9532 = vmatprep.subr.mxu0 %v9523
      %9533 = vmatpush1.msra.mxu0 %v9522
      %9534 = vmatprep.subr.mxu0 %v9526
      %9535 = vmatpush1.msra.mxu0 %v9525
      %9536 = vmatprep.subr.mxu0 0.0
      %9537 = vmatpush1.msra.mxu0 0.0
      %9538 = vmatprep.subr.mxu0 0.0
      %9539 = vmatpush1.msra.mxu0 0.0
      %9540 = vmatprep.subr.mxu0 0.0
      %9541 = vmatpush1.msra.mxu0 0.0
      %9542 = vmatprep.subr.mxu0 0.0
      %9543 = vmatpush1.msra.mxu0 0.0
      %9544 = vmatprep.subr.mxu0 0.0
      %9545 = vmatpush1.msra.mxu0 0.0
      %9546 = vmatprep.subr.mxu0 0.0
      %9547 = vmatpush1.msra.mxu0 0.0
      %9548 = vmatprep.subr.mxu0 0.0
      %9549 = vmatpush1.msra.mxu0 0.0
      %9550 = vmatprep.subr.mxu0 0.0
      %9551 = vmatpush1.msra.mxu0 0.0
      %9552 = vmatprep.subr.mxu0 0.0
      %9553 = vmatpush1.msra.mxu0 0.0
      %9554 = vmatprep.subr.mxu0 0.0
      %9555 = vmatpush1.msra.mxu0 0.0
      %9556 = vmatprep.subr.mxu0 0.0
      %9557 = vmatpush1.msra.mxu0 0.0
      %9558 = vmatprep.subr.mxu0 0.0
      %9559 = vmatpush1.msra.mxu0 0.0
      %9560 = vmatprep.subr.mxu0 0.0
      %9561 = vmatpush1.msra.mxu0 0.0
      %9562 = vmatprep.subr.mxu0 0.0
      %9563 = vmatpush1.msra.mxu0 0.0
      %9564 = vmatprep.subr.mxu0 0.0
      %9565 = vmatpush1.msra.mxu0 0.0
      %9566 = vmatprep.subr.mxu0 0.0
      %9567 = vmatpush1.msra.mxu0 0.0
      %9568 = vmatprep.subr.mxu0 0.0
      %9569 = vmatpush1.msra.mxu0 0.0
      %9570 = vmatprep.subr.mxu0 0.0
      %9571 = vmatpush1.msra.mxu0 0.0
      %9572 = vmatprep.subr.mxu0 0.0
      %9573 = vmatpush1.msra.mxu0 0.0
      %9574 = vmatprep.subr.mxu0 0.0
      %9575 = vmatpush1.msra.mxu0 0.0
      %9576 = vmatprep.subr.mxu0 0.0
      %9577 = vmatpush1.msra.mxu0 0.0
      %9578 = vmatprep.subr.mxu0 0.0
      %9579 = vmatpush1.msra.mxu0 0.0
      %9580 = vmatprep.subr.mxu0 0.0
      %9581 = vmatpush1.msra.mxu0 0.0
      %9582 = vmatprep.subr.mxu0 0.0
      %9583 = vmatpush1.msra.mxu0 0.0
      %9584 = vmatprep.subr.mxu0 0.0
      %9585 = vmatpush1.msra.mxu0 0.0
      %9586 = vmatprep.subr.mxu0 0.0
      %9587 = vmatpush1.msra.mxu0 0.0
      %9588 = vmatprep.subr.mxu0 0.0
      %9589 = vmatpush1.msra.mxu0 0.0
      %9590 = vmatprep.subr.mxu0 0.0
      %9591 = vmatpush1.msra.mxu0 0.0
      %9592 = vmatprep.subr.mxu0 0.0
      %9593 = vmatpush1.msra.mxu0 0.0
      %9594 = vmatprep.subr.mxu0 0.0
      %9595 = vmatpush1.msra.mxu0 0.0
      %9596 = vmatprep.mubr.f32.mxu0 0.0
      %9597 = vmatmul.mubr.f32.gmra.mrb[0].mxu0 %v9530
      %v9598 = vpop.f32.mrb[0].mxu0
      %v9599 = vadd.f32 0.0, %v9598
      %v9600 = vpop.f32.mrb[0].mxu0
      %v9601 = vadd.f32 0.0, %v9600
      %9602 = vdwg.mxu0
      %9603 = vmatprep.subr.mxu0 0.0
      %9604 = vmatpush1.msra.mxu0 %v9524
      %9605 = vmatprep.subr.mxu0 0.0
      %9606 = vmatpush1.msra.mxu0 %v9527
      %9607 = vmatprep.subr.mxu0 0.0
      %9608 = vmatpush1.msra.mxu0 0.0
      %9609 = vmatprep.subr.mxu0 0.0
      %9610 = vmatpush1.msra.mxu0 0.0
      %9611 = vmatprep.subr.mxu0 0.0
      %9612 = vmatpush1.msra.mxu0 0.0
      %9613 = vmatprep.subr.mxu0 0.0
      %9614 = vmatpush1.msra.mxu0 0.0
      %9615 = vmatprep.subr.mxu0 0.0
      %9616 = vmatpush1.msra.mxu0 0.0
      %9617 = vmatprep.subr.mxu0 0.0
      %9618 = vmatpush1.msra.mxu0 0.0
      %9619 = vmatprep.subr.mxu0 0.0
      %9620 = vmatpush1.msra.mxu0 0.0
      %9621 = vmatprep.subr.mxu0 0.0
      %9622 = vmatpush1.msra.mxu0 0.0
      %9623 = vmatprep.subr.mxu0 0.0
      %9624 = vmatpush1.msra.mxu0 0.0
      %9625 = vmatprep.subr.mxu0 0.0
      %9626 = vmatpush1.msra.mxu0 0.0
      %9627 = vmatprep.subr.mxu0 0.0
      %9628 = vmatpush1.msra.mxu0 0.0
      %9629 = vmatprep.subr.mxu0 0.0
      %9630 = vmatpush1.msra.mxu0 0.0
      %9631 = vmatprep.subr.mxu0 0.0
      %9632 = vmatpush1.msra.mxu0 0.0
      %9633 = vmatprep.subr.mxu0 0.0
      %9634 = vmatpush1.msra.mxu0 0.0
      %9635 = vmatprep.subr.mxu0 0.0
      %9636 = vmatpush1.msra.mxu0 0.0
      %9637 = vmatprep.subr.mxu0 0.0
      %9638 = vmatpush1.msra.mxu0 0.0
      %9639 = vmatprep.subr.mxu0 0.0
      %9640 = vmatpush1.msra.mxu0 0.0
      %9641 = vmatprep.subr.mxu0 0.0
      %9642 = vmatpush1.msra.mxu0 0.0
      %9643 = vmatprep.subr.mxu0 0.0
      %9644 = vmatpush1.msra.mxu0 0.0
      %9645 = vmatprep.subr.mxu0 0.0
      %9646 = vmatpush1.msra.mxu0 0.0
      %9647 = vmatprep.subr.mxu0 0.0
      %9648 = vmatpush1.msra.mxu0 0.0
      %9649 = vmatprep.subr.mxu0 0.0
      %9650 = vmatpush1.msra.mxu0 0.0
      %9651 = vmatprep.subr.mxu0 0.0
      %9652 = vmatpush1.msra.mxu0 0.0
      %9653 = vmatprep.subr.mxu0 0.0
      %9654 = vmatpush1.msra.mxu0 0.0
      %9655 = vmatprep.subr.mxu0 0.0
      %9656 = vmatpush1.msra.mxu0 0.0
      %9657 = vmatprep.subr.mxu0 0.0
      %9658 = vmatpush1.msra.mxu0 0.0
      %9659 = vmatprep.subr.mxu0 0.0
      %9660 = vmatpush1.msra.mxu0 0.0
      %9661 = vmatprep.subr.mxu0 0.0
      %9662 = vmatpush1.msra.mxu0 0.0
      %9663 = vmatprep.subr.mxu0 0.0
      %9664 = vmatpush1.msra.mxu0 0.0
      %9665 = vmatprep.subr.mxu0 0.0
      %9666 = vmatpush1.msra.mxu0 0.0
      %9667 = vmatprep.mubr.f32.mxu0 0.0
      %9668 = vmatmul.mubr.f32.gmra.mrb[0].mxu0 %v9530
      %v9669 = vpop.f32.mrb[0].mxu0
      %v9670 = vadd.f32 0.0, %v9669
      %v9671 = vpop.f32.mrb[0].mxu0
      %9672 = vdwg.mxu0
      %v9673 = vld [vmem:[%s15] sm:$0xff]
      %v9675 = vsel %vm3501, %v9673, 0
      %v9678 = vsel %vm3745, %v9599, 0
      %v9681 = vsel %vm3745, %v9601, 0
      %v9684 = vsel %vm3745, %v9670, 0
      %9686 = vmatprep.subr.mxu0 %v9681
      %9687 = vmatpush1.msra.mxu0 %v9678
      %9688 = vmatprep.subr.mxu0 0.0
      %9689 = vmatpush1.msra.mxu0 0.0
      %9690 = vmatprep.subr.mxu0 0.0
      %9691 = vmatpush1.msra.mxu0 0.0
      %9692 = vmatprep.subr.mxu0 0.0
      %9693 = vmatpush1.msra.mxu0 0.0
      %9694 = vmatprep.subr.mxu0 0.0
      %9695 = vmatpush1.msra.mxu0 0.0
      %9696 = vmatprep.subr.mxu0 0.0
      %9697 = vmatpush1.msra.mxu0 0.0
      %9698 = vmatprep.subr.mxu0 0.0
      %9699 = vmatpush1.msra.mxu0 0.0
      %9700 = vmatprep.subr.mxu0 0.0
      %9701 = vmatpush1.msra.mxu0 0.0
      %9702 = vmatprep.subr.mxu0 0.0
      %9703 = vmatpush1.msra.mxu0 0.0
      %9704 = vmatprep.subr.mxu0 0.0
      %9705 = vmatpush1.msra.mxu0 0.0
      %9706 = vmatprep.subr.mxu0 0.0
      %9707 = vmatpush1.msra.mxu0 0.0
      %9708 = vmatprep.subr.mxu0 0.0
      %9709 = vmatpush1.msra.mxu0 0.0
      %9710 = vmatprep.subr.mxu0 0.0
      %9711 = vmatpush1.msra.mxu0 0.0
      %9712 = vmatprep.subr.mxu0 0.0
      %9713 = vmatpush1.msra.mxu0 0.0
      %9714 = vmatprep.subr.mxu0 0.0
      %9715 = vmatpush1.msra.mxu0 0.0
      %9716 = vmatprep.subr.mxu0 0.0
      %9717 = vmatpush1.msra.mxu0 0.0
      %9718 = vmatprep.subr.mxu0 0.0
      %9719 = vmatpush1.msra.mxu0 0.0
      %9720 = vmatprep.subr.mxu0 0.0
      %9721 = vmatpush1.msra.mxu0 0.0
      %9722 = vmatprep.subr.mxu0 0.0
      %9723 = vmatpush1.msra.mxu0 0.0
      %9724 = vmatprep.subr.mxu0 0.0
      %9725 = vmatpush1.msra.mxu0 0.0
      %9726 = vmatprep.subr.mxu0 0.0
      %9727 = vmatpush1.msra.mxu0 0.0
      %9728 = vmatprep.subr.mxu0 0.0
      %9729 = vmatpush1.msra.mxu0 0.0
      %9730 = vmatprep.subr.mxu0 0.0
      %9731 = vmatpush1.msra.mxu0 0.0
      %9732 = vmatprep.subr.mxu0 0.0
      %9733 = vmatpush1.msra.mxu0 0.0
      %9734 = vmatprep.subr.mxu0 0.0
      %9735 = vmatpush1.msra.mxu0 0.0
      %9736 = vmatprep.subr.mxu0 0.0
      %9737 = vmatpush1.msra.mxu0 0.0
      %9738 = vmatprep.subr.mxu0 0.0
      %9739 = vmatpush1.msra.mxu0 0.0
      %9740 = vmatprep.subr.mxu0 0.0
      %9741 = vmatpush1.msra.mxu0 0.0
      %9742 = vmatprep.subr.mxu0 0.0
      %9743 = vmatpush1.msra.mxu0 0.0
      %9744 = vmatprep.subr.mxu0 0.0
      %9745 = vmatpush1.msra.mxu0 0.0
      %9746 = vmatprep.subr.mxu0 0.0
      %9747 = vmatpush1.msra.mxu0 0.0
      %9748 = vmatprep.subr.mxu0 0.0
      %9749 = vmatpush1.msra.mxu0 0.0
      %9750 = vmatprep.mubr.f32.mxu0 0.0
      %9751 = vmatmul.mubr.f32.gmra.mrb[0].mxu0 %v9675
      %v9752 = vpop.f32.mrb[0].mxu0
      %v9753 = vadd.f32 0.0, %v9752
      %v9754 = vpop.f32.mrb[0].mxu0
      %v9755 = vadd.f32 0.0, %v9754
      %9756 = vdwg.mxu0
      %9757 = vmatprep.subr.mxu0 0.0
      %9758 = vmatpush1.msra.mxu0 %v9684
      %9759 = vmatprep.subr.mxu0 0.0
      %9760 = vmatpush1.msra.mxu0 0.0
      %9761 = vmatprep.subr.mxu0 0.0
      %9762 = vmatpush1.msra.mxu0 0.0
      %9763 = vmatprep.subr.mxu0 0.0
      %9764 = vmatpush1.msra.mxu0 0.0
      %9765 = vmatprep.subr.mxu0 0.0
      %9766 = vmatpush1.msra.mxu0 0.0
      %9767 = vmatprep.subr.mxu0 0.0
      %9768 = vmatpush1.msra.mxu0 0.0
      %9769 = vmatprep.subr.mxu0 0.0
      %9770 = vmatpush1.msra.mxu0 0.0
      %9771 = vmatprep.subr.mxu0 0.0
      %9772 = vmatpush1.msra.mxu0 0.0
      %9773 = vmatprep.subr.mxu0 0.0
      %9774 = vmatpush1.msra.mxu0 0.0
      %9775 = vmatprep.subr.mxu0 0.0
      %9776 = vmatpush1.msra.mxu0 0.0
      %9777 = vmatprep.subr.mxu0 0.0
      %9778 = vmatpush1.msra.mxu0 0.0
      %9779 = vmatprep.subr.mxu0 0.0
      %9780 = vmatpush1.msra.mxu0 0.0
      %9781 = vmatprep.subr.mxu0 0.0
      %9782 = vmatpush1.msra.mxu0 0.0
      %9783 = vmatprep.subr.mxu0 0.0
      %9784 = vmatpush1.msra.mxu0 0.0
      %9785 = vmatprep.subr.mxu0 0.0
      %9786 = vmatpush1.msra.mxu0 0.0
      %9787 = vmatprep.subr.mxu0 0.0
      %9788 = vmatpush1.msra.mxu0 0.0
      %9789 = vmatprep.subr.mxu0 0.0
      %9790 = vmatpush1.msra.mxu0 0.0
      %9791 = vmatprep.subr.mxu0 0.0
      %9792 = vmatpush1.msra.mxu0 0.0
      %9793 = vmatprep.subr.mxu0 0.0
      %9794 = vmatpush1.msra.mxu0 0.0
      %9795 = vmatprep.subr.mxu0 0.0
      %9796 = vmatpush1.msra.mxu0 0.0
      %9797 = vmatprep.subr.mxu0 0.0
      %9798 = vmatpush1.msra.mxu0 0.0
      %9799 = vmatprep.subr.mxu0 0.0
      %9800 = vmatpush1.msra.mxu0 0.0
      %9801 = vmatprep.subr.mxu0 0.0
      %9802 = vmatpush1.msra.mxu0 0.0
      %9803 = vmatprep.subr.mxu0 0.0
      %9804 = vmatpush1.msra.mxu0 0.0
      %9805 = vmatprep.subr.mxu0 0.0
      %9806 = vmatpush1.msra.mxu0 0.0
      %9807 = vmatprep.subr.mxu0 0.0
      %9808 = vmatpush1.msra.mxu0 0.0
      %9809 = vmatprep.subr.mxu0 0.0
      %9810 = vmatpush1.msra.mxu0 0.0
      %9811 = vmatprep.subr.mxu0 0.0
      %9812 = vmatpush1.msra.mxu0 0.0
      %9813 = vmatprep.subr.mxu0 0.0
      %9814 = vmatpush1.msra.mxu0 0.0
      %9815 = vmatprep.subr.mxu0 0.0
      %9816 = vmatpush1.msra.mxu0 0.0
      %9817 = vmatprep.subr.mxu0 0.0
      %9818 = vmatpush1.msra.mxu0 0.0
      %9819 = vmatprep.subr.mxu0 0.0
      %9820 = vmatpush1.msra.mxu0 0.0
      %9821 = vmatprep.mubr.f32.mxu0 0.0
      %9822 = vmatmul.mubr.f32.gmra.mrb[0].mxu0 %v9675
      %v9823 = vpop.f32.mrb[0].mxu0
      %v9824 = vadd.f32 0.0, %v9823
      %v9825 = vpop.f32.mrb[0].mxu0
      %9826 = vdwg.mxu0
      %v9827 = vpack.c.bf16 %v9753, %v9753
      %v9828 = vpack.c.bf16 %v9755, %v9755
      %v9829 = vpack.c.bf16 %v9824, %v9824
      %v9830 = vld [vmem:[%s73] sm:$0xff]
      %v9831 = vld [vmem:[%s73 + $0x8] sm:$0xff]
      %v9832 = vld [vmem:[%s73 + $0x10] sm:$0xff]
      %v9833 = vld [vmem:[%s73 + $0x18] sm:$0xff]
      %v9834 = vld [vmem:[%s73 + $0x20] sm:$0xff]
      %v9835 = vld [vmem:[%s73 + $0x28] sm:$0xff]
      %v9836 = vld [vmem:[%s73 + $0x30] sm:$0xff]
      %v9837 = vld [vmem:[%s73 + $0x38] sm:$0xff]
      %v9838 = vld [vmem:[%s73 + $0x40] sm:$0xff]
      %v9839 = vld [vmem:[%s73 + $0x48] sm:$0xff]
      %v9840 = vld [vmem:[%s73 + $0x50] sm:$0xff]
      %v9841 = vld [vmem:[%s73 + $0x58] sm:$0xff]
      %v9842 = vld [vmem:[%s73 + $0x60] sm:$0xff]
      %v9843 = vld [vmem:[%s73 + $0x68] sm:$0xff]
      %v9844 = vld [vmem:[%s73 + $0x70] sm:$0xff]
      %v9845 = vld [vmem:[%s73 + $0x78] sm:$0xff]
      %v9846 = vld [vmem:[%s73 + $0x80] sm:$0xff]
      %v9847 = vld [vmem:[%s73 + $0x88] sm:$0xff]
      %v9848 = vld [vmem:[%s73 + $0x90] sm:$0xff]
      %v9849 = vld [vmem:[%s73 + $0x98] sm:$0xff]
      %v9850 = vld [vmem:[%s73 + $0xa0] sm:$0xff]
      %v9851 = vld [vmem:[%s73 + $0xa8] sm:$0xff]
      %v9852 = vld [vmem:[%s73 + $0xb0] sm:$0xff]
      %v9853 = vld [vmem:[%s73 + $0xb8] sm:$0xff]
      %v9854 = vld [vmem:[%s73 + $0xc0] sm:$0xff]
      %v9855 = vld [vmem:[%s73 + $0xc8] sm:$0xff]
      %v9856 = vld [vmem:[%s73 + $0xd0] sm:$0xff]
      %v9857 = vld [vmem:[%s73 + $0xd8] sm:$0xff]
      %v9858 = vld [vmem:[%s73 + $0xe0] sm:$0xff]
      %v9859 = vld [vmem:[%s73 + $0xe8] sm:$0xff]
      %v9860 = vld [vmem:[%s73 + $0xf0] sm:$0xff]
      %v9861 = vld [vmem:[%s73 + $0xf8] sm:$0xff]
      %v9862 = vld [vmem:[%s73 + $0x100] sm:$0xff]
      %v9863 = vld [vmem:[%s73 + $0x108] sm:$0xff]
      %v9864 = vld [vmem:[%s73 + $0x110] sm:$0xff]
      %v9865 = vld [vmem:[%s73 + $0x118] sm:$0xff]
      %v9866 = vld [vmem:[%s73 + $0x120] sm:$0xff]
      %v9867 = vld [vmem:[%s73 + $0x128] sm:$0xff]
      %v9868 = vld [vmem:[%s73 + $0x130] sm:$0xff]
      %v9869 = vld [vmem:[%s73 + $0x138] sm:$0xff]
      %v9870 = vld [vmem:[%s73 + $0x140] sm:$0xff]
      %v9871 = vld [vmem:[%s73 + $0x148] sm:$0xff]
      %v9872 = vld [vmem:[%s73 + $0x150] sm:$0xff]
      %v9873 = vld [vmem:[%s73 + $0x158] sm:$0xff]
      %v9874 = vld [vmem:[%s75] sm:$0x3]
      %v9876 = vlaneseq
      %v9877 = vshrl.u32 %v9876, 7
      %v9878 = vsub.s32 0, %v9877
      %v9879 = vrot.slane %v9874, %v9878
      %v9880 = vlaneseq
      %v9881 = vshrl.u32 %v9880, 7
      %v9882 = vsub.s32 1, %v9881
      %v9883 = vrot.slane %v9874, %v9882
      %v9930 = vunpack.c.l.b16 %v9830
      %v9931 = vunpack.c.h.b16 %v9830
      %v9932 = vunpack.c.l.b16 %v9831
      %v9933 = vunpack.c.h.b16 %v9831
      %v9934 = vunpack.c.l.b16 %v9832
      %v9935 = vunpack.c.h.b16 %v9832
      %v9936 = vunpack.c.l.b16 %v9833
      %v9937 = vunpack.c.h.b16 %v9833
      %v9938 = vunpack.c.l.b16 %v9834
      %v9939 = vunpack.c.h.b16 %v9834
      %v9940 = vunpack.c.l.b16 %v9835
      %v9941 = vunpack.c.h.b16 %v9835
      %v9942 = vunpack.c.l.b16 %v9836
      %v9943 = vunpack.c.h.b16 %v9836
      %v9944 = vunpack.c.l.b16 %v9837
      %v9945 = vunpack.c.h.b16 %v9837
      %v9946 = vunpack.c.l.b16 %v9838
      %v9947 = vunpack.c.h.b16 %v9838
      %v9948 = vunpack.c.l.b16 %v9839
      %v9949 = vunpack.c.h.b16 %v9839
      %v9950 = vunpack.c.l.b16 %v9840
      %v9951 = vunpack.c.h.b16 %v9840
      %v9952 = vunpack.c.l.b16 %v9841
      %v9953 = vunpack.c.h.b16 %v9841
      %v9954 = vunpack.c.l.b16 %v9842
      %v9955 = vunpack.c.h.b16 %v9842
      %v9956 = vunpack.c.l.b16 %v9843
      %v9957 = vunpack.c.h.b16 %v9843
      %v9958 = vunpack.c.l.b16 %v9844
      %v9959 = vunpack.c.h.b16 %v9844
      %v9960 = vunpack.c.l.b16 %v9845
      %v9961 = vunpack.c.h.b16 %v9845
      %v9962 = vunpack.c.l.b16 %v9846
      %v9963 = vunpack.c.h.b16 %v9846
      %v9964 = vunpack.c.l.b16 %v9847
      %v9965 = vunpack.c.h.b16 %v9847
      %v9966 = vunpack.c.l.b16 %v9848
      %v9967 = vunpack.c.h.b16 %v9848
      %v9968 = vunpack.c.l.b16 %v9849
      %v9969 = vunpack.c.h.b16 %v9849
      %v9970 = vunpack.c.l.b16 %v9850
      %v9971 = vunpack.c.h.b16 %v9850
      %v9972 = vunpack.c.l.b16 %v9851
      %v9973 = vunpack.c.h.b16 %v9851
      %v9974 = vunpack.c.l.b16 %v9852
      %v9975 = vunpack.c.h.b16 %v9852
      %v9976 = vunpack.c.l.b16 %v9853
      %v9977 = vunpack.c.h.b16 %v9853
      %v9978 = vunpack.c.l.b16 %v9854
      %v9979 = vunpack.c.h.b16 %v9854
      %v9980 = vunpack.c.l.b16 %v9855
      %v9981 = vunpack.c.h.b16 %v9855
      %v9982 = vunpack.c.l.b16 %v9856
      %v9983 = vunpack.c.h.b16 %v9856
      %v9984 = vunpack.c.l.b16 %v9857
      %v9985 = vunpack.c.h.b16 %v9857
      %v9986 = vunpack.c.l.b16 %v9858
      %v9987 = vunpack.c.h.b16 %v9858
      %v9988 = vunpack.c.l.b16 %v9859
      %v9989 = vunpack.c.h.b16 %v9859
      %v9990 = vunpack.c.l.b16 %v9860
      %v9991 = vunpack.c.h.b16 %v9860
      %v9992 = vunpack.c.l.b16 %v9861
      %v9993 = vunpack.c.h.b16 %v9861
      %v9994 = vunpack.c.l.b16 %v9862
      %v9995 = vunpack.c.h.b16 %v9862
      %v9996 = vunpack.c.l.b16 %v9863
      %v9997 = vunpack.c.h.b16 %v9863
      %v9998 = vunpack.c.l.b16 %v9864
      %v9999 = vunpack.c.h.b16 %v9864
      %v10000 = vunpack.c.l.b16 %v9865
      %v10001 = vunpack.c.h.b16 %v9865
      %v10002 = vunpack.c.l.b16 %v9866
      %v10003 = vunpack.c.h.b16 %v9866
      %v10004 = vunpack.c.l.b16 %v9867
      %v10005 = vunpack.c.h.b16 %v9867
      %v10006 = vunpack.c.l.b16 %v9868
      %v10007 = vunpack.c.h.b16 %v9868
      %v10008 = vunpack.c.l.b16 %v9869
      %v10009 = vunpack.c.h.b16 %v9869
      %v10010 = vunpack.c.l.b16 %v9870
      %v10011 = vunpack.c.h.b16 %v9870
      %v10012 = vunpack.c.l.b16 %v9871
      %v10013 = vunpack.c.h.b16 %v9871
      %v10014 = vunpack.c.l.b16 %v9872
      %v10015 = vunpack.c.h.b16 %v9872
      %v10016 = vunpack.c.l.b16 %v9873
      %v10017 = vunpack.c.h.b16 %v9873
      %v10018 = vpack.c.b16 %v9932, %v9930
      %v10019 = vpack.c.b16 %v9933, %v9931
      %v10020 = vpack.c.b16 %v9936, %v9934
      %v10021 = vpack.c.b16 %v9937, %v9935
      %v10022 = vpack.c.b16 %v9940, %v9938
      %v10023 = vpack.c.b16 %v9941, %v9939
      %v10024 = vpack.c.b16 %v9944, %v9942
      %v10025 = vpack.c.b16 %v9945, %v9943
      %v10026 = vpack.c.b16 %v9948, %v9946
      %v10027 = vpack.c.b16 %v9949, %v9947
      %v10028 = vpack.c.b16 %v9952, %v9950
      %v10029 = vpack.c.b16 %v9953, %v9951
      %v10030 = vpack.c.b16 %v9956, %v9954
      %v10031 = vpack.c.b16 %v9957, %v9955
      %v10032 = vpack.c.b16 %v9960, %v9958
      %v10033 = vpack.c.b16 %v9961, %v9959
      %v10034 = vpack.c.b16 %v9964, %v9962
      %v10035 = vpack.c.b16 %v9965, %v9963
      %v10036 = vpack.c.b16 %v9968, %v9966
      %v10037 = vpack.c.b16 %v9969, %v9967
      %v10038 = vpack.c.b16 %v9972, %v9970
      %v10039 = vpack.c.b16 %v9973, %v9971
      %v10040 = vpack.c.b16 %v9976, %v9974
      %v10041 = vpack.c.b16 %v9977, %v9975
      %v10042 = vpack.c.b16 %v9980, %v9978
      %v10043 = vpack.c.b16 %v9981, %v9979
      %v10044 = vpack.c.b16 %v9984, %v9982
      %v10045 = vpack.c.b16 %v9985, %v9983
      %v10046 = vpack.c.b16 %v9988, %v9986
      %v10047 = vpack.c.b16 %v9989, %v9987
      %v10048 = vpack.c.b16 %v9992, %v9990
      %v10049 = vpack.c.b16 %v9993, %v9991
      %v10050 = vpack.c.b16 %v9996, %v9994
      %v10051 = vpack.c.b16 %v9997, %v9995
      %v10052 = vpack.c.b16 %v10000, %v9998
      %v10053 = vpack.c.b16 %v10001, %v9999
      %v10054 = vpack.c.b16 %v10004, %v10002
      %v10055 = vpack.c.b16 %v10005, %v10003
      %v10056 = vpack.c.b16 %v10008, %v10006
      %v10057 = vpack.c.b16 %v10009, %v10007
      %v10058 = vpack.c.b16 %v10012, %v10010
      %v10059 = vpack.c.b16 %v10013, %v10011
      %v10060 = vpack.c.b16 %v10016, %v10014
      %v10061 = vpack.c.b16 %v10017, %v10015
      %v10107 = vsel %vm5604, %v9829, 0
      %10109 = vmatprep.subr.bf16.mxu0 %v10019
      %10110 = vmatpush1.bf16.msra.mxu0 %v10018
      %10111 = vmatprep.subr.bf16.mxu0 %v10021
      %10112 = vmatpush1.bf16.msra.mxu0 %v10020
      %10113 = vmatprep.subr.bf16.mxu0 %v10023
      %10114 = vmatpush1.bf16.msra.mxu0 %v10022
      %10115 = vmatprep.subr.bf16.mxu0 %v10025
      %10116 = vmatpush1.bf16.msra.mxu0 %v10024
      %10117 = vmatprep.subr.bf16.mxu0 %v10027
      %10118 = vmatpush1.bf16.msra.mxu0 %v10026
      %10119 = vmatprep.subr.bf16.mxu0 %v10029
      %10120 = vmatpush1.bf16.msra.mxu0 %v10028
      %10121 = vmatprep.subr.bf16.mxu0 %v10031
      %10122 = vmatpush1.bf16.msra.mxu0 %v10030
      %10123 = vmatprep.subr.bf16.mxu0 %v10033
      %10124 = vmatpush1.bf16.msra.mxu0 %v10032
      %10125 = vmatprep.subr.bf16.mxu0 %v10035
      %10126 = vmatpush1.bf16.msra.mxu0 %v10034
      %10127 = vmatprep.subr.bf16.mxu0 %v10037
      %10128 = vmatpush1.bf16.msra.mxu0 %v10036
      %10129 = vmatprep.subr.bf16.mxu0 %v10039
      %10130 = vmatpush1.bf16.msra.mxu0 %v10038
      %10131 = vmatprep.subr.bf16.mxu0 %v10041
      %10132 = vmatpush1.bf16.msra.mxu0 %v10040
      %10133 = vmatprep.subr.bf16.mxu0 %v10043
      %10134 = vmatpush1.bf16.msra.mxu0 %v10042
      %10135 = vmatprep.subr.bf16.mxu0 %v10045
      %10136 = vmatpush1.bf16.msra.mxu0 %v10044
      %10137 = vmatprep.subr.bf16.mxu0 %v10047
      %10138 = vmatpush1.bf16.msra.mxu0 %v10046
      %10139 = vmatprep.subr.bf16.mxu0 %v10049
      %10140 = vmatpush1.bf16.msra.mxu0 %v10048
      %10141 = vmatprep.mubr.bf16.mxu0 %v9828
      %10142 = vmatmul.mubr.bf16.gmra.mrb[0].mxu0 %v9827
      %v10143 = vpop.f32.mrb[0].mxu0
      %v10144 = vadd.f32 %v9879, %v10143
      %v10145 = vpop.f32.mrb[0].mxu0
      %v10146 = vadd.f32 %v9883, %v10145
      %v10147 = vpop.f32.mrb[0].mxu0
      %v10148 = vpop.f32.mrb[0].mxu0
      %10149 = vdwg.mxu0
      %10150 = vmatprep.subr.bf16.mxu0 %v10051
      %10151 = vmatpush1.bf16.msra.mxu0 %v10050
      %10152 = vmatprep.subr.bf16.mxu0 %v10053
      %10153 = vmatpush1.bf16.msra.mxu0 %v10052
      %10154 = vmatprep.subr.bf16.mxu0 %v10055
      %10155 = vmatpush1.bf16.msra.mxu0 %v10054
      %10156 = vmatprep.subr.bf16.mxu0 %v10057
      %10157 = vmatpush1.bf16.msra.mxu0 %v10056
      %10158 = vmatprep.subr.bf16.mxu0 %v10059
      %10159 = vmatpush1.bf16.msra.mxu0 %v10058
      %10160 = vmatprep.subr.bf16.mxu0 %v10061
      %10161 = vmatpush1.bf16.msra.mxu0 %v10060
      %10162 = vmatprep.subr.bf16.mxu0 0
      %10163 = vmatpush1.bf16.msra.mxu0 0
      %10164 = vmatprep.subr.bf16.mxu0 0
      %10165 = vmatpush1.bf16.msra.mxu0 0
      %10166 = vmatprep.subr.bf16.mxu0 0
      %10167 = vmatpush1.bf16.msra.mxu0 0
      %10168 = vmatprep.subr.bf16.mxu0 0
      %10169 = vmatpush1.bf16.msra.mxu0 0
      %10170 = vmatprep.subr.bf16.mxu0 0
      %10171 = vmatpush1.bf16.msra.mxu0 0
      %10172 = vmatprep.subr.bf16.mxu0 0
      %10173 = vmatpush1.bf16.msra.mxu0 0
      %10174 = vmatprep.subr.bf16.mxu0 0
      %10175 = vmatpush1.bf16.msra.mxu0 0
      %10176 = vmatprep.subr.bf16.mxu0 0
      %10177 = vmatpush1.bf16.msra.mxu0 0
      %10178 = vmatprep.subr.bf16.mxu0 0
      %10179 = vmatpush1.bf16.msra.mxu0 0
      %10180 = vmatprep.subr.bf16.mxu0 0
      %10181 = vmatpush1.bf16.msra.mxu0 0
      %10182 = vmatprep.mubr.bf16.mxu0 0
      %10183 = vmatmul.mubr.bf16.gmra.mrb[0].mxu0 %v10107
      %v10184 = vpop.f32.mrb[0].mxu0
      %v10185 = vadd.f32 %v10144, %v10184
      %v10186 = vpop.f32.mrb[0].mxu0
      %v10187 = vadd.f32 %v10146, %v10186
      %v10188 = vpop.f32.mrb[0].mxu0
      %v10189 = vpop.f32.mrb[0].mxu0
      %10190 = vdwg.mxu0
      %v10191 = vmax.f32 %v10185, 0.0
      %v10192 = vmax.f32 %v10187, 0.0
      %v10193 = vpack.c.bf16 %v10191, %v10191
      %v10194 = vpack.c.bf16 %v10192, %v10192
      %v10195 = vld [vmem:[%s77] sm:$0xf]
      %v10196 = vld [vmem:[%s77 + $0x4] sm:$0xf]
      %v10197 = vld [vmem:[%s77 + $0x8] sm:$0xf]
      %v10198 = vld [vmem:[%s77 + $0xc] sm:$0xf]
      %v10199 = vld [vmem:[%s77 + $0x10] sm:$0xf]
      %v10200 = vld [vmem:[%s77 + $0x14] sm:$0xf]
      %v10201 = vld [vmem:[%s77 + $0x18] sm:$0xf]
      %v10202 = vld [vmem:[%s77 + $0x1c] sm:$0xf]
      %v10203 = vld [vmem:[%s77 + $0x20] sm:$0xf]
      %v10204 = vld [vmem:[%s77 + $0x24] sm:$0xf]
      %v10205 = vld [vmem:[%s77 + $0x28] sm:$0xf]
      %v10206 = vld [vmem:[%s77 + $0x2c] sm:$0xf]
      %v10207 = vld [vmem:[%s77 + $0x30] sm:$0xf]
      %v10208 = vld [vmem:[%s77 + $0x34] sm:$0xf]
      %v10209 = vld [vmem:[%s77 + $0x38] sm:$0xf]
      %v10210 = vld [vmem:[%s77 + $0x3c] sm:$0xf]
      %v10211 = vld [vmem:[%s77 + $0x40] sm:$0xf]
      %v10212 = vld [vmem:[%s77 + $0x44] sm:$0xf]
      %v10213 = vld [vmem:[%s77 + $0x48] sm:$0xf]
      %v10214 = vld [vmem:[%s77 + $0x4c] sm:$0xf]
      %v10215 = vld [vmem:[%s77 + $0x50] sm:$0xf]
      %v10216 = vld [vmem:[%s77 + $0x54] sm:$0xf]
      %v10217 = vld [vmem:[%s77 + $0x58] sm:$0xf]
      %v10218 = vld [vmem:[%s77 + $0x5c] sm:$0xf]
      %v10219 = vld [vmem:[%s77 + $0x60] sm:$0xf]
      %v10220 = vld [vmem:[%s77 + $0x64] sm:$0xf]
      %v10221 = vld [vmem:[%s77 + $0x68] sm:$0xf]
      %v10222 = vld [vmem:[%s77 + $0x6c] sm:$0xf]
      %v10223 = vld [vmem:[%s77 + $0x70] sm:$0xf]
      %v10224 = vld [vmem:[%s77 + $0x74] sm:$0xf]
      %v10225 = vld [vmem:[%s77 + $0x78] sm:$0xf]
      %v10226 = vld [vmem:[%s77 + $0x7c] sm:$0xf]
      %v10227 = vld [vmem:[%s79] sm:$0x1]
      %v10229 = vlaneseq
      %v10230 = vshrl.u32 %v10229, 7
      %v10231 = vsub.s32 0, %v10230
      %v10232 = vrot.slane %v10227, %v10231
      %v10266 = vunpack.c.l.b16 %v10195
      %v10267 = vunpack.c.l.b16 %v10196
      %v10268 = vunpack.c.l.b16 %v10197
      %v10269 = vunpack.c.l.b16 %v10198
      %v10270 = vunpack.c.l.b16 %v10199
      %v10271 = vunpack.c.l.b16 %v10200
      %v10272 = vunpack.c.l.b16 %v10201
      %v10273 = vunpack.c.l.b16 %v10202
      %v10274 = vunpack.c.l.b16 %v10203
      %v10275 = vunpack.c.l.b16 %v10204
      %v10276 = vunpack.c.l.b16 %v10205
      %v10277 = vunpack.c.l.b16 %v10206
      %v10278 = vunpack.c.l.b16 %v10207
      %v10279 = vunpack.c.l.b16 %v10208
      %v10280 = vunpack.c.l.b16 %v10209
      %v10281 = vunpack.c.l.b16 %v10210
      %v10282 = vunpack.c.l.b16 %v10211
      %v10283 = vunpack.c.l.b16 %v10212
      %v10284 = vunpack.c.l.b16 %v10213
      %v10285 = vunpack.c.l.b16 %v10214
      %v10286 = vunpack.c.l.b16 %v10215
      %v10287 = vunpack.c.l.b16 %v10216
      %v10288 = vunpack.c.l.b16 %v10217
      %v10289 = vunpack.c.l.b16 %v10218
      %v10290 = vunpack.c.l.b16 %v10219
      %v10291 = vunpack.c.l.b16 %v10220
      %v10292 = vunpack.c.l.b16 %v10221
      %v10293 = vunpack.c.l.b16 %v10222
      %v10294 = vunpack.c.l.b16 %v10223
      %v10295 = vunpack.c.l.b16 %v10224
      %v10296 = vunpack.c.l.b16 %v10225
      %v10297 = vunpack.c.l.b16 %v10226
      %v10298 = vpack.c.b16 %v10267, %v10266
      %v10299 = vpack.c.b16 %v10269, %v10268
      %v10300 = vpack.c.b16 %v10271, %v10270
      %v10301 = vpack.c.b16 %v10273, %v10272
      %v10302 = vpack.c.b16 %v10275, %v10274
      %v10303 = vpack.c.b16 %v10277, %v10276
      %v10304 = vpack.c.b16 %v10279, %v10278
      %v10305 = vpack.c.b16 %v10281, %v10280
      %v10306 = vpack.c.b16 %v10283, %v10282
      %v10307 = vpack.c.b16 %v10285, %v10284
      %v10308 = vpack.c.b16 %v10287, %v10286
      %v10309 = vpack.c.b16 %v10289, %v10288
      %v10310 = vpack.c.b16 %v10291, %v10290
      %v10311 = vpack.c.b16 %v10293, %v10292
      %v10312 = vpack.c.b16 %v10295, %v10294
      %v10313 = vpack.c.b16 %v10297, %v10296
      %10330 = vmatprep.subr.bf16.mxu0 0
      %10331 = vmatpush1.bf16.msra.mxu0 %v10298
      %10332 = vmatprep.subr.bf16.mxu0 0
      %10333 = vmatpush1.bf16.msra.mxu0 %v10299
      %10334 = vmatprep.subr.bf16.mxu0 0
      %10335 = vmatpush1.bf16.msra.mxu0 %v10300
      %10336 = vmatprep.subr.bf16.mxu0 0
      %10337 = vmatpush1.bf16.msra.mxu0 %v10301
      %10338 = vmatprep.subr.bf16.mxu0 0
      %10339 = vmatpush1.bf16.msra.mxu0 %v10302
      %10340 = vmatprep.subr.bf16.mxu0 0
      %10341 = vmatpush1.bf16.msra.mxu0 %v10303
      %10342 = vmatprep.subr.bf16.mxu0 0
      %10343 = vmatpush1.bf16.msra.mxu0 %v10304
      %10344 = vmatprep.subr.bf16.mxu0 0
      %10345 = vmatpush1.bf16.msra.mxu0 %v10305
      %10346 = vmatprep.subr.bf16.mxu0 0
      %10347 = vmatpush1.bf16.msra.mxu0 %v10306
      %10348 = vmatprep.subr.bf16.mxu0 0
      %10349 = vmatpush1.bf16.msra.mxu0 %v10307
      %10350 = vmatprep.subr.bf16.mxu0 0
      %10351 = vmatpush1.bf16.msra.mxu0 %v10308
      %10352 = vmatprep.subr.bf16.mxu0 0
      %10353 = vmatpush1.bf16.msra.mxu0 %v10309
      %10354 = vmatprep.subr.bf16.mxu0 0
      %10355 = vmatpush1.bf16.msra.mxu0 %v10310
      %10356 = vmatprep.subr.bf16.mxu0 0
      %10357 = vmatpush1.bf16.msra.mxu0 %v10311
      %10358 = vmatprep.subr.bf16.mxu0 0
      %10359 = vmatpush1.bf16.msra.mxu0 %v10312
      %10360 = vmatprep.subr.bf16.mxu0 0
      %10361 = vmatpush1.bf16.msra.mxu0 %v10313
      %10362 = vmatprep.mubr.bf16.mxu0 %v10194
      %10363 = vmatmul.mubr.bf16.gmra.mrb[0].mxu0 %v10193
      %v10364 = vpop.f32.mrb[0].mxu0
      %v10365 = vadd.f32 %v10232, %v10364
      %v10366 = vpop.f32.mrb[0].mxu0
      %v10367 = vpop.f32.mrb[0].mxu0
      %v10368 = vpop.f32.mrb[0].mxu0
      %10369 = vdwg.mxu0
      %vm10370 = vcmask 80896
      %10371 = vst.msk [vmem:[%s1210] sm:$0xff] %vm10370, %v10365
      %p10372 = scmp.lt.s32.totalorder %s92, 1
      %s10373 = scalar_select %p10372, %s92, 1
      %s10374 = smul.addr %s10373, 8
      %s10375 = scalar_lea.vmem %s81, %s10374
      // Predicated region
      $region181: #{forward.1} parent=179 // pred_check
        %p10376 = pneg %p955
      $region182: #{forward.1} parent=179 // pred_check_branch
        %10378 = sbr.rel (%p10376) target = $region184
      $region183: #{forward.1} parent=179 // pred_region
        _
      $region184: #{forward.1} parent=179 // pred_fallthru
        _
    $region180: #{forward.1} parent=5 // pred_fallthru
      _
    %p10379 = scmp.le.s32.totalorder 2, %s87
    // Predicated region
    $region185: #{forward.1} parent=5 // pred_check
      %p10380 = pneg %p10379
    $region186: #{forward.1} parent=5 // pred_check_branch
      %10382 = sbr.rel (%p10380) target = $region188
    $region187: #{forward.1} parent=5 // pred_region
      %s10383 = ssub.s32 %s87, 2
      // Predicated region
      $region189: #{forward.1} parent=187 // pred_check
        %p10384 = pneg %p961
      $region190: #{forward.1} parent=187 // pred_check_branch
        %10386 = sbr.rel (%p10384) target = $region192
      $region191: #{forward.1} parent=187 // pred_region
        %p10387 = scmp.lt.s32.totalorder %s93, 1
        %s10388 = scalar_select %p10387, %s93, 1
        %s10389 = smul.addr %s10388, 8
        %s10390 = scalar_lea.vmem %s81, %s10389
      $region192: #{forward.1} parent=187 // pred_fallthru
        _
    $region188: #{forward.1} parent=5 // pred_fallthru
      _
  $region6: #{forward.1} parent=0 // loop_footer
    %s91 = sadd.s32 1, %s87
  $region7: #{forward.1} parent=0 // loop_footer_branch
    %86 = sbr.rel target = $region3
  $region8: #{forward.1} parent=0 // loop_exit
    _

</llo_original>
